<compile_context>
chip_gen: v7x
topology: tpu7x:2x2x1
jax: 0.10.0
libtpu: 0.0.40
codegen_flags: <defaults>
</compile_context>

<pallas_src>
import jax
import jax.numpy as jnp
from jax.experimental import pallas as pl
from jax.experimental.pallas import tpu as pltpu

IN_CHANNELS = [256, 512, 1024, 512, 256, 256, 256, 256, 256]
OUT_CHANNELS = [60, 80, 100, 80, 60, 50, 40, 30, 20]

_TCO = 128                            # output-channel tile (lane-dense; max cout=100)
_PATCH_TILE_BYTES = 4 * 1024 * 1024   # bf16 patch-tile VMEM budget per grid step


def _round_up(a, b):
    return -(-a // b) * b


def _pick_tm(m, kc):
    """Rows of the corner-im2col matrix per grid step, sized to the VMEM budget."""
    rows = _PATCH_TILE_BYTES // (kc * 2)            # bf16 bytes per row = 2*kc
    rows = max(16, min(512, (rows // 16) * 16))
    m16 = _round_up(m, 16)
    return m16 if m16 <= rows else rows


def _head_groups():
    """Heads grouped by Cin (static): [(256,(0,4,5,6,7,8)), (512,(1,3)), (1024,(2,))]."""
    groups = {}
    for idx, cin in enumerate(IN_CHANNELS):
        groups.setdefault(cin, []).append(idx)
    return [(cin, tuple(ids)) for cin, ids in groups.items()]


# --------------------- conv3x3(+bias+ReLU) as one long-K matmul ---------------------

def _conv_heads_kernel(p_ref, w_ref, b_ref, o_ref):
    """out = relu(patches @ W + b): one long-K bf16 matmul, f32 accumulation.

    p_ref: (TM, 9*Cin)  bf16 corner im2col tile
    w_ref: (9*Cin, 128) bf16 packed weights (Cout zero-padded to 128 lanes)
    b_ref: (1, 128)     f32 packed bias
    o_ref: (TM, 128)    f32 output tile (lane-dense, unmasked stores)
    """
    acc = jnp.dot(p_ref[...], w_ref[...], preferred_element_type=jnp.float32)
    o_ref[...] = jnp.maximum(acc + b_ref[...], 0.0)


def conv_heads_relu(patches_g, wm_g, b_g):
    """Batched per-head conv-as-matmul over the sampled corner rows.

    patches_g: (G, M, 9*Cin) bf16   (one im2col row per bilinear corner)
    wm_g:      (G, 9*Cin, 128) bf16 (prepacked, hoisted out of the forward)
    b_g:       (G, 1, 128) f32
    Returns    (G, M, 128) f32 = relu(patches @ W + b) per head.
    """
    g, m, kc = patches_g.shape
    tm = _pick_tm(m, kc)
    m_pad = _round_up(m, tm)
    if m_pad > m:
        patches_g = jnp.pad(patches_g, ((0, 0), (0, m_pad - m), (0, 0)))

    out = pl.pallas_call(
        _conv_heads_kernel,
        out_shape=jax.ShapeDtypeStruct((g, m_pad, _TCO), jnp.float32),
        grid=(g, m_pad // tm),
        in_specs=[
            pl.BlockSpec((None, tm, kc), lambda h, i: (h, i, 0)),    # patches stream
            pl.BlockSpec((None, kc, _TCO), lambda h, i: (h, 0, 0)),  # weights per head
            pl.BlockSpec((None, 1, _TCO), lambda h, i: (h, 0, 0)),   # bias per head
        ],
        out_specs=pl.BlockSpec((None, tm, _TCO), lambda h, i: (h, i, 0)),
        compiler_params=pltpu.CompilerParams(
            dimension_semantics=("parallel", "parallel"),  # head axis splits across TCs
            vmem_limit_bytes=48 * 1024 * 1024),
    )(patches_g, wm_g, b_g)
    # padded rows (relu(bias)) are sliced off; lane dim stays 128-dense.
    return out[:, :m, :]


# --------------- bilinear-corner gather (glue; data-dependent, tiny) ----------------

def _gather_corner_patches(x_nhwc, gx, gy):
    """For each box, the 4 bilinear-corner pixels' 3x3xCin im2col rows + weights.

    x_nhwc: (N,H,W,Cin) f32; gx, gy: (N,B) normalized coords in [-1,1]
    (grid_sample convention: align_corners=False, zeros padding).
    Returns patches (N*B*4, 9*Cin) bf16 and corner weights (N,B,4) f32.
    Out-of-bounds corners get weight 0 (their clipped patch is harmless).
    """
    n, h, w, cin = x_nhwc.shape
    bnum = gx.shape[1]

    ix = ((gx + 1.0) * w - 1.0) * 0.5
    iy = ((gy + 1.0) * h - 1.0) * 0.5
    x0 = jnp.floor(ix)
    y0 = jnp.floor(iy)

    dx = jnp.array([0.0, 1.0, 0.0, 1.0], jnp.float32)     # corners (dy,dx)=(0,0),(0,1),(1,0),(1,1)
    dy = jnp.array([0.0, 0.0, 1.0, 1.0], jnp.float32)
    xc = x0[:, :, None] + dx                               # (N,B,4)
    yc = y0[:, :, None] + dy
    wx = 1.0 - jnp.abs(ix[:, :, None] - xc)
    wy = 1.0 - jnp.abs(iy[:, :, None] - yc)
    valid = (xc >= 0) & (xc <= w - 1) & (yc >= 0) & (yc <= h - 1)
    cw = wx * wy * valid.astype(jnp.float32)               # (N,B,4)

    xi = jnp.clip(xc, 0, w - 1).astype(jnp.int32)
    yi = jnp.clip(yc, 0, h - 1).astype(jnp.int32)

    # 3x3 taps of pixel (yi,xi) live at rows yi..yi+2, cols xi..xi+2 of the
    # zero-padded map; flatten to indices into (H+2)*(W+2).
    ky = jnp.repeat(jnp.arange(3, dtype=jnp.int32), 3)     # [0,0,0,1,1,1,2,2,2]
    kx = jnp.tile(jnp.arange(3, dtype=jnp.int32), 3)       # [0,1,2,0,1,2,0,1,2]
    wp = w + 2
    flat = (yi[..., None] + ky) * wp + (xi[..., None] + kx)  # (N,B,4,9)

    xp = jnp.pad(x_nhwc.astype(jnp.bfloat16), ((0, 0), (1, 1), (1, 1), (0, 0)))
    xp_flat = xp.reshape(n, (h + 2) * wp, cin)
    g = jnp.take_along_axis(xp_flat, flat.reshape(n, bnum * 4 * 9)[:, :, None], axis=1)
    patches = g.reshape(n * bnum * 4, 9 * cin)             # (ky,kx,cin) row order = HWIO
    return patches, cw


# ------------------------------ params & packing ------------------------------------

def init_params(key):
    keys = jax.random.split(key, len(IN_CHANNELS))
    params = []
    for k, ci, co in zip(keys, IN_CHANNELS, OUT_CHANNELS):
        kw_key, kb_key = jax.random.split(k)
        fan_in = 3 * 3 * ci
        bound = 1.0 / (fan_in ** 0.5)
        w = jax.random.uniform(kw_key, (3, 3, ci, co), jnp.float32, -bound, bound)
        b = jax.random.uniform(kb_key, (co,), jnp.float32, -bound, bound)
        params.append((w, b))
    return params


def prepare_packed_params(params):
    """One-time weight packing (hoisted out of the forward, per perf review).

    Per head: flatten HWIO (3,3,Cin,Cout) -> (9*Cin, Cout), zero-pad Cout to
    128 lanes, cast to bf16; stack heads that share Cin so each group is one
    pallas_call.  Returns [(wm_g (G,9*Cin,128) bf16, b_g (G,1,128) f32), ...]
    in `_head_groups()` order.
    """
    packed = []
    for cin, head_ids in _head_groups():
        kc = 9 * cin
        wms, bs = [], []
        for hid in head_ids:
            w, b = params[hid]
            cout = w.shape[-1]
            wm = jnp.zeros((kc, _TCO), jnp.bfloat16)
            wm = wm.at[:, :cout].set(w.reshape(kc, cout).astype(jnp.bfloat16))
            b2 = jnp.zeros((1, _TCO), jnp.float32).at[:, :cout].set(b)
            wms.append(wm)
            bs.append(b2)
        packed.append((jnp.stack(wms), jnp.stack(bs)))
    return packed


# ----------------------------------- forward ----------------------------------------

def selector_forward(sources_nchw, bbox, packed_params):
    """sources: list of 9 NCHW maps; bbox: (N,B,1,1,2) in [-1,1]; packed_params
    from prepare_packed_params.  Returns (N, B, sum(OUT_CHANNELS))."""
    gx = bbox[:, :, 0, 0, 0]
    gy = bbox[:, :, 0, 0, 1]
    n, bnum = gx.shape

    head_out = [None] * len(IN_CHANNELS)
    for (cin, head_ids), (wm_g, b_g) in zip(_head_groups(), packed_params):
        patch_list, cw_list = [], []
        for hid in head_ids:
            xh = jnp.transpose(sources_nchw[hid], (0, 2, 3, 1)).astype(jnp.float32)
            p, cw = _gather_corner_patches(xh, gx, gy)       # (N*B*4, 9*Cin), (N,B,4)
            patch_list.append(p)
            cw_list.append(cw)
        out_g = conv_heads_relu(jnp.stack(patch_list), wm_g, b_g)  # (G, N*B*4, 128)
        for gi, hid in enumerate(head_ids):
            corners = out_g[gi].reshape(n, bnum, 4, _TCO)
            # bilinear combine over the 4 corners; stays lane-dense (128 wide)
            head_out[hid] = jnp.sum(corners * cw_list[gi][..., None], axis=2)
    # slice to the real Cout only at the very end (padded lanes are exactly 0)
    return jnp.concatenate(
        [head_out[i][..., :co] for i, co in enumerate(OUT_CHANNELS)], axis=-1)


# ----------------------------- pure-JAX reference -----------------------------------

def _grid_sample_ref(feat, gx, gy):
    n, h, w, c = feat.shape
    bnum = gx.shape[1]
    ix = ((gx + 1.0) * w - 1.0) * 0.5
    iy = ((gy + 1.0) * h - 1.0) * 0.5
    x0 = jnp.floor(ix)
    y0 = jnp.floor(iy)
    flat = feat.reshape(n, h * w, c)
    out = jnp.zeros((n, bnum, c), jnp.float32)
    for dx in (0.0, 1.0):
        for dy in (0.0, 1.0):
            xc = x0 + dx
            yc = y0 + dy
            wxv = 1.0 - jnp.abs(ix - xc)
            wyv = 1.0 - jnp.abs(iy - yc)
            valid = (xc >= 0) & (xc <= w - 1) & (yc >= 0) & (yc <= h - 1)
            xi = jnp.clip(xc, 0, w - 1).astype(jnp.int32)
            yi = jnp.clip(yc, 0, h - 1).astype(jnp.int32)
            vals = jnp.take_along_axis(flat, (yi * w + xi)[:, :, None], axis=1)
            out = out + (wxv * wyv * valid.astype(jnp.float32))[:, :, None] * vals
    return out


def _reference_forward(sources_nchw, bbox, params):
    """f32 dense conv over the whole map + dense grid_sample (spec semantics)."""
    gx = bbox[:, :, 0, 0, 0]
    gy = bbox[:, :, 0, 0, 1]
    outs = []
    for x, (w, b) in zip(sources_nchw, params):
        y = jax.lax.conv_general_dilated(
            x, w, window_strides=(1, 1), padding=((1, 1), (1, 1)),
            dimension_numbers=("NCHW", "HWIO", "NCHW"),
            precision=jax.lax.Precision.HIGHEST)
        y = jnp.maximum(y + b[None, :, None, None], 0.0)
        outs.append(_grid_sample_ref(jnp.transpose(y, (0, 2, 3, 1)), gx, gy))
    return jnp.concatenate(outs, axis=-1)


# ------------------------------------- main ------------------------------------------

if __name__ == "__main__":
    key = jax.random.PRNGKey(0)
    pkey, skey, bkey = jax.random.split(key, 3)
    params = init_params(pkey)
    packed = prepare_packed_params(params)      # hoisted one-time weight packing

    n, num_boxes = 2, 4
    spatial = [8, 8, 4, 4, 4, 2, 2, 2, 1]       # small SSD-like pyramid
    skeys = jax.random.split(skey, len(IN_CHANNELS))
    sources = [jax.random.normal(k, (n, ci, s, s), jnp.float32)
               for k, ci, s in zip(skeys, IN_CHANNELS, spatial)]
    bbox = jax.random.uniform(bkey, (n, num_boxes, 1, 1, 2), jnp.float32,
                              -1.0, 1.0)

    fwd = jax.jit(selector_forward)
    out = fwd(sources, bbox, packed)
    jax.block_until_ready(out)

    assert out.shape == (n, num_boxes, sum(OUT_CHANNELS))   # (2, 4, 520)
    assert bool(jnp.all(jnp.isfinite(out)))

    ref = jax.jit(_reference_forward)(sources, bbox, params)
    jax.block_until_ready(ref)
    # bf16 MXU inputs with f32 accumulation vs f32 reference
    assert bool(jnp.allclose(out, ref, atol=5e-2, rtol=5e-2))
    print("KERNEL_OK")
</pallas_src>

<mosaic_0001>
module attributes {stable_mosaic.version = 11 : i64} {
  func.func @_conv_heads_kernel(%arg0: i32, %arg1: i32, %arg2: memref<1x32x2304xbf16, #tpu.memory_space<vmem>>, %arg3: memref<1x2304x128xbf16, #tpu.memory_space<vmem>>, %arg4: memref<1x1x128xf32, #tpu.memory_space<vmem>>, %arg5: memref<1x32x128xf32, #tpu.memory_space<vmem>>) attributes {dimension_semantics = [#tpu.dimension_semantics<parallel>, #tpu.dimension_semantics<parallel>], iteration_bounds = array<i64: 6, 1>, scalar_prefetch = 0 : i64, scratch_operands = 0 : i64, tpu.core_type = #tpu.core_type<tc>, window_params = [{transform_indices = @transform_0, window_bounds = array<i64: 1, 32, 2304>}, {transform_indices = @transform_1, window_bounds = array<i64: 1, 2304, 128>}, {transform_indices = @transform_2, window_bounds = array<i64: 1, 1, 128>}, {transform_indices = @transform_3, window_bounds = array<i64: 1, 32, 128>}]} {
    %c0 = arith.constant 0 : index
    %c0_0 = arith.constant 0 : index
    %c0_1 = arith.constant 0 : index
    %0 = vector.load %arg2[%c0, %c0_0, %c0_1] : memref<1x32x2304xbf16, #tpu.memory_space<vmem>>, vector<1x32x2304xbf16>
    %1 = vector.shape_cast %0 : vector<1x32x2304xbf16> to vector<32x2304xbf16>
    %c0_2 = arith.constant 0 : index
    %c0_3 = arith.constant 0 : index
    %c0_4 = arith.constant 0 : index
    %2 = vector.load %arg3[%c0_2, %c0_3, %c0_4] : memref<1x2304x128xbf16, #tpu.memory_space<vmem>>, vector<1x2304x128xbf16>
    %3 = vector.shape_cast %2 : vector<1x2304x128xbf16> to vector<2304x128xbf16>
    %cst = arith.constant dense<0.000000e+00> : vector<32x128xf32>
    %4 = tpu.matmul %1, %3, %cst {dimension_numbers = #tpu.dot_dimension_numbers<[1], [0], [0], [1], [0, 0, 1, 1], [], []>} : vector<32x2304xbf16>, vector<2304x128xbf16>, vector<32x128xf32> -> vector<32x128xf32>
    %c0_5 = arith.constant 0 : index
    %c0_6 = arith.constant 0 : index
    %c0_7 = arith.constant 0 : index
    %5 = vector.load %arg4[%c0_5, %c0_6, %c0_7] : memref<1x1x128xf32, #tpu.memory_space<vmem>>, vector<1x1x128xf32>
    %6 = vector.shape_cast %5 : vector<1x1x128xf32> to vector<1x128xf32>
    %7 = vector.broadcast %6 : vector<1x128xf32> to vector<32x128xf32>
    %8 = arith.addf %4, %7 : vector<32x128xf32>
    %cst_8 = arith.constant 0.000000e+00 : f32
    %9 = vector.broadcast %cst_8 : f32 to vector<32x128xf32>
    %10 = arith.maximumf %8, %9 : vector<32x128xf32>
    %c0_9 = arith.constant 0 : index
    %c0_10 = arith.constant 0 : index
    %c0_11 = arith.constant 0 : index
    %11 = vector.load %arg5[%c0_9, %c0_10, %c0_11] : memref<1x32x128xf32, #tpu.memory_space<vmem>>, vector<1x32x128xf32>
    %12 = vector.shape_cast %11 : vector<1x32x128xf32> to vector<32x128xf32>
    %13 = vector.shape_cast %10 : vector<32x128xf32> to vector<1x32x128xf32>
    tpu.vector_store %arg5[%c0_9, %c0_10, %c0_11], %13 {strides = array<i32>} : memref<1x32x128xf32, #tpu.memory_space<vmem>>, vector<1x32x128xf32>,
    return
  }
  func.func @transform_0(%arg0: i32, %arg1: i32) -> (i32, i32, i32) {
    %c0_i32 = arith.constant 0 : i32
    %c0_i32_0 = arith.constant 0 : i32
    return %arg0, %arg1, %c0_i32 : i32, i32, i32
  }
  func.func @transform_1(%arg0: i32, %arg1: i32) -> (i32, i32, i32) {
    %c0_i32 = arith.constant 0 : i32
    %c0_i32_0 = arith.constant 0 : i32
    %c0_i32_1 = arith.constant 0 : i32
    return %arg0, %c0_i32, %c0_i32_0 : i32, i32, i32
  }
  func.func @transform_2(%arg0: i32, %arg1: i32) -> (i32, i32, i32) {
    %c0_i32 = arith.constant 0 : i32
    %c0_i32_0 = arith.constant 0 : i32
    %c0_i32_1 = arith.constant 0 : i32
    return %arg0, %c0_i32, %c0_i32_0 : i32, i32, i32
  }
  func.func @transform_3(%arg0: i32, %arg1: i32) -> (i32, i32, i32) {
    %c0_i32 = arith.constant 0 : i32
    %c0_i32_0 = arith.constant 0 : i32
    return %arg0, %arg1, %c0_i32 : i32, i32, i32
  }
}

module attributes {stable_mosaic.version = 11 : i64} {
  func.func @_conv_heads_kernel(%arg0: i32, %arg1: i32, %arg2: memref<1x32x4608xbf16, #tpu.memory_space<vmem>>, %arg3: memref<1x4608x128xbf16, #tpu.memory_space<vmem>>, %arg4: memref<1x1x128xf32, #tpu.memory_space<vmem>>, %arg5: memref<1x32x128xf32, #tpu.memory_space<vmem>>) attributes {dimension_semantics = [#tpu.dimension_semantics<parallel>, #tpu.dimension_semantics<parallel>], iteration_bounds = array<i64: 2, 1>, scalar_prefetch = 0 : i64, scratch_operands = 0 : i64, tpu.core_type = #tpu.core_type<tc>, window_params = [{transform_indices = @transform_0, window_bounds = array<i64: 1, 32, 4608>}, {transform_indices = @transform_1, window_bounds = array<i64: 1, 4608, 128>}, {transform_indices = @transform_2, window_bounds = array<i64: 1, 1, 128>}, {transform_indices = @transform_3, window_bounds = array<i64: 1, 32, 128>}]} {
    %c0 = arith.constant 0 : index
    %c0_0 = arith.constant 0 : index
    %c0_1 = arith.constant 0 : index
    %0 = vector.load %arg2[%c0, %c0_0, %c0_1] : memref<1x32x4608xbf16, #tpu.memory_space<vmem>>, vector<1x32x4608xbf16>
    %1 = vector.shape_cast %0 : vector<1x32x4608xbf16> to vector<32x4608xbf16>
    %c0_2 = arith.constant 0 : index
    %c0_3 = arith.constant 0 : index
    %c0_4 = arith.constant 0 : index
    %2 = vector.load %arg3[%c0_2, %c0_3, %c0_4] : memref<1x4608x128xbf16, #tpu.memory_space<vmem>>, vector<1x4608x128xbf16>
    %3 = vector.shape_cast %2 : vector<1x4608x128xbf16> to vector<4608x128xbf16>
    %cst = arith.constant dense<0.000000e+00> : vector<32x128xf32>
    %4 = tpu.matmul %1, %3, %cst {dimension_numbers = #tpu.dot_dimension_numbers<[1], [0], [0], [1], [0, 0, 1, 1], [], []>} : vector<32x4608xbf16>, vector<4608x128xbf16>, vector<32x128xf32> -> vector<32x128xf32>
    %c0_5 = arith.constant 0 : index
    %c0_6 = arith.constant 0 : index
    %c0_7 = arith.constant 0 : index
    %5 = vector.load %arg4[%c0_5, %c0_6, %c0_7] : memref<1x1x128xf32, #tpu.memory_space<vmem>>, vector<1x1x128xf32>
    %6 = vector.shape_cast %5 : vector<1x1x128xf32> to vector<1x128xf32>
    %7 = vector.broadcast %6 : vector<1x128xf32> to vector<32x128xf32>
    %8 = arith.addf %4, %7 : vector<32x128xf32>
    %cst_8 = arith.constant 0.000000e+00 : f32
    %9 = vector.broadcast %cst_8 : f32 to vector<32x128xf32>
    %10 = arith.maximumf %8, %9 : vector<32x128xf32>
    %c0_9 = arith.constant 0 : index
    %c0_10 = arith.constant 0 : index
    %c0_11 = arith.constant 0 : index
    %11 = vector.load %arg5[%c0_9, %c0_10, %c0_11] : memref<1x32x128xf32, #tpu.memory_space<vmem>>, vector<1x32x128xf32>
    %12 = vector.shape_cast %11 : vector<1x32x128xf32> to vector<32x128xf32>
    %13 = vector.shape_cast %10 : vector<32x128xf32> to vector<1x32x128xf32>
    tpu.vector_store %arg5[%c0_9, %c0_10, %c0_11], %13 {strides = array<i32>} : memref<1x32x128xf32, #tpu.memory_space<vmem>>, vector<1x32x128xf32>,
    return
  }
  func.func @transform_0(%arg0: i32, %arg1: i32) -> (i32, i32, i32) {
    %c0_i32 = arith.constant 0 : i32
    %c0_i32_0 = arith.constant 0 : i32
    return %arg0, %arg1, %c0_i32 : i32, i32, i32
  }
  func.func @transform_1(%arg0: i32, %arg1: i32) -> (i32, i32, i32) {
    %c0_i32 = arith.constant 0 : i32
    %c0_i32_0 = arith.constant 0 : i32
    %c0_i32_1 = arith.constant 0 : i32
    return %arg0, %c0_i32, %c0_i32_0 : i32, i32, i32
  }
  func.func @transform_2(%arg0: i32, %arg1: i32) -> (i32, i32, i32) {
    %c0_i32 = arith.constant 0 : i32
    %c0_i32_0 = arith.constant 0 : i32
    %c0_i32_1 = arith.constant 0 : i32
    return %arg0, %c0_i32, %c0_i32_0 : i32, i32, i32
  }
  func.func @transform_3(%arg0: i32, %arg1: i32) -> (i32, i32, i32) {
    %c0_i32 = arith.constant 0 : i32
    %c0_i32_0 = arith.constant 0 : i32
    return %arg0, %arg1, %c0_i32 : i32, i32, i32
  }
}

module attributes {stable_mosaic.version = 11 : i64} {
  func.func @_conv_heads_kernel(%arg0: i32, %arg1: i32, %arg2: memref<1x32x9216xbf16, #tpu.memory_space<vmem>>, %arg3: memref<1x9216x128xbf16, #tpu.memory_space<vmem>>, %arg4: memref<1x1x128xf32, #tpu.memory_space<vmem>>, %arg5: memref<1x32x128xf32, #tpu.memory_space<vmem>>) attributes {dimension_semantics = [#tpu.dimension_semantics<parallel>, #tpu.dimension_semantics<parallel>], iteration_bounds = array<i64: 1, 1>, scalar_prefetch = 0 : i64, scratch_operands = 0 : i64, tpu.core_type = #tpu.core_type<tc>, window_params = [{transform_indices = @transform_0, window_bounds = array<i64: 1, 32, 9216>}, {transform_indices = @transform_1, window_bounds = array<i64: 1, 9216, 128>}, {transform_indices = @transform_2, window_bounds = array<i64: 1, 1, 128>}, {transform_indices = @transform_3, window_bounds = array<i64: 1, 32, 128>}]} {
    %c0 = arith.constant 0 : index
    %c0_0 = arith.constant 0 : index
    %c0_1 = arith.constant 0 : index
    %0 = vector.load %arg2[%c0, %c0_0, %c0_1] : memref<1x32x9216xbf16, #tpu.memory_space<vmem>>, vector<1x32x9216xbf16>
    %1 = vector.shape_cast %0 : vector<1x32x9216xbf16> to vector<32x9216xbf16>
    %c0_2 = arith.constant 0 : index
    %c0_3 = arith.constant 0 : index
    %c0_4 = arith.constant 0 : index
    %2 = vector.load %arg3[%c0_2, %c0_3, %c0_4] : memref<1x9216x128xbf16, #tpu.memory_space<vmem>>, vector<1x9216x128xbf16>
    %3 = vector.shape_cast %2 : vector<1x9216x128xbf16> to vector<9216x128xbf16>
    %cst = arith.constant dense<0.000000e+00> : vector<32x128xf32>
    %4 = tpu.matmul %1, %3, %cst {dimension_numbers = #tpu.dot_dimension_numbers<[1], [0], [0], [1], [0, 0, 1, 1], [], []>} : vector<32x9216xbf16>, vector<9216x128xbf16>, vector<32x128xf32> -> vector<32x128xf32>
    %c0_5 = arith.constant 0 : index
    %c0_6 = arith.constant 0 : index
    %c0_7 = arith.constant 0 : index
    %5 = vector.load %arg4[%c0_5, %c0_6, %c0_7] : memref<1x1x128xf32, #tpu.memory_space<vmem>>, vector<1x1x128xf32>
    %6 = vector.shape_cast %5 : vector<1x1x128xf32> to vector<1x128xf32>
    %7 = vector.broadcast %6 : vector<1x128xf32> to vector<32x128xf32>
    %8 = arith.addf %4, %7 : vector<32x128xf32>
    %cst_8 = arith.constant 0.000000e+00 : f32
    %9 = vector.broadcast %cst_8 : f32 to vector<32x128xf32>
    %10 = arith.maximumf %8, %9 : vector<32x128xf32>
    %c0_9 = arith.constant 0 : index
    %c0_10 = arith.constant 0 : index
    %c0_11 = arith.constant 0 : index
    %11 = vector.load %arg5[%c0_9, %c0_10, %c0_11] : memref<1x32x128xf32, #tpu.memory_space<vmem>>, vector<1x32x128xf32>
    %12 = vector.shape_cast %11 : vector<1x32x128xf32> to vector<32x128xf32>
    %13 = vector.shape_cast %10 : vector<32x128xf32> to vector<1x32x128xf32>
    tpu.vector_store %arg5[%c0_9, %c0_10, %c0_11], %13 {strides = array<i32>} : memref<1x32x128xf32, #tpu.memory_space<vmem>>, vector<1x32x128xf32>,
    return
  }
  func.func @transform_0(%arg0: i32, %arg1: i32) -> (i32, i32, i32) {
    %c0_i32 = arith.constant 0 : i32
    %c0_i32_0 = arith.constant 0 : i32
    return %arg0, %arg1, %c0_i32 : i32, i32, i32
  }
  func.func @transform_1(%arg0: i32, %arg1: i32) -> (i32, i32, i32) {
    %c0_i32 = arith.constant 0 : i32
    %c0_i32_0 = arith.constant 0 : i32
    %c0_i32_1 = arith.constant 0 : i32
    return %arg0, %c0_i32, %c0_i32_0 : i32, i32, i32
  }
  func.func @transform_2(%arg0: i32, %arg1: i32) -> (i32, i32, i32) {
    %c0_i32 = arith.constant 0 : i32
    %c0_i32_0 = arith.constant 0 : i32
    %c0_i32_1 = arith.constant 0 : i32
    return %arg0, %c0_i32, %c0_i32_0 : i32, i32, i32
  }
  func.func @transform_3(%arg0: i32, %arg1: i32) -> (i32, i32, i32) {
    %c0_i32 = arith.constant 0 : i32
    %c0_i32_0 = arith.constant 0 : i32
    return %arg0, %arg1, %c0_i32 : i32, i32, i32
  }
}

</mosaic_0001>

<llo_original>
// kernel: selector_forward.3
$region0: #{selector_forward.3}
  #allocation0 [shape = 'u32[]', space=smem, size = 0x4, offset = 0x4, fixed_abs, tag = 'smem constant byte address 0x4 - core index']
  #allocation1 [shape = 'u32[144,128]{1,0:T(1,128)}', space=vmem, size = 0x12000, scoped, tag = 'internal scratch']
  %s0 = inlined_call_operand.vmem [shape: bf16[6,32,2304], index: 0, kind: input, shape index: {}]
  %s1 = inlined_call_operand.vmem [shape: bf16[6,2304,128], index: 1, kind: input, shape index: {}]
  %s2 = inlined_call_operand.vmem [shape: f32[6,1,128], index: 2, kind: input, shape index: {}]
  %s3 = inlined_call_operand.vmem [shape: f32[6,32,128], index: 3, kind: output, shape index: {}]
  %s4 = sld [smem:[#allocation0]]
  $region45: #{selector_forward.3} parent=0
    _
  %s6 = ssub.s32 1, %s4
  %s7 = scalar_select 0, %s6, %s4
  loop: start=0, step=1, limit=8
  $region2: #{selector_forward.3} parent=0 // loop_pre_header
    _
  $region3: #{selector_forward.3} parent=0 // loop_header
    %s9 = sphi 0, %s13
    %p10 = scmp.ge.s32.totalorder %s9, 8
    %s16 = sphi 0, %s28
    %s17 = sphi 0, %s24
    %s18 = sphi 0, %s16
    %s19 = sphi 0, %s17
    %s20 = sphi 0, %s18
    %s21 = sphi 0, %s19
    %s33 = sphi 0, %s35
    %s36 = sphi 0, %s33
    %s37 = sphi 0, %s36
    %s53 = sphi 0, %s37
    %s59 = sphi 0, %s61
    %s62 = sphi 0, %s59
    %s63 = sphi 0, %s62
    %s79 = sphi 0, %s63
    %s85 = sphi 0, %s87
    %s88 = sphi 0, %s85
    %s89 = sphi 0, %s88
    %s105 = sphi 0, %s89
    %s113 = sphi 0, %s115
    %s116 = sphi 0, %s113
    %s117 = sphi 0, %s116
    %s133 = sphi 0, %s117
  $region4: #{selector_forward.3} parent=0 // loop_header_branch
    %12 = sbr.rel (%p10) target = $region8
  $region5: #{selector_forward.3} parent=0 // loop_body
    %s14 = ssub.s32 %s9, 1
    %s15 = ssub.s32 %s9, 2
    %s22 = sadd.s32 1, %s17
    %p23 = scmp.ge.s32.totalorder %s22, 1
    %s24 = scalar_select %p23, 0, %s22
    %s25 = sadd.s32 1, %s16
    %s26 = scalar_select %p23, %s25, %s16
    %p27 = scmp.ge.s32.totalorder %s26, 6
    %s28 = scalar_select %p27, 0, %s26
    %s29 = ssub.s32 %s16, %s28
    %s30 = ssub.s32 %s17, %s24
    %s31 = sor.u32 %s29, %s30
    %p32 = scmp.eq.s32.totalorder %s31, 0
    %s34 = sadd.s32 %s33, 1
    %s35 = scalar_select %p32, %s33, %s34
    %p38 = pneg %p32
    %p39 = scmp.eq.s32.totalorder %s9, 5
    %p40 = por %p38, %p39
    %p41 = scmp.ne.s32.totalorder %s33, %s36
    %p42 = scmp.eq.s32.totalorder %s9, 0
    %p43 = por %p41, %p42
    %p44 = scmp.ne.s32.totalorder %s33, %s36
    %p45 = scmp.eq.s32.totalorder %s14, 5
    %p46 = por %p44, %p45
    %p47 = scmp.ne.s32.totalorder %s36, %s37
    %p48 = scmp.eq.s32.totalorder %s14, 0
    %p49 = por %p47, %p48
    %p50 = scmp.ne.s32.totalorder %s36, %s37
    %p51 = scmp.eq.s32.totalorder %s15, 5
    %p52 = por %p50, %p51
    %p54 = scmp.ne.s32.totalorder %s37, %s53
    %p55 = scmp.eq.s32.totalorder %s15, 0
    %p56 = por %p54, %p55
    %s57 = ssub.s32 %s16, %s28
    %p58 = scmp.eq.s32.totalorder %s57, 0
    %s60 = sadd.s32 %s59, 1
    %s61 = scalar_select %p58, %s59, %s60
    %p64 = pneg %p58
    %p65 = scmp.eq.s32.totalorder %s9, 5
    %p66 = por %p64, %p65
    %p67 = scmp.ne.s32.totalorder %s59, %s62
    %p68 = scmp.eq.s32.totalorder %s9, 0
    %p69 = por %p67, %p68
    %p70 = scmp.ne.s32.totalorder %s59, %s62
    %p71 = scmp.eq.s32.totalorder %s14, 5
    %p72 = por %p70, %p71
    %p73 = scmp.ne.s32.totalorder %s62, %s63
    %p74 = scmp.eq.s32.totalorder %s14, 0
    %p75 = por %p73, %p74
    %p76 = scmp.ne.s32.totalorder %s62, %s63
    %p77 = scmp.eq.s32.totalorder %s15, 5
    %p78 = por %p76, %p77
    %p80 = scmp.ne.s32.totalorder %s63, %s79
    %p81 = scmp.eq.s32.totalorder %s15, 0
    %p82 = por %p80, %p81
    %s83 = ssub.s32 %s16, %s28
    %p84 = scmp.eq.s32.totalorder %s83, 0
    %s86 = sadd.s32 %s85, 1
    %s87 = scalar_select %p84, %s85, %s86
    %p90 = pneg %p84
    %p91 = scmp.eq.s32.totalorder %s9, 5
    %p92 = por %p90, %p91
    %p93 = scmp.ne.s32.totalorder %s85, %s88
    %p94 = scmp.eq.s32.totalorder %s9, 0
    %p95 = por %p93, %p94
    %p96 = scmp.ne.s32.totalorder %s85, %s88
    %p97 = scmp.eq.s32.totalorder %s14, 5
    %p98 = por %p96, %p97
    %p99 = scmp.ne.s32.totalorder %s88, %s89
    %p100 = scmp.eq.s32.totalorder %s14, 0
    %p101 = por %p99, %p100
    %p102 = scmp.ne.s32.totalorder %s88, %s89
    %p103 = scmp.eq.s32.totalorder %s15, 5
    %p104 = por %p102, %p103
    %p106 = scmp.ne.s32.totalorder %s89, %s105
    %p107 = scmp.eq.s32.totalorder %s15, 0
    %p108 = por %p106, %p107
    %s109 = ssub.s32 %s16, %s28
    %s110 = ssub.s32 %s17, %s24
    %s111 = sor.u32 %s109, %s110
    %p112 = scmp.eq.s32.totalorder %s111, 0
    %s114 = sadd.s32 %s113, 1
    %s115 = scalar_select %p112, %s113, %s114
    %p118 = pneg %p112
    %p119 = scmp.eq.s32.totalorder %s9, 5
    %p120 = por %p118, %p119
    %p121 = scmp.ne.s32.totalorder %s113, %s116
    %p122 = scmp.eq.s32.totalorder %s9, 0
    %p123 = por %p121, %p122
    %p124 = scmp.ne.s32.totalorder %s113, %s116
    %p125 = scmp.eq.s32.totalorder %s14, 5
    %p126 = por %p124, %p125
    %p127 = scmp.ne.s32.totalorder %s116, %s117
    %p128 = scmp.eq.s32.totalorder %s14, 0
    %p129 = por %p127, %p128
    %p130 = scmp.ne.s32.totalorder %s116, %s117
    %p131 = scmp.eq.s32.totalorder %s15, 5
    %p132 = por %p130, %p131
    %p134 = scmp.ne.s32.totalorder %s117, %s133
    %p135 = scmp.eq.s32.totalorder %s15, 0
    %p136 = por %p134, %p135
    %p137 = scmp.le.s32.totalorder 1, %s9
    %p138 = scmp.lt.s32.totalorder %s9, 7
    %p139 = pnand %p137, %p138
    %p140 = pneg %p139
    // Predicated region
    $region9: #{selector_forward.3} parent=5 // pred_check
      _
    $region10: #{selector_forward.3} parent=5 // pred_check_branch
      %142 = sbr.rel (%p139) target = $region12
    $region11: #{selector_forward.3} parent=5 // pred_region
      %s143 = ssub.s32 %s9, 1
    $region12: #{selector_forward.3} parent=5 // pred_fallthru
      _
    %p144 = scmp.lt.s32.totalorder %s9, 6
    // Predicated region
    $region13: #{selector_forward.3} parent=5 // pred_check
      %p145 = pneg %p144
    $region14: #{selector_forward.3} parent=5 // pred_check_branch
      %147 = sbr.rel (%p145) target = $region16
    $region15: #{selector_forward.3} parent=5 // pred_region
      // Predicated region
      $region17: #{selector_forward.3} parent=15 // pred_check
        %p148 = pneg %p43
      $region18: #{selector_forward.3} parent=15 // pred_check_branch
        %150 = sbr.rel (%p148) target = $region20
      $region19: #{selector_forward.3} parent=15 // pred_region
        %s151 = smul.u32 4, %s17
        %p152 = scmp.lt.s32.totalorder %s16, 5
        %s153 = scalar_select %p152, %s16, 5
        %p154 = scmp.lt.s32.totalorder %s151, 3
        %s155 = scalar_select %p154, %s151, 3
        %s156 = smul.addr %s155, 18
        %s157 = smul.addr %s153, 72
        %s158 = sadd.s32 %s156, %s157
        %s159 = smul.addr %s158, 4
        %s160 = scalar_lea.vmem %s0, %s159
        %s161 = smul.u32 4, %s17
      $region20: #{selector_forward.3} parent=15 // pred_fallthru
        _
      // Predicated region
      $region21: #{selector_forward.3} parent=15 // pred_check
        %p162 = pneg %p69
      $region22: #{selector_forward.3} parent=15 // pred_check_branch
        %164 = sbr.rel (%p162) target = $region24
      $region23: #{selector_forward.3} parent=15 // pred_region
        %p165 = scmp.lt.s32.totalorder %s16, 5
        %s166 = scalar_select %p165, %s16, 5
        %s167 = smul.addr %s166, 288
        %s168 = smul.addr %s167, 4
        %s169 = scalar_lea.vmem %s1, %s168
      $region24: #{selector_forward.3} parent=15 // pred_fallthru
        _
      // Predicated region
      $region25: #{selector_forward.3} parent=15 // pred_check
        %p170 = pneg %p95
      $region26: #{selector_forward.3} parent=15 // pred_check_branch
        %172 = sbr.rel (%p170) target = $region28
      $region27: #{selector_forward.3} parent=15 // pred_region
        %p173 = scmp.lt.s32.totalorder %s16, 5
        %s174 = scalar_select %p173, %s16, 5
        %s175 = scalar_lea.vmem %s2, %s174
      $region28: #{selector_forward.3} parent=15 // pred_fallthru
        _
    $region16: #{selector_forward.3} parent=5 // pred_fallthru
      _
    %p176 = scmp.le.s32.totalorder 1, %s9
    %p177 = scmp.lt.s32.totalorder %s9, 7
    %p178 = pnand %p176, %p177
    %p179 = pneg %p178
    // Predicated region
    $region29: #{selector_forward.3} parent=5 // pred_check
      _
    $region30: #{selector_forward.3} parent=5 // pred_check_branch
      %181 = sbr.rel (%p178) target = $region32
    $region31: #{selector_forward.3} parent=5 // pred_region
      %s182 = ssub.s32 %s9, 1
      %s183 = smul.u32 4, %s19
      %p184 = scmp.lt.s32.totalorder %s18, 5
      %s185 = scalar_select %p184, %s18, 5
      %p186 = scmp.lt.s32.totalorder %s183, 3
      %s187 = scalar_select %p186, %s183, 3
      %s188 = smul.addr %s187, 18
      %s189 = smul.addr %s185, 72
      %s190 = sadd.s32 %s188, %s189
      %s191 = smul.addr %s190, 4
      %s192 = scalar_lea.vmem %s0, %s191
      %p193 = pneg %p49
      %p194 = pneg %p46
      %p195 = scmp.lt.s32.totalorder %s18, 5
      %s196 = scalar_select %p195, %s18, 5
      %s197 = smul.addr %s196, 288
      %s198 = smul.addr %s197, 4
      %s199 = scalar_lea.vmem %s1, %s198
      %p200 = pneg %p75
      %p201 = pneg %p72
      %p202 = scmp.lt.s32.totalorder %s18, 5
      %s203 = scalar_select %p202, %s18, 5
      %s204 = scalar_lea.vmem %s2, %s203
      %p205 = pneg %p101
      %p206 = pneg %p98
      %p207 = pneg %p129
      %p208 = pneg %p126
      %s209 = smul.u32 4, %s19
      %p210 = scmp.lt.s32.totalorder %s18, 5
      %s211 = scalar_select %p210, %s18, 5
      %p212 = scmp.lt.s32.totalorder %s209, 3
      %s213 = scalar_select %p212, %s209, 3
      %s214 = smul.addr %s211, 4
      %s215 = sadd.s32 %s213, %s214
      %s216 = smul.addr %s215, 8
      %s217 = scalar_lea.vmem %s3, %s216
      %s218 = smul.u32 4, %s19
      %p219 = scmp.lt.s32.totalorder %s18, 5
      %s220 = scalar_select %p219, %s18, 5
      %p221 = scmp.lt.s32.totalorder %s218, 3
      %s222 = scalar_select %p221, %s218, 3
      %s223 = smul.addr %s222, 18
      %s224 = smul.addr %s220, 72
      %s225 = sadd.s32 %s223, %s224
      %s226 = smul.addr %s225, 4
      %s227 = scalar_lea.vmem %s0, %s226
      %s228 = smul.u32 4, %s19
      %p229 = scmp.lt.s32.totalorder %s18, 5
      %s230 = scalar_select %p229, %s18, 5
      %s231 = smul.addr %s230, 288
      %s232 = smul.addr %s231, 4
      %s233 = scalar_lea.vmem %s1, %s232
      %p234 = scmp.lt.s32.totalorder %s18, 5
      %s235 = scalar_select %p234, %s18, 5
      %s236 = scalar_lea.vmem %s2, %s235
      %s237 = smul.u32 4, %s19
      %p238 = scmp.lt.s32.totalorder %s18, 5
      %s239 = scalar_select %p238, %s18, 5
      %p240 = scmp.lt.s32.totalorder %s237, 3
      %s241 = scalar_select %p240, %s237, 3
      %s242 = smul.addr %s239, 4
      %s243 = sadd.s32 %s241, %s242
      %s244 = smul.addr %s243, 8
      %s245 = scalar_lea.vmem %s3, %s244
      %s246 = smul.u32 4, %s19
      %v248 = vld [vmem:[%s227] sm:$0xff]
      %v249 = vld [vmem:[%s227 + $0x8] sm:$0xff]
      %v250 = vld [vmem:[%s227 + $0x10] sm:$0xff]
      %v251 = vld [vmem:[%s227 + $0x18] sm:$0xff]
      %v252 = vld [vmem:[%s227 + $0x20] sm:$0xff]
      %v253 = vld [vmem:[%s227 + $0x28] sm:$0xff]
      %v254 = vld [vmem:[%s227 + $0x30] sm:$0xff]
      %v255 = vld [vmem:[%s227 + $0x38] sm:$0xff]
      %v256 = vld [vmem:[%s227 + $0x40] sm:$0xff]
      %v257 = vld [vmem:[%s227 + $0x48] sm:$0xff]
      %v258 = vld [vmem:[%s227 + $0x50] sm:$0xff]
      %v259 = vld [vmem:[%s227 + $0x58] sm:$0xff]
      %v260 = vld [vmem:[%s227 + $0x60] sm:$0xff]
      %v261 = vld [vmem:[%s227 + $0x68] sm:$0xff]
      %v262 = vld [vmem:[%s227 + $0x70] sm:$0xff]
      %v263 = vld [vmem:[%s227 + $0x78] sm:$0xff]
      %v264 = vld [vmem:[%s227 + $0x80] sm:$0xff]
      %v265 = vld [vmem:[%s227 + $0x88] sm:$0xff]
      %v266 = vld [vmem:[%s227 + $0x90] sm:$0xff]
      %v267 = vld [vmem:[%s227 + $0x98] sm:$0xff]
      %v268 = vld [vmem:[%s227 + $0xa0] sm:$0xff]
      %v269 = vld [vmem:[%s227 + $0xa8] sm:$0xff]
      %v270 = vld [vmem:[%s227 + $0xb0] sm:$0xff]
      %v271 = vld [vmem:[%s227 + $0xb8] sm:$0xff]
      %v272 = vld [vmem:[%s227 + $0xc0] sm:$0xff]
      %v273 = vld [vmem:[%s227 + $0xc8] sm:$0xff]
      %v274 = vld [vmem:[%s227 + $0xd0] sm:$0xff]
      %v275 = vld [vmem:[%s227 + $0xd8] sm:$0xff]
      %v276 = vld [vmem:[%s227 + $0xe0] sm:$0xff]
      %v277 = vld [vmem:[%s227 + $0xe8] sm:$0xff]
      %v278 = vld [vmem:[%s227 + $0xf0] sm:$0xff]
      %v279 = vld [vmem:[%s227 + $0xf8] sm:$0xff]
      %v280 = vld [vmem:[%s227 + $0x100] sm:$0xff]
      %v281 = vld [vmem:[%s227 + $0x108] sm:$0xff]
      %v282 = vld [vmem:[%s227 + $0x110] sm:$0xff]
      %v283 = vld [vmem:[%s227 + $0x118] sm:$0xff]
      %v284 = vld [vmem:[%s233] sm:$0xf]
      %v285 = vld [vmem:[%s233 + $0x4] sm:$0xf]
      %v286 = vld [vmem:[%s233 + $0x8] sm:$0xf]
      %v287 = vld [vmem:[%s233 + $0xc] sm:$0xf]
      %v288 = vld [vmem:[%s233 + $0x10] sm:$0xf]
      %v289 = vld [vmem:[%s233 + $0x14] sm:$0xf]
      %v290 = vld [vmem:[%s233 + $0x18] sm:$0xf]
      %v291 = vld [vmem:[%s233 + $0x1c] sm:$0xf]
      %v292 = vld [vmem:[%s233 + $0x20] sm:$0xf]
      %v293 = vld [vmem:[%s233 + $0x24] sm:$0xf]
      %v294 = vld [vmem:[%s233 + $0x28] sm:$0xf]
      %v295 = vld [vmem:[%s233 + $0x2c] sm:$0xf]
      %v296 = vld [vmem:[%s233 + $0x30] sm:$0xf]
      %v297 = vld [vmem:[%s233 + $0x34] sm:$0xf]
      %v298 = vld [vmem:[%s233 + $0x38] sm:$0xf]
      %v299 = vld [vmem:[%s233 + $0x3c] sm:$0xf]
      %v300 = vld [vmem:[%s233 + $0x40] sm:$0xf]
      %v301 = vld [vmem:[%s233 + $0x44] sm:$0xf]
      %v302 = vld [vmem:[%s233 + $0x48] sm:$0xf]
      %v303 = vld [vmem:[%s233 + $0x4c] sm:$0xf]
      %v304 = vld [vmem:[%s233 + $0x50] sm:$0xf]
      %v305 = vld [vmem:[%s233 + $0x54] sm:$0xf]
      %v306 = vld [vmem:[%s233 + $0x58] sm:$0xf]
      %v307 = vld [vmem:[%s233 + $0x5c] sm:$0xf]
      %v308 = vld [vmem:[%s233 + $0x60] sm:$0xf]
      %v309 = vld [vmem:[%s233 + $0x64] sm:$0xf]
      %v310 = vld [vmem:[%s233 + $0x68] sm:$0xf]
      %v311 = vld [vmem:[%s233 + $0x6c] sm:$0xf]
      %v312 = vld [vmem:[%s233 + $0x70] sm:$0xf]
      %v313 = vld [vmem:[%s233 + $0x74] sm:$0xf]
      %v314 = vld [vmem:[%s233 + $0x78] sm:$0xf]
      %v315 = vld [vmem:[%s233 + $0x7c] sm:$0xf]
      %v316 = vld [vmem:[%s233 + $0x80] sm:$0xf]
      %v317 = vld [vmem:[%s233 + $0x84] sm:$0xf]
      %v318 = vld [vmem:[%s233 + $0x88] sm:$0xf]
      %v319 = vld [vmem:[%s233 + $0x8c] sm:$0xf]
      %v320 = vld [vmem:[%s233 + $0x90] sm:$0xf]
      %v321 = vld [vmem:[%s233 + $0x94] sm:$0xf]
      %v322 = vld [vmem:[%s233 + $0x98] sm:$0xf]
      %v323 = vld [vmem:[%s233 + $0x9c] sm:$0xf]
      %v324 = vld [vmem:[%s233 + $0xa0] sm:$0xf]
      %v325 = vld [vmem:[%s233 + $0xa4] sm:$0xf]
      %v326 = vld [vmem:[%s233 + $0xa8] sm:$0xf]
      %v327 = vld [vmem:[%s233 + $0xac] sm:$0xf]
      %v328 = vld [vmem:[%s233 + $0xb0] sm:$0xf]
      %v329 = vld [vmem:[%s233 + $0xb4] sm:$0xf]
      %v330 = vld [vmem:[%s233 + $0xb8] sm:$0xf]
      %v331 = vld [vmem:[%s233 + $0xbc] sm:$0xf]
      %v332 = vld [vmem:[%s233 + $0xc0] sm:$0xf]
      %v333 = vld [vmem:[%s233 + $0xc4] sm:$0xf]
      %v334 = vld [vmem:[%s233 + $0xc8] sm:$0xf]
      %v335 = vld [vmem:[%s233 + $0xcc] sm:$0xf]
      %v336 = vld [vmem:[%s233 + $0xd0] sm:$0xf]
      %v337 = vld [vmem:[%s233 + $0xd4] sm:$0xf]
      %v338 = vld [vmem:[%s233 + $0xd8] sm:$0xf]
      %v339 = vld [vmem:[%s233 + $0xdc] sm:$0xf]
      %v340 = vld [vmem:[%s233 + $0xe0] sm:$0xf]
      %v341 = vld [vmem:[%s233 + $0xe4] sm:$0xf]
      %v342 = vld [vmem:[%s233 + $0xe8] sm:$0xf]
      %v343 = vld [vmem:[%s233 + $0xec] sm:$0xf]
      %v344 = vld [vmem:[%s233 + $0xf0] sm:$0xf]
      %v345 = vld [vmem:[%s233 + $0xf4] sm:$0xf]
      %v346 = vld [vmem:[%s233 + $0xf8] sm:$0xf]
      %v347 = vld [vmem:[%s233 + $0xfc] sm:$0xf]
      %v348 = vld [vmem:[%s233 + $0x100] sm:$0xf]
      %v349 = vld [vmem:[%s233 + $0x104] sm:$0xf]
      %v350 = vld [vmem:[%s233 + $0x108] sm:$0xf]
      %v351 = vld [vmem:[%s233 + $0x10c] sm:$0xf]
      %v352 = vld [vmem:[%s233 + $0x110] sm:$0xf]
      %v353 = vld [vmem:[%s233 + $0x114] sm:$0xf]
      %v354 = vld [vmem:[%s233 + $0x118] sm:$0xf]
      %v355 = vld [vmem:[%s233 + $0x11c] sm:$0xf]
      %v356 = vld [vmem:[%s233 + $0x120] sm:$0xf]
      %v357 = vld [vmem:[%s233 + $0x124] sm:$0xf]
      %v358 = vld [vmem:[%s233 + $0x128] sm:$0xf]
      %v359 = vld [vmem:[%s233 + $0x12c] sm:$0xf]
      %v360 = vld [vmem:[%s233 + $0x130] sm:$0xf]
      %v361 = vld [vmem:[%s233 + $0x134] sm:$0xf]
      %v362 = vld [vmem:[%s233 + $0x138] sm:$0xf]
      %v363 = vld [vmem:[%s233 + $0x13c] sm:$0xf]
      %v364 = vld [vmem:[%s233 + $0x140] sm:$0xf]
      %v365 = vld [vmem:[%s233 + $0x144] sm:$0xf]
      %v366 = vld [vmem:[%s233 + $0x148] sm:$0xf]
      %v367 = vld [vmem:[%s233 + $0x14c] sm:$0xf]
      %v368 = vld [vmem:[%s233 + $0x150] sm:$0xf]
      %v369 = vld [vmem:[%s233 + $0x154] sm:$0xf]
      %v370 = vld [vmem:[%s233 + $0x158] sm:$0xf]
      %v371 = vld [vmem:[%s233 + $0x15c] sm:$0xf]
      %v372 = vld [vmem:[%s233 + $0x160] sm:$0xf]
      %v373 = vld [vmem:[%s233 + $0x164] sm:$0xf]
      %v374 = vld [vmem:[%s233 + $0x168] sm:$0xf]
      %v375 = vld [vmem:[%s233 + $0x16c] sm:$0xf]
      %v376 = vld [vmem:[%s233 + $0x170] sm:$0xf]
      %v377 = vld [vmem:[%s233 + $0x174] sm:$0xf]
      %v378 = vld [vmem:[%s233 + $0x178] sm:$0xf]
      %v379 = vld [vmem:[%s233 + $0x17c] sm:$0xf]
      %v380 = vld [vmem:[%s233 + $0x180] sm:$0xf]
      %v381 = vld [vmem:[%s233 + $0x184] sm:$0xf]
      %v382 = vld [vmem:[%s233 + $0x188] sm:$0xf]
      %v383 = vld [vmem:[%s233 + $0x18c] sm:$0xf]
      %v384 = vld [vmem:[%s233 + $0x190] sm:$0xf]
      %v385 = vld [vmem:[%s233 + $0x194] sm:$0xf]
      %v386 = vld [vmem:[%s233 + $0x198] sm:$0xf]
      %v387 = vld [vmem:[%s233 + $0x19c] sm:$0xf]
      %v388 = vld [vmem:[%s233 + $0x1a0] sm:$0xf]
      %v389 = vld [vmem:[%s233 + $0x1a4] sm:$0xf]
      %v390 = vld [vmem:[%s233 + $0x1a8] sm:$0xf]
      %v391 = vld [vmem:[%s233 + $0x1ac] sm:$0xf]
      %v392 = vld [vmem:[%s233 + $0x1b0] sm:$0xf]
      %v393 = vld [vmem:[%s233 + $0x1b4] sm:$0xf]
      %v394 = vld [vmem:[%s233 + $0x1b8] sm:$0xf]
      %v395 = vld [vmem:[%s233 + $0x1bc] sm:$0xf]
      %v396 = vld [vmem:[%s233 + $0x1c0] sm:$0xf]
      %v397 = vld [vmem:[%s233 + $0x1c4] sm:$0xf]
      %v398 = vld [vmem:[%s233 + $0x1c8] sm:$0xf]
      %v399 = vld [vmem:[%s233 + $0x1cc] sm:$0xf]
      %v400 = vld [vmem:[%s233 + $0x1d0] sm:$0xf]
      %v401 = vld [vmem:[%s233 + $0x1d4] sm:$0xf]
      %v402 = vld [vmem:[%s233 + $0x1d8] sm:$0xf]
      %v403 = vld [vmem:[%s233 + $0x1dc] sm:$0xf]
      %v404 = vld [vmem:[%s233 + $0x1e0] sm:$0xf]
      %v405 = vld [vmem:[%s233 + $0x1e4] sm:$0xf]
      %v406 = vld [vmem:[%s233 + $0x1e8] sm:$0xf]
      %v407 = vld [vmem:[%s233 + $0x1ec] sm:$0xf]
      %v408 = vld [vmem:[%s233 + $0x1f0] sm:$0xf]
      %v409 = vld [vmem:[%s233 + $0x1f4] sm:$0xf]
      %v410 = vld [vmem:[%s233 + $0x1f8] sm:$0xf]
      %v411 = vld [vmem:[%s233 + $0x1fc] sm:$0xf]
      %v412 = vld [vmem:[%s233 + $0x200] sm:$0xf]
      %v413 = vld [vmem:[%s233 + $0x204] sm:$0xf]
      %v414 = vld [vmem:[%s233 + $0x208] sm:$0xf]
      %v415 = vld [vmem:[%s233 + $0x20c] sm:$0xf]
      %v416 = vld [vmem:[%s233 + $0x210] sm:$0xf]
      %v417 = vld [vmem:[%s233 + $0x214] sm:$0xf]
      %v418 = vld [vmem:[%s233 + $0x218] sm:$0xf]
      %v419 = vld [vmem:[%s233 + $0x21c] sm:$0xf]
      %v420 = vld [vmem:[%s233 + $0x220] sm:$0xf]
      %v421 = vld [vmem:[%s233 + $0x224] sm:$0xf]
      %v422 = vld [vmem:[%s233 + $0x228] sm:$0xf]
      %v423 = vld [vmem:[%s233 + $0x22c] sm:$0xf]
      %v424 = vld [vmem:[%s233 + $0x230] sm:$0xf]
      %v425 = vld [vmem:[%s233 + $0x234] sm:$0xf]
      %v426 = vld [vmem:[%s233 + $0x238] sm:$0xf]
      %v427 = vld [vmem:[%s233 + $0x23c] sm:$0xf]
      %v428 = vld [vmem:[%s233 + $0x240] sm:$0xf]
      %v429 = vld [vmem:[%s233 + $0x244] sm:$0xf]
      %v430 = vld [vmem:[%s233 + $0x248] sm:$0xf]
      %v431 = vld [vmem:[%s233 + $0x24c] sm:$0xf]
      %v432 = vld [vmem:[%s233 + $0x250] sm:$0xf]
      %v433 = vld [vmem:[%s233 + $0x254] sm:$0xf]
      %v434 = vld [vmem:[%s233 + $0x258] sm:$0xf]
      %v435 = vld [vmem:[%s233 + $0x25c] sm:$0xf]
      %v436 = vld [vmem:[%s233 + $0x260] sm:$0xf]
      %v437 = vld [vmem:[%s233 + $0x264] sm:$0xf]
      %v438 = vld [vmem:[%s233 + $0x268] sm:$0xf]
      %v439 = vld [vmem:[%s233 + $0x26c] sm:$0xf]
      %v440 = vld [vmem:[%s233 + $0x270] sm:$0xf]
      %v441 = vld [vmem:[%s233 + $0x274] sm:$0xf]
      %v442 = vld [vmem:[%s233 + $0x278] sm:$0xf]
      %v443 = vld [vmem:[%s233 + $0x27c] sm:$0xf]
      %v444 = vld [vmem:[%s233 + $0x280] sm:$0xf]
      %v445 = vld [vmem:[%s233 + $0x284] sm:$0xf]
      %v446 = vld [vmem:[%s233 + $0x288] sm:$0xf]
      %v447 = vld [vmem:[%s233 + $0x28c] sm:$0xf]
      %v448 = vld [vmem:[%s233 + $0x290] sm:$0xf]
      %v449 = vld [vmem:[%s233 + $0x294] sm:$0xf]
      %v450 = vld [vmem:[%s233 + $0x298] sm:$0xf]
      %v451 = vld [vmem:[%s233 + $0x29c] sm:$0xf]
      %v452 = vld [vmem:[%s233 + $0x2a0] sm:$0xf]
      %v453 = vld [vmem:[%s233 + $0x2a4] sm:$0xf]
      %v454 = vld [vmem:[%s233 + $0x2a8] sm:$0xf]
      %v455 = vld [vmem:[%s233 + $0x2ac] sm:$0xf]
      %v456 = vld [vmem:[%s233 + $0x2b0] sm:$0xf]
      %v457 = vld [vmem:[%s233 + $0x2b4] sm:$0xf]
      %v458 = vld [vmem:[%s233 + $0x2b8] sm:$0xf]
      %v459 = vld [vmem:[%s233 + $0x2bc] sm:$0xf]
      %v460 = vld [vmem:[%s233 + $0x2c0] sm:$0xf]
      %v461 = vld [vmem:[%s233 + $0x2c4] sm:$0xf]
      %v462 = vld [vmem:[%s233 + $0x2c8] sm:$0xf]
      %v463 = vld [vmem:[%s233 + $0x2cc] sm:$0xf]
      %v464 = vld [vmem:[%s233 + $0x2d0] sm:$0xf]
      %v465 = vld [vmem:[%s233 + $0x2d4] sm:$0xf]
      %v466 = vld [vmem:[%s233 + $0x2d8] sm:$0xf]
      %v467 = vld [vmem:[%s233 + $0x2dc] sm:$0xf]
      %v468 = vld [vmem:[%s233 + $0x2e0] sm:$0xf]
      %v469 = vld [vmem:[%s233 + $0x2e4] sm:$0xf]
      %v470 = vld [vmem:[%s233 + $0x2e8] sm:$0xf]
      %v471 = vld [vmem:[%s233 + $0x2ec] sm:$0xf]
      %v472 = vld [vmem:[%s233 + $0x2f0] sm:$0xf]
      %v473 = vld [vmem:[%s233 + $0x2f4] sm:$0xf]
      %v474 = vld [vmem:[%s233 + $0x2f8] sm:$0xf]
      %v475 = vld [vmem:[%s233 + $0x2fc] sm:$0xf]
      %v476 = vld [vmem:[%s233 + $0x300] sm:$0xf]
      %v477 = vld [vmem:[%s233 + $0x304] sm:$0xf]
      %v478 = vld [vmem:[%s233 + $0x308] sm:$0xf]
      %v479 = vld [vmem:[%s233 + $0x30c] sm:$0xf]
      %v480 = vld [vmem:[%s233 + $0x310] sm:$0xf]
      %v481 = vld [vmem:[%s233 + $0x314] sm:$0xf]
      %v482 = vld [vmem:[%s233 + $0x318] sm:$0xf]
      %v483 = vld [vmem:[%s233 + $0x31c] sm:$0xf]
      %v484 = vld [vmem:[%s233 + $0x320] sm:$0xf]
      %v485 = vld [vmem:[%s233 + $0x324] sm:$0xf]
      %v486 = vld [vmem:[%s233 + $0x328] sm:$0xf]
      %v487 = vld [vmem:[%s233 + $0x32c] sm:$0xf]
      %v488 = vld [vmem:[%s233 + $0x330] sm:$0xf]
      %v489 = vld [vmem:[%s233 + $0x334] sm:$0xf]
      %v490 = vld [vmem:[%s233 + $0x338] sm:$0xf]
      %v491 = vld [vmem:[%s233 + $0x33c] sm:$0xf]
      %v492 = vld [vmem:[%s233 + $0x340] sm:$0xf]
      %v493 = vld [vmem:[%s233 + $0x344] sm:$0xf]
      %v494 = vld [vmem:[%s233 + $0x348] sm:$0xf]
      %v495 = vld [vmem:[%s233 + $0x34c] sm:$0xf]
      %v496 = vld [vmem:[%s233 + $0x350] sm:$0xf]
      %v497 = vld [vmem:[%s233 + $0x354] sm:$0xf]
      %v498 = vld [vmem:[%s233 + $0x358] sm:$0xf]
      %v499 = vld [vmem:[%s233 + $0x35c] sm:$0xf]
      %v500 = vld [vmem:[%s233 + $0x360] sm:$0xf]
      %v501 = vld [vmem:[%s233 + $0x364] sm:$0xf]
      %v502 = vld [vmem:[%s233 + $0x368] sm:$0xf]
      %v503 = vld [vmem:[%s233 + $0x36c] sm:$0xf]
      %v504 = vld [vmem:[%s233 + $0x370] sm:$0xf]
      %v505 = vld [vmem:[%s233 + $0x374] sm:$0xf]
      %v506 = vld [vmem:[%s233 + $0x378] sm:$0xf]
      %v507 = vld [vmem:[%s233 + $0x37c] sm:$0xf]
      %v508 = vld [vmem:[%s233 + $0x380] sm:$0xf]
      %v509 = vld [vmem:[%s233 + $0x384] sm:$0xf]
      %v510 = vld [vmem:[%s233 + $0x388] sm:$0xf]
      %v511 = vld [vmem:[%s233 + $0x38c] sm:$0xf]
      %v512 = vld [vmem:[%s233 + $0x390] sm:$0xf]
      %v513 = vld [vmem:[%s233 + $0x394] sm:$0xf]
      %v514 = vld [vmem:[%s233 + $0x398] sm:$0xf]
      %v515 = vld [vmem:[%s233 + $0x39c] sm:$0xf]
      %v516 = vld [vmem:[%s233 + $0x3a0] sm:$0xf]
      %v517 = vld [vmem:[%s233 + $0x3a4] sm:$0xf]
      %v518 = vld [vmem:[%s233 + $0x3a8] sm:$0xf]
      %v519 = vld [vmem:[%s233 + $0x3ac] sm:$0xf]
      %v520 = vld [vmem:[%s233 + $0x3b0] sm:$0xf]
      %v521 = vld [vmem:[%s233 + $0x3b4] sm:$0xf]
      %v522 = vld [vmem:[%s233 + $0x3b8] sm:$0xf]
      %v523 = vld [vmem:[%s233 + $0x3bc] sm:$0xf]
      %v524 = vld [vmem:[%s233 + $0x3c0] sm:$0xf]
      %v525 = vld [vmem:[%s233 + $0x3c4] sm:$0xf]
      %v526 = vld [vmem:[%s233 + $0x3c8] sm:$0xf]
      %v527 = vld [vmem:[%s233 + $0x3cc] sm:$0xf]
      %v528 = vld [vmem:[%s233 + $0x3d0] sm:$0xf]
      %v529 = vld [vmem:[%s233 + $0x3d4] sm:$0xf]
      %v530 = vld [vmem:[%s233 + $0x3d8] sm:$0xf]
      %v531 = vld [vmem:[%s233 + $0x3dc] sm:$0xf]
      %v532 = vld [vmem:[%s233 + $0x3e0] sm:$0xf]
      %v533 = vld [vmem:[%s233 + $0x3e4] sm:$0xf]
      %v534 = vld [vmem:[%s233 + $0x3e8] sm:$0xf]
      %v535 = vld [vmem:[%s233 + $0x3ec] sm:$0xf]
      %v536 = vld [vmem:[%s233 + $0x3f0] sm:$0xf]
      %v537 = vld [vmem:[%s233 + $0x3f4] sm:$0xf]
      %v538 = vld [vmem:[%s233 + $0x3f8] sm:$0xf]
      %v539 = vld [vmem:[%s233 + $0x3fc] sm:$0xf]
      %v540 = vld [vmem:[%s233 + $0x400] sm:$0xf]
      %v541 = vld [vmem:[%s233 + $0x404] sm:$0xf]
      %v542 = vld [vmem:[%s233 + $0x408] sm:$0xf]
      %v543 = vld [vmem:[%s233 + $0x40c] sm:$0xf]
      %v544 = vld [vmem:[%s233 + $0x410] sm:$0xf]
      %v545 = vld [vmem:[%s233 + $0x414] sm:$0xf]
      %v546 = vld [vmem:[%s233 + $0x418] sm:$0xf]
      %v547 = vld [vmem:[%s233 + $0x41c] sm:$0xf]
      %v548 = vld [vmem:[%s233 + $0x420] sm:$0xf]
      %v549 = vld [vmem:[%s233 + $0x424] sm:$0xf]
      %v550 = vld [vmem:[%s233 + $0x428] sm:$0xf]
      %v551 = vld [vmem:[%s233 + $0x42c] sm:$0xf]
      %v552 = vld [vmem:[%s233 + $0x430] sm:$0xf]
      %v553 = vld [vmem:[%s233 + $0x434] sm:$0xf]
      %v554 = vld [vmem:[%s233 + $0x438] sm:$0xf]
      %v555 = vld [vmem:[%s233 + $0x43c] sm:$0xf]
      %v556 = vld [vmem:[%s233 + $0x440] sm:$0xf]
      %v557 = vld [vmem:[%s233 + $0x444] sm:$0xf]
      %v558 = vld [vmem:[%s233 + $0x448] sm:$0xf]
      %v559 = vld [vmem:[%s233 + $0x44c] sm:$0xf]
      %v560 = vld [vmem:[%s233 + $0x450] sm:$0xf]
      %v561 = vld [vmem:[%s233 + $0x454] sm:$0xf]
      %v562 = vld [vmem:[%s233 + $0x458] sm:$0xf]
      %v563 = vld [vmem:[%s233 + $0x45c] sm:$0xf]
      %v564 = vld [vmem:[%s233 + $0x460] sm:$0xf]
      %v565 = vld [vmem:[%s233 + $0x464] sm:$0xf]
      %v566 = vld [vmem:[%s233 + $0x468] sm:$0xf]
      %v567 = vld [vmem:[%s233 + $0x46c] sm:$0xf]
      %v568 = vld [vmem:[%s233 + $0x470] sm:$0xf]
      %v569 = vld [vmem:[%s233 + $0x474] sm:$0xf]
      %v570 = vld [vmem:[%s233 + $0x478] sm:$0xf]
      %v571 = vld [vmem:[%s233 + $0x47c] sm:$0xf]
      %v572 = vld [vmem:[%s236] sm:$0x1]
      %v574 = vlaneseq
      %v575 = vshrl.u32 %v574, 7
      %v576 = vsub.s32 0, %v575
      %v577 = vrot.slane %v572, %v576
      %v615 = vunpack.c.l.b16 %v248
      %v616 = vunpack.c.h.b16 %v248
      %v617 = vunpack.c.l.b16 %v249
      %v618 = vunpack.c.h.b16 %v249
      %v619 = vunpack.c.l.b16 %v250
      %v620 = vunpack.c.h.b16 %v250
      %v621 = vunpack.c.l.b16 %v251
      %v622 = vunpack.c.h.b16 %v251
      %v623 = vunpack.c.l.b16 %v252
      %v624 = vunpack.c.h.b16 %v252
      %v625 = vunpack.c.l.b16 %v253
      %v626 = vunpack.c.h.b16 %v253
      %v627 = vunpack.c.l.b16 %v254
      %v628 = vunpack.c.h.b16 %v254
      %v629 = vunpack.c.l.b16 %v255
      %v630 = vunpack.c.h.b16 %v255
      %v631 = vunpack.c.l.b16 %v256
      %v632 = vunpack.c.h.b16 %v256
      %v633 = vunpack.c.l.b16 %v257
      %v634 = vunpack.c.h.b16 %v257
      %v635 = vunpack.c.l.b16 %v258
      %v636 = vunpack.c.h.b16 %v258
      %v637 = vunpack.c.l.b16 %v259
      %v638 = vunpack.c.h.b16 %v259
      %v639 = vunpack.c.l.b16 %v260
      %v640 = vunpack.c.h.b16 %v260
      %v641 = vunpack.c.l.b16 %v261
      %v642 = vunpack.c.h.b16 %v261
      %v643 = vunpack.c.l.b16 %v262
      %v644 = vunpack.c.h.b16 %v262
      %v645 = vunpack.c.l.b16 %v263
      %v646 = vunpack.c.h.b16 %v263
      %v647 = vunpack.c.l.b16 %v264
      %v648 = vunpack.c.h.b16 %v264
      %v649 = vunpack.c.l.b16 %v265
      %v650 = vunpack.c.h.b16 %v265
      %v651 = vunpack.c.l.b16 %v266
      %v652 = vunpack.c.h.b16 %v266
      %v653 = vunpack.c.l.b16 %v267
      %v654 = vunpack.c.h.b16 %v267
      %v655 = vunpack.c.l.b16 %v268
      %v656 = vunpack.c.h.b16 %v268
      %v657 = vunpack.c.l.b16 %v269
      %v658 = vunpack.c.h.b16 %v269
      %v659 = vunpack.c.l.b16 %v270
      %v660 = vunpack.c.h.b16 %v270
      %v661 = vunpack.c.l.b16 %v271
      %v662 = vunpack.c.h.b16 %v271
      %v663 = vunpack.c.l.b16 %v272
      %v664 = vunpack.c.h.b16 %v272
      %v665 = vunpack.c.l.b16 %v273
      %v666 = vunpack.c.h.b16 %v273
      %v667 = vunpack.c.l.b16 %v274
      %v668 = vunpack.c.h.b16 %v274
      %v669 = vunpack.c.l.b16 %v275
      %v670 = vunpack.c.h.b16 %v275
      %v671 = vunpack.c.l.b16 %v276
      %v672 = vunpack.c.h.b16 %v276
      %v673 = vunpack.c.l.b16 %v277
      %v674 = vunpack.c.h.b16 %v277
      %v675 = vunpack.c.l.b16 %v278
      %v676 = vunpack.c.h.b16 %v278
      %v677 = vunpack.c.l.b16 %v279
      %v678 = vunpack.c.h.b16 %v279
      %v679 = vunpack.c.l.b16 %v280
      %v680 = vunpack.c.h.b16 %v280
      %v681 = vunpack.c.l.b16 %v281
      %v682 = vunpack.c.h.b16 %v281
      %v683 = vunpack.c.l.b16 %v282
      %v684 = vunpack.c.h.b16 %v282
      %v685 = vunpack.c.l.b16 %v283
      %v686 = vunpack.c.h.b16 %v283
      %v687 = vpack.c.b16 %v633, %v615
      %v688 = vpack.c.b16 %v634, %v616
      %v689 = vpack.c.b16 %v635, %v617
      %v690 = vpack.c.b16 %v636, %v618
      %v691 = vpack.c.b16 %v637, %v619
      %v692 = vpack.c.b16 %v638, %v620
      %v693 = vpack.c.b16 %v639, %v621
      %v694 = vpack.c.b16 %v640, %v622
      %v695 = vpack.c.b16 %v641, %v623
      %v696 = vpack.c.b16 %v642, %v624
      %v697 = vpack.c.b16 %v643, %v625
      %v698 = vpack.c.b16 %v644, %v626
      %v699 = vpack.c.b16 %v645, %v627
      %v700 = vpack.c.b16 %v646, %v628
      %v701 = vpack.c.b16 %v647, %v629
      %v702 = vpack.c.b16 %v648, %v630
      %v703 = vpack.c.b16 %v649, %v631
      %v704 = vpack.c.b16 %v650, %v632
      %v705 = vpack.c.b16 %v669, %v651
      %v706 = vpack.c.b16 %v670, %v652
      %v707 = vpack.c.b16 %v671, %v653
      %v708 = vpack.c.b16 %v672, %v654
      %v709 = vpack.c.b16 %v673, %v655
      %v710 = vpack.c.b16 %v674, %v656
      %v711 = vpack.c.b16 %v675, %v657
      %v712 = vpack.c.b16 %v676, %v658
      %v713 = vpack.c.b16 %v677, %v659
      %v714 = vpack.c.b16 %v678, %v660
      %v715 = vpack.c.b16 %v679, %v661
      %v716 = vpack.c.b16 %v680, %v662
      %v717 = vpack.c.b16 %v681, %v663
      %v718 = vpack.c.b16 %v682, %v664
      %v719 = vpack.c.b16 %v683, %v665
      %v720 = vpack.c.b16 %v684, %v666
      %v721 = vpack.c.b16 %v685, %v667
      %v722 = vpack.c.b16 %v686, %v668
      %v1047 = vunpack.c.l.b16 %v284
      %v1048 = vunpack.c.l.b16 %v285
      %v1049 = vunpack.c.l.b16 %v286
      %v1050 = vunpack.c.l.b16 %v287
      %v1051 = vunpack.c.l.b16 %v288
      %v1052 = vunpack.c.l.b16 %v289
      %v1053 = vunpack.c.l.b16 %v290
      %v1054 = vunpack.c.l.b16 %v291
      %v1055 = vunpack.c.l.b16 %v292
      %v1056 = vunpack.c.l.b16 %v293
      %v1057 = vunpack.c.l.b16 %v294
      %v1058 = vunpack.c.l.b16 %v295
      %v1059 = vunpack.c.l.b16 %v296
      %v1060 = vunpack.c.l.b16 %v297
      %v1061 = vunpack.c.l.b16 %v298
      %v1062 = vunpack.c.l.b16 %v299
      %v1063 = vunpack.c.l.b16 %v300
      %v1064 = vunpack.c.l.b16 %v301
      %v1065 = vunpack.c.l.b16 %v302
      %v1066 = vunpack.c.l.b16 %v303
      %v1067 = vunpack.c.l.b16 %v304
      %v1068 = vunpack.c.l.b16 %v305
      %v1069 = vunpack.c.l.b16 %v306
      %v1070 = vunpack.c.l.b16 %v307
      %v1071 = vunpack.c.l.b16 %v308
      %v1072 = vunpack.c.l.b16 %v309
      %v1073 = vunpack.c.l.b16 %v310
      %v1074 = vunpack.c.l.b16 %v311
      %v1075 = vunpack.c.l.b16 %v312
      %v1076 = vunpack.c.l.b16 %v313
      %v1077 = vunpack.c.l.b16 %v314
      %v1078 = vunpack.c.l.b16 %v315
      %v1079 = vunpack.c.l.b16 %v316
      %v1080 = vunpack.c.l.b16 %v317
      %v1081 = vunpack.c.l.b16 %v318
      %v1082 = vunpack.c.l.b16 %v319
      %v1083 = vunpack.c.l.b16 %v320
      %v1084 = vunpack.c.l.b16 %v321
      %v1085 = vunpack.c.l.b16 %v322
      %v1086 = vunpack.c.l.b16 %v323
      %v1087 = vunpack.c.l.b16 %v324
      %v1088 = vunpack.c.l.b16 %v325
      %v1089 = vunpack.c.l.b16 %v326
      %v1090 = vunpack.c.l.b16 %v327
      %v1091 = vunpack.c.l.b16 %v328
      %v1092 = vunpack.c.l.b16 %v329
      %v1093 = vunpack.c.l.b16 %v330
      %v1094 = vunpack.c.l.b16 %v331
      %v1095 = vunpack.c.l.b16 %v332
      %v1096 = vunpack.c.l.b16 %v333
      %v1097 = vunpack.c.l.b16 %v334
      %v1098 = vunpack.c.l.b16 %v335
      %v1099 = vunpack.c.l.b16 %v336
      %v1100 = vunpack.c.l.b16 %v337
      %v1101 = vunpack.c.l.b16 %v338
      %v1102 = vunpack.c.l.b16 %v339
      %v1103 = vunpack.c.l.b16 %v340
      %v1104 = vunpack.c.l.b16 %v341
      %v1105 = vunpack.c.l.b16 %v342
      %v1106 = vunpack.c.l.b16 %v343
      %v1107 = vunpack.c.l.b16 %v344
      %v1108 = vunpack.c.l.b16 %v345
      %v1109 = vunpack.c.l.b16 %v346
      %v1110 = vunpack.c.l.b16 %v347
      %v1111 = vunpack.c.l.b16 %v348
      %v1112 = vunpack.c.l.b16 %v349
      %v1113 = vunpack.c.l.b16 %v350
      %v1114 = vunpack.c.l.b16 %v351
      %v1115 = vunpack.c.l.b16 %v352
      %v1116 = vunpack.c.l.b16 %v353
      %v1117 = vunpack.c.l.b16 %v354
      %v1118 = vunpack.c.l.b16 %v355
      %v1119 = vunpack.c.l.b16 %v356
      %v1120 = vunpack.c.l.b16 %v357
      %v1121 = vunpack.c.l.b16 %v358
      %v1122 = vunpack.c.l.b16 %v359
      %v1123 = vunpack.c.l.b16 %v360
      %v1124 = vunpack.c.l.b16 %v361
      %v1125 = vunpack.c.l.b16 %v362
      %v1126 = vunpack.c.l.b16 %v363
      %v1127 = vunpack.c.l.b16 %v364
      %v1128 = vunpack.c.l.b16 %v365
      %v1129 = vunpack.c.l.b16 %v366
      %v1130 = vunpack.c.l.b16 %v367
      %v1131 = vunpack.c.l.b16 %v368
      %v1132 = vunpack.c.l.b16 %v369
      %v1133 = vunpack.c.l.b16 %v370
      %v1134 = vunpack.c.l.b16 %v371
      %v1135 = vunpack.c.l.b16 %v372
      %v1136 = vunpack.c.l.b16 %v373
      %v1137 = vunpack.c.l.b16 %v374
      %v1138 = vunpack.c.l.b16 %v375
      %v1139 = vunpack.c.l.b16 %v376
      %v1140 = vunpack.c.l.b16 %v377
      %v1141 = vunpack.c.l.b16 %v378
      %v1142 = vunpack.c.l.b16 %v379
      %v1143 = vunpack.c.l.b16 %v380
      %v1144 = vunpack.c.l.b16 %v381
      %v1145 = vunpack.c.l.b16 %v382
      %v1146 = vunpack.c.l.b16 %v383
      %v1147 = vunpack.c.l.b16 %v384
      %v1148 = vunpack.c.l.b16 %v385
      %v1149 = vunpack.c.l.b16 %v386
      %v1150 = vunpack.c.l.b16 %v387
      %v1151 = vunpack.c.l.b16 %v388
      %v1152 = vunpack.c.l.b16 %v389
      %v1153 = vunpack.c.l.b16 %v390
      %v1154 = vunpack.c.l.b16 %v391
      %v1155 = vunpack.c.l.b16 %v392
      %v1156 = vunpack.c.l.b16 %v393
      %v1157 = vunpack.c.l.b16 %v394
      %v1158 = vunpack.c.l.b16 %v395
      %v1159 = vunpack.c.l.b16 %v396
      %v1160 = vunpack.c.l.b16 %v397
      %v1161 = vunpack.c.l.b16 %v398
      %v1162 = vunpack.c.l.b16 %v399
      %v1163 = vunpack.c.l.b16 %v400
      %v1164 = vunpack.c.l.b16 %v401
      %v1165 = vunpack.c.l.b16 %v402
      %v1166 = vunpack.c.l.b16 %v403
      %v1167 = vunpack.c.l.b16 %v404
      %v1168 = vunpack.c.l.b16 %v405
      %v1169 = vunpack.c.l.b16 %v406
      %v1170 = vunpack.c.l.b16 %v407
      %v1171 = vunpack.c.l.b16 %v408
      %v1172 = vunpack.c.l.b16 %v409
      %v1173 = vunpack.c.l.b16 %v410
      %v1174 = vunpack.c.l.b16 %v411
      %v1175 = vunpack.c.l.b16 %v412
      %v1176 = vunpack.c.l.b16 %v413
      %v1177 = vunpack.c.l.b16 %v414
      %v1178 = vunpack.c.l.b16 %v415
      %v1179 = vunpack.c.l.b16 %v416
      %v1180 = vunpack.c.l.b16 %v417
      %v1181 = vunpack.c.l.b16 %v418
      %v1182 = vunpack.c.l.b16 %v419
      %v1183 = vunpack.c.l.b16 %v420
      %v1184 = vunpack.c.l.b16 %v421
      %v1185 = vunpack.c.l.b16 %v422
      %v1186 = vunpack.c.l.b16 %v423
      %v1187 = vunpack.c.l.b16 %v424
      %v1188 = vunpack.c.l.b16 %v425
      %v1189 = vunpack.c.l.b16 %v426
      %v1190 = vunpack.c.l.b16 %v427
      %v1191 = vunpack.c.l.b16 %v428
      %v1192 = vunpack.c.l.b16 %v429
      %v1193 = vunpack.c.l.b16 %v430
      %v1194 = vunpack.c.l.b16 %v431
      %v1195 = vunpack.c.l.b16 %v432
      %v1196 = vunpack.c.l.b16 %v433
      %v1197 = vunpack.c.l.b16 %v434
      %v1198 = vunpack.c.l.b16 %v435
      %v1199 = vunpack.c.l.b16 %v436
      %v1200 = vunpack.c.l.b16 %v437
      %v1201 = vunpack.c.l.b16 %v438
      %v1202 = vunpack.c.l.b16 %v439
      %v1203 = vunpack.c.l.b16 %v440
      %v1204 = vunpack.c.l.b16 %v441
      %v1205 = vunpack.c.l.b16 %v442
      %v1206 = vunpack.c.l.b16 %v443
      %v1207 = vunpack.c.l.b16 %v444
      %v1208 = vunpack.c.l.b16 %v445
      %v1209 = vunpack.c.l.b16 %v446
      %v1210 = vunpack.c.l.b16 %v447
      %v1211 = vunpack.c.l.b16 %v448
      %v1212 = vunpack.c.l.b16 %v449
      %v1213 = vunpack.c.l.b16 %v450
      %v1214 = vunpack.c.l.b16 %v451
      %v1215 = vunpack.c.l.b16 %v452
      %v1216 = vunpack.c.l.b16 %v453
      %v1217 = vunpack.c.l.b16 %v454
      %v1218 = vunpack.c.l.b16 %v455
      %v1219 = vunpack.c.l.b16 %v456
      %v1220 = vunpack.c.l.b16 %v457
      %v1221 = vunpack.c.l.b16 %v458
      %v1222 = vunpack.c.l.b16 %v459
      %v1223 = vunpack.c.l.b16 %v460
      %v1224 = vunpack.c.l.b16 %v461
      %v1225 = vunpack.c.l.b16 %v462
      %v1226 = vunpack.c.l.b16 %v463
      %v1227 = vunpack.c.l.b16 %v464
      %v1228 = vunpack.c.l.b16 %v465
      %v1229 = vunpack.c.l.b16 %v466
      %v1230 = vunpack.c.l.b16 %v467
      %v1231 = vunpack.c.l.b16 %v468
      %v1232 = vunpack.c.l.b16 %v469
      %v1233 = vunpack.c.l.b16 %v470
      %v1234 = vunpack.c.l.b16 %v471
      %v1235 = vunpack.c.l.b16 %v472
      %v1236 = vunpack.c.l.b16 %v473
      %v1237 = vunpack.c.l.b16 %v474
      %v1238 = vunpack.c.l.b16 %v475
      %v1239 = vunpack.c.l.b16 %v476
      %v1240 = vunpack.c.l.b16 %v477
      %v1241 = vunpack.c.l.b16 %v478
      %v1242 = vunpack.c.l.b16 %v479
      %v1243 = vunpack.c.l.b16 %v480
      %v1244 = vunpack.c.l.b16 %v481
      %v1245 = vunpack.c.l.b16 %v482
      %v1246 = vunpack.c.l.b16 %v483
      %v1247 = vunpack.c.l.b16 %v484
      %v1248 = vunpack.c.l.b16 %v485
      %v1249 = vunpack.c.l.b16 %v486
      %v1250 = vunpack.c.l.b16 %v487
      %v1251 = vunpack.c.l.b16 %v488
      %v1252 = vunpack.c.l.b16 %v489
      %v1253 = vunpack.c.l.b16 %v490
      %v1254 = vunpack.c.l.b16 %v491
      %v1255 = vunpack.c.l.b16 %v492
      %v1256 = vunpack.c.l.b16 %v493
      %v1257 = vunpack.c.l.b16 %v494
      %v1258 = vunpack.c.l.b16 %v495
      %v1259 = vunpack.c.l.b16 %v496
      %v1260 = vunpack.c.l.b16 %v497
      %v1261 = vunpack.c.l.b16 %v498
      %v1262 = vunpack.c.l.b16 %v499
      %v1263 = vunpack.c.l.b16 %v500
      %v1264 = vunpack.c.l.b16 %v501
      %v1265 = vunpack.c.l.b16 %v502
      %v1266 = vunpack.c.l.b16 %v503
      %v1267 = vunpack.c.l.b16 %v504
      %v1268 = vunpack.c.l.b16 %v505
      %v1269 = vunpack.c.l.b16 %v506
      %v1270 = vunpack.c.l.b16 %v507
      %v1271 = vunpack.c.l.b16 %v508
      %v1272 = vunpack.c.l.b16 %v509
      %v1273 = vunpack.c.l.b16 %v510
      %v1274 = vunpack.c.l.b16 %v511
      %v1275 = vunpack.c.l.b16 %v512
      %v1276 = vunpack.c.l.b16 %v513
      %v1277 = vunpack.c.l.b16 %v514
      %v1278 = vunpack.c.l.b16 %v515
      %v1279 = vunpack.c.l.b16 %v516
      %v1280 = vunpack.c.l.b16 %v517
      %v1281 = vunpack.c.l.b16 %v518
      %v1282 = vunpack.c.l.b16 %v519
      %v1283 = vunpack.c.l.b16 %v520
      %v1284 = vunpack.c.l.b16 %v521
      %v1285 = vunpack.c.l.b16 %v522
      %v1286 = vunpack.c.l.b16 %v523
      %v1287 = vunpack.c.l.b16 %v524
      %v1288 = vunpack.c.l.b16 %v525
      %v1289 = vunpack.c.l.b16 %v526
      %v1290 = vunpack.c.l.b16 %v527
      %v1291 = vunpack.c.l.b16 %v528
      %v1292 = vunpack.c.l.b16 %v529
      %v1293 = vunpack.c.l.b16 %v530
      %v1294 = vunpack.c.l.b16 %v531
      %v1295 = vunpack.c.l.b16 %v532
      %v1296 = vunpack.c.l.b16 %v533
      %v1297 = vunpack.c.l.b16 %v534
      %v1298 = vunpack.c.l.b16 %v535
      %v1299 = vunpack.c.l.b16 %v536
      %v1300 = vunpack.c.l.b16 %v537
      %v1301 = vunpack.c.l.b16 %v538
      %v1302 = vunpack.c.l.b16 %v539
      %v1303 = vunpack.c.l.b16 %v540
      %v1304 = vunpack.c.l.b16 %v541
      %v1305 = vunpack.c.l.b16 %v542
      %v1306 = vunpack.c.l.b16 %v543
      %v1307 = vunpack.c.l.b16 %v544
      %v1308 = vunpack.c.l.b16 %v545
      %v1309 = vunpack.c.l.b16 %v546
      %v1310 = vunpack.c.l.b16 %v547
      %v1311 = vunpack.c.l.b16 %v548
      %v1312 = vunpack.c.l.b16 %v549
      %v1313 = vunpack.c.l.b16 %v550
      %v1314 = vunpack.c.l.b16 %v551
      %v1315 = vunpack.c.l.b16 %v552
      %v1316 = vunpack.c.l.b16 %v553
      %v1317 = vunpack.c.l.b16 %v554
      %v1318 = vunpack.c.l.b16 %v555
      %v1319 = vunpack.c.l.b16 %v556
      %v1320 = vunpack.c.l.b16 %v557
      %v1321 = vunpack.c.l.b16 %v558
      %v1322 = vunpack.c.l.b16 %v559
      %v1323 = vunpack.c.l.b16 %v560
      %v1324 = vunpack.c.l.b16 %v561
      %v1325 = vunpack.c.l.b16 %v562
      %v1326 = vunpack.c.l.b16 %v563
      %v1327 = vunpack.c.l.b16 %v564
      %v1328 = vunpack.c.l.b16 %v565
      %v1329 = vunpack.c.l.b16 %v566
      %v1330 = vunpack.c.l.b16 %v567
      %v1331 = vunpack.c.l.b16 %v568
      %v1332 = vunpack.c.l.b16 %v569
      %v1333 = vunpack.c.l.b16 %v570
      %v1334 = vunpack.c.l.b16 %v571
      %v1335 = vpack.c.b16 %v1048, %v1047
      %v1336 = vpack.c.b16 %v1050, %v1049
      %v1337 = vpack.c.b16 %v1052, %v1051
      %v1338 = vpack.c.b16 %v1054, %v1053
      %v1339 = vpack.c.b16 %v1056, %v1055
      %v1340 = vpack.c.b16 %v1058, %v1057
      %v1341 = vpack.c.b16 %v1060, %v1059
      %v1342 = vpack.c.b16 %v1062, %v1061
      %v1343 = vpack.c.b16 %v1064, %v1063
      %v1344 = vpack.c.b16 %v1066, %v1065
      %v1345 = vpack.c.b16 %v1068, %v1067
      %v1346 = vpack.c.b16 %v1070, %v1069
      %v1347 = vpack.c.b16 %v1072, %v1071
      %v1348 = vpack.c.b16 %v1074, %v1073
      %v1349 = vpack.c.b16 %v1076, %v1075
      %v1350 = vpack.c.b16 %v1078, %v1077
      %v1351 = vpack.c.b16 %v1080, %v1079
      %v1352 = vpack.c.b16 %v1082, %v1081
      %v1353 = vpack.c.b16 %v1084, %v1083
      %v1354 = vpack.c.b16 %v1086, %v1085
      %v1355 = vpack.c.b16 %v1088, %v1087
      %v1356 = vpack.c.b16 %v1090, %v1089
      %v1357 = vpack.c.b16 %v1092, %v1091
      %v1358 = vpack.c.b16 %v1094, %v1093
      %v1359 = vpack.c.b16 %v1096, %v1095
      %v1360 = vpack.c.b16 %v1098, %v1097
      %v1361 = vpack.c.b16 %v1100, %v1099
      %v1362 = vpack.c.b16 %v1102, %v1101
      %v1363 = vpack.c.b16 %v1104, %v1103
      %v1364 = vpack.c.b16 %v1106, %v1105
      %v1365 = vpack.c.b16 %v1108, %v1107
      %v1366 = vpack.c.b16 %v1110, %v1109
      %v1367 = vpack.c.b16 %v1112, %v1111
      %v1368 = vpack.c.b16 %v1114, %v1113
      %v1369 = vpack.c.b16 %v1116, %v1115
      %v1370 = vpack.c.b16 %v1118, %v1117
      %v1371 = vpack.c.b16 %v1120, %v1119
      %v1372 = vpack.c.b16 %v1122, %v1121
      %v1373 = vpack.c.b16 %v1124, %v1123
      %v1374 = vpack.c.b16 %v1126, %v1125
      %v1375 = vpack.c.b16 %v1128, %v1127
      %v1376 = vpack.c.b16 %v1130, %v1129
      %v1377 = vpack.c.b16 %v1132, %v1131
      %v1378 = vpack.c.b16 %v1134, %v1133
      %v1379 = vpack.c.b16 %v1136, %v1135
      %v1380 = vpack.c.b16 %v1138, %v1137
      %v1381 = vpack.c.b16 %v1140, %v1139
      %v1382 = vpack.c.b16 %v1142, %v1141
      %v1383 = vpack.c.b16 %v1144, %v1143
      %v1384 = vpack.c.b16 %v1146, %v1145
      %v1385 = vpack.c.b16 %v1148, %v1147
      %v1386 = vpack.c.b16 %v1150, %v1149
      %v1387 = vpack.c.b16 %v1152, %v1151
      %v1388 = vpack.c.b16 %v1154, %v1153
      %v1389 = vpack.c.b16 %v1156, %v1155
      %v1390 = vpack.c.b16 %v1158, %v1157
      %v1391 = vpack.c.b16 %v1160, %v1159
      %v1392 = vpack.c.b16 %v1162, %v1161
      %v1393 = vpack.c.b16 %v1164, %v1163
      %v1394 = vpack.c.b16 %v1166, %v1165
      %v1395 = vpack.c.b16 %v1168, %v1167
      %v1396 = vpack.c.b16 %v1170, %v1169
      %v1397 = vpack.c.b16 %v1172, %v1171
      %v1398 = vpack.c.b16 %v1174, %v1173
      %v1399 = vpack.c.b16 %v1176, %v1175
      %v1400 = vpack.c.b16 %v1178, %v1177
      %v1401 = vpack.c.b16 %v1180, %v1179
      %v1402 = vpack.c.b16 %v1182, %v1181
      %v1403 = vpack.c.b16 %v1184, %v1183
      %v1404 = vpack.c.b16 %v1186, %v1185
      %v1405 = vpack.c.b16 %v1188, %v1187
      %v1406 = vpack.c.b16 %v1190, %v1189
      %v1407 = vpack.c.b16 %v1192, %v1191
      %v1408 = vpack.c.b16 %v1194, %v1193
      %v1409 = vpack.c.b16 %v1196, %v1195
      %v1410 = vpack.c.b16 %v1198, %v1197
      %v1411 = vpack.c.b16 %v1200, %v1199
      %v1412 = vpack.c.b16 %v1202, %v1201
      %v1413 = vpack.c.b16 %v1204, %v1203
      %v1414 = vpack.c.b16 %v1206, %v1205
      %v1415 = vpack.c.b16 %v1208, %v1207
      %v1416 = vpack.c.b16 %v1210, %v1209
      %v1417 = vpack.c.b16 %v1212, %v1211
      %v1418 = vpack.c.b16 %v1214, %v1213
      %v1419 = vpack.c.b16 %v1216, %v1215
      %v1420 = vpack.c.b16 %v1218, %v1217
      %v1421 = vpack.c.b16 %v1220, %v1219
      %v1422 = vpack.c.b16 %v1222, %v1221
      %v1423 = vpack.c.b16 %v1224, %v1223
      %v1424 = vpack.c.b16 %v1226, %v1225
      %v1425 = vpack.c.b16 %v1228, %v1227
      %v1426 = vpack.c.b16 %v1230, %v1229
      %v1427 = vpack.c.b16 %v1232, %v1231
      %v1428 = vpack.c.b16 %v1234, %v1233
      %v1429 = vpack.c.b16 %v1236, %v1235
      %v1430 = vpack.c.b16 %v1238, %v1237
      %v1431 = vpack.c.b16 %v1240, %v1239
      %v1432 = vpack.c.b16 %v1242, %v1241
      %v1433 = vpack.c.b16 %v1244, %v1243
      %v1434 = vpack.c.b16 %v1246, %v1245
      %v1435 = vpack.c.b16 %v1248, %v1247
      %v1436 = vpack.c.b16 %v1250, %v1249
      %v1437 = vpack.c.b16 %v1252, %v1251
      %v1438 = vpack.c.b16 %v1254, %v1253
      %v1439 = vpack.c.b16 %v1256, %v1255
      %v1440 = vpack.c.b16 %v1258, %v1257
      %v1441 = vpack.c.b16 %v1260, %v1259
      %v1442 = vpack.c.b16 %v1262, %v1261
      %v1443 = vpack.c.b16 %v1264, %v1263
      %v1444 = vpack.c.b16 %v1266, %v1265
      %v1445 = vpack.c.b16 %v1268, %v1267
      %v1446 = vpack.c.b16 %v1270, %v1269
      %v1447 = vpack.c.b16 %v1272, %v1271
      %v1448 = vpack.c.b16 %v1274, %v1273
      %v1449 = vpack.c.b16 %v1276, %v1275
      %v1450 = vpack.c.b16 %v1278, %v1277
      %v1451 = vpack.c.b16 %v1280, %v1279
      %v1452 = vpack.c.b16 %v1282, %v1281
      %v1453 = vpack.c.b16 %v1284, %v1283
      %v1454 = vpack.c.b16 %v1286, %v1285
      %v1455 = vpack.c.b16 %v1288, %v1287
      %v1456 = vpack.c.b16 %v1290, %v1289
      %v1457 = vpack.c.b16 %v1292, %v1291
      %v1458 = vpack.c.b16 %v1294, %v1293
      %v1459 = vpack.c.b16 %v1296, %v1295
      %v1460 = vpack.c.b16 %v1298, %v1297
      %v1461 = vpack.c.b16 %v1300, %v1299
      %v1462 = vpack.c.b16 %v1302, %v1301
      %v1463 = vpack.c.b16 %v1304, %v1303
      %v1464 = vpack.c.b16 %v1306, %v1305
      %v1465 = vpack.c.b16 %v1308, %v1307
      %v1466 = vpack.c.b16 %v1310, %v1309
      %v1467 = vpack.c.b16 %v1312, %v1311
      %v1468 = vpack.c.b16 %v1314, %v1313
      %v1469 = vpack.c.b16 %v1316, %v1315
      %v1470 = vpack.c.b16 %v1318, %v1317
      %v1471 = vpack.c.b16 %v1320, %v1319
      %v1472 = vpack.c.b16 %v1322, %v1321
      %v1473 = vpack.c.b16 %v1324, %v1323
      %v1474 = vpack.c.b16 %v1326, %v1325
      %v1475 = vpack.c.b16 %v1328, %v1327
      %v1476 = vpack.c.b16 %v1330, %v1329
      %v1477 = vpack.c.b16 %v1332, %v1331
      %v1478 = vpack.c.b16 %v1334, %v1333
      %1623 = vmatprep.subr.bf16.mxu0 0
      %1624 = vmatpush1.bf16.msra.mxu0 %v1335
      %1625 = vmatprep.subr.bf16.mxu0 0
      %1626 = vmatpush1.bf16.msra.mxu0 %v1336
      %1627 = vmatprep.subr.bf16.mxu0 0
      %1628 = vmatpush1.bf16.msra.mxu0 %v1337
      %1629 = vmatprep.subr.bf16.mxu0 0
      %1630 = vmatpush1.bf16.msra.mxu0 %v1338
      %1631 = vmatprep.subr.bf16.mxu0 0
      %1632 = vmatpush1.bf16.msra.mxu0 %v1339
      %1633 = vmatprep.subr.bf16.mxu0 0
      %1634 = vmatpush1.bf16.msra.mxu0 %v1340
      %1635 = vmatprep.subr.bf16.mxu0 0
      %1636 = vmatpush1.bf16.msra.mxu0 %v1341
      %1637 = vmatprep.subr.bf16.mxu0 0
      %1638 = vmatpush1.bf16.msra.mxu0 %v1342
      %1639 = vmatprep.subr.bf16.mxu0 0
      %1640 = vmatpush1.bf16.msra.mxu0 %v1343
      %1641 = vmatprep.subr.bf16.mxu0 0
      %1642 = vmatpush1.bf16.msra.mxu0 %v1344
      %1643 = vmatprep.subr.bf16.mxu0 0
      %1644 = vmatpush1.bf16.msra.mxu0 %v1345
      %1645 = vmatprep.subr.bf16.mxu0 0
      %1646 = vmatpush1.bf16.msra.mxu0 %v1346
      %1647 = vmatprep.subr.bf16.mxu0 0
      %1648 = vmatpush1.bf16.msra.mxu0 %v1347
      %1649 = vmatprep.subr.bf16.mxu0 0
      %1650 = vmatpush1.bf16.msra.mxu0 %v1348
      %1651 = vmatprep.subr.bf16.mxu0 0
      %1652 = vmatpush1.bf16.msra.mxu0 %v1349
      %1653 = vmatprep.subr.bf16.mxu0 0
      %1654 = vmatpush1.bf16.msra.mxu0 %v1350
      %1655 = vmatprep.mubr.bf16.mxu0 %v688
      %1656 = vmatmul.mubr.bf16.gmra.mrb[0].mxu0 %v687
      %v1657 = vpop.f32.mrb[0].mxu0
      %v1658 = vadd.f32 %v577, %v1657
      %v1659 = vpop.f32.mrb[0].mxu0
      %v1660 = vpop.f32.mrb[0].mxu0
      %v1661 = vadd.f32 %v577, %v1660
      %v1662 = vpop.f32.mrb[0].mxu0
      %1663 = vmatprep.mubr.bf16.mxu0 %v706
      %1664 = vmatmul.mubr.bf16.gmra.mrb[0].mxu0 %v705
      %v1665 = vpop.f32.mrb[0].mxu0
      %v1666 = vadd.f32 %v577, %v1665
      %v1667 = vpop.f32.mrb[0].mxu0
      %v1668 = vpop.f32.mrb[0].mxu0
      %v1669 = vadd.f32 %v577, %v1668
      %v1670 = vpop.f32.mrb[0].mxu0
      %1671 = vdwg.mxu0
      %1672 = vmatprep.subr.bf16.mxu0 0
      %1673 = vmatpush1.bf16.msra.mxu0 %v1351
      %1674 = vmatprep.subr.bf16.mxu0 0
      %1675 = vmatpush1.bf16.msra.mxu0 %v1352
      %1676 = vmatprep.subr.bf16.mxu0 0
      %1677 = vmatpush1.bf16.msra.mxu0 %v1353
      %1678 = vmatprep.subr.bf16.mxu0 0
      %1679 = vmatpush1.bf16.msra.mxu0 %v1354
      %1680 = vmatprep.subr.bf16.mxu0 0
      %1681 = vmatpush1.bf16.msra.mxu0 %v1355
      %1682 = vmatprep.subr.bf16.mxu0 0
      %1683 = vmatpush1.bf16.msra.mxu0 %v1356
      %1684 = vmatprep.subr.bf16.mxu0 0
      %1685 = vmatpush1.bf16.msra.mxu0 %v1357
      %1686 = vmatprep.subr.bf16.mxu0 0
      %1687 = vmatpush1.bf16.msra.mxu0 %v1358
      %1688 = vmatprep.subr.bf16.mxu0 0
      %1689 = vmatpush1.bf16.msra.mxu0 %v1359
      %1690 = vmatprep.subr.bf16.mxu0 0
      %1691 = vmatpush1.bf16.msra.mxu0 %v1360
      %1692 = vmatprep.subr.bf16.mxu0 0
      %1693 = vmatpush1.bf16.msra.mxu0 %v1361
      %1694 = vmatprep.subr.bf16.mxu0 0
      %1695 = vmatpush1.bf16.msra.mxu0 %v1362
      %1696 = vmatprep.subr.bf16.mxu0 0
      %1697 = vmatpush1.bf16.msra.mxu0 %v1363
      %1698 = vmatprep.subr.bf16.mxu0 0
      %1699 = vmatpush1.bf16.msra.mxu0 %v1364
      %1700 = vmatprep.subr.bf16.mxu0 0
      %1701 = vmatpush1.bf16.msra.mxu0 %v1365
      %1702 = vmatprep.subr.bf16.mxu0 0
      %1703 = vmatpush1.bf16.msra.mxu0 %v1366
      %1704 = vmatprep.mubr.bf16.mxu0 %v690
      %1705 = vmatmul.mubr.bf16.gmra.mrb[0].mxu0 %v689
      %v1706 = vpop.f32.mrb[0].mxu0
      %v1707 = vadd.f32 %v1658, %v1706
      %v1708 = vpop.f32.mrb[0].mxu0
      %v1709 = vpop.f32.mrb[0].mxu0
      %v1710 = vadd.f32 %v1661, %v1709
      %v1711 = vpop.f32.mrb[0].mxu0
      %1712 = vmatprep.mubr.bf16.mxu0 %v708
      %1713 = vmatmul.mubr.bf16.gmra.mrb[0].mxu0 %v707
      %v1714 = vpop.f32.mrb[0].mxu0
      %v1715 = vadd.f32 %v1666, %v1714
      %v1716 = vpop.f32.mrb[0].mxu0
      %v1717 = vpop.f32.mrb[0].mxu0
      %v1718 = vadd.f32 %v1669, %v1717
      %v1719 = vpop.f32.mrb[0].mxu0
      %1720 = vdwg.mxu0
      %1721 = vmatprep.subr.bf16.mxu0 0
      %1722 = vmatpush1.bf16.msra.mxu0 %v1367
      %1723 = vmatprep.subr.bf16.mxu0 0
      %1724 = vmatpush1.bf16.msra.mxu0 %v1368
      %1725 = vmatprep.subr.bf16.mxu0 0
      %1726 = vmatpush1.bf16.msra.mxu0 %v1369
      %1727 = vmatprep.subr.bf16.mxu0 0
      %1728 = vmatpush1.bf16.msra.mxu0 %v1370
      %1729 = vmatprep.subr.bf16.mxu0 0
      %1730 = vmatpush1.bf16.msra.mxu0 %v1371
      %1731 = vmatprep.subr.bf16.mxu0 0
      %1732 = vmatpush1.bf16.msra.mxu0 %v1372
      %1733 = vmatprep.subr.bf16.mxu0 0
      %1734 = vmatpush1.bf16.msra.mxu0 %v1373
      %1735 = vmatprep.subr.bf16.mxu0 0
      %1736 = vmatpush1.bf16.msra.mxu0 %v1374
      %1737 = vmatprep.subr.bf16.mxu0 0
      %1738 = vmatpush1.bf16.msra.mxu0 %v1375
      %1739 = vmatprep.subr.bf16.mxu0 0
      %1740 = vmatpush1.bf16.msra.mxu0 %v1376
      %1741 = vmatprep.subr.bf16.mxu0 0
      %1742 = vmatpush1.bf16.msra.mxu0 %v1377
      %1743 = vmatprep.subr.bf16.mxu0 0
      %1744 = vmatpush1.bf16.msra.mxu0 %v1378
      %1745 = vmatprep.subr.bf16.mxu0 0
      %1746 = vmatpush1.bf16.msra.mxu0 %v1379
      %1747 = vmatprep.subr.bf16.mxu0 0
      %1748 = vmatpush1.bf16.msra.mxu0 %v1380
      %1749 = vmatprep.subr.bf16.mxu0 0
      %1750 = vmatpush1.bf16.msra.mxu0 %v1381
      %1751 = vmatprep.subr.bf16.mxu0 0
      %1752 = vmatpush1.bf16.msra.mxu0 %v1382
      %1753 = vmatprep.mubr.bf16.mxu0 %v692
      %1754 = vmatmul.mubr.bf16.gmra.mrb[0].mxu0 %v691
      %v1755 = vpop.f32.mrb[0].mxu0
      %v1756 = vadd.f32 %v1707, %v1755
      %v1757 = vpop.f32.mrb[0].mxu0
      %v1758 = vpop.f32.mrb[0].mxu0
      %v1759 = vadd.f32 %v1710, %v1758
      %v1760 = vpop.f32.mrb[0].mxu0
      %1761 = vmatprep.mubr.bf16.mxu0 %v710
      %1762 = vmatmul.mubr.bf16.gmra.mrb[0].mxu0 %v709
      %v1763 = vpop.f32.mrb[0].mxu0
      %v1764 = vadd.f32 %v1715, %v1763
      %v1765 = vpop.f32.mrb[0].mxu0
      %v1766 = vpop.f32.mrb[0].mxu0
      %v1767 = vadd.f32 %v1718, %v1766
      %v1768 = vpop.f32.mrb[0].mxu0
      %1769 = vdwg.mxu0
      %1770 = vmatprep.subr.bf16.mxu0 0
      %1771 = vmatpush1.bf16.msra.mxu0 %v1383
      %1772 = vmatprep.subr.bf16.mxu0 0
      %1773 = vmatpush1.bf16.msra.mxu0 %v1384
      %1774 = vmatprep.subr.bf16.mxu0 0
      %1775 = vmatpush1.bf16.msra.mxu0 %v1385
      %1776 = vmatprep.subr.bf16.mxu0 0
      %1777 = vmatpush1.bf16.msra.mxu0 %v1386
      %1778 = vmatprep.subr.bf16.mxu0 0
      %1779 = vmatpush1.bf16.msra.mxu0 %v1387
      %1780 = vmatprep.subr.bf16.mxu0 0
      %1781 = vmatpush1.bf16.msra.mxu0 %v1388
      %1782 = vmatprep.subr.bf16.mxu0 0
      %1783 = vmatpush1.bf16.msra.mxu0 %v1389
      %1784 = vmatprep.subr.bf16.mxu0 0
      %1785 = vmatpush1.bf16.msra.mxu0 %v1390
      %1786 = vmatprep.subr.bf16.mxu0 0
      %1787 = vmatpush1.bf16.msra.mxu0 %v1391
      %1788 = vmatprep.subr.bf16.mxu0 0
      %1789 = vmatpush1.bf16.msra.mxu0 %v1392
      %1790 = vmatprep.subr.bf16.mxu0 0
      %1791 = vmatpush1.bf16.msra.mxu0 %v1393
      %1792 = vmatprep.subr.bf16.mxu0 0
      %1793 = vmatpush1.bf16.msra.mxu0 %v1394
      %1794 = vmatprep.subr.bf16.mxu0 0
      %1795 = vmatpush1.bf16.msra.mxu0 %v1395
      %1796 = vmatprep.subr.bf16.mxu0 0
      %1797 = vmatpush1.bf16.msra.mxu0 %v1396
      %1798 = vmatprep.subr.bf16.mxu0 0
      %1799 = vmatpush1.bf16.msra.mxu0 %v1397
      %1800 = vmatprep.subr.bf16.mxu0 0
      %1801 = vmatpush1.bf16.msra.mxu0 %v1398
      %1802 = vmatprep.mubr.bf16.mxu0 %v694
      %1803 = vmatmul.mubr.bf16.gmra.mrb[0].mxu0 %v693
      %v1804 = vpop.f32.mrb[0].mxu0
      %v1805 = vadd.f32 %v1756, %v1804
      %v1806 = vpop.f32.mrb[0].mxu0
      %v1807 = vpop.f32.mrb[0].mxu0
      %v1808 = vadd.f32 %v1759, %v1807
      %v1809 = vpop.f32.mrb[0].mxu0
      %1810 = vmatprep.mubr.bf16.mxu0 %v712
      %1811 = vmatmul.mubr.bf16.gmra.mrb[0].mxu0 %v711
      %v1812 = vpop.f32.mrb[0].mxu0
      %v1813 = vadd.f32 %v1764, %v1812
      %v1814 = vpop.f32.mrb[0].mxu0
      %v1815 = vpop.f32.mrb[0].mxu0
      %v1816 = vadd.f32 %v1767, %v1815
      %v1817 = vpop.f32.mrb[0].mxu0
      %1818 = vdwg.mxu0
      %1819 = vmatprep.subr.bf16.mxu0 0
      %1820 = vmatpush1.bf16.msra.mxu0 %v1399
      %1821 = vmatprep.subr.bf16.mxu0 0
      %1822 = vmatpush1.bf16.msra.mxu0 %v1400
      %1823 = vmatprep.subr.bf16.mxu0 0
      %1824 = vmatpush1.bf16.msra.mxu0 %v1401
      %1825 = vmatprep.subr.bf16.mxu0 0
      %1826 = vmatpush1.bf16.msra.mxu0 %v1402
      %1827 = vmatprep.subr.bf16.mxu0 0
      %1828 = vmatpush1.bf16.msra.mxu0 %v1403
      %1829 = vmatprep.subr.bf16.mxu0 0
      %1830 = vmatpush1.bf16.msra.mxu0 %v1404
      %1831 = vmatprep.subr.bf16.mxu0 0
      %1832 = vmatpush1.bf16.msra.mxu0 %v1405
      %1833 = vmatprep.subr.bf16.mxu0 0
      %1834 = vmatpush1.bf16.msra.mxu0 %v1406
      %1835 = vmatprep.subr.bf16.mxu0 0
      %1836 = vmatpush1.bf16.msra.mxu0 %v1407
      %1837 = vmatprep.subr.bf16.mxu0 0
      %1838 = vmatpush1.bf16.msra.mxu0 %v1408
      %1839 = vmatprep.subr.bf16.mxu0 0
      %1840 = vmatpush1.bf16.msra.mxu0 %v1409
      %1841 = vmatprep.subr.bf16.mxu0 0
      %1842 = vmatpush1.bf16.msra.mxu0 %v1410
      %1843 = vmatprep.subr.bf16.mxu0 0
      %1844 = vmatpush1.bf16.msra.mxu0 %v1411
      %1845 = vmatprep.subr.bf16.mxu0 0
      %1846 = vmatpush1.bf16.msra.mxu0 %v1412
      %1847 = vmatprep.subr.bf16.mxu0 0
      %1848 = vmatpush1.bf16.msra.mxu0 %v1413
      %1849 = vmatprep.subr.bf16.mxu0 0
      %1850 = vmatpush1.bf16.msra.mxu0 %v1414
      %1851 = vmatprep.mubr.bf16.mxu0 %v696
      %1852 = vmatmul.mubr.bf16.gmra.mrb[0].mxu0 %v695
      %v1853 = vpop.f32.mrb[0].mxu0
      %v1854 = vadd.f32 %v1805, %v1853
      %v1855 = vpop.f32.mrb[0].mxu0
      %v1856 = vpop.f32.mrb[0].mxu0
      %v1857 = vadd.f32 %v1808, %v1856
      %v1858 = vpop.f32.mrb[0].mxu0
      %1859 = vmatprep.mubr.bf16.mxu0 %v714
      %1860 = vmatmul.mubr.bf16.gmra.mrb[0].mxu0 %v713
      %v1861 = vpop.f32.mrb[0].mxu0
      %v1862 = vadd.f32 %v1813, %v1861
      %v1863 = vpop.f32.mrb[0].mxu0
      %v1864 = vpop.f32.mrb[0].mxu0
      %v1865 = vadd.f32 %v1816, %v1864
      %v1866 = vpop.f32.mrb[0].mxu0
      %1867 = vdwg.mxu0
      %1868 = vmatprep.subr.bf16.mxu0 0
      %1869 = vmatpush1.bf16.msra.mxu0 %v1415
      %1870 = vmatprep.subr.bf16.mxu0 0
      %1871 = vmatpush1.bf16.msra.mxu0 %v1416
      %1872 = vmatprep.subr.bf16.mxu0 0
      %1873 = vmatpush1.bf16.msra.mxu0 %v1417
      %1874 = vmatprep.subr.bf16.mxu0 0
      %1875 = vmatpush1.bf16.msra.mxu0 %v1418
      %1876 = vmatprep.subr.bf16.mxu0 0
      %1877 = vmatpush1.bf16.msra.mxu0 %v1419
      %1878 = vmatprep.subr.bf16.mxu0 0
      %1879 = vmatpush1.bf16.msra.mxu0 %v1420
      %1880 = vmatprep.subr.bf16.mxu0 0
      %1881 = vmatpush1.bf16.msra.mxu0 %v1421
      %1882 = vmatprep.subr.bf16.mxu0 0
      %1883 = vmatpush1.bf16.msra.mxu0 %v1422
      %1884 = vmatprep.subr.bf16.mxu0 0
      %1885 = vmatpush1.bf16.msra.mxu0 %v1423
      %1886 = vmatprep.subr.bf16.mxu0 0
      %1887 = vmatpush1.bf16.msra.mxu0 %v1424
      %1888 = vmatprep.subr.bf16.mxu0 0
      %1889 = vmatpush1.bf16.msra.mxu0 %v1425
      %1890 = vmatprep.subr.bf16.mxu0 0
      %1891 = vmatpush1.bf16.msra.mxu0 %v1426
      %1892 = vmatprep.subr.bf16.mxu0 0
      %1893 = vmatpush1.bf16.msra.mxu0 %v1427
      %1894 = vmatprep.subr.bf16.mxu0 0
      %1895 = vmatpush1.bf16.msra.mxu0 %v1428
      %1896 = vmatprep.subr.bf16.mxu0 0
      %1897 = vmatpush1.bf16.msra.mxu0 %v1429
      %1898 = vmatprep.subr.bf16.mxu0 0
      %1899 = vmatpush1.bf16.msra.mxu0 %v1430
      %1900 = vmatprep.mubr.bf16.mxu0 %v698
      %1901 = vmatmul.mubr.bf16.gmra.mrb[0].mxu0 %v697
      %v1902 = vpop.f32.mrb[0].mxu0
      %v1903 = vadd.f32 %v1854, %v1902
      %v1904 = vpop.f32.mrb[0].mxu0
      %v1905 = vpop.f32.mrb[0].mxu0
      %v1906 = vadd.f32 %v1857, %v1905
      %v1907 = vpop.f32.mrb[0].mxu0
      %1908 = vmatprep.mubr.bf16.mxu0 %v716
      %1909 = vmatmul.mubr.bf16.gmra.mrb[0].mxu0 %v715
      %v1910 = vpop.f32.mrb[0].mxu0
      %v1911 = vadd.f32 %v1862, %v1910
      %v1912 = vpop.f32.mrb[0].mxu0
      %v1913 = vpop.f32.mrb[0].mxu0
      %v1914 = vadd.f32 %v1865, %v1913
      %v1915 = vpop.f32.mrb[0].mxu0
      %1916 = vdwg.mxu0
      %1917 = vmatprep.subr.bf16.mxu0 0
      %1918 = vmatpush1.bf16.msra.mxu0 %v1431
      %1919 = vmatprep.subr.bf16.mxu0 0
      %1920 = vmatpush1.bf16.msra.mxu0 %v1432
      %1921 = vmatprep.subr.bf16.mxu0 0
      %1922 = vmatpush1.bf16.msra.mxu0 %v1433
      %1923 = vmatprep.subr.bf16.mxu0 0
      %1924 = vmatpush1.bf16.msra.mxu0 %v1434
      %1925 = vmatprep.subr.bf16.mxu0 0
      %1926 = vmatpush1.bf16.msra.mxu0 %v1435
      %1927 = vmatprep.subr.bf16.mxu0 0
      %1928 = vmatpush1.bf16.msra.mxu0 %v1436
      %1929 = vmatprep.subr.bf16.mxu0 0
      %1930 = vmatpush1.bf16.msra.mxu0 %v1437
      %1931 = vmatprep.subr.bf16.mxu0 0
      %1932 = vmatpush1.bf16.msra.mxu0 %v1438
      %1933 = vmatprep.subr.bf16.mxu0 0
      %1934 = vmatpush1.bf16.msra.mxu0 %v1439
      %1935 = vmatprep.subr.bf16.mxu0 0
      %1936 = vmatpush1.bf16.msra.mxu0 %v1440
      %1937 = vmatprep.subr.bf16.mxu0 0
      %1938 = vmatpush1.bf16.msra.mxu0 %v1441
      %1939 = vmatprep.subr.bf16.mxu0 0
      %1940 = vmatpush1.bf16.msra.mxu0 %v1442
      %1941 = vmatprep.subr.bf16.mxu0 0
      %1942 = vmatpush1.bf16.msra.mxu0 %v1443
      %1943 = vmatprep.subr.bf16.mxu0 0
      %1944 = vmatpush1.bf16.msra.mxu0 %v1444
      %1945 = vmatprep.subr.bf16.mxu0 0
      %1946 = vmatpush1.bf16.msra.mxu0 %v1445
      %1947 = vmatprep.subr.bf16.mxu0 0
      %1948 = vmatpush1.bf16.msra.mxu0 %v1446
      %1949 = vmatprep.mubr.bf16.mxu0 %v700
      %1950 = vmatmul.mubr.bf16.gmra.mrb[0].mxu0 %v699
      %v1951 = vpop.f32.mrb[0].mxu0
      %v1952 = vadd.f32 %v1903, %v1951
      %v1953 = vpop.f32.mrb[0].mxu0
      %v1954 = vpop.f32.mrb[0].mxu0
      %v1955 = vadd.f32 %v1906, %v1954
      %v1956 = vpop.f32.mrb[0].mxu0
      %1957 = vmatprep.mubr.bf16.mxu0 %v718
      %1958 = vmatmul.mubr.bf16.gmra.mrb[0].mxu0 %v717
      %v1959 = vpop.f32.mrb[0].mxu0
      %v1960 = vadd.f32 %v1911, %v1959
      %v1961 = vpop.f32.mrb[0].mxu0
      %v1962 = vpop.f32.mrb[0].mxu0
      %v1963 = vadd.f32 %v1914, %v1962
      %v1964 = vpop.f32.mrb[0].mxu0
      %1965 = vdwg.mxu0
      %1966 = vmatprep.subr.bf16.mxu0 0
      %1967 = vmatpush1.bf16.msra.mxu0 %v1447
      %1968 = vmatprep.subr.bf16.mxu0 0
      %1969 = vmatpush1.bf16.msra.mxu0 %v1448
      %1970 = vmatprep.subr.bf16.mxu0 0
      %1971 = vmatpush1.bf16.msra.mxu0 %v1449
      %1972 = vmatprep.subr.bf16.mxu0 0
      %1973 = vmatpush1.bf16.msra.mxu0 %v1450
      %1974 = vmatprep.subr.bf16.mxu0 0
      %1975 = vmatpush1.bf16.msra.mxu0 %v1451
      %1976 = vmatprep.subr.bf16.mxu0 0
      %1977 = vmatpush1.bf16.msra.mxu0 %v1452
      %1978 = vmatprep.subr.bf16.mxu0 0
      %1979 = vmatpush1.bf16.msra.mxu0 %v1453
      %1980 = vmatprep.subr.bf16.mxu0 0
      %1981 = vmatpush1.bf16.msra.mxu0 %v1454
      %1982 = vmatprep.subr.bf16.mxu0 0
      %1983 = vmatpush1.bf16.msra.mxu0 %v1455
      %1984 = vmatprep.subr.bf16.mxu0 0
      %1985 = vmatpush1.bf16.msra.mxu0 %v1456
      %1986 = vmatprep.subr.bf16.mxu0 0
      %1987 = vmatpush1.bf16.msra.mxu0 %v1457
      %1988 = vmatprep.subr.bf16.mxu0 0
      %1989 = vmatpush1.bf16.msra.mxu0 %v1458
      %1990 = vmatprep.subr.bf16.mxu0 0
      %1991 = vmatpush1.bf16.msra.mxu0 %v1459
      %1992 = vmatprep.subr.bf16.mxu0 0
      %1993 = vmatpush1.bf16.msra.mxu0 %v1460
      %1994 = vmatprep.subr.bf16.mxu0 0
      %1995 = vmatpush1.bf16.msra.mxu0 %v1461
      %1996 = vmatprep.subr.bf16.mxu0 0
      %1997 = vmatpush1.bf16.msra.mxu0 %v1462
      %1998 = vmatprep.mubr.bf16.mxu0 %v702
      %1999 = vmatmul.mubr.bf16.gmra.mrb[0].mxu0 %v701
      %v2000 = vpop.f32.mrb[0].mxu0
      %v2001 = vadd.f32 %v1952, %v2000
      %v2002 = vpop.f32.mrb[0].mxu0
      %v2003 = vpop.f32.mrb[0].mxu0
      %v2004 = vadd.f32 %v1955, %v2003
      %v2005 = vpop.f32.mrb[0].mxu0
      %2006 = vmatprep.mubr.bf16.mxu0 %v720
      %2007 = vmatmul.mubr.bf16.gmra.mrb[0].mxu0 %v719
      %v2008 = vpop.f32.mrb[0].mxu0
      %v2009 = vadd.f32 %v1960, %v2008
      %v2010 = vpop.f32.mrb[0].mxu0
      %v2011 = vpop.f32.mrb[0].mxu0
      %v2012 = vadd.f32 %v1963, %v2011
      %v2013 = vpop.f32.mrb[0].mxu0
      %2014 = vdwg.mxu0
      %2015 = vmatprep.subr.bf16.mxu0 0
      %2016 = vmatpush1.bf16.msra.mxu0 %v1463
      %2017 = vmatprep.subr.bf16.mxu0 0
      %2018 = vmatpush1.bf16.msra.mxu0 %v1464
      %2019 = vmatprep.subr.bf16.mxu0 0
      %2020 = vmatpush1.bf16.msra.mxu0 %v1465
      %2021 = vmatprep.subr.bf16.mxu0 0
      %2022 = vmatpush1.bf16.msra.mxu0 %v1466
      %2023 = vmatprep.subr.bf16.mxu0 0
      %2024 = vmatpush1.bf16.msra.mxu0 %v1467
      %2025 = vmatprep.subr.bf16.mxu0 0
      %2026 = vmatpush1.bf16.msra.mxu0 %v1468
      %2027 = vmatprep.subr.bf16.mxu0 0
      %2028 = vmatpush1.bf16.msra.mxu0 %v1469
      %2029 = vmatprep.subr.bf16.mxu0 0
      %2030 = vmatpush1.bf16.msra.mxu0 %v1470
      %2031 = vmatprep.subr.bf16.mxu0 0
      %2032 = vmatpush1.bf16.msra.mxu0 %v1471
      %2033 = vmatprep.subr.bf16.mxu0 0
      %2034 = vmatpush1.bf16.msra.mxu0 %v1472
      %2035 = vmatprep.subr.bf16.mxu0 0
      %2036 = vmatpush1.bf16.msra.mxu0 %v1473
      %2037 = vmatprep.subr.bf16.mxu0 0
      %2038 = vmatpush1.bf16.msra.mxu0 %v1474
      %2039 = vmatprep.subr.bf16.mxu0 0
      %2040 = vmatpush1.bf16.msra.mxu0 %v1475
      %2041 = vmatprep.subr.bf16.mxu0 0
      %2042 = vmatpush1.bf16.msra.mxu0 %v1476
      %2043 = vmatprep.subr.bf16.mxu0 0
      %2044 = vmatpush1.bf16.msra.mxu0 %v1477
      %2045 = vmatprep.subr.bf16.mxu0 0
      %2046 = vmatpush1.bf16.msra.mxu0 %v1478
      %2047 = vmatprep.mubr.bf16.mxu0 %v704
      %2048 = vmatmul.mubr.bf16.gmra.mrb[0].mxu0 %v703
      %v2049 = vpop.f32.mrb[0].mxu0
      %v2050 = vadd.f32 %v2001, %v2049
      %v2051 = vpop.f32.mrb[0].mxu0
      %v2052 = vpop.f32.mrb[0].mxu0
      %v2053 = vadd.f32 %v2004, %v2052
      %v2054 = vpop.f32.mrb[0].mxu0
      %2055 = vmatprep.mubr.bf16.mxu0 %v722
      %2056 = vmatmul.mubr.bf16.gmra.mrb[0].mxu0 %v721
      %v2057 = vpop.f32.mrb[0].mxu0
      %v2058 = vadd.f32 %v2009, %v2057
      %v2059 = vpop.f32.mrb[0].mxu0
      %v2060 = vpop.f32.mrb[0].mxu0
      %v2061 = vadd.f32 %v2012, %v2060
      %v2062 = vpop.f32.mrb[0].mxu0
      %2063 = vdwg.mxu0
      %v2064 = vmax.f32 %v2050, 0.0
      %v2065 = vmax.f32 %v2053, 0.0
      %v2066 = vmax.f32 %v2058, 0.0
      %v2067 = vmax.f32 %v2061, 0.0
      %2068 = vst [vmem:[%s245] sm:$0xff] %v2064
      %2069 = vst [vmem:[%s245 + $0x8] sm:$0xff] %v2065
      %2070 = vst [vmem:[%s245 + $0x10] sm:$0xff] %v2066
      %2071 = vst [vmem:[%s245 + $0x18] sm:$0xff] %v2067
      %s2072 = smul.u32 4, %s19
      %p2073 = scmp.lt.s32.totalorder %s18, 5
      %s2074 = scalar_select %p2073, %s18, 5
      %p2075 = scmp.lt.s32.totalorder %s2072, 3
      %s2076 = scalar_select %p2075, %s2072, 3
      %s2077 = smul.addr %s2074, 4
      %s2078 = sadd.s32 %s2076, %s2077
      %s2079 = smul.addr %s2078, 8
      %s2080 = scalar_lea.vmem %s3, %s2079
      // Predicated region
      $region33: #{selector_forward.3} parent=31 // pred_check
        %p2081 = pneg %p126
      $region34: #{selector_forward.3} parent=31 // pred_check_branch
        %2083 = sbr.rel (%p2081) target = $region36
      $region35: #{selector_forward.3} parent=31 // pred_region
        %s2084 = smul.u32 4, %s19
      $region36: #{selector_forward.3} parent=31 // pred_fallthru
        _
    $region32: #{selector_forward.3} parent=5 // pred_fallthru
      _
    %p2085 = scmp.le.s32.totalorder 2, %s9
    // Predicated region
    $region37: #{selector_forward.3} parent=5 // pred_check
      %p2086 = pneg %p2085
    $region38: #{selector_forward.3} parent=5 // pred_check_branch
      %2088 = sbr.rel (%p2086) target = $region40
    $region39: #{selector_forward.3} parent=5 // pred_region
      %s2089 = ssub.s32 %s9, 2
      // Predicated region
      $region41: #{selector_forward.3} parent=39 // pred_check
        %p2090 = pneg %p132
      $region42: #{selector_forward.3} parent=39 // pred_check_branch
        %2092 = sbr.rel (%p2090) target = $region44
      $region43: #{selector_forward.3} parent=39 // pred_region
        %s2093 = smul.u32 4, %s21
        %p2094 = scmp.lt.s32.totalorder %s20, 5
        %s2095 = scalar_select %p2094, %s20, 5
        %p2096 = scmp.lt.s32.totalorder %s2093, 3
        %s2097 = scalar_select %p2096, %s2093, 3
        %s2098 = smul.addr %s2095, 4
        %s2099 = sadd.s32 %s2097, %s2098
        %s2100 = smul.addr %s2099, 8
        %s2101 = scalar_lea.vmem %s3, %s2100
      $region44: #{selector_forward.3} parent=39 // pred_fallthru
        _
    $region40: #{selector_forward.3} parent=5 // pred_fallthru
      _
  $region6: #{selector_forward.3} parent=0 // loop_footer
    %s13 = sadd.s32 1, %s9
  $region7: #{selector_forward.3} parent=0 // loop_footer_branch
    %8 = sbr.rel target = $region3
  $region8: #{selector_forward.3} parent=0 // loop_exit
    _

// kernel: selector_forward.4
$region0: #{selector_forward.4}
  #allocation0 [shape = 'u32[]', space=smem, size = 0x4, offset = 0x4, fixed_abs, tag = 'smem constant byte address 0x4 - core index']
  #allocation1 [shape = 'u32[144,128]{1,0:T(1,128)}', space=vmem, size = 0x12000, scoped, tag = 'internal scratch']
  %s0 = inlined_call_operand.vmem [shape: bf16[2,32,4608], index: 0, kind: input, shape index: {}]
  %s1 = inlined_call_operand.vmem [shape: bf16[2,4608,128], index: 1, kind: input, shape index: {}]
  %s2 = inlined_call_operand.vmem [shape: f32[2,1,128], index: 2, kind: input, shape index: {}]
  %s3 = inlined_call_operand.vmem [shape: f32[2,32,128], index: 3, kind: output, shape index: {}]
  %s4 = sld [smem:[#allocation0]]
  $region45: #{selector_forward.4} parent=0
    _
  %s6 = ssub.s32 1, %s4
  %s7 = scalar_select 0, %s6, %s4
  loop: start=0, step=1, limit=4
  $region2: #{selector_forward.4} parent=0 // loop_pre_header
    _
  $region3: #{selector_forward.4} parent=0 // loop_header
    %s9 = sphi 0, %s13
    %p10 = scmp.ge.s32.totalorder %s9, 4
    %s16 = sphi 0, %s28
    %s17 = sphi 0, %s24
    %s18 = sphi 0, %s16
    %s19 = sphi 0, %s17
    %s20 = sphi 0, %s18
    %s21 = sphi 0, %s19
    %s33 = sphi 0, %s35
    %s36 = sphi 0, %s33
    %s37 = sphi 0, %s36
    %s53 = sphi 0, %s37
    %s59 = sphi 0, %s61
    %s62 = sphi 0, %s59
    %s63 = sphi 0, %s62
    %s79 = sphi 0, %s63
    %s85 = sphi 0, %s87
    %s88 = sphi 0, %s85
    %s89 = sphi 0, %s88
    %s105 = sphi 0, %s89
    %s113 = sphi 0, %s115
    %s116 = sphi 0, %s113
    %s117 = sphi 0, %s116
    %s133 = sphi 0, %s117
  $region4: #{selector_forward.4} parent=0 // loop_header_branch
    %12 = sbr.rel (%p10) target = $region8
  $region5: #{selector_forward.4} parent=0 // loop_body
    %s14 = ssub.s32 %s9, 1
    %s15 = ssub.s32 %s9, 2
    %s22 = sadd.s32 1, %s17
    %p23 = scmp.ge.s32.totalorder %s22, 1
    %s24 = scalar_select %p23, 0, %s22
    %s25 = sadd.s32 1, %s16
    %s26 = scalar_select %p23, %s25, %s16
    %p27 = scmp.ge.s32.totalorder %s26, 2
    %s28 = scalar_select %p27, 0, %s26
    %s29 = ssub.s32 %s16, %s28
    %s30 = ssub.s32 %s17, %s24
    %s31 = sor.u32 %s29, %s30
    %p32 = scmp.eq.s32.totalorder %s31, 0
    %s34 = sadd.s32 %s33, 1
    %s35 = scalar_select %p32, %s33, %s34
    %p38 = pneg %p32
    %p39 = scmp.eq.s32.totalorder %s9, 1
    %p40 = por %p38, %p39
    %p41 = scmp.ne.s32.totalorder %s33, %s36
    %p42 = scmp.eq.s32.totalorder %s9, 0
    %p43 = por %p41, %p42
    %p44 = scmp.ne.s32.totalorder %s33, %s36
    %p45 = scmp.eq.s32.totalorder %s14, 1
    %p46 = por %p44, %p45
    %p47 = scmp.ne.s32.totalorder %s36, %s37
    %p48 = scmp.eq.s32.totalorder %s14, 0
    %p49 = por %p47, %p48
    %p50 = scmp.ne.s32.totalorder %s36, %s37
    %p51 = scmp.eq.s32.totalorder %s15, 1
    %p52 = por %p50, %p51
    %p54 = scmp.ne.s32.totalorder %s37, %s53
    %p55 = scmp.eq.s32.totalorder %s15, 0
    %p56 = por %p54, %p55
    %s57 = ssub.s32 %s16, %s28
    %p58 = scmp.eq.s32.totalorder %s57, 0
    %s60 = sadd.s32 %s59, 1
    %s61 = scalar_select %p58, %s59, %s60
    %p64 = pneg %p58
    %p65 = scmp.eq.s32.totalorder %s9, 1
    %p66 = por %p64, %p65
    %p67 = scmp.ne.s32.totalorder %s59, %s62
    %p68 = scmp.eq.s32.totalorder %s9, 0
    %p69 = por %p67, %p68
    %p70 = scmp.ne.s32.totalorder %s59, %s62
    %p71 = scmp.eq.s32.totalorder %s14, 1
    %p72 = por %p70, %p71
    %p73 = scmp.ne.s32.totalorder %s62, %s63
    %p74 = scmp.eq.s32.totalorder %s14, 0
    %p75 = por %p73, %p74
    %p76 = scmp.ne.s32.totalorder %s62, %s63
    %p77 = scmp.eq.s32.totalorder %s15, 1
    %p78 = por %p76, %p77
    %p80 = scmp.ne.s32.totalorder %s63, %s79
    %p81 = scmp.eq.s32.totalorder %s15, 0
    %p82 = por %p80, %p81
    %s83 = ssub.s32 %s16, %s28
    %p84 = scmp.eq.s32.totalorder %s83, 0
    %s86 = sadd.s32 %s85, 1
    %s87 = scalar_select %p84, %s85, %s86
    %p90 = pneg %p84
    %p91 = scmp.eq.s32.totalorder %s9, 1
    %p92 = por %p90, %p91
    %p93 = scmp.ne.s32.totalorder %s85, %s88
    %p94 = scmp.eq.s32.totalorder %s9, 0
    %p95 = por %p93, %p94
    %p96 = scmp.ne.s32.totalorder %s85, %s88
    %p97 = scmp.eq.s32.totalorder %s14, 1
    %p98 = por %p96, %p97
    %p99 = scmp.ne.s32.totalorder %s88, %s89
    %p100 = scmp.eq.s32.totalorder %s14, 0
    %p101 = por %p99, %p100
    %p102 = scmp.ne.s32.totalorder %s88, %s89
    %p103 = scmp.eq.s32.totalorder %s15, 1
    %p104 = por %p102, %p103
    %p106 = scmp.ne.s32.totalorder %s89, %s105
    %p107 = scmp.eq.s32.totalorder %s15, 0
    %p108 = por %p106, %p107
    %s109 = ssub.s32 %s16, %s28
    %s110 = ssub.s32 %s17, %s24
    %s111 = sor.u32 %s109, %s110
    %p112 = scmp.eq.s32.totalorder %s111, 0
    %s114 = sadd.s32 %s113, 1
    %s115 = scalar_select %p112, %s113, %s114
    %p118 = pneg %p112
    %p119 = scmp.eq.s32.totalorder %s9, 1
    %p120 = por %p118, %p119
    %p121 = scmp.ne.s32.totalorder %s113, %s116
    %p122 = scmp.eq.s32.totalorder %s9, 0
    %p123 = por %p121, %p122
    %p124 = scmp.ne.s32.totalorder %s113, %s116
    %p125 = scmp.eq.s32.totalorder %s14, 1
    %p126 = por %p124, %p125
    %p127 = scmp.ne.s32.totalorder %s116, %s117
    %p128 = scmp.eq.s32.totalorder %s14, 0
    %p129 = por %p127, %p128
    %p130 = scmp.ne.s32.totalorder %s116, %s117
    %p131 = scmp.eq.s32.totalorder %s15, 1
    %p132 = por %p130, %p131
    %p134 = scmp.ne.s32.totalorder %s117, %s133
    %p135 = scmp.eq.s32.totalorder %s15, 0
    %p136 = por %p134, %p135
    %p137 = scmp.le.s32.totalorder 1, %s9
    %p138 = scmp.lt.s32.totalorder %s9, 3
    %p139 = pnand %p137, %p138
    %p140 = pneg %p139
    // Predicated region
    $region9: #{selector_forward.4} parent=5 // pred_check
      _
    $region10: #{selector_forward.4} parent=5 // pred_check_branch
      %142 = sbr.rel (%p139) target = $region12
    $region11: #{selector_forward.4} parent=5 // pred_region
      %s143 = ssub.s32 %s9, 1
    $region12: #{selector_forward.4} parent=5 // pred_fallthru
      _
    %p144 = scmp.lt.s32.totalorder %s9, 2
    // Predicated region
    $region13: #{selector_forward.4} parent=5 // pred_check
      %p145 = pneg %p144
    $region14: #{selector_forward.4} parent=5 // pred_check_branch
      %147 = sbr.rel (%p145) target = $region16
    $region15: #{selector_forward.4} parent=5 // pred_region
      // Predicated region
      $region17: #{selector_forward.4} parent=15 // pred_check
        %p148 = pneg %p43
      $region18: #{selector_forward.4} parent=15 // pred_check_branch
        %150 = sbr.rel (%p148) target = $region20
      $region19: #{selector_forward.4} parent=15 // pred_region
        %s151 = smul.u32 4, %s17
        %p152 = scmp.lt.s32.totalorder %s16, 1
        %s153 = scalar_select %p152, %s16, 1
        %p154 = scmp.lt.s32.totalorder %s151, 3
        %s155 = scalar_select %p154, %s151, 3
        %s156 = smul.addr %s155, 36
        %s157 = smul.addr %s153, 144
        %s158 = sadd.s32 %s156, %s157
        %s159 = smul.addr %s158, 4
        %s160 = scalar_lea.vmem %s0, %s159
        %s161 = smul.u32 4, %s17
      $region20: #{selector_forward.4} parent=15 // pred_fallthru
        _
      // Predicated region
      $region21: #{selector_forward.4} parent=15 // pred_check
        %p162 = pneg %p69
      $region22: #{selector_forward.4} parent=15 // pred_check_branch
        %164 = sbr.rel (%p162) target = $region24
      $region23: #{selector_forward.4} parent=15 // pred_region
        %p165 = scmp.lt.s32.totalorder %s16, 1
        %s166 = scalar_select %p165, %s16, 1
        %s167 = smul.addr %s166, 576
        %s168 = smul.addr %s167, 4
        %s169 = scalar_lea.vmem %s1, %s168
      $region24: #{selector_forward.4} parent=15 // pred_fallthru
        _
      // Predicated region
      $region25: #{selector_forward.4} parent=15 // pred_check
        %p170 = pneg %p95
      $region26: #{selector_forward.4} parent=15 // pred_check_branch
        %172 = sbr.rel (%p170) target = $region28
      $region27: #{selector_forward.4} parent=15 // pred_region
        %p173 = scmp.lt.s32.totalorder %s16, 1
        %s174 = scalar_select %p173, %s16, 1
        %s175 = scalar_lea.vmem %s2, %s174
      $region28: #{selector_forward.4} parent=15 // pred_fallthru
        _
    $region16: #{selector_forward.4} parent=5 // pred_fallthru
      _
    %p176 = scmp.le.s32.totalorder 1, %s9
    %p177 = scmp.lt.s32.totalorder %s9, 3
    %p178 = pnand %p176, %p177
    %p179 = pneg %p178
    // Predicated region
    $region29: #{selector_forward.4} parent=5 // pred_check
      _
    $region30: #{selector_forward.4} parent=5 // pred_check_branch
      %181 = sbr.rel (%p178) target = $region32
    $region31: #{selector_forward.4} parent=5 // pred_region
      %s182 = ssub.s32 %s9, 1
      %s183 = smul.u32 4, %s19
      %p184 = scmp.lt.s32.totalorder %s18, 1
      %s185 = scalar_select %p184, %s18, 1
      %p186 = scmp.lt.s32.totalorder %s183, 3
      %s187 = scalar_select %p186, %s183, 3
      %s188 = smul.addr %s187, 36
      %s189 = smul.addr %s185, 144
      %s190 = sadd.s32 %s188, %s189
      %s191 = smul.addr %s190, 4
      %s192 = scalar_lea.vmem %s0, %s191
      %p193 = pneg %p49
      %p194 = pneg %p46
      %p195 = scmp.lt.s32.totalorder %s18, 1
      %s196 = scalar_select %p195, %s18, 1
      %s197 = smul.addr %s196, 576
      %s198 = smul.addr %s197, 4
      %s199 = scalar_lea.vmem %s1, %s198
      %p200 = pneg %p75
      %p201 = pneg %p72
      %p202 = scmp.lt.s32.totalorder %s18, 1
      %s203 = scalar_select %p202, %s18, 1
      %s204 = scalar_lea.vmem %s2, %s203
      %p205 = pneg %p101
      %p206 = pneg %p98
      %p207 = pneg %p129
      %p208 = pneg %p126
      %s209 = smul.u32 4, %s19
      %p210 = scmp.lt.s32.totalorder %s18, 1
      %s211 = scalar_select %p210, %s18, 1
      %p212 = scmp.lt.s32.totalorder %s209, 3
      %s213 = scalar_select %p212, %s209, 3
      %s214 = smul.addr %s211, 4
      %s215 = sadd.s32 %s213, %s214
      %s216 = smul.addr %s215, 8
      %s217 = scalar_lea.vmem %s3, %s216
      %s218 = smul.u32 4, %s19
      %p219 = scmp.lt.s32.totalorder %s18, 1
      %s220 = scalar_select %p219, %s18, 1
      %p221 = scmp.lt.s32.totalorder %s218, 3
      %s222 = scalar_select %p221, %s218, 3
      %s223 = smul.addr %s222, 36
      %s224 = smul.addr %s220, 144
      %s225 = sadd.s32 %s223, %s224
      %s226 = smul.addr %s225, 4
      %s227 = scalar_lea.vmem %s0, %s226
      %s228 = smul.u32 4, %s19
      %p229 = scmp.lt.s32.totalorder %s18, 1
      %s230 = scalar_select %p229, %s18, 1
      %s231 = smul.addr %s230, 576
      %s232 = smul.addr %s231, 4
      %s233 = scalar_lea.vmem %s1, %s232
      %p234 = scmp.lt.s32.totalorder %s18, 1
      %s235 = scalar_select %p234, %s18, 1
      %s236 = scalar_lea.vmem %s2, %s235
      %s237 = smul.u32 4, %s19
      %p238 = scmp.lt.s32.totalorder %s18, 1
      %s239 = scalar_select %p238, %s18, 1
      %p240 = scmp.lt.s32.totalorder %s237, 3
      %s241 = scalar_select %p240, %s237, 3
      %s242 = smul.addr %s239, 4
      %s243 = sadd.s32 %s241, %s242
      %s244 = smul.addr %s243, 8
      %s245 = scalar_lea.vmem %s3, %s244
      %s246 = smul.u32 4, %s19
      %v248 = vld [vmem:[%s227] sm:$0xff]
      %v249 = vld [vmem:[%s227 + $0x8] sm:$0xff]
      %v250 = vld [vmem:[%s227 + $0x10] sm:$0xff]
      %v251 = vld [vmem:[%s227 + $0x18] sm:$0xff]
      %v252 = vld [vmem:[%s227 + $0x20] sm:$0xff]
      %v253 = vld [vmem:[%s227 + $0x28] sm:$0xff]
      %v254 = vld [vmem:[%s227 + $0x30] sm:$0xff]
      %v255 = vld [vmem:[%s227 + $0x38] sm:$0xff]
      %v256 = vld [vmem:[%s227 + $0x40] sm:$0xff]
      %v257 = vld [vmem:[%s227 + $0x48] sm:$0xff]
      %v258 = vld [vmem:[%s227 + $0x50] sm:$0xff]
      %v259 = vld [vmem:[%s227 + $0x58] sm:$0xff]
      %v260 = vld [vmem:[%s227 + $0x60] sm:$0xff]
      %v261 = vld [vmem:[%s227 + $0x68] sm:$0xff]
      %v262 = vld [vmem:[%s227 + $0x70] sm:$0xff]
      %v263 = vld [vmem:[%s227 + $0x78] sm:$0xff]
      %v264 = vld [vmem:[%s227 + $0x80] sm:$0xff]
      %v265 = vld [vmem:[%s227 + $0x88] sm:$0xff]
      %v266 = vld [vmem:[%s227 + $0x90] sm:$0xff]
      %v267 = vld [vmem:[%s227 + $0x98] sm:$0xff]
      %v268 = vld [vmem:[%s227 + $0xa0] sm:$0xff]
      %v269 = vld [vmem:[%s227 + $0xa8] sm:$0xff]
      %v270 = vld [vmem:[%s227 + $0xb0] sm:$0xff]
      %v271 = vld [vmem:[%s227 + $0xb8] sm:$0xff]
      %v272 = vld [vmem:[%s227 + $0xc0] sm:$0xff]
      %v273 = vld [vmem:[%s227 + $0xc8] sm:$0xff]
      %v274 = vld [vmem:[%s227 + $0xd0] sm:$0xff]
      %v275 = vld [vmem:[%s227 + $0xd8] sm:$0xff]
      %v276 = vld [vmem:[%s227 + $0xe0] sm:$0xff]
      %v277 = vld [vmem:[%s227 + $0xe8] sm:$0xff]
      %v278 = vld [vmem:[%s227 + $0xf0] sm:$0xff]
      %v279 = vld [vmem:[%s227 + $0xf8] sm:$0xff]
      %v280 = vld [vmem:[%s227 + $0x100] sm:$0xff]
      %v281 = vld [vmem:[%s227 + $0x108] sm:$0xff]
      %v282 = vld [vmem:[%s227 + $0x110] sm:$0xff]
      %v283 = vld [vmem:[%s227 + $0x118] sm:$0xff]
      %v284 = vld [vmem:[%s227 + $0x120] sm:$0xff]
      %v285 = vld [vmem:[%s227 + $0x128] sm:$0xff]
      %v286 = vld [vmem:[%s227 + $0x130] sm:$0xff]
      %v287 = vld [vmem:[%s227 + $0x138] sm:$0xff]
      %v288 = vld [vmem:[%s227 + $0x140] sm:$0xff]
      %v289 = vld [vmem:[%s227 + $0x148] sm:$0xff]
      %v290 = vld [vmem:[%s227 + $0x150] sm:$0xff]
      %v291 = vld [vmem:[%s227 + $0x158] sm:$0xff]
      %v292 = vld [vmem:[%s227 + $0x160] sm:$0xff]
      %v293 = vld [vmem:[%s227 + $0x168] sm:$0xff]
      %v294 = vld [vmem:[%s227 + $0x170] sm:$0xff]
      %v295 = vld [vmem:[%s227 + $0x178] sm:$0xff]
      %v296 = vld [vmem:[%s227 + $0x180] sm:$0xff]
      %v297 = vld [vmem:[%s227 + $0x188] sm:$0xff]
      %v298 = vld [vmem:[%s227 + $0x190] sm:$0xff]
      %v299 = vld [vmem:[%s227 + $0x198] sm:$0xff]
      %v300 = vld [vmem:[%s227 + $0x1a0] sm:$0xff]
      %v301 = vld [vmem:[%s227 + $0x1a8] sm:$0xff]
      %v302 = vld [vmem:[%s227 + $0x1b0] sm:$0xff]
      %v303 = vld [vmem:[%s227 + $0x1b8] sm:$0xff]
      %v304 = vld [vmem:[%s227 + $0x1c0] sm:$0xff]
      %v305 = vld [vmem:[%s227 + $0x1c8] sm:$0xff]
      %v306 = vld [vmem:[%s227 + $0x1d0] sm:$0xff]
      %v307 = vld [vmem:[%s227 + $0x1d8] sm:$0xff]
      %v308 = vld [vmem:[%s227 + $0x1e0] sm:$0xff]
      %v309 = vld [vmem:[%s227 + $0x1e8] sm:$0xff]
      %v310 = vld [vmem:[%s227 + $0x1f0] sm:$0xff]
      %v311 = vld [vmem:[%s227 + $0x1f8] sm:$0xff]
      %v312 = vld [vmem:[%s227 + $0x200] sm:$0xff]
      %v313 = vld [vmem:[%s227 + $0x208] sm:$0xff]
      %v314 = vld [vmem:[%s227 + $0x210] sm:$0xff]
      %v315 = vld [vmem:[%s227 + $0x218] sm:$0xff]
      %v316 = vld [vmem:[%s227 + $0x220] sm:$0xff]
      %v317 = vld [vmem:[%s227 + $0x228] sm:$0xff]
      %v318 = vld [vmem:[%s227 + $0x230] sm:$0xff]
      %v319 = vld [vmem:[%s227 + $0x238] sm:$0xff]
      %v320 = vld [vmem:[%s233] sm:$0xf]
      %v321 = vld [vmem:[%s233 + $0x4] sm:$0xf]
      %v322 = vld [vmem:[%s233 + $0x8] sm:$0xf]
      %v323 = vld [vmem:[%s233 + $0xc] sm:$0xf]
      %v324 = vld [vmem:[%s233 + $0x10] sm:$0xf]
      %v325 = vld [vmem:[%s233 + $0x14] sm:$0xf]
      %v326 = vld [vmem:[%s233 + $0x18] sm:$0xf]
      %v327 = vld [vmem:[%s233 + $0x1c] sm:$0xf]
      %v328 = vld [vmem:[%s233 + $0x20] sm:$0xf]
      %v329 = vld [vmem:[%s233 + $0x24] sm:$0xf]
      %v330 = vld [vmem:[%s233 + $0x28] sm:$0xf]
      %v331 = vld [vmem:[%s233 + $0x2c] sm:$0xf]
      %v332 = vld [vmem:[%s233 + $0x30] sm:$0xf]
      %v333 = vld [vmem:[%s233 + $0x34] sm:$0xf]
      %v334 = vld [vmem:[%s233 + $0x38] sm:$0xf]
      %v335 = vld [vmem:[%s233 + $0x3c] sm:$0xf]
      %v336 = vld [vmem:[%s233 + $0x40] sm:$0xf]
      %v337 = vld [vmem:[%s233 + $0x44] sm:$0xf]
      %v338 = vld [vmem:[%s233 + $0x48] sm:$0xf]
      %v339 = vld [vmem:[%s233 + $0x4c] sm:$0xf]
      %v340 = vld [vmem:[%s233 + $0x50] sm:$0xf]
      %v341 = vld [vmem:[%s233 + $0x54] sm:$0xf]
      %v342 = vld [vmem:[%s233 + $0x58] sm:$0xf]
      %v343 = vld [vmem:[%s233 + $0x5c] sm:$0xf]
      %v344 = vld [vmem:[%s233 + $0x60] sm:$0xf]
      %v345 = vld [vmem:[%s233 + $0x64] sm:$0xf]
      %v346 = vld [vmem:[%s233 + $0x68] sm:$0xf]
      %v347 = vld [vmem:[%s233 + $0x6c] sm:$0xf]
      %v348 = vld [vmem:[%s233 + $0x70] sm:$0xf]
      %v349 = vld [vmem:[%s233 + $0x74] sm:$0xf]
      %v350 = vld [vmem:[%s233 + $0x78] sm:$0xf]
      %v351 = vld [vmem:[%s233 + $0x7c] sm:$0xf]
      %v352 = vld [vmem:[%s233 + $0x80] sm:$0xf]
      %v353 = vld [vmem:[%s233 + $0x84] sm:$0xf]
      %v354 = vld [vmem:[%s233 + $0x88] sm:$0xf]
      %v355 = vld [vmem:[%s233 + $0x8c] sm:$0xf]
      %v356 = vld [vmem:[%s233 + $0x90] sm:$0xf]
      %v357 = vld [vmem:[%s233 + $0x94] sm:$0xf]
      %v358 = vld [vmem:[%s233 + $0x98] sm:$0xf]
      %v359 = vld [vmem:[%s233 + $0x9c] sm:$0xf]
      %v360 = vld [vmem:[%s233 + $0xa0] sm:$0xf]
      %v361 = vld [vmem:[%s233 + $0xa4] sm:$0xf]
      %v362 = vld [vmem:[%s233 + $0xa8] sm:$0xf]
      %v363 = vld [vmem:[%s233 + $0xac] sm:$0xf]
      %v364 = vld [vmem:[%s233 + $0xb0] sm:$0xf]
      %v365 = vld [vmem:[%s233 + $0xb4] sm:$0xf]
      %v366 = vld [vmem:[%s233 + $0xb8] sm:$0xf]
      %v367 = vld [vmem:[%s233 + $0xbc] sm:$0xf]
      %v368 = vld [vmem:[%s233 + $0xc0] sm:$0xf]
      %v369 = vld [vmem:[%s233 + $0xc4] sm:$0xf]
      %v370 = vld [vmem:[%s233 + $0xc8] sm:$0xf]
      %v371 = vld [vmem:[%s233 + $0xcc] sm:$0xf]
      %v372 = vld [vmem:[%s233 + $0xd0] sm:$0xf]
      %v373 = vld [vmem:[%s233 + $0xd4] sm:$0xf]
      %v374 = vld [vmem:[%s233 + $0xd8] sm:$0xf]
      %v375 = vld [vmem:[%s233 + $0xdc] sm:$0xf]
      %v376 = vld [vmem:[%s233 + $0xe0] sm:$0xf]
      %v377 = vld [vmem:[%s233 + $0xe4] sm:$0xf]
      %v378 = vld [vmem:[%s233 + $0xe8] sm:$0xf]
      %v379 = vld [vmem:[%s233 + $0xec] sm:$0xf]
      %v380 = vld [vmem:[%s233 + $0xf0] sm:$0xf]
      %v381 = vld [vmem:[%s233 + $0xf4] sm:$0xf]
      %v382 = vld [vmem:[%s233 + $0xf8] sm:$0xf]
      %v383 = vld [vmem:[%s233 + $0xfc] sm:$0xf]
      %v384 = vld [vmem:[%s233 + $0x100] sm:$0xf]
      %v385 = vld [vmem:[%s233 + $0x104] sm:$0xf]
      %v386 = vld [vmem:[%s233 + $0x108] sm:$0xf]
      %v387 = vld [vmem:[%s233 + $0x10c] sm:$0xf]
      %v388 = vld [vmem:[%s233 + $0x110] sm:$0xf]
      %v389 = vld [vmem:[%s233 + $0x114] sm:$0xf]
      %v390 = vld [vmem:[%s233 + $0x118] sm:$0xf]
      %v391 = vld [vmem:[%s233 + $0x11c] sm:$0xf]
      %v392 = vld [vmem:[%s233 + $0x120] sm:$0xf]
      %v393 = vld [vmem:[%s233 + $0x124] sm:$0xf]
      %v394 = vld [vmem:[%s233 + $0x128] sm:$0xf]
      %v395 = vld [vmem:[%s233 + $0x12c] sm:$0xf]
      %v396 = vld [vmem:[%s233 + $0x130] sm:$0xf]
      %v397 = vld [vmem:[%s233 + $0x134] sm:$0xf]
      %v398 = vld [vmem:[%s233 + $0x138] sm:$0xf]
      %v399 = vld [vmem:[%s233 + $0x13c] sm:$0xf]
      %v400 = vld [vmem:[%s233 + $0x140] sm:$0xf]
      %v401 = vld [vmem:[%s233 + $0x144] sm:$0xf]
      %v402 = vld [vmem:[%s233 + $0x148] sm:$0xf]
      %v403 = vld [vmem:[%s233 + $0x14c] sm:$0xf]
      %v404 = vld [vmem:[%s233 + $0x150] sm:$0xf]
      %v405 = vld [vmem:[%s233 + $0x154] sm:$0xf]
      %v406 = vld [vmem:[%s233 + $0x158] sm:$0xf]
      %v407 = vld [vmem:[%s233 + $0x15c] sm:$0xf]
      %v408 = vld [vmem:[%s233 + $0x160] sm:$0xf]
      %v409 = vld [vmem:[%s233 + $0x164] sm:$0xf]
      %v410 = vld [vmem:[%s233 + $0x168] sm:$0xf]
      %v411 = vld [vmem:[%s233 + $0x16c] sm:$0xf]
      %v412 = vld [vmem:[%s233 + $0x170] sm:$0xf]
      %v413 = vld [vmem:[%s233 + $0x174] sm:$0xf]
      %v414 = vld [vmem:[%s233 + $0x178] sm:$0xf]
      %v415 = vld [vmem:[%s233 + $0x17c] sm:$0xf]
      %v416 = vld [vmem:[%s233 + $0x180] sm:$0xf]
      %v417 = vld [vmem:[%s233 + $0x184] sm:$0xf]
      %v418 = vld [vmem:[%s233 + $0x188] sm:$0xf]
      %v419 = vld [vmem:[%s233 + $0x18c] sm:$0xf]
      %v420 = vld [vmem:[%s233 + $0x190] sm:$0xf]
      %v421 = vld [vmem:[%s233 + $0x194] sm:$0xf]
      %v422 = vld [vmem:[%s233 + $0x198] sm:$0xf]
      %v423 = vld [vmem:[%s233 + $0x19c] sm:$0xf]
      %v424 = vld [vmem:[%s233 + $0x1a0] sm:$0xf]
      %v425 = vld [vmem:[%s233 + $0x1a4] sm:$0xf]
      %v426 = vld [vmem:[%s233 + $0x1a8] sm:$0xf]
      %v427 = vld [vmem:[%s233 + $0x1ac] sm:$0xf]
      %v428 = vld [vmem:[%s233 + $0x1b0] sm:$0xf]
      %v429 = vld [vmem:[%s233 + $0x1b4] sm:$0xf]
      %v430 = vld [vmem:[%s233 + $0x1b8] sm:$0xf]
      %v431 = vld [vmem:[%s233 + $0x1bc] sm:$0xf]
      %v432 = vld [vmem:[%s233 + $0x1c0] sm:$0xf]
      %v433 = vld [vmem:[%s233 + $0x1c4] sm:$0xf]
      %v434 = vld [vmem:[%s233 + $0x1c8] sm:$0xf]
      %v435 = vld [vmem:[%s233 + $0x1cc] sm:$0xf]
      %v436 = vld [vmem:[%s233 + $0x1d0] sm:$0xf]
      %v437 = vld [vmem:[%s233 + $0x1d4] sm:$0xf]
      %v438 = vld [vmem:[%s233 + $0x1d8] sm:$0xf]
      %v439 = vld [vmem:[%s233 + $0x1dc] sm:$0xf]
      %v440 = vld [vmem:[%s233 + $0x1e0] sm:$0xf]
      %v441 = vld [vmem:[%s233 + $0x1e4] sm:$0xf]
      %v442 = vld [vmem:[%s233 + $0x1e8] sm:$0xf]
      %v443 = vld [vmem:[%s233 + $0x1ec] sm:$0xf]
      %v444 = vld [vmem:[%s233 + $0x1f0] sm:$0xf]
      %v445 = vld [vmem:[%s233 + $0x1f4] sm:$0xf]
      %v446 = vld [vmem:[%s233 + $0x1f8] sm:$0xf]
      %v447 = vld [vmem:[%s233 + $0x1fc] sm:$0xf]
      %v448 = vld [vmem:[%s233 + $0x200] sm:$0xf]
      %v449 = vld [vmem:[%s233 + $0x204] sm:$0xf]
      %v450 = vld [vmem:[%s233 + $0x208] sm:$0xf]
      %v451 = vld [vmem:[%s233 + $0x20c] sm:$0xf]
      %v452 = vld [vmem:[%s233 + $0x210] sm:$0xf]
      %v453 = vld [vmem:[%s233 + $0x214] sm:$0xf]
      %v454 = vld [vmem:[%s233 + $0x218] sm:$0xf]
      %v455 = vld [vmem:[%s233 + $0x21c] sm:$0xf]
      %v456 = vld [vmem:[%s233 + $0x220] sm:$0xf]
      %v457 = vld [vmem:[%s233 + $0x224] sm:$0xf]
      %v458 = vld [vmem:[%s233 + $0x228] sm:$0xf]
      %v459 = vld [vmem:[%s233 + $0x22c] sm:$0xf]
      %v460 = vld [vmem:[%s233 + $0x230] sm:$0xf]
      %v461 = vld [vmem:[%s233 + $0x234] sm:$0xf]
      %v462 = vld [vmem:[%s233 + $0x238] sm:$0xf]
      %v463 = vld [vmem:[%s233 + $0x23c] sm:$0xf]
      %v464 = vld [vmem:[%s233 + $0x240] sm:$0xf]
      %v465 = vld [vmem:[%s233 + $0x244] sm:$0xf]
      %v466 = vld [vmem:[%s233 + $0x248] sm:$0xf]
      %v467 = vld [vmem:[%s233 + $0x24c] sm:$0xf]
      %v468 = vld [vmem:[%s233 + $0x250] sm:$0xf]
      %v469 = vld [vmem:[%s233 + $0x254] sm:$0xf]
      %v470 = vld [vmem:[%s233 + $0x258] sm:$0xf]
      %v471 = vld [vmem:[%s233 + $0x25c] sm:$0xf]
      %v472 = vld [vmem:[%s233 + $0x260] sm:$0xf]
      %v473 = vld [vmem:[%s233 + $0x264] sm:$0xf]
      %v474 = vld [vmem:[%s233 + $0x268] sm:$0xf]
      %v475 = vld [vmem:[%s233 + $0x26c] sm:$0xf]
      %v476 = vld [vmem:[%s233 + $0x270] sm:$0xf]
      %v477 = vld [vmem:[%s233 + $0x274] sm:$0xf]
      %v478 = vld [vmem:[%s233 + $0x278] sm:$0xf]
      %v479 = vld [vmem:[%s233 + $0x27c] sm:$0xf]
      %v480 = vld [vmem:[%s233 + $0x280] sm:$0xf]
      %v481 = vld [vmem:[%s233 + $0x284] sm:$0xf]
      %v482 = vld [vmem:[%s233 + $0x288] sm:$0xf]
      %v483 = vld [vmem:[%s233 + $0x28c] sm:$0xf]
      %v484 = vld [vmem:[%s233 + $0x290] sm:$0xf]
      %v485 = vld [vmem:[%s233 + $0x294] sm:$0xf]
      %v486 = vld [vmem:[%s233 + $0x298] sm:$0xf]
      %v487 = vld [vmem:[%s233 + $0x29c] sm:$0xf]
      %v488 = vld [vmem:[%s233 + $0x2a0] sm:$0xf]
      %v489 = vld [vmem:[%s233 + $0x2a4] sm:$0xf]
      %v490 = vld [vmem:[%s233 + $0x2a8] sm:$0xf]
      %v491 = vld [vmem:[%s233 + $0x2ac] sm:$0xf]
      %v492 = vld [vmem:[%s233 + $0x2b0] sm:$0xf]
      %v493 = vld [vmem:[%s233 + $0x2b4] sm:$0xf]
      %v494 = vld [vmem:[%s233 + $0x2b8] sm:$0xf]
      %v495 = vld [vmem:[%s233 + $0x2bc] sm:$0xf]
      %v496 = vld [vmem:[%s233 + $0x2c0] sm:$0xf]
      %v497 = vld [vmem:[%s233 + $0x2c4] sm:$0xf]
      %v498 = vld [vmem:[%s233 + $0x2c8] sm:$0xf]
      %v499 = vld [vmem:[%s233 + $0x2cc] sm:$0xf]
      %v500 = vld [vmem:[%s233 + $0x2d0] sm:$0xf]
      %v501 = vld [vmem:[%s233 + $0x2d4] sm:$0xf]
      %v502 = vld [vmem:[%s233 + $0x2d8] sm:$0xf]
      %v503 = vld [vmem:[%s233 + $0x2dc] sm:$0xf]
      %v504 = vld [vmem:[%s233 + $0x2e0] sm:$0xf]
      %v505 = vld [vmem:[%s233 + $0x2e4] sm:$0xf]
      %v506 = vld [vmem:[%s233 + $0x2e8] sm:$0xf]
      %v507 = vld [vmem:[%s233 + $0x2ec] sm:$0xf]
      %v508 = vld [vmem:[%s233 + $0x2f0] sm:$0xf]
      %v509 = vld [vmem:[%s233 + $0x2f4] sm:$0xf]
      %v510 = vld [vmem:[%s233 + $0x2f8] sm:$0xf]
      %v511 = vld [vmem:[%s233 + $0x2fc] sm:$0xf]
      %v512 = vld [vmem:[%s233 + $0x300] sm:$0xf]
      %v513 = vld [vmem:[%s233 + $0x304] sm:$0xf]
      %v514 = vld [vmem:[%s233 + $0x308] sm:$0xf]
      %v515 = vld [vmem:[%s233 + $0x30c] sm:$0xf]
      %v516 = vld [vmem:[%s233 + $0x310] sm:$0xf]
      %v517 = vld [vmem:[%s233 + $0x314] sm:$0xf]
      %v518 = vld [vmem:[%s233 + $0x318] sm:$0xf]
      %v519 = vld [vmem:[%s233 + $0x31c] sm:$0xf]
      %v520 = vld [vmem:[%s233 + $0x320] sm:$0xf]
      %v521 = vld [vmem:[%s233 + $0x324] sm:$0xf]
      %v522 = vld [vmem:[%s233 + $0x328] sm:$0xf]
      %v523 = vld [vmem:[%s233 + $0x32c] sm:$0xf]
      %v524 = vld [vmem:[%s233 + $0x330] sm:$0xf]
      %v525 = vld [vmem:[%s233 + $0x334] sm:$0xf]
      %v526 = vld [vmem:[%s233 + $0x338] sm:$0xf]
      %v527 = vld [vmem:[%s233 + $0x33c] sm:$0xf]
      %v528 = vld [vmem:[%s233 + $0x340] sm:$0xf]
      %v529 = vld [vmem:[%s233 + $0x344] sm:$0xf]
      %v530 = vld [vmem:[%s233 + $0x348] sm:$0xf]
      %v531 = vld [vmem:[%s233 + $0x34c] sm:$0xf]
      %v532 = vld [vmem:[%s233 + $0x350] sm:$0xf]
      %v533 = vld [vmem:[%s233 + $0x354] sm:$0xf]
      %v534 = vld [vmem:[%s233 + $0x358] sm:$0xf]
      %v535 = vld [vmem:[%s233 + $0x35c] sm:$0xf]
      %v536 = vld [vmem:[%s233 + $0x360] sm:$0xf]
      %v537 = vld [vmem:[%s233 + $0x364] sm:$0xf]
      %v538 = vld [vmem:[%s233 + $0x368] sm:$0xf]
      %v539 = vld [vmem:[%s233 + $0x36c] sm:$0xf]
      %v540 = vld [vmem:[%s233 + $0x370] sm:$0xf]
      %v541 = vld [vmem:[%s233 + $0x374] sm:$0xf]
      %v542 = vld [vmem:[%s233 + $0x378] sm:$0xf]
      %v543 = vld [vmem:[%s233 + $0x37c] sm:$0xf]
      %v544 = vld [vmem:[%s233 + $0x380] sm:$0xf]
      %v545 = vld [vmem:[%s233 + $0x384] sm:$0xf]
      %v546 = vld [vmem:[%s233 + $0x388] sm:$0xf]
      %v547 = vld [vmem:[%s233 + $0x38c] sm:$0xf]
      %v548 = vld [vmem:[%s233 + $0x390] sm:$0xf]
      %v549 = vld [vmem:[%s233 + $0x394] sm:$0xf]
      %v550 = vld [vmem:[%s233 + $0x398] sm:$0xf]
      %v551 = vld [vmem:[%s233 + $0x39c] sm:$0xf]
      %v552 = vld [vmem:[%s233 + $0x3a0] sm:$0xf]
      %v553 = vld [vmem:[%s233 + $0x3a4] sm:$0xf]
      %v554 = vld [vmem:[%s233 + $0x3a8] sm:$0xf]
      %v555 = vld [vmem:[%s233 + $0x3ac] sm:$0xf]
      %v556 = vld [vmem:[%s233 + $0x3b0] sm:$0xf]
      %v557 = vld [vmem:[%s233 + $0x3b4] sm:$0xf]
      %v558 = vld [vmem:[%s233 + $0x3b8] sm:$0xf]
      %v559 = vld [vmem:[%s233 + $0x3bc] sm:$0xf]
      %v560 = vld [vmem:[%s233 + $0x3c0] sm:$0xf]
      %v561 = vld [vmem:[%s233 + $0x3c4] sm:$0xf]
      %v562 = vld [vmem:[%s233 + $0x3c8] sm:$0xf]
      %v563 = vld [vmem:[%s233 + $0x3cc] sm:$0xf]
      %v564 = vld [vmem:[%s233 + $0x3d0] sm:$0xf]
      %v565 = vld [vmem:[%s233 + $0x3d4] sm:$0xf]
      %v566 = vld [vmem:[%s233 + $0x3d8] sm:$0xf]
      %v567 = vld [vmem:[%s233 + $0x3dc] sm:$0xf]
      %v568 = vld [vmem:[%s233 + $0x3e0] sm:$0xf]
      %v569 = vld [vmem:[%s233 + $0x3e4] sm:$0xf]
      %v570 = vld [vmem:[%s233 + $0x3e8] sm:$0xf]
      %v571 = vld [vmem:[%s233 + $0x3ec] sm:$0xf]
      %v572 = vld [vmem:[%s233 + $0x3f0] sm:$0xf]
      %v573 = vld [vmem:[%s233 + $0x3f4] sm:$0xf]
      %v574 = vld [vmem:[%s233 + $0x3f8] sm:$0xf]
      %v575 = vld [vmem:[%s233 + $0x3fc] sm:$0xf]
      %v576 = vld [vmem:[%s233 + $0x400] sm:$0xf]
      %v577 = vld [vmem:[%s233 + $0x404] sm:$0xf]
      %v578 = vld [vmem:[%s233 + $0x408] sm:$0xf]
      %v579 = vld [vmem:[%s233 + $0x40c] sm:$0xf]
      %v580 = vld [vmem:[%s233 + $0x410] sm:$0xf]
      %v581 = vld [vmem:[%s233 + $0x414] sm:$0xf]
      %v582 = vld [vmem:[%s233 + $0x418] sm:$0xf]
      %v583 = vld [vmem:[%s233 + $0x41c] sm:$0xf]
      %v584 = vld [vmem:[%s233 + $0x420] sm:$0xf]
      %v585 = vld [vmem:[%s233 + $0x424] sm:$0xf]
      %v586 = vld [vmem:[%s233 + $0x428] sm:$0xf]
      %v587 = vld [vmem:[%s233 + $0x42c] sm:$0xf]
      %v588 = vld [vmem:[%s233 + $0x430] sm:$0xf]
      %v589 = vld [vmem:[%s233 + $0x434] sm:$0xf]
      %v590 = vld [vmem:[%s233 + $0x438] sm:$0xf]
      %v591 = vld [vmem:[%s233 + $0x43c] sm:$0xf]
      %v592 = vld [vmem:[%s233 + $0x440] sm:$0xf]
      %v593 = vld [vmem:[%s233 + $0x444] sm:$0xf]
      %v594 = vld [vmem:[%s233 + $0x448] sm:$0xf]
      %v595 = vld [vmem:[%s233 + $0x44c] sm:$0xf]
      %v596 = vld [vmem:[%s233 + $0x450] sm:$0xf]
      %v597 = vld [vmem:[%s233 + $0x454] sm:$0xf]
      %v598 = vld [vmem:[%s233 + $0x458] sm:$0xf]
      %v599 = vld [vmem:[%s233 + $0x45c] sm:$0xf]
      %v600 = vld [vmem:[%s233 + $0x460] sm:$0xf]
      %v601 = vld [vmem:[%s233 + $0x464] sm:$0xf]
      %v602 = vld [vmem:[%s233 + $0x468] sm:$0xf]
      %v603 = vld [vmem:[%s233 + $0x46c] sm:$0xf]
      %v604 = vld [vmem:[%s233 + $0x470] sm:$0xf]
      %v605 = vld [vmem:[%s233 + $0x474] sm:$0xf]
      %v606 = vld [vmem:[%s233 + $0x478] sm:$0xf]
      %v607 = vld [vmem:[%s233 + $0x47c] sm:$0xf]
      %v608 = vld [vmem:[%s233 + $0x480] sm:$0xf]
      %v609 = vld [vmem:[%s233 + $0x484] sm:$0xf]
      %v610 = vld [vmem:[%s233 + $0x488] sm:$0xf]
      %v611 = vld [vmem:[%s233 + $0x48c] sm:$0xf]
      %v612 = vld [vmem:[%s233 + $0x490] sm:$0xf]
      %v613 = vld [vmem:[%s233 + $0x494] sm:$0xf]
      %v614 = vld [vmem:[%s233 + $0x498] sm:$0xf]
      %v615 = vld [vmem:[%s233 + $0x49c] sm:$0xf]
      %v616 = vld [vmem:[%s233 + $0x4a0] sm:$0xf]
      %v617 = vld [vmem:[%s233 + $0x4a4] sm:$0xf]
      %v618 = vld [vmem:[%s233 + $0x4a8] sm:$0xf]
      %v619 = vld [vmem:[%s233 + $0x4ac] sm:$0xf]
      %v620 = vld [vmem:[%s233 + $0x4b0] sm:$0xf]
      %v621 = vld [vmem:[%s233 + $0x4b4] sm:$0xf]
      %v622 = vld [vmem:[%s233 + $0x4b8] sm:$0xf]
      %v623 = vld [vmem:[%s233 + $0x4bc] sm:$0xf]
      %v624 = vld [vmem:[%s233 + $0x4c0] sm:$0xf]
      %v625 = vld [vmem:[%s233 + $0x4c4] sm:$0xf]
      %v626 = vld [vmem:[%s233 + $0x4c8] sm:$0xf]
      %v627 = vld [vmem:[%s233 + $0x4cc] sm:$0xf]
      %v628 = vld [vmem:[%s233 + $0x4d0] sm:$0xf]
      %v629 = vld [vmem:[%s233 + $0x4d4] sm:$0xf]
      %v630 = vld [vmem:[%s233 + $0x4d8] sm:$0xf]
      %v631 = vld [vmem:[%s233 + $0x4dc] sm:$0xf]
      %v632 = vld [vmem:[%s233 + $0x4e0] sm:$0xf]
      %v633 = vld [vmem:[%s233 + $0x4e4] sm:$0xf]
      %v634 = vld [vmem:[%s233 + $0x4e8] sm:$0xf]
      %v635 = vld [vmem:[%s233 + $0x4ec] sm:$0xf]
      %v636 = vld [vmem:[%s233 + $0x4f0] sm:$0xf]
      %v637 = vld [vmem:[%s233 + $0x4f4] sm:$0xf]
      %v638 = vld [vmem:[%s233 + $0x4f8] sm:$0xf]
      %v639 = vld [vmem:[%s233 + $0x4fc] sm:$0xf]
      %v640 = vld [vmem:[%s233 + $0x500] sm:$0xf]
      %v641 = vld [vmem:[%s233 + $0x504] sm:$0xf]
      %v642 = vld [vmem:[%s233 + $0x508] sm:$0xf]
      %v643 = vld [vmem:[%s233 + $0x50c] sm:$0xf]
      %v644 = vld [vmem:[%s233 + $0x510] sm:$0xf]
      %v645 = vld [vmem:[%s233 + $0x514] sm:$0xf]
      %v646 = vld [vmem:[%s233 + $0x518] sm:$0xf]
      %v647 = vld [vmem:[%s233 + $0x51c] sm:$0xf]
      %v648 = vld [vmem:[%s233 + $0x520] sm:$0xf]
      %v649 = vld [vmem:[%s233 + $0x524] sm:$0xf]
      %v650 = vld [vmem:[%s233 + $0x528] sm:$0xf]
      %v651 = vld [vmem:[%s233 + $0x52c] sm:$0xf]
      %v652 = vld [vmem:[%s233 + $0x530] sm:$0xf]
      %v653 = vld [vmem:[%s233 + $0x534] sm:$0xf]
      %v654 = vld [vmem:[%s233 + $0x538] sm:$0xf]
      %v655 = vld [vmem:[%s233 + $0x53c] sm:$0xf]
      %v656 = vld [vmem:[%s233 + $0x540] sm:$0xf]
      %v657 = vld [vmem:[%s233 + $0x544] sm:$0xf]
      %v658 = vld [vmem:[%s233 + $0x548] sm:$0xf]
      %v659 = vld [vmem:[%s233 + $0x54c] sm:$0xf]
      %v660 = vld [vmem:[%s233 + $0x550] sm:$0xf]
      %v661 = vld [vmem:[%s233 + $0x554] sm:$0xf]
      %v662 = vld [vmem:[%s233 + $0x558] sm:$0xf]
      %v663 = vld [vmem:[%s233 + $0x55c] sm:$0xf]
      %v664 = vld [vmem:[%s233 + $0x560] sm:$0xf]
      %v665 = vld [vmem:[%s233 + $0x564] sm:$0xf]
      %v666 = vld [vmem:[%s233 + $0x568] sm:$0xf]
      %v667 = vld [vmem:[%s233 + $0x56c] sm:$0xf]
      %v668 = vld [vmem:[%s233 + $0x570] sm:$0xf]
      %v669 = vld [vmem:[%s233 + $0x574] sm:$0xf]
      %v670 = vld [vmem:[%s233 + $0x578] sm:$0xf]
      %v671 = vld [vmem:[%s233 + $0x57c] sm:$0xf]
      %v672 = vld [vmem:[%s233 + $0x580] sm:$0xf]
      %v673 = vld [vmem:[%s233 + $0x584] sm:$0xf]
      %v674 = vld [vmem:[%s233 + $0x588] sm:$0xf]
      %v675 = vld [vmem:[%s233 + $0x58c] sm:$0xf]
      %v676 = vld [vmem:[%s233 + $0x590] sm:$0xf]
      %v677 = vld [vmem:[%s233 + $0x594] sm:$0xf]
      %v678 = vld [vmem:[%s233 + $0x598] sm:$0xf]
      %v679 = vld [vmem:[%s233 + $0x59c] sm:$0xf]
      %v680 = vld [vmem:[%s233 + $0x5a0] sm:$0xf]
      %v681 = vld [vmem:[%s233 + $0x5a4] sm:$0xf]
      %v682 = vld [vmem:[%s233 + $0x5a8] sm:$0xf]
      %v683 = vld [vmem:[%s233 + $0x5ac] sm:$0xf]
      %v684 = vld [vmem:[%s233 + $0x5b0] sm:$0xf]
      %v685 = vld [vmem:[%s233 + $0x5b4] sm:$0xf]
      %v686 = vld [vmem:[%s233 + $0x5b8] sm:$0xf]
      %v687 = vld [vmem:[%s233 + $0x5bc] sm:$0xf]
      %v688 = vld [vmem:[%s233 + $0x5c0] sm:$0xf]
      %v689 = vld [vmem:[%s233 + $0x5c4] sm:$0xf]
      %v690 = vld [vmem:[%s233 + $0x5c8] sm:$0xf]
      %v691 = vld [vmem:[%s233 + $0x5cc] sm:$0xf]
      %v692 = vld [vmem:[%s233 + $0x5d0] sm:$0xf]
      %v693 = vld [vmem:[%s233 + $0x5d4] sm:$0xf]
      %v694 = vld [vmem:[%s233 + $0x5d8] sm:$0xf]
      %v695 = vld [vmem:[%s233 + $0x5dc] sm:$0xf]
      %v696 = vld [vmem:[%s233 + $0x5e0] sm:$0xf]
      %v697 = vld [vmem:[%s233 + $0x5e4] sm:$0xf]
      %v698 = vld [vmem:[%s233 + $0x5e8] sm:$0xf]
      %v699 = vld [vmem:[%s233 + $0x5ec] sm:$0xf]
      %v700 = vld [vmem:[%s233 + $0x5f0] sm:$0xf]
      %v701 = vld [vmem:[%s233 + $0x5f4] sm:$0xf]
      %v702 = vld [vmem:[%s233 + $0x5f8] sm:$0xf]
      %v703 = vld [vmem:[%s233 + $0x5fc] sm:$0xf]
      %v704 = vld [vmem:[%s233 + $0x600] sm:$0xf]
      %v705 = vld [vmem:[%s233 + $0x604] sm:$0xf]
      %v706 = vld [vmem:[%s233 + $0x608] sm:$0xf]
      %v707 = vld [vmem:[%s233 + $0x60c] sm:$0xf]
      %v708 = vld [vmem:[%s233 + $0x610] sm:$0xf]
      %v709 = vld [vmem:[%s233 + $0x614] sm:$0xf]
      %v710 = vld [vmem:[%s233 + $0x618] sm:$0xf]
      %v711 = vld [vmem:[%s233 + $0x61c] sm:$0xf]
      %v712 = vld [vmem:[%s233 + $0x620] sm:$0xf]
      %v713 = vld [vmem:[%s233 + $0x624] sm:$0xf]
      %v714 = vld [vmem:[%s233 + $0x628] sm:$0xf]
      %v715 = vld [vmem:[%s233 + $0x62c] sm:$0xf]
      %v716 = vld [vmem:[%s233 + $0x630] sm:$0xf]
      %v717 = vld [vmem:[%s233 + $0x634] sm:$0xf]
      %v718 = vld [vmem:[%s233 + $0x638] sm:$0xf]
      %v719 = vld [vmem:[%s233 + $0x63c] sm:$0xf]
      %v720 = vld [vmem:[%s233 + $0x640] sm:$0xf]
      %v721 = vld [vmem:[%s233 + $0x644] sm:$0xf]
      %v722 = vld [vmem:[%s233 + $0x648] sm:$0xf]
      %v723 = vld [vmem:[%s233 + $0x64c] sm:$0xf]
      %v724 = vld [vmem:[%s233 + $0x650] sm:$0xf]
      %v725 = vld [vmem:[%s233 + $0x654] sm:$0xf]
      %v726 = vld [vmem:[%s233 + $0x658] sm:$0xf]
      %v727 = vld [vmem:[%s233 + $0x65c] sm:$0xf]
      %v728 = vld [vmem:[%s233 + $0x660] sm:$0xf]
      %v729 = vld [vmem:[%s233 + $0x664] sm:$0xf]
      %v730 = vld [vmem:[%s233 + $0x668] sm:$0xf]
      %v731 = vld [vmem:[%s233 + $0x66c] sm:$0xf]
      %v732 = vld [vmem:[%s233 + $0x670] sm:$0xf]
      %v733 = vld [vmem:[%s233 + $0x674] sm:$0xf]
      %v734 = vld [vmem:[%s233 + $0x678] sm:$0xf]
      %v735 = vld [vmem:[%s233 + $0x67c] sm:$0xf]
      %v736 = vld [vmem:[%s233 + $0x680] sm:$0xf]
      %v737 = vld [vmem:[%s233 + $0x684] sm:$0xf]
      %v738 = vld [vmem:[%s233 + $0x688] sm:$0xf]
      %v739 = vld [vmem:[%s233 + $0x68c] sm:$0xf]
      %v740 = vld [vmem:[%s233 + $0x690] sm:$0xf]
      %v741 = vld [vmem:[%s233 + $0x694] sm:$0xf]
      %v742 = vld [vmem:[%s233 + $0x698] sm:$0xf]
      %v743 = vld [vmem:[%s233 + $0x69c] sm:$0xf]
      %v744 = vld [vmem:[%s233 + $0x6a0] sm:$0xf]
      %v745 = vld [vmem:[%s233 + $0x6a4] sm:$0xf]
      %v746 = vld [vmem:[%s233 + $0x6a8] sm:$0xf]
      %v747 = vld [vmem:[%s233 + $0x6ac] sm:$0xf]
      %v748 = vld [vmem:[%s233 + $0x6b0] sm:$0xf]
      %v749 = vld [vmem:[%s233 + $0x6b4] sm:$0xf]
      %v750 = vld [vmem:[%s233 + $0x6b8] sm:$0xf]
      %v751 = vld [vmem:[%s233 + $0x6bc] sm:$0xf]
      %v752 = vld [vmem:[%s233 + $0x6c0] sm:$0xf]
      %v753 = vld [vmem:[%s233 + $0x6c4] sm:$0xf]
      %v754 = vld [vmem:[%s233 + $0x6c8] sm:$0xf]
      %v755 = vld [vmem:[%s233 + $0x6cc] sm:$0xf]
      %v756 = vld [vmem:[%s233 + $0x6d0] sm:$0xf]
      %v757 = vld [vmem:[%s233 + $0x6d4] sm:$0xf]
      %v758 = vld [vmem:[%s233 + $0x6d8] sm:$0xf]
      %v759 = vld [vmem:[%s233 + $0x6dc] sm:$0xf]
      %v760 = vld [vmem:[%s233 + $0x6e0] sm:$0xf]
      %v761 = vld [vmem:[%s233 + $0x6e4] sm:$0xf]
      %v762 = vld [vmem:[%s233 + $0x6e8] sm:$0xf]
      %v763 = vld [vmem:[%s233 + $0x6ec] sm:$0xf]
      %v764 = vld [vmem:[%s233 + $0x6f0] sm:$0xf]
      %v765 = vld [vmem:[%s233 + $0x6f4] sm:$0xf]
      %v766 = vld [vmem:[%s233 + $0x6f8] sm:$0xf]
      %v767 = vld [vmem:[%s233 + $0x6fc] sm:$0xf]
      %v768 = vld [vmem:[%s233 + $0x700] sm:$0xf]
      %v769 = vld [vmem:[%s233 + $0x704] sm:$0xf]
      %v770 = vld [vmem:[%s233 + $0x708] sm:$0xf]
      %v771 = vld [vmem:[%s233 + $0x70c] sm:$0xf]
      %v772 = vld [vmem:[%s233 + $0x710] sm:$0xf]
      %v773 = vld [vmem:[%s233 + $0x714] sm:$0xf]
      %v774 = vld [vmem:[%s233 + $0x718] sm:$0xf]
      %v775 = vld [vmem:[%s233 + $0x71c] sm:$0xf]
      %v776 = vld [vmem:[%s233 + $0x720] sm:$0xf]
      %v777 = vld [vmem:[%s233 + $0x724] sm:$0xf]
      %v778 = vld [vmem:[%s233 + $0x728] sm:$0xf]
      %v779 = vld [vmem:[%s233 + $0x72c] sm:$0xf]
      %v780 = vld [vmem:[%s233 + $0x730] sm:$0xf]
      %v781 = vld [vmem:[%s233 + $0x734] sm:$0xf]
      %v782 = vld [vmem:[%s233 + $0x738] sm:$0xf]
      %v783 = vld [vmem:[%s233 + $0x73c] sm:$0xf]
      %v784 = vld [vmem:[%s233 + $0x740] sm:$0xf]
      %v785 = vld [vmem:[%s233 + $0x744] sm:$0xf]
      %v786 = vld [vmem:[%s233 + $0x748] sm:$0xf]
      %v787 = vld [vmem:[%s233 + $0x74c] sm:$0xf]
      %v788 = vld [vmem:[%s233 + $0x750] sm:$0xf]
      %v789 = vld [vmem:[%s233 + $0x754] sm:$0xf]
      %v790 = vld [vmem:[%s233 + $0x758] sm:$0xf]
      %v791 = vld [vmem:[%s233 + $0x75c] sm:$0xf]
      %v792 = vld [vmem:[%s233 + $0x760] sm:$0xf]
      %v793 = vld [vmem:[%s233 + $0x764] sm:$0xf]
      %v794 = vld [vmem:[%s233 + $0x768] sm:$0xf]
      %v795 = vld [vmem:[%s233 + $0x76c] sm:$0xf]
      %v796 = vld [vmem:[%s233 + $0x770] sm:$0xf]
      %v797 = vld [vmem:[%s233 + $0x774] sm:$0xf]
      %v798 = vld [vmem:[%s233 + $0x778] sm:$0xf]
      %v799 = vld [vmem:[%s233 + $0x77c] sm:$0xf]
      %v800 = vld [vmem:[%s233 + $0x780] sm:$0xf]
      %v801 = vld [vmem:[%s233 + $0x784] sm:$0xf]
      %v802 = vld [vmem:[%s233 + $0x788] sm:$0xf]
      %v803 = vld [vmem:[%s233 + $0x78c] sm:$0xf]
      %v804 = vld [vmem:[%s233 + $0x790] sm:$0xf]
      %v805 = vld [vmem:[%s233 + $0x794] sm:$0xf]
      %v806 = vld [vmem:[%s233 + $0x798] sm:$0xf]
      %v807 = vld [vmem:[%s233 + $0x79c] sm:$0xf]
      %v808 = vld [vmem:[%s233 + $0x7a0] sm:$0xf]
      %v809 = vld [vmem:[%s233 + $0x7a4] sm:$0xf]
      %v810 = vld [vmem:[%s233 + $0x7a8] sm:$0xf]
      %v811 = vld [vmem:[%s233 + $0x7ac] sm:$0xf]
      %v812 = vld [vmem:[%s233 + $0x7b0] sm:$0xf]
      %v813 = vld [vmem:[%s233 + $0x7b4] sm:$0xf]
      %v814 = vld [vmem:[%s233 + $0x7b8] sm:$0xf]
      %v815 = vld [vmem:[%s233 + $0x7bc] sm:$0xf]
      %v816 = vld [vmem:[%s233 + $0x7c0] sm:$0xf]
      %v817 = vld [vmem:[%s233 + $0x7c4] sm:$0xf]
      %v818 = vld [vmem:[%s233 + $0x7c8] sm:$0xf]
      %v819 = vld [vmem:[%s233 + $0x7cc] sm:$0xf]
      %v820 = vld [vmem:[%s233 + $0x7d0] sm:$0xf]
      %v821 = vld [vmem:[%s233 + $0x7d4] sm:$0xf]
      %v822 = vld [vmem:[%s233 + $0x7d8] sm:$0xf]
      %v823 = vld [vmem:[%s233 + $0x7dc] sm:$0xf]
      %v824 = vld [vmem:[%s233 + $0x7e0] sm:$0xf]
      %v825 = vld [vmem:[%s233 + $0x7e4] sm:$0xf]
      %v826 = vld [vmem:[%s233 + $0x7e8] sm:$0xf]
      %v827 = vld [vmem:[%s233 + $0x7ec] sm:$0xf]
      %v828 = vld [vmem:[%s233 + $0x7f0] sm:$0xf]
      %v829 = vld [vmem:[%s233 + $0x7f4] sm:$0xf]
      %v830 = vld [vmem:[%s233 + $0x7f8] sm:$0xf]
      %v831 = vld [vmem:[%s233 + $0x7fc] sm:$0xf]
      %v832 = vld [vmem:[%s233 + $0x800] sm:$0xf]
      %v833 = vld [vmem:[%s233 + $0x804] sm:$0xf]
      %v834 = vld [vmem:[%s233 + $0x808] sm:$0xf]
      %v835 = vld [vmem:[%s233 + $0x80c] sm:$0xf]
      %v836 = vld [vmem:[%s233 + $0x810] sm:$0xf]
      %v837 = vld [vmem:[%s233 + $0x814] sm:$0xf]
      %v838 = vld [vmem:[%s233 + $0x818] sm:$0xf]
      %v839 = vld [vmem:[%s233 + $0x81c] sm:$0xf]
      %v840 = vld [vmem:[%s233 + $0x820] sm:$0xf]
      %v841 = vld [vmem:[%s233 + $0x824] sm:$0xf]
      %v842 = vld [vmem:[%s233 + $0x828] sm:$0xf]
      %v843 = vld [vmem:[%s233 + $0x82c] sm:$0xf]
      %v844 = vld [vmem:[%s233 + $0x830] sm:$0xf]
      %v845 = vld [vmem:[%s233 + $0x834] sm:$0xf]
      %v846 = vld [vmem:[%s233 + $0x838] sm:$0xf]
      %v847 = vld [vmem:[%s233 + $0x83c] sm:$0xf]
      %v848 = vld [vmem:[%s233 + $0x840] sm:$0xf]
      %v849 = vld [vmem:[%s233 + $0x844] sm:$0xf]
      %v850 = vld [vmem:[%s233 + $0x848] sm:$0xf]
      %v851 = vld [vmem:[%s233 + $0x84c] sm:$0xf]
      %v852 = vld [vmem:[%s233 + $0x850] sm:$0xf]
      %v853 = vld [vmem:[%s233 + $0x854] sm:$0xf]
      %v854 = vld [vmem:[%s233 + $0x858] sm:$0xf]
      %v855 = vld [vmem:[%s233 + $0x85c] sm:$0xf]
      %v856 = vld [vmem:[%s233 + $0x860] sm:$0xf]
      %v857 = vld [vmem:[%s233 + $0x864] sm:$0xf]
      %v858 = vld [vmem:[%s233 + $0x868] sm:$0xf]
      %v859 = vld [vmem:[%s233 + $0x86c] sm:$0xf]
      %v860 = vld [vmem:[%s233 + $0x870] sm:$0xf]
      %v861 = vld [vmem:[%s233 + $0x874] sm:$0xf]
      %v862 = vld [vmem:[%s233 + $0x878] sm:$0xf]
      %v863 = vld [vmem:[%s233 + $0x87c] sm:$0xf]
      %v864 = vld [vmem:[%s233 + $0x880] sm:$0xf]
      %v865 = vld [vmem:[%s233 + $0x884] sm:$0xf]
      %v866 = vld [vmem:[%s233 + $0x888] sm:$0xf]
      %v867 = vld [vmem:[%s233 + $0x88c] sm:$0xf]
      %v868 = vld [vmem:[%s233 + $0x890] sm:$0xf]
      %v869 = vld [vmem:[%s233 + $0x894] sm:$0xf]
      %v870 = vld [vmem:[%s233 + $0x898] sm:$0xf]
      %v871 = vld [vmem:[%s233 + $0x89c] sm:$0xf]
      %v872 = vld [vmem:[%s233 + $0x8a0] sm:$0xf]
      %v873 = vld [vmem:[%s233 + $0x8a4] sm:$0xf]
      %v874 = vld [vmem:[%s233 + $0x8a8] sm:$0xf]
      %v875 = vld [vmem:[%s233 + $0x8ac] sm:$0xf]
      %v876 = vld [vmem:[%s233 + $0x8b0] sm:$0xf]
      %v877 = vld [vmem:[%s233 + $0x8b4] sm:$0xf]
      %v878 = vld [vmem:[%s233 + $0x8b8] sm:$0xf]
      %v879 = vld [vmem:[%s233 + $0x8bc] sm:$0xf]
      %v880 = vld [vmem:[%s233 + $0x8c0] sm:$0xf]
      %v881 = vld [vmem:[%s233 + $0x8c4] sm:$0xf]
      %v882 = vld [vmem:[%s233 + $0x8c8] sm:$0xf]
      %v883 = vld [vmem:[%s233 + $0x8cc] sm:$0xf]
      %v884 = vld [vmem:[%s233 + $0x8d0] sm:$0xf]
      %v885 = vld [vmem:[%s233 + $0x8d4] sm:$0xf]
      %v886 = vld [vmem:[%s233 + $0x8d8] sm:$0xf]
      %v887 = vld [vmem:[%s233 + $0x8dc] sm:$0xf]
      %v888 = vld [vmem:[%s233 + $0x8e0] sm:$0xf]
      %v889 = vld [vmem:[%s233 + $0x8e4] sm:$0xf]
      %v890 = vld [vmem:[%s233 + $0x8e8] sm:$0xf]
      %v891 = vld [vmem:[%s233 + $0x8ec] sm:$0xf]
      %v892 = vld [vmem:[%s233 + $0x8f0] sm:$0xf]
      %v893 = vld [vmem:[%s233 + $0x8f4] sm:$0xf]
      %v894 = vld [vmem:[%s233 + $0x8f8] sm:$0xf]
      %v895 = vld [vmem:[%s233 + $0x8fc] sm:$0xf]
      %v896 = vld [vmem:[%s236] sm:$0x1]
      %v898 = vlaneseq
      %v899 = vshrl.u32 %v898, 7
      %v900 = vsub.s32 0, %v899
      %v901 = vrot.slane %v896, %v900
      %v975 = vunpack.c.l.b16 %v248
      %v976 = vunpack.c.h.b16 %v248
      %v977 = vunpack.c.l.b16 %v249
      %v978 = vunpack.c.h.b16 %v249
      %v979 = vunpack.c.l.b16 %v250
      %v980 = vunpack.c.h.b16 %v250
      %v981 = vunpack.c.l.b16 %v251
      %v982 = vunpack.c.h.b16 %v251
      %v983 = vunpack.c.l.b16 %v252
      %v984 = vunpack.c.h.b16 %v252
      %v985 = vunpack.c.l.b16 %v253
      %v986 = vunpack.c.h.b16 %v253
      %v987 = vunpack.c.l.b16 %v254
      %v988 = vunpack.c.h.b16 %v254
      %v989 = vunpack.c.l.b16 %v255
      %v990 = vunpack.c.h.b16 %v255
      %v991 = vunpack.c.l.b16 %v256
      %v992 = vunpack.c.h.b16 %v256
      %v993 = vunpack.c.l.b16 %v257
      %v994 = vunpack.c.h.b16 %v257
      %v995 = vunpack.c.l.b16 %v258
      %v996 = vunpack.c.h.b16 %v258
      %v997 = vunpack.c.l.b16 %v259
      %v998 = vunpack.c.h.b16 %v259
      %v999 = vunpack.c.l.b16 %v260
      %v1000 = vunpack.c.h.b16 %v260
      %v1001 = vunpack.c.l.b16 %v261
      %v1002 = vunpack.c.h.b16 %v261
      %v1003 = vunpack.c.l.b16 %v262
      %v1004 = vunpack.c.h.b16 %v262
      %v1005 = vunpack.c.l.b16 %v263
      %v1006 = vunpack.c.h.b16 %v263
      %v1007 = vunpack.c.l.b16 %v264
      %v1008 = vunpack.c.h.b16 %v264
      %v1009 = vunpack.c.l.b16 %v265
      %v1010 = vunpack.c.h.b16 %v265
      %v1011 = vunpack.c.l.b16 %v266
      %v1012 = vunpack.c.h.b16 %v266
      %v1013 = vunpack.c.l.b16 %v267
      %v1014 = vunpack.c.h.b16 %v267
      %v1015 = vunpack.c.l.b16 %v268
      %v1016 = vunpack.c.h.b16 %v268
      %v1017 = vunpack.c.l.b16 %v269
      %v1018 = vunpack.c.h.b16 %v269
      %v1019 = vunpack.c.l.b16 %v270
      %v1020 = vunpack.c.h.b16 %v270
      %v1021 = vunpack.c.l.b16 %v271
      %v1022 = vunpack.c.h.b16 %v271
      %v1023 = vunpack.c.l.b16 %v272
      %v1024 = vunpack.c.h.b16 %v272
      %v1025 = vunpack.c.l.b16 %v273
      %v1026 = vunpack.c.h.b16 %v273
      %v1027 = vunpack.c.l.b16 %v274
      %v1028 = vunpack.c.h.b16 %v274
      %v1029 = vunpack.c.l.b16 %v275
      %v1030 = vunpack.c.h.b16 %v275
      %v1031 = vunpack.c.l.b16 %v276
      %v1032 = vunpack.c.h.b16 %v276
      %v1033 = vunpack.c.l.b16 %v277
      %v1034 = vunpack.c.h.b16 %v277
      %v1035 = vunpack.c.l.b16 %v278
      %v1036 = vunpack.c.h.b16 %v278
      %v1037 = vunpack.c.l.b16 %v279
      %v1038 = vunpack.c.h.b16 %v279
      %v1039 = vunpack.c.l.b16 %v280
      %v1040 = vunpack.c.h.b16 %v280
      %v1041 = vunpack.c.l.b16 %v281
      %v1042 = vunpack.c.h.b16 %v281
      %v1043 = vunpack.c.l.b16 %v282
      %v1044 = vunpack.c.h.b16 %v282
      %v1045 = vunpack.c.l.b16 %v283
      %v1046 = vunpack.c.h.b16 %v283
      %v1047 = vunpack.c.l.b16 %v284
      %v1048 = vunpack.c.h.b16 %v284
      %v1049 = vunpack.c.l.b16 %v285
      %v1050 = vunpack.c.h.b16 %v285
      %v1051 = vunpack.c.l.b16 %v286
      %v1052 = vunpack.c.h.b16 %v286
      %v1053 = vunpack.c.l.b16 %v287
      %v1054 = vunpack.c.h.b16 %v287
      %v1055 = vunpack.c.l.b16 %v288
      %v1056 = vunpack.c.h.b16 %v288
      %v1057 = vunpack.c.l.b16 %v289
      %v1058 = vunpack.c.h.b16 %v289
      %v1059 = vunpack.c.l.b16 %v290
      %v1060 = vunpack.c.h.b16 %v290
      %v1061 = vunpack.c.l.b16 %v291
      %v1062 = vunpack.c.h.b16 %v291
      %v1063 = vunpack.c.l.b16 %v292
      %v1064 = vunpack.c.h.b16 %v292
      %v1065 = vunpack.c.l.b16 %v293
      %v1066 = vunpack.c.h.b16 %v293
      %v1067 = vunpack.c.l.b16 %v294
      %v1068 = vunpack.c.h.b16 %v294
      %v1069 = vunpack.c.l.b16 %v295
      %v1070 = vunpack.c.h.b16 %v295
      %v1071 = vunpack.c.l.b16 %v296
      %v1072 = vunpack.c.h.b16 %v296
      %v1073 = vunpack.c.l.b16 %v297
      %v1074 = vunpack.c.h.b16 %v297
      %v1075 = vunpack.c.l.b16 %v298
      %v1076 = vunpack.c.h.b16 %v298
      %v1077 = vunpack.c.l.b16 %v299
      %v1078 = vunpack.c.h.b16 %v299
      %v1079 = vunpack.c.l.b16 %v300
      %v1080 = vunpack.c.h.b16 %v300
      %v1081 = vunpack.c.l.b16 %v301
      %v1082 = vunpack.c.h.b16 %v301
      %v1083 = vunpack.c.l.b16 %v302
      %v1084 = vunpack.c.h.b16 %v302
      %v1085 = vunpack.c.l.b16 %v303
      %v1086 = vunpack.c.h.b16 %v303
      %v1087 = vunpack.c.l.b16 %v304
      %v1088 = vunpack.c.h.b16 %v304
      %v1089 = vunpack.c.l.b16 %v305
      %v1090 = vunpack.c.h.b16 %v305
      %v1091 = vunpack.c.l.b16 %v306
      %v1092 = vunpack.c.h.b16 %v306
      %v1093 = vunpack.c.l.b16 %v307
      %v1094 = vunpack.c.h.b16 %v307
      %v1095 = vunpack.c.l.b16 %v308
      %v1096 = vunpack.c.h.b16 %v308
      %v1097 = vunpack.c.l.b16 %v309
      %v1098 = vunpack.c.h.b16 %v309
      %v1099 = vunpack.c.l.b16 %v310
      %v1100 = vunpack.c.h.b16 %v310
      %v1101 = vunpack.c.l.b16 %v311
      %v1102 = vunpack.c.h.b16 %v311
      %v1103 = vunpack.c.l.b16 %v312
      %v1104 = vunpack.c.h.b16 %v312
      %v1105 = vunpack.c.l.b16 %v313
      %v1106 = vunpack.c.h.b16 %v313
      %v1107 = vunpack.c.l.b16 %v314
      %v1108 = vunpack.c.h.b16 %v314
      %v1109 = vunpack.c.l.b16 %v315
      %v1110 = vunpack.c.h.b16 %v315
      %v1111 = vunpack.c.l.b16 %v316
      %v1112 = vunpack.c.h.b16 %v316
      %v1113 = vunpack.c.l.b16 %v317
      %v1114 = vunpack.c.h.b16 %v317
      %v1115 = vunpack.c.l.b16 %v318
      %v1116 = vunpack.c.h.b16 %v318
      %v1117 = vunpack.c.l.b16 %v319
      %v1118 = vunpack.c.h.b16 %v319
      %v1119 = vpack.c.b16 %v1011, %v975
      %v1120 = vpack.c.b16 %v1012, %v976
      %v1121 = vpack.c.b16 %v1013, %v977
      %v1122 = vpack.c.b16 %v1014, %v978
      %v1123 = vpack.c.b16 %v1015, %v979
      %v1124 = vpack.c.b16 %v1016, %v980
      %v1125 = vpack.c.b16 %v1017, %v981
      %v1126 = vpack.c.b16 %v1018, %v982
      %v1127 = vpack.c.b16 %v1019, %v983
      %v1128 = vpack.c.b16 %v1020, %v984
      %v1129 = vpack.c.b16 %v1021, %v985
      %v1130 = vpack.c.b16 %v1022, %v986
      %v1131 = vpack.c.b16 %v1023, %v987
      %v1132 = vpack.c.b16 %v1024, %v988
      %v1133 = vpack.c.b16 %v1025, %v989
      %v1134 = vpack.c.b16 %v1026, %v990
      %v1135 = vpack.c.b16 %v1027, %v991
      %v1136 = vpack.c.b16 %v1028, %v992
      %v1137 = vpack.c.b16 %v1029, %v993
      %v1138 = vpack.c.b16 %v1030, %v994
      %v1139 = vpack.c.b16 %v1031, %v995
      %v1140 = vpack.c.b16 %v1032, %v996
      %v1141 = vpack.c.b16 %v1033, %v997
      %v1142 = vpack.c.b16 %v1034, %v998
      %v1143 = vpack.c.b16 %v1035, %v999
      %v1144 = vpack.c.b16 %v1036, %v1000
      %v1145 = vpack.c.b16 %v1037, %v1001
      %v1146 = vpack.c.b16 %v1038, %v1002
      %v1147 = vpack.c.b16 %v1039, %v1003
      %v1148 = vpack.c.b16 %v1040, %v1004
      %v1149 = vpack.c.b16 %v1041, %v1005
      %v1150 = vpack.c.b16 %v1042, %v1006
      %v1151 = vpack.c.b16 %v1043, %v1007
      %v1152 = vpack.c.b16 %v1044, %v1008
      %v1153 = vpack.c.b16 %v1045, %v1009
      %v1154 = vpack.c.b16 %v1046, %v1010
      %v1155 = vpack.c.b16 %v1083, %v1047
      %v1156 = vpack.c.b16 %v1084, %v1048
      %v1157 = vpack.c.b16 %v1085, %v1049
      %v1158 = vpack.c.b16 %v1086, %v1050
      %v1159 = vpack.c.b16 %v1087, %v1051
      %v1160 = vpack.c.b16 %v1088, %v1052
      %v1161 = vpack.c.b16 %v1089, %v1053
      %v1162 = vpack.c.b16 %v1090, %v1054
      %v1163 = vpack.c.b16 %v1091, %v1055
      %v1164 = vpack.c.b16 %v1092, %v1056
      %v1165 = vpack.c.b16 %v1093, %v1057
      %v1166 = vpack.c.b16 %v1094, %v1058
      %v1167 = vpack.c.b16 %v1095, %v1059
      %v1168 = vpack.c.b16 %v1096, %v1060
      %v1169 = vpack.c.b16 %v1097, %v1061
      %v1170 = vpack.c.b16 %v1098, %v1062
      %v1171 = vpack.c.b16 %v1099, %v1063
      %v1172 = vpack.c.b16 %v1100, %v1064
      %v1173 = vpack.c.b16 %v1101, %v1065
      %v1174 = vpack.c.b16 %v1102, %v1066
      %v1175 = vpack.c.b16 %v1103, %v1067
      %v1176 = vpack.c.b16 %v1104, %v1068
      %v1177 = vpack.c.b16 %v1105, %v1069
      %v1178 = vpack.c.b16 %v1106, %v1070
      %v1179 = vpack.c.b16 %v1107, %v1071
      %v1180 = vpack.c.b16 %v1108, %v1072
      %v1181 = vpack.c.b16 %v1109, %v1073
      %v1182 = vpack.c.b16 %v1110, %v1074
      %v1183 = vpack.c.b16 %v1111, %v1075
      %v1184 = vpack.c.b16 %v1112, %v1076
      %v1185 = vpack.c.b16 %v1113, %v1077
      %v1186 = vpack.c.b16 %v1114, %v1078
      %v1187 = vpack.c.b16 %v1115, %v1079
      %v1188 = vpack.c.b16 %v1116, %v1080
      %v1189 = vpack.c.b16 %v1117, %v1081
      %v1190 = vpack.c.b16 %v1118, %v1082
      %v1839 = vunpack.c.l.b16 %v320
      %v1840 = vunpack.c.l.b16 %v321
      %v1841 = vunpack.c.l.b16 %v322
      %v1842 = vunpack.c.l.b16 %v323
      %v1843 = vunpack.c.l.b16 %v324
      %v1844 = vunpack.c.l.b16 %v325
      %v1845 = vunpack.c.l.b16 %v326
      %v1846 = vunpack.c.l.b16 %v327
      %v1847 = vunpack.c.l.b16 %v328
      %v1848 = vunpack.c.l.b16 %v329
      %v1849 = vunpack.c.l.b16 %v330
      %v1850 = vunpack.c.l.b16 %v331
      %v1851 = vunpack.c.l.b16 %v332
      %v1852 = vunpack.c.l.b16 %v333
      %v1853 = vunpack.c.l.b16 %v334
      %v1854 = vunpack.c.l.b16 %v335
      %v1855 = vunpack.c.l.b16 %v336
      %v1856 = vunpack.c.l.b16 %v337
      %v1857 = vunpack.c.l.b16 %v338
      %v1858 = vunpack.c.l.b16 %v339
      %v1859 = vunpack.c.l.b16 %v340
      %v1860 = vunpack.c.l.b16 %v341
      %v1861 = vunpack.c.l.b16 %v342
      %v1862 = vunpack.c.l.b16 %v343
      %v1863 = vunpack.c.l.b16 %v344
      %v1864 = vunpack.c.l.b16 %v345
      %v1865 = vunpack.c.l.b16 %v346
      %v1866 = vunpack.c.l.b16 %v347
      %v1867 = vunpack.c.l.b16 %v348
      %v1868 = vunpack.c.l.b16 %v349
      %v1869 = vunpack.c.l.b16 %v350
      %v1870 = vunpack.c.l.b16 %v351
      %v1871 = vunpack.c.l.b16 %v352
      %v1872 = vunpack.c.l.b16 %v353
      %v1873 = vunpack.c.l.b16 %v354
      %v1874 = vunpack.c.l.b16 %v355
      %v1875 = vunpack.c.l.b16 %v356
      %v1876 = vunpack.c.l.b16 %v357
      %v1877 = vunpack.c.l.b16 %v358
      %v1878 = vunpack.c.l.b16 %v359
      %v1879 = vunpack.c.l.b16 %v360
      %v1880 = vunpack.c.l.b16 %v361
      %v1881 = vunpack.c.l.b16 %v362
      %v1882 = vunpack.c.l.b16 %v363
      %v1883 = vunpack.c.l.b16 %v364
      %v1884 = vunpack.c.l.b16 %v365
      %v1885 = vunpack.c.l.b16 %v366
      %v1886 = vunpack.c.l.b16 %v367
      %v1887 = vunpack.c.l.b16 %v368
      %v1888 = vunpack.c.l.b16 %v369
      %v1889 = vunpack.c.l.b16 %v370
      %v1890 = vunpack.c.l.b16 %v371
      %v1891 = vunpack.c.l.b16 %v372
      %v1892 = vunpack.c.l.b16 %v373
      %v1893 = vunpack.c.l.b16 %v374
      %v1894 = vunpack.c.l.b16 %v375
      %v1895 = vunpack.c.l.b16 %v376
      %v1896 = vunpack.c.l.b16 %v377
      %v1897 = vunpack.c.l.b16 %v378
      %v1898 = vunpack.c.l.b16 %v379
      %v1899 = vunpack.c.l.b16 %v380
      %v1900 = vunpack.c.l.b16 %v381
      %v1901 = vunpack.c.l.b16 %v382
      %v1902 = vunpack.c.l.b16 %v383
      %v1903 = vunpack.c.l.b16 %v384
      %v1904 = vunpack.c.l.b16 %v385
      %v1905 = vunpack.c.l.b16 %v386
      %v1906 = vunpack.c.l.b16 %v387
      %v1907 = vunpack.c.l.b16 %v388
      %v1908 = vunpack.c.l.b16 %v389
      %v1909 = vunpack.c.l.b16 %v390
      %v1910 = vunpack.c.l.b16 %v391
      %v1911 = vunpack.c.l.b16 %v392
      %v1912 = vunpack.c.l.b16 %v393
      %v1913 = vunpack.c.l.b16 %v394
      %v1914 = vunpack.c.l.b16 %v395
      %v1915 = vunpack.c.l.b16 %v396
      %v1916 = vunpack.c.l.b16 %v397
      %v1917 = vunpack.c.l.b16 %v398
      %v1918 = vunpack.c.l.b16 %v399
      %v1919 = vunpack.c.l.b16 %v400
      %v1920 = vunpack.c.l.b16 %v401
      %v1921 = vunpack.c.l.b16 %v402
      %v1922 = vunpack.c.l.b16 %v403
      %v1923 = vunpack.c.l.b16 %v404
      %v1924 = vunpack.c.l.b16 %v405
      %v1925 = vunpack.c.l.b16 %v406
      %v1926 = vunpack.c.l.b16 %v407
      %v1927 = vunpack.c.l.b16 %v408
      %v1928 = vunpack.c.l.b16 %v409
      %v1929 = vunpack.c.l.b16 %v410
      %v1930 = vunpack.c.l.b16 %v411
      %v1931 = vunpack.c.l.b16 %v412
      %v1932 = vunpack.c.l.b16 %v413
      %v1933 = vunpack.c.l.b16 %v414
      %v1934 = vunpack.c.l.b16 %v415
      %v1935 = vunpack.c.l.b16 %v416
      %v1936 = vunpack.c.l.b16 %v417
      %v1937 = vunpack.c.l.b16 %v418
      %v1938 = vunpack.c.l.b16 %v419
      %v1939 = vunpack.c.l.b16 %v420
      %v1940 = vunpack.c.l.b16 %v421
      %v1941 = vunpack.c.l.b16 %v422
      %v1942 = vunpack.c.l.b16 %v423
      %v1943 = vunpack.c.l.b16 %v424
      %v1944 = vunpack.c.l.b16 %v425
      %v1945 = vunpack.c.l.b16 %v426
      %v1946 = vunpack.c.l.b16 %v427
      %v1947 = vunpack.c.l.b16 %v428
      %v1948 = vunpack.c.l.b16 %v429
      %v1949 = vunpack.c.l.b16 %v430
      %v1950 = vunpack.c.l.b16 %v431
      %v1951 = vunpack.c.l.b16 %v432
      %v1952 = vunpack.c.l.b16 %v433
      %v1953 = vunpack.c.l.b16 %v434
      %v1954 = vunpack.c.l.b16 %v435
      %v1955 = vunpack.c.l.b16 %v436
      %v1956 = vunpack.c.l.b16 %v437
      %v1957 = vunpack.c.l.b16 %v438
      %v1958 = vunpack.c.l.b16 %v439
      %v1959 = vunpack.c.l.b16 %v440
      %v1960 = vunpack.c.l.b16 %v441
      %v1961 = vunpack.c.l.b16 %v442
      %v1962 = vunpack.c.l.b16 %v443
      %v1963 = vunpack.c.l.b16 %v444
      %v1964 = vunpack.c.l.b16 %v445
      %v1965 = vunpack.c.l.b16 %v446
      %v1966 = vunpack.c.l.b16 %v447
      %v1967 = vunpack.c.l.b16 %v448
      %v1968 = vunpack.c.l.b16 %v449
      %v1969 = vunpack.c.l.b16 %v450
      %v1970 = vunpack.c.l.b16 %v451
      %v1971 = vunpack.c.l.b16 %v452
      %v1972 = vunpack.c.l.b16 %v453
      %v1973 = vunpack.c.l.b16 %v454
      %v1974 = vunpack.c.l.b16 %v455
      %v1975 = vunpack.c.l.b16 %v456
      %v1976 = vunpack.c.l.b16 %v457
      %v1977 = vunpack.c.l.b16 %v458
      %v1978 = vunpack.c.l.b16 %v459
      %v1979 = vunpack.c.l.b16 %v460
      %v1980 = vunpack.c.l.b16 %v461
      %v1981 = vunpack.c.l.b16 %v462
      %v1982 = vunpack.c.l.b16 %v463
      %v1983 = vunpack.c.l.b16 %v464
      %v1984 = vunpack.c.l.b16 %v465
      %v1985 = vunpack.c.l.b16 %v466
      %v1986 = vunpack.c.l.b16 %v467
      %v1987 = vunpack.c.l.b16 %v468
      %v1988 = vunpack.c.l.b16 %v469
      %v1989 = vunpack.c.l.b16 %v470
      %v1990 = vunpack.c.l.b16 %v471
      %v1991 = vunpack.c.l.b16 %v472
      %v1992 = vunpack.c.l.b16 %v473
      %v1993 = vunpack.c.l.b16 %v474
      %v1994 = vunpack.c.l.b16 %v475
      %v1995 = vunpack.c.l.b16 %v476
      %v1996 = vunpack.c.l.b16 %v477
      %v1997 = vunpack.c.l.b16 %v478
      %v1998 = vunpack.c.l.b16 %v479
      %v1999 = vunpack.c.l.b16 %v480
      %v2000 = vunpack.c.l.b16 %v481
      %v2001 = vunpack.c.l.b16 %v482
      %v2002 = vunpack.c.l.b16 %v483
      %v2003 = vunpack.c.l.b16 %v484
      %v2004 = vunpack.c.l.b16 %v485
      %v2005 = vunpack.c.l.b16 %v486
      %v2006 = vunpack.c.l.b16 %v487
      %v2007 = vunpack.c.l.b16 %v488
      %v2008 = vunpack.c.l.b16 %v489
      %v2009 = vunpack.c.l.b16 %v490
      %v2010 = vunpack.c.l.b16 %v491
      %v2011 = vunpack.c.l.b16 %v492
      %v2012 = vunpack.c.l.b16 %v493
      %v2013 = vunpack.c.l.b16 %v494
      %v2014 = vunpack.c.l.b16 %v495
      %v2015 = vunpack.c.l.b16 %v496
      %v2016 = vunpack.c.l.b16 %v497
      %v2017 = vunpack.c.l.b16 %v498
      %v2018 = vunpack.c.l.b16 %v499
      %v2019 = vunpack.c.l.b16 %v500
      %v2020 = vunpack.c.l.b16 %v501
      %v2021 = vunpack.c.l.b16 %v502
      %v2022 = vunpack.c.l.b16 %v503
      %v2023 = vunpack.c.l.b16 %v504
      %v2024 = vunpack.c.l.b16 %v505
      %v2025 = vunpack.c.l.b16 %v506
      %v2026 = vunpack.c.l.b16 %v507
      %v2027 = vunpack.c.l.b16 %v508
      %v2028 = vunpack.c.l.b16 %v509
      %v2029 = vunpack.c.l.b16 %v510
      %v2030 = vunpack.c.l.b16 %v511
      %v2031 = vunpack.c.l.b16 %v512
      %v2032 = vunpack.c.l.b16 %v513
      %v2033 = vunpack.c.l.b16 %v514
      %v2034 = vunpack.c.l.b16 %v515
      %v2035 = vunpack.c.l.b16 %v516
      %v2036 = vunpack.c.l.b16 %v517
      %v2037 = vunpack.c.l.b16 %v518
      %v2038 = vunpack.c.l.b16 %v519
      %v2039 = vunpack.c.l.b16 %v520
      %v2040 = vunpack.c.l.b16 %v521
      %v2041 = vunpack.c.l.b16 %v522
      %v2042 = vunpack.c.l.b16 %v523
      %v2043 = vunpack.c.l.b16 %v524
      %v2044 = vunpack.c.l.b16 %v525
      %v2045 = vunpack.c.l.b16 %v526
      %v2046 = vunpack.c.l.b16 %v527
      %v2047 = vunpack.c.l.b16 %v528
      %v2048 = vunpack.c.l.b16 %v529
      %v2049 = vunpack.c.l.b16 %v530
      %v2050 = vunpack.c.l.b16 %v531
      %v2051 = vunpack.c.l.b16 %v532
      %v2052 = vunpack.c.l.b16 %v533
      %v2053 = vunpack.c.l.b16 %v534
      %v2054 = vunpack.c.l.b16 %v535
      %v2055 = vunpack.c.l.b16 %v536
      %v2056 = vunpack.c.l.b16 %v537
      %v2057 = vunpack.c.l.b16 %v538
      %v2058 = vunpack.c.l.b16 %v539
      %v2059 = vunpack.c.l.b16 %v540
      %v2060 = vunpack.c.l.b16 %v541
      %v2061 = vunpack.c.l.b16 %v542
      %v2062 = vunpack.c.l.b16 %v543
      %v2063 = vunpack.c.l.b16 %v544
      %v2064 = vunpack.c.l.b16 %v545
      %v2065 = vunpack.c.l.b16 %v546
      %v2066 = vunpack.c.l.b16 %v547
      %v2067 = vunpack.c.l.b16 %v548
      %v2068 = vunpack.c.l.b16 %v549
      %v2069 = vunpack.c.l.b16 %v550
      %v2070 = vunpack.c.l.b16 %v551
      %v2071 = vunpack.c.l.b16 %v552
      %v2072 = vunpack.c.l.b16 %v553
      %v2073 = vunpack.c.l.b16 %v554
      %v2074 = vunpack.c.l.b16 %v555
      %v2075 = vunpack.c.l.b16 %v556
      %v2076 = vunpack.c.l.b16 %v557
      %v2077 = vunpack.c.l.b16 %v558
      %v2078 = vunpack.c.l.b16 %v559
      %v2079 = vunpack.c.l.b16 %v560
      %v2080 = vunpack.c.l.b16 %v561
      %v2081 = vunpack.c.l.b16 %v562
      %v2082 = vunpack.c.l.b16 %v563
      %v2083 = vunpack.c.l.b16 %v564
      %v2084 = vunpack.c.l.b16 %v565
      %v2085 = vunpack.c.l.b16 %v566
      %v2086 = vunpack.c.l.b16 %v567
      %v2087 = vunpack.c.l.b16 %v568
      %v2088 = vunpack.c.l.b16 %v569
      %v2089 = vunpack.c.l.b16 %v570
      %v2090 = vunpack.c.l.b16 %v571
      %v2091 = vunpack.c.l.b16 %v572
      %v2092 = vunpack.c.l.b16 %v573
      %v2093 = vunpack.c.l.b16 %v574
      %v2094 = vunpack.c.l.b16 %v575
      %v2095 = vunpack.c.l.b16 %v576
      %v2096 = vunpack.c.l.b16 %v577
      %v2097 = vunpack.c.l.b16 %v578
      %v2098 = vunpack.c.l.b16 %v579
      %v2099 = vunpack.c.l.b16 %v580
      %v2100 = vunpack.c.l.b16 %v581
      %v2101 = vunpack.c.l.b16 %v582
      %v2102 = vunpack.c.l.b16 %v583
      %v2103 = vunpack.c.l.b16 %v584
      %v2104 = vunpack.c.l.b16 %v585
      %v2105 = vunpack.c.l.b16 %v586
      %v2106 = vunpack.c.l.b16 %v587
      %v2107 = vunpack.c.l.b16 %v588
      %v2108 = vunpack.c.l.b16 %v589
      %v2109 = vunpack.c.l.b16 %v590
      %v2110 = vunpack.c.l.b16 %v591
      %v2111 = vunpack.c.l.b16 %v592
      %v2112 = vunpack.c.l.b16 %v593
      %v2113 = vunpack.c.l.b16 %v594
      %v2114 = vunpack.c.l.b16 %v595
      %v2115 = vunpack.c.l.b16 %v596
      %v2116 = vunpack.c.l.b16 %v597
      %v2117 = vunpack.c.l.b16 %v598
      %v2118 = vunpack.c.l.b16 %v599
      %v2119 = vunpack.c.l.b16 %v600
      %v2120 = vunpack.c.l.b16 %v601
      %v2121 = vunpack.c.l.b16 %v602
      %v2122 = vunpack.c.l.b16 %v603
      %v2123 = vunpack.c.l.b16 %v604
      %v2124 = vunpack.c.l.b16 %v605
      %v2125 = vunpack.c.l.b16 %v606
      %v2126 = vunpack.c.l.b16 %v607
      %v2127 = vunpack.c.l.b16 %v608
      %v2128 = vunpack.c.l.b16 %v609
      %v2129 = vunpack.c.l.b16 %v610
      %v2130 = vunpack.c.l.b16 %v611
      %v2131 = vunpack.c.l.b16 %v612
      %v2132 = vunpack.c.l.b16 %v613
      %v2133 = vunpack.c.l.b16 %v614
      %v2134 = vunpack.c.l.b16 %v615
      %v2135 = vunpack.c.l.b16 %v616
      %v2136 = vunpack.c.l.b16 %v617
      %v2137 = vunpack.c.l.b16 %v618
      %v2138 = vunpack.c.l.b16 %v619
      %v2139 = vunpack.c.l.b16 %v620
      %v2140 = vunpack.c.l.b16 %v621
      %v2141 = vunpack.c.l.b16 %v622
      %v2142 = vunpack.c.l.b16 %v623
      %v2143 = vunpack.c.l.b16 %v624
      %v2144 = vunpack.c.l.b16 %v625
      %v2145 = vunpack.c.l.b16 %v626
      %v2146 = vunpack.c.l.b16 %v627
      %v2147 = vunpack.c.l.b16 %v628
      %v2148 = vunpack.c.l.b16 %v629
      %v2149 = vunpack.c.l.b16 %v630
      %v2150 = vunpack.c.l.b16 %v631
      %v2151 = vunpack.c.l.b16 %v632
      %v2152 = vunpack.c.l.b16 %v633
      %v2153 = vunpack.c.l.b16 %v634
      %v2154 = vunpack.c.l.b16 %v635
      %v2155 = vunpack.c.l.b16 %v636
      %v2156 = vunpack.c.l.b16 %v637
      %v2157 = vunpack.c.l.b16 %v638
      %v2158 = vunpack.c.l.b16 %v639
      %v2159 = vunpack.c.l.b16 %v640
      %v2160 = vunpack.c.l.b16 %v641
      %v2161 = vunpack.c.l.b16 %v642
      %v2162 = vunpack.c.l.b16 %v643
      %v2163 = vunpack.c.l.b16 %v644
      %v2164 = vunpack.c.l.b16 %v645
      %v2165 = vunpack.c.l.b16 %v646
      %v2166 = vunpack.c.l.b16 %v647
      %v2167 = vunpack.c.l.b16 %v648
      %v2168 = vunpack.c.l.b16 %v649
      %v2169 = vunpack.c.l.b16 %v650
      %v2170 = vunpack.c.l.b16 %v651
      %v2171 = vunpack.c.l.b16 %v652
      %v2172 = vunpack.c.l.b16 %v653
      %v2173 = vunpack.c.l.b16 %v654
      %v2174 = vunpack.c.l.b16 %v655
      %v2175 = vunpack.c.l.b16 %v656
      %v2176 = vunpack.c.l.b16 %v657
      %v2177 = vunpack.c.l.b16 %v658
      %v2178 = vunpack.c.l.b16 %v659
      %v2179 = vunpack.c.l.b16 %v660
      %v2180 = vunpack.c.l.b16 %v661
      %v2181 = vunpack.c.l.b16 %v662
      %v2182 = vunpack.c.l.b16 %v663
      %v2183 = vunpack.c.l.b16 %v664
      %v2184 = vunpack.c.l.b16 %v665
      %v2185 = vunpack.c.l.b16 %v666
      %v2186 = vunpack.c.l.b16 %v667
      %v2187 = vunpack.c.l.b16 %v668
      %v2188 = vunpack.c.l.b16 %v669
      %v2189 = vunpack.c.l.b16 %v670
      %v2190 = vunpack.c.l.b16 %v671
      %v2191 = vunpack.c.l.b16 %v672
      %v2192 = vunpack.c.l.b16 %v673
      %v2193 = vunpack.c.l.b16 %v674
      %v2194 = vunpack.c.l.b16 %v675
      %v2195 = vunpack.c.l.b16 %v676
      %v2196 = vunpack.c.l.b16 %v677
      %v2197 = vunpack.c.l.b16 %v678
      %v2198 = vunpack.c.l.b16 %v679
      %v2199 = vunpack.c.l.b16 %v680
      %v2200 = vunpack.c.l.b16 %v681
      %v2201 = vunpack.c.l.b16 %v682
      %v2202 = vunpack.c.l.b16 %v683
      %v2203 = vunpack.c.l.b16 %v684
      %v2204 = vunpack.c.l.b16 %v685
      %v2205 = vunpack.c.l.b16 %v686
      %v2206 = vunpack.c.l.b16 %v687
      %v2207 = vunpack.c.l.b16 %v688
      %v2208 = vunpack.c.l.b16 %v689
      %v2209 = vunpack.c.l.b16 %v690
      %v2210 = vunpack.c.l.b16 %v691
      %v2211 = vunpack.c.l.b16 %v692
      %v2212 = vunpack.c.l.b16 %v693
      %v2213 = vunpack.c.l.b16 %v694
      %v2214 = vunpack.c.l.b16 %v695
      %v2215 = vunpack.c.l.b16 %v696
      %v2216 = vunpack.c.l.b16 %v697
      %v2217 = vunpack.c.l.b16 %v698
      %v2218 = vunpack.c.l.b16 %v699
      %v2219 = vunpack.c.l.b16 %v700
      %v2220 = vunpack.c.l.b16 %v701
      %v2221 = vunpack.c.l.b16 %v702
      %v2222 = vunpack.c.l.b16 %v703
      %v2223 = vunpack.c.l.b16 %v704
      %v2224 = vunpack.c.l.b16 %v705
      %v2225 = vunpack.c.l.b16 %v706
      %v2226 = vunpack.c.l.b16 %v707
      %v2227 = vunpack.c.l.b16 %v708
      %v2228 = vunpack.c.l.b16 %v709
      %v2229 = vunpack.c.l.b16 %v710
      %v2230 = vunpack.c.l.b16 %v711
      %v2231 = vunpack.c.l.b16 %v712
      %v2232 = vunpack.c.l.b16 %v713
      %v2233 = vunpack.c.l.b16 %v714
      %v2234 = vunpack.c.l.b16 %v715
      %v2235 = vunpack.c.l.b16 %v716
      %v2236 = vunpack.c.l.b16 %v717
      %v2237 = vunpack.c.l.b16 %v718
      %v2238 = vunpack.c.l.b16 %v719
      %v2239 = vunpack.c.l.b16 %v720
      %v2240 = vunpack.c.l.b16 %v721
      %v2241 = vunpack.c.l.b16 %v722
      %v2242 = vunpack.c.l.b16 %v723
      %v2243 = vunpack.c.l.b16 %v724
      %v2244 = vunpack.c.l.b16 %v725
      %v2245 = vunpack.c.l.b16 %v726
      %v2246 = vunpack.c.l.b16 %v727
      %v2247 = vunpack.c.l.b16 %v728
      %v2248 = vunpack.c.l.b16 %v729
      %v2249 = vunpack.c.l.b16 %v730
      %v2250 = vunpack.c.l.b16 %v731
      %v2251 = vunpack.c.l.b16 %v732
      %v2252 = vunpack.c.l.b16 %v733
      %v2253 = vunpack.c.l.b16 %v734
      %v2254 = vunpack.c.l.b16 %v735
      %v2255 = vunpack.c.l.b16 %v736
      %v2256 = vunpack.c.l.b16 %v737
      %v2257 = vunpack.c.l.b16 %v738
      %v2258 = vunpack.c.l.b16 %v739
      %v2259 = vunpack.c.l.b16 %v740
      %v2260 = vunpack.c.l.b16 %v741
      %v2261 = vunpack.c.l.b16 %v742
      %v2262 = vunpack.c.l.b16 %v743
      %v2263 = vunpack.c.l.b16 %v744
      %v2264 = vunpack.c.l.b16 %v745
      %v2265 = vunpack.c.l.b16 %v746
      %v2266 = vunpack.c.l.b16 %v747
      %v2267 = vunpack.c.l.b16 %v748
      %v2268 = vunpack.c.l.b16 %v749
      %v2269 = vunpack.c.l.b16 %v750
      %v2270 = vunpack.c.l.b16 %v751
      %v2271 = vunpack.c.l.b16 %v752
      %v2272 = vunpack.c.l.b16 %v753
      %v2273 = vunpack.c.l.b16 %v754
      %v2274 = vunpack.c.l.b16 %v755
      %v2275 = vunpack.c.l.b16 %v756
      %v2276 = vunpack.c.l.b16 %v757
      %v2277 = vunpack.c.l.b16 %v758
      %v2278 = vunpack.c.l.b16 %v759
      %v2279 = vunpack.c.l.b16 %v760
      %v2280 = vunpack.c.l.b16 %v761
      %v2281 = vunpack.c.l.b16 %v762
      %v2282 = vunpack.c.l.b16 %v763
      %v2283 = vunpack.c.l.b16 %v764
      %v2284 = vunpack.c.l.b16 %v765
      %v2285 = vunpack.c.l.b16 %v766
      %v2286 = vunpack.c.l.b16 %v767
      %v2287 = vunpack.c.l.b16 %v768
      %v2288 = vunpack.c.l.b16 %v769
      %v2289 = vunpack.c.l.b16 %v770
      %v2290 = vunpack.c.l.b16 %v771
      %v2291 = vunpack.c.l.b16 %v772
      %v2292 = vunpack.c.l.b16 %v773
      %v2293 = vunpack.c.l.b16 %v774
      %v2294 = vunpack.c.l.b16 %v775
      %v2295 = vunpack.c.l.b16 %v776
      %v2296 = vunpack.c.l.b16 %v777
      %v2297 = vunpack.c.l.b16 %v778
      %v2298 = vunpack.c.l.b16 %v779
      %v2299 = vunpack.c.l.b16 %v780
      %v2300 = vunpack.c.l.b16 %v781
      %v2301 = vunpack.c.l.b16 %v782
      %v2302 = vunpack.c.l.b16 %v783
      %v2303 = vunpack.c.l.b16 %v784
      %v2304 = vunpack.c.l.b16 %v785
      %v2305 = vunpack.c.l.b16 %v786
      %v2306 = vunpack.c.l.b16 %v787
      %v2307 = vunpack.c.l.b16 %v788
      %v2308 = vunpack.c.l.b16 %v789
      %v2309 = vunpack.c.l.b16 %v790
      %v2310 = vunpack.c.l.b16 %v791
      %v2311 = vunpack.c.l.b16 %v792
      %v2312 = vunpack.c.l.b16 %v793
      %v2313 = vunpack.c.l.b16 %v794
      %v2314 = vunpack.c.l.b16 %v795
      %v2315 = vunpack.c.l.b16 %v796
      %v2316 = vunpack.c.l.b16 %v797
      %v2317 = vunpack.c.l.b16 %v798
      %v2318 = vunpack.c.l.b16 %v799
      %v2319 = vunpack.c.l.b16 %v800
      %v2320 = vunpack.c.l.b16 %v801
      %v2321 = vunpack.c.l.b16 %v802
      %v2322 = vunpack.c.l.b16 %v803
      %v2323 = vunpack.c.l.b16 %v804
      %v2324 = vunpack.c.l.b16 %v805
      %v2325 = vunpack.c.l.b16 %v806
      %v2326 = vunpack.c.l.b16 %v807
      %v2327 = vunpack.c.l.b16 %v808
      %v2328 = vunpack.c.l.b16 %v809
      %v2329 = vunpack.c.l.b16 %v810
      %v2330 = vunpack.c.l.b16 %v811
      %v2331 = vunpack.c.l.b16 %v812
      %v2332 = vunpack.c.l.b16 %v813
      %v2333 = vunpack.c.l.b16 %v814
      %v2334 = vunpack.c.l.b16 %v815
      %v2335 = vunpack.c.l.b16 %v816
      %v2336 = vunpack.c.l.b16 %v817
      %v2337 = vunpack.c.l.b16 %v818
      %v2338 = vunpack.c.l.b16 %v819
      %v2339 = vunpack.c.l.b16 %v820
      %v2340 = vunpack.c.l.b16 %v821
      %v2341 = vunpack.c.l.b16 %v822
      %v2342 = vunpack.c.l.b16 %v823
      %v2343 = vunpack.c.l.b16 %v824
      %v2344 = vunpack.c.l.b16 %v825
      %v2345 = vunpack.c.l.b16 %v826
      %v2346 = vunpack.c.l.b16 %v827
      %v2347 = vunpack.c.l.b16 %v828
      %v2348 = vunpack.c.l.b16 %v829
      %v2349 = vunpack.c.l.b16 %v830
      %v2350 = vunpack.c.l.b16 %v831
      %v2351 = vunpack.c.l.b16 %v832
      %v2352 = vunpack.c.l.b16 %v833
      %v2353 = vunpack.c.l.b16 %v834
      %v2354 = vunpack.c.l.b16 %v835
      %v2355 = vunpack.c.l.b16 %v836
      %v2356 = vunpack.c.l.b16 %v837
      %v2357 = vunpack.c.l.b16 %v838
      %v2358 = vunpack.c.l.b16 %v839
      %v2359 = vunpack.c.l.b16 %v840
      %v2360 = vunpack.c.l.b16 %v841
      %v2361 = vunpack.c.l.b16 %v842
      %v2362 = vunpack.c.l.b16 %v843
      %v2363 = vunpack.c.l.b16 %v844
      %v2364 = vunpack.c.l.b16 %v845
      %v2365 = vunpack.c.l.b16 %v846
      %v2366 = vunpack.c.l.b16 %v847
      %v2367 = vunpack.c.l.b16 %v848
      %v2368 = vunpack.c.l.b16 %v849
      %v2369 = vunpack.c.l.b16 %v850
      %v2370 = vunpack.c.l.b16 %v851
      %v2371 = vunpack.c.l.b16 %v852
      %v2372 = vunpack.c.l.b16 %v853
      %v2373 = vunpack.c.l.b16 %v854
      %v2374 = vunpack.c.l.b16 %v855
      %v2375 = vunpack.c.l.b16 %v856
      %v2376 = vunpack.c.l.b16 %v857
      %v2377 = vunpack.c.l.b16 %v858
      %v2378 = vunpack.c.l.b16 %v859
      %v2379 = vunpack.c.l.b16 %v860
      %v2380 = vunpack.c.l.b16 %v861
      %v2381 = vunpack.c.l.b16 %v862
      %v2382 = vunpack.c.l.b16 %v863
      %v2383 = vunpack.c.l.b16 %v864
      %v2384 = vunpack.c.l.b16 %v865
      %v2385 = vunpack.c.l.b16 %v866
      %v2386 = vunpack.c.l.b16 %v867
      %v2387 = vunpack.c.l.b16 %v868
      %v2388 = vunpack.c.l.b16 %v869
      %v2389 = vunpack.c.l.b16 %v870
      %v2390 = vunpack.c.l.b16 %v871
      %v2391 = vunpack.c.l.b16 %v872
      %v2392 = vunpack.c.l.b16 %v873
      %v2393 = vunpack.c.l.b16 %v874
      %v2394 = vunpack.c.l.b16 %v875
      %v2395 = vunpack.c.l.b16 %v876
      %v2396 = vunpack.c.l.b16 %v877
      %v2397 = vunpack.c.l.b16 %v878
      %v2398 = vunpack.c.l.b16 %v879
      %v2399 = vunpack.c.l.b16 %v880
      %v2400 = vunpack.c.l.b16 %v881
      %v2401 = vunpack.c.l.b16 %v882
      %v2402 = vunpack.c.l.b16 %v883
      %v2403 = vunpack.c.l.b16 %v884
      %v2404 = vunpack.c.l.b16 %v885
      %v2405 = vunpack.c.l.b16 %v886
      %v2406 = vunpack.c.l.b16 %v887
      %v2407 = vunpack.c.l.b16 %v888
      %v2408 = vunpack.c.l.b16 %v889
      %v2409 = vunpack.c.l.b16 %v890
      %v2410 = vunpack.c.l.b16 %v891
      %v2411 = vunpack.c.l.b16 %v892
      %v2412 = vunpack.c.l.b16 %v893
      %v2413 = vunpack.c.l.b16 %v894
      %v2414 = vunpack.c.l.b16 %v895
      %v2415 = vpack.c.b16 %v1840, %v1839
      %v2416 = vpack.c.b16 %v1842, %v1841
      %v2417 = vpack.c.b16 %v1844, %v1843
      %v2418 = vpack.c.b16 %v1846, %v1845
      %v2419 = vpack.c.b16 %v1848, %v1847
      %v2420 = vpack.c.b16 %v1850, %v1849
      %v2421 = vpack.c.b16 %v1852, %v1851
      %v2422 = vpack.c.b16 %v1854, %v1853
      %v2423 = vpack.c.b16 %v1856, %v1855
      %v2424 = vpack.c.b16 %v1858, %v1857
      %v2425 = vpack.c.b16 %v1860, %v1859
      %v2426 = vpack.c.b16 %v1862, %v1861
      %v2427 = vpack.c.b16 %v1864, %v1863
      %v2428 = vpack.c.b16 %v1866, %v1865
      %v2429 = vpack.c.b16 %v1868, %v1867
      %v2430 = vpack.c.b16 %v1870, %v1869
      %v2431 = vpack.c.b16 %v1872, %v1871
      %v2432 = vpack.c.b16 %v1874, %v1873
      %v2433 = vpack.c.b16 %v1876, %v1875
      %v2434 = vpack.c.b16 %v1878, %v1877
      %v2435 = vpack.c.b16 %v1880, %v1879
      %v2436 = vpack.c.b16 %v1882, %v1881
      %v2437 = vpack.c.b16 %v1884, %v1883
      %v2438 = vpack.c.b16 %v1886, %v1885
      %v2439 = vpack.c.b16 %v1888, %v1887
      %v2440 = vpack.c.b16 %v1890, %v1889
      %v2441 = vpack.c.b16 %v1892, %v1891
      %v2442 = vpack.c.b16 %v1894, %v1893
      %v2443 = vpack.c.b16 %v1896, %v1895
      %v2444 = vpack.c.b16 %v1898, %v1897
      %v2445 = vpack.c.b16 %v1900, %v1899
      %v2446 = vpack.c.b16 %v1902, %v1901
      %v2447 = vpack.c.b16 %v1904, %v1903
      %v2448 = vpack.c.b16 %v1906, %v1905
      %v2449 = vpack.c.b16 %v1908, %v1907
      %v2450 = vpack.c.b16 %v1910, %v1909
      %v2451 = vpack.c.b16 %v1912, %v1911
      %v2452 = vpack.c.b16 %v1914, %v1913
      %v2453 = vpack.c.b16 %v1916, %v1915
      %v2454 = vpack.c.b16 %v1918, %v1917
      %v2455 = vpack.c.b16 %v1920, %v1919
      %v2456 = vpack.c.b16 %v1922, %v1921
      %v2457 = vpack.c.b16 %v1924, %v1923
      %v2458 = vpack.c.b16 %v1926, %v1925
      %v2459 = vpack.c.b16 %v1928, %v1927
      %v2460 = vpack.c.b16 %v1930, %v1929
      %v2461 = vpack.c.b16 %v1932, %v1931
      %v2462 = vpack.c.b16 %v1934, %v1933
      %v2463 = vpack.c.b16 %v1936, %v1935
      %v2464 = vpack.c.b16 %v1938, %v1937
      %v2465 = vpack.c.b16 %v1940, %v1939
      %v2466 = vpack.c.b16 %v1942, %v1941
      %v2467 = vpack.c.b16 %v1944, %v1943
      %v2468 = vpack.c.b16 %v1946, %v1945
      %v2469 = vpack.c.b16 %v1948, %v1947
      %v2470 = vpack.c.b16 %v1950, %v1949
      %v2471 = vpack.c.b16 %v1952, %v1951
      %v2472 = vpack.c.b16 %v1954, %v1953
      %v2473 = vpack.c.b16 %v1956, %v1955
      %v2474 = vpack.c.b16 %v1958, %v1957
      %v2475 = vpack.c.b16 %v1960, %v1959
      %v2476 = vpack.c.b16 %v1962, %v1961
      %v2477 = vpack.c.b16 %v1964, %v1963
      %v2478 = vpack.c.b16 %v1966, %v1965
      %v2479 = vpack.c.b16 %v1968, %v1967
      %v2480 = vpack.c.b16 %v1970, %v1969
      %v2481 = vpack.c.b16 %v1972, %v1971
      %v2482 = vpack.c.b16 %v1974, %v1973
      %v2483 = vpack.c.b16 %v1976, %v1975
      %v2484 = vpack.c.b16 %v1978, %v1977
      %v2485 = vpack.c.b16 %v1980, %v1979
      %v2486 = vpack.c.b16 %v1982, %v1981
      %v2487 = vpack.c.b16 %v1984, %v1983
      %v2488 = vpack.c.b16 %v1986, %v1985
      %v2489 = vpack.c.b16 %v1988, %v1987
      %v2490 = vpack.c.b16 %v1990, %v1989
      %v2491 = vpack.c.b16 %v1992, %v1991
      %v2492 = vpack.c.b16 %v1994, %v1993
      %v2493 = vpack.c.b16 %v1996, %v1995
      %v2494 = vpack.c.b16 %v1998, %v1997
      %v2495 = vpack.c.b16 %v2000, %v1999
      %v2496 = vpack.c.b16 %v2002, %v2001
      %v2497 = vpack.c.b16 %v2004, %v2003
      %v2498 = vpack.c.b16 %v2006, %v2005
      %v2499 = vpack.c.b16 %v2008, %v2007
      %v2500 = vpack.c.b16 %v2010, %v2009
      %v2501 = vpack.c.b16 %v2012, %v2011
      %v2502 = vpack.c.b16 %v2014, %v2013
      %v2503 = vpack.c.b16 %v2016, %v2015
      %v2504 = vpack.c.b16 %v2018, %v2017
      %v2505 = vpack.c.b16 %v2020, %v2019
      %v2506 = vpack.c.b16 %v2022, %v2021
      %v2507 = vpack.c.b16 %v2024, %v2023
      %v2508 = vpack.c.b16 %v2026, %v2025
      %v2509 = vpack.c.b16 %v2028, %v2027
      %v2510 = vpack.c.b16 %v2030, %v2029
      %v2511 = vpack.c.b16 %v2032, %v2031
      %v2512 = vpack.c.b16 %v2034, %v2033
      %v2513 = vpack.c.b16 %v2036, %v2035
      %v2514 = vpack.c.b16 %v2038, %v2037
      %v2515 = vpack.c.b16 %v2040, %v2039
      %v2516 = vpack.c.b16 %v2042, %v2041
      %v2517 = vpack.c.b16 %v2044, %v2043
      %v2518 = vpack.c.b16 %v2046, %v2045
      %v2519 = vpack.c.b16 %v2048, %v2047
      %v2520 = vpack.c.b16 %v2050, %v2049
      %v2521 = vpack.c.b16 %v2052, %v2051
      %v2522 = vpack.c.b16 %v2054, %v2053
      %v2523 = vpack.c.b16 %v2056, %v2055
      %v2524 = vpack.c.b16 %v2058, %v2057
      %v2525 = vpack.c.b16 %v2060, %v2059
      %v2526 = vpack.c.b16 %v2062, %v2061
      %v2527 = vpack.c.b16 %v2064, %v2063
      %v2528 = vpack.c.b16 %v2066, %v2065
      %v2529 = vpack.c.b16 %v2068, %v2067
      %v2530 = vpack.c.b16 %v2070, %v2069
      %v2531 = vpack.c.b16 %v2072, %v2071
      %v2532 = vpack.c.b16 %v2074, %v2073
      %v2533 = vpack.c.b16 %v2076, %v2075
      %v2534 = vpack.c.b16 %v2078, %v2077
      %v2535 = vpack.c.b16 %v2080, %v2079
      %v2536 = vpack.c.b16 %v2082, %v2081
      %v2537 = vpack.c.b16 %v2084, %v2083
      %v2538 = vpack.c.b16 %v2086, %v2085
      %v2539 = vpack.c.b16 %v2088, %v2087
      %v2540 = vpack.c.b16 %v2090, %v2089
      %v2541 = vpack.c.b16 %v2092, %v2091
      %v2542 = vpack.c.b16 %v2094, %v2093
      %v2543 = vpack.c.b16 %v2096, %v2095
      %v2544 = vpack.c.b16 %v2098, %v2097
      %v2545 = vpack.c.b16 %v2100, %v2099
      %v2546 = vpack.c.b16 %v2102, %v2101
      %v2547 = vpack.c.b16 %v2104, %v2103
      %v2548 = vpack.c.b16 %v2106, %v2105
      %v2549 = vpack.c.b16 %v2108, %v2107
      %v2550 = vpack.c.b16 %v2110, %v2109
      %v2551 = vpack.c.b16 %v2112, %v2111
      %v2552 = vpack.c.b16 %v2114, %v2113
      %v2553 = vpack.c.b16 %v2116, %v2115
      %v2554 = vpack.c.b16 %v2118, %v2117
      %v2555 = vpack.c.b16 %v2120, %v2119
      %v2556 = vpack.c.b16 %v2122, %v2121
      %v2557 = vpack.c.b16 %v2124, %v2123
      %v2558 = vpack.c.b16 %v2126, %v2125
      %v2559 = vpack.c.b16 %v2128, %v2127
      %v2560 = vpack.c.b16 %v2130, %v2129
      %v2561 = vpack.c.b16 %v2132, %v2131
      %v2562 = vpack.c.b16 %v2134, %v2133
      %v2563 = vpack.c.b16 %v2136, %v2135
      %v2564 = vpack.c.b16 %v2138, %v2137
      %v2565 = vpack.c.b16 %v2140, %v2139
      %v2566 = vpack.c.b16 %v2142, %v2141
      %v2567 = vpack.c.b16 %v2144, %v2143
      %v2568 = vpack.c.b16 %v2146, %v2145
      %v2569 = vpack.c.b16 %v2148, %v2147
      %v2570 = vpack.c.b16 %v2150, %v2149
      %v2571 = vpack.c.b16 %v2152, %v2151
      %v2572 = vpack.c.b16 %v2154, %v2153
      %v2573 = vpack.c.b16 %v2156, %v2155
      %v2574 = vpack.c.b16 %v2158, %v2157
      %v2575 = vpack.c.b16 %v2160, %v2159
      %v2576 = vpack.c.b16 %v2162, %v2161
      %v2577 = vpack.c.b16 %v2164, %v2163
      %v2578 = vpack.c.b16 %v2166, %v2165
      %v2579 = vpack.c.b16 %v2168, %v2167
      %v2580 = vpack.c.b16 %v2170, %v2169
      %v2581 = vpack.c.b16 %v2172, %v2171
      %v2582 = vpack.c.b16 %v2174, %v2173
      %v2583 = vpack.c.b16 %v2176, %v2175
      %v2584 = vpack.c.b16 %v2178, %v2177
      %v2585 = vpack.c.b16 %v2180, %v2179
      %v2586 = vpack.c.b16 %v2182, %v2181
      %v2587 = vpack.c.b16 %v2184, %v2183
      %v2588 = vpack.c.b16 %v2186, %v2185
      %v2589 = vpack.c.b16 %v2188, %v2187
      %v2590 = vpack.c.b16 %v2190, %v2189
      %v2591 = vpack.c.b16 %v2192, %v2191
      %v2592 = vpack.c.b16 %v2194, %v2193
      %v2593 = vpack.c.b16 %v2196, %v2195
      %v2594 = vpack.c.b16 %v2198, %v2197
      %v2595 = vpack.c.b16 %v2200, %v2199
      %v2596 = vpack.c.b16 %v2202, %v2201
      %v2597 = vpack.c.b16 %v2204, %v2203
      %v2598 = vpack.c.b16 %v2206, %v2205
      %v2599 = vpack.c.b16 %v2208, %v2207
      %v2600 = vpack.c.b16 %v2210, %v2209
      %v2601 = vpack.c.b16 %v2212, %v2211
      %v2602 = vpack.c.b16 %v2214, %v2213
      %v2603 = vpack.c.b16 %v2216, %v2215
      %v2604 = vpack.c.b16 %v2218, %v2217
      %v2605 = vpack.c.b16 %v2220, %v2219
      %v2606 = vpack.c.b16 %v2222, %v2221
      %v2607 = vpack.c.b16 %v2224, %v2223
      %v2608 = vpack.c.b16 %v2226, %v2225
      %v2609 = vpack.c.b16 %v2228, %v2227
      %v2610 = vpack.c.b16 %v2230, %v2229
      %v2611 = vpack.c.b16 %v2232, %v2231
      %v2612 = vpack.c.b16 %v2234, %v2233
      %v2613 = vpack.c.b16 %v2236, %v2235
      %v2614 = vpack.c.b16 %v2238, %v2237
      %v2615 = vpack.c.b16 %v2240, %v2239
      %v2616 = vpack.c.b16 %v2242, %v2241
      %v2617 = vpack.c.b16 %v2244, %v2243
      %v2618 = vpack.c.b16 %v2246, %v2245
      %v2619 = vpack.c.b16 %v2248, %v2247
      %v2620 = vpack.c.b16 %v2250, %v2249
      %v2621 = vpack.c.b16 %v2252, %v2251
      %v2622 = vpack.c.b16 %v2254, %v2253
      %v2623 = vpack.c.b16 %v2256, %v2255
      %v2624 = vpack.c.b16 %v2258, %v2257
      %v2625 = vpack.c.b16 %v2260, %v2259
      %v2626 = vpack.c.b16 %v2262, %v2261
      %v2627 = vpack.c.b16 %v2264, %v2263
      %v2628 = vpack.c.b16 %v2266, %v2265
      %v2629 = vpack.c.b16 %v2268, %v2267
      %v2630 = vpack.c.b16 %v2270, %v2269
      %v2631 = vpack.c.b16 %v2272, %v2271
      %v2632 = vpack.c.b16 %v2274, %v2273
      %v2633 = vpack.c.b16 %v2276, %v2275
      %v2634 = vpack.c.b16 %v2278, %v2277
      %v2635 = vpack.c.b16 %v2280, %v2279
      %v2636 = vpack.c.b16 %v2282, %v2281
      %v2637 = vpack.c.b16 %v2284, %v2283
      %v2638 = vpack.c.b16 %v2286, %v2285
      %v2639 = vpack.c.b16 %v2288, %v2287
      %v2640 = vpack.c.b16 %v2290, %v2289
      %v2641 = vpack.c.b16 %v2292, %v2291
      %v2642 = vpack.c.b16 %v2294, %v2293
      %v2643 = vpack.c.b16 %v2296, %v2295
      %v2644 = vpack.c.b16 %v2298, %v2297
      %v2645 = vpack.c.b16 %v2300, %v2299
      %v2646 = vpack.c.b16 %v2302, %v2301
      %v2647 = vpack.c.b16 %v2304, %v2303
      %v2648 = vpack.c.b16 %v2306, %v2305
      %v2649 = vpack.c.b16 %v2308, %v2307
      %v2650 = vpack.c.b16 %v2310, %v2309
      %v2651 = vpack.c.b16 %v2312, %v2311
      %v2652 = vpack.c.b16 %v2314, %v2313
      %v2653 = vpack.c.b16 %v2316, %v2315
      %v2654 = vpack.c.b16 %v2318, %v2317
      %v2655 = vpack.c.b16 %v2320, %v2319
      %v2656 = vpack.c.b16 %v2322, %v2321
      %v2657 = vpack.c.b16 %v2324, %v2323
      %v2658 = vpack.c.b16 %v2326, %v2325
      %v2659 = vpack.c.b16 %v2328, %v2327
      %v2660 = vpack.c.b16 %v2330, %v2329
      %v2661 = vpack.c.b16 %v2332, %v2331
      %v2662 = vpack.c.b16 %v2334, %v2333
      %v2663 = vpack.c.b16 %v2336, %v2335
      %v2664 = vpack.c.b16 %v2338, %v2337
      %v2665 = vpack.c.b16 %v2340, %v2339
      %v2666 = vpack.c.b16 %v2342, %v2341
      %v2667 = vpack.c.b16 %v2344, %v2343
      %v2668 = vpack.c.b16 %v2346, %v2345
      %v2669 = vpack.c.b16 %v2348, %v2347
      %v2670 = vpack.c.b16 %v2350, %v2349
      %v2671 = vpack.c.b16 %v2352, %v2351
      %v2672 = vpack.c.b16 %v2354, %v2353
      %v2673 = vpack.c.b16 %v2356, %v2355
      %v2674 = vpack.c.b16 %v2358, %v2357
      %v2675 = vpack.c.b16 %v2360, %v2359
      %v2676 = vpack.c.b16 %v2362, %v2361
      %v2677 = vpack.c.b16 %v2364, %v2363
      %v2678 = vpack.c.b16 %v2366, %v2365
      %v2679 = vpack.c.b16 %v2368, %v2367
      %v2680 = vpack.c.b16 %v2370, %v2369
      %v2681 = vpack.c.b16 %v2372, %v2371
      %v2682 = vpack.c.b16 %v2374, %v2373
      %v2683 = vpack.c.b16 %v2376, %v2375
      %v2684 = vpack.c.b16 %v2378, %v2377
      %v2685 = vpack.c.b16 %v2380, %v2379
      %v2686 = vpack.c.b16 %v2382, %v2381
      %v2687 = vpack.c.b16 %v2384, %v2383
      %v2688 = vpack.c.b16 %v2386, %v2385
      %v2689 = vpack.c.b16 %v2388, %v2387
      %v2690 = vpack.c.b16 %v2390, %v2389
      %v2691 = vpack.c.b16 %v2392, %v2391
      %v2692 = vpack.c.b16 %v2394, %v2393
      %v2693 = vpack.c.b16 %v2396, %v2395
      %v2694 = vpack.c.b16 %v2398, %v2397
      %v2695 = vpack.c.b16 %v2400, %v2399
      %v2696 = vpack.c.b16 %v2402, %v2401
      %v2697 = vpack.c.b16 %v2404, %v2403
      %v2698 = vpack.c.b16 %v2406, %v2405
      %v2699 = vpack.c.b16 %v2408, %v2407
      %v2700 = vpack.c.b16 %v2410, %v2409
      %v2701 = vpack.c.b16 %v2412, %v2411
      %v2702 = vpack.c.b16 %v2414, %v2413
      %2991 = vmatprep.subr.bf16.mxu0 0
      %2992 = vmatpush1.bf16.msra.mxu0 %v2415
      %2993 = vmatprep.subr.bf16.mxu0 0
      %2994 = vmatpush1.bf16.msra.mxu0 %v2416
      %2995 = vmatprep.subr.bf16.mxu0 0
      %2996 = vmatpush1.bf16.msra.mxu0 %v2417
      %2997 = vmatprep.subr.bf16.mxu0 0
      %2998 = vmatpush1.bf16.msra.mxu0 %v2418
      %2999 = vmatprep.subr.bf16.mxu0 0
      %3000 = vmatpush1.bf16.msra.mxu0 %v2419
      %3001 = vmatprep.subr.bf16.mxu0 0
      %3002 = vmatpush1.bf16.msra.mxu0 %v2420
      %3003 = vmatprep.subr.bf16.mxu0 0
      %3004 = vmatpush1.bf16.msra.mxu0 %v2421
      %3005 = vmatprep.subr.bf16.mxu0 0
      %3006 = vmatpush1.bf16.msra.mxu0 %v2422
      %3007 = vmatprep.subr.bf16.mxu0 0
      %3008 = vmatpush1.bf16.msra.mxu0 %v2423
      %3009 = vmatprep.subr.bf16.mxu0 0
      %3010 = vmatpush1.bf16.msra.mxu0 %v2424
      %3011 = vmatprep.subr.bf16.mxu0 0
      %3012 = vmatpush1.bf16.msra.mxu0 %v2425
      %3013 = vmatprep.subr.bf16.mxu0 0
      %3014 = vmatpush1.bf16.msra.mxu0 %v2426
      %3015 = vmatprep.subr.bf16.mxu0 0
      %3016 = vmatpush1.bf16.msra.mxu0 %v2427
      %3017 = vmatprep.subr.bf16.mxu0 0
      %3018 = vmatpush1.bf16.msra.mxu0 %v2428
      %3019 = vmatprep.subr.bf16.mxu0 0
      %3020 = vmatpush1.bf16.msra.mxu0 %v2429
      %3021 = vmatprep.subr.bf16.mxu0 0
      %3022 = vmatpush1.bf16.msra.mxu0 %v2430
      %3023 = vmatprep.mubr.bf16.mxu0 %v1120
      %3024 = vmatmul.mubr.bf16.gmra.mrb[0].mxu0 %v1119
      %v3025 = vpop.f32.mrb[0].mxu0
      %v3026 = vadd.f32 %v901, %v3025
      %v3027 = vpop.f32.mrb[0].mxu0
      %v3028 = vpop.f32.mrb[0].mxu0
      %v3029 = vadd.f32 %v901, %v3028
      %v3030 = vpop.f32.mrb[0].mxu0
      %3031 = vmatprep.mubr.bf16.mxu0 %v1156
      %3032 = vmatmul.mubr.bf16.gmra.mrb[0].mxu0 %v1155
      %v3033 = vpop.f32.mrb[0].mxu0
      %v3034 = vadd.f32 %v901, %v3033
      %v3035 = vpop.f32.mrb[0].mxu0
      %v3036 = vpop.f32.mrb[0].mxu0
      %v3037 = vadd.f32 %v901, %v3036
      %v3038 = vpop.f32.mrb[0].mxu0
      %3039 = vdwg.mxu0
      %3040 = vmatprep.subr.bf16.mxu0 0
      %3041 = vmatpush1.bf16.msra.mxu0 %v2431
      %3042 = vmatprep.subr.bf16.mxu0 0
      %3043 = vmatpush1.bf16.msra.mxu0 %v2432
      %3044 = vmatprep.subr.bf16.mxu0 0
      %3045 = vmatpush1.bf16.msra.mxu0 %v2433
      %3046 = vmatprep.subr.bf16.mxu0 0
      %3047 = vmatpush1.bf16.msra.mxu0 %v2434
      %3048 = vmatprep.subr.bf16.mxu0 0
      %3049 = vmatpush1.bf16.msra.mxu0 %v2435
      %3050 = vmatprep.subr.bf16.mxu0 0
      %3051 = vmatpush1.bf16.msra.mxu0 %v2436
      %3052 = vmatprep.subr.bf16.mxu0 0
      %3053 = vmatpush1.bf16.msra.mxu0 %v2437
      %3054 = vmatprep.subr.bf16.mxu0 0
      %3055 = vmatpush1.bf16.msra.mxu0 %v2438
      %3056 = vmatprep.subr.bf16.mxu0 0
      %3057 = vmatpush1.bf16.msra.mxu0 %v2439
      %3058 = vmatprep.subr.bf16.mxu0 0
      %3059 = vmatpush1.bf16.msra.mxu0 %v2440
      %3060 = vmatprep.subr.bf16.mxu0 0
      %3061 = vmatpush1.bf16.msra.mxu0 %v2441
      %3062 = vmatprep.subr.bf16.mxu0 0
      %3063 = vmatpush1.bf16.msra.mxu0 %v2442
      %3064 = vmatprep.subr.bf16.mxu0 0
      %3065 = vmatpush1.bf16.msra.mxu0 %v2443
      %3066 = vmatprep.subr.bf16.mxu0 0
      %3067 = vmatpush1.bf16.msra.mxu0 %v2444
      %3068 = vmatprep.subr.bf16.mxu0 0
      %3069 = vmatpush1.bf16.msra.mxu0 %v2445
      %3070 = vmatprep.subr.bf16.mxu0 0
      %3071 = vmatpush1.bf16.msra.mxu0 %v2446
      %3072 = vmatprep.mubr.bf16.mxu0 %v1122
      %3073 = vmatmul.mubr.bf16.gmra.mrb[0].mxu0 %v1121
      %v3074 = vpop.f32.mrb[0].mxu0
      %v3075 = vadd.f32 %v3026, %v3074
      %v3076 = vpop.f32.mrb[0].mxu0
      %v3077 = vpop.f32.mrb[0].mxu0
      %v3078 = vadd.f32 %v3029, %v3077
      %v3079 = vpop.f32.mrb[0].mxu0
      %3080 = vmatprep.mubr.bf16.mxu0 %v1158
      %3081 = vmatmul.mubr.bf16.gmra.mrb[0].mxu0 %v1157
      %v3082 = vpop.f32.mrb[0].mxu0
      %v3083 = vadd.f32 %v3034, %v3082
      %v3084 = vpop.f32.mrb[0].mxu0
      %v3085 = vpop.f32.mrb[0].mxu0
      %v3086 = vadd.f32 %v3037, %v3085
      %v3087 = vpop.f32.mrb[0].mxu0
      %3088 = vdwg.mxu0
      %3089 = vmatprep.subr.bf16.mxu0 0
      %3090 = vmatpush1.bf16.msra.mxu0 %v2447
      %3091 = vmatprep.subr.bf16.mxu0 0
      %3092 = vmatpush1.bf16.msra.mxu0 %v2448
      %3093 = vmatprep.subr.bf16.mxu0 0
      %3094 = vmatpush1.bf16.msra.mxu0 %v2449
      %3095 = vmatprep.subr.bf16.mxu0 0
      %3096 = vmatpush1.bf16.msra.mxu0 %v2450
      %3097 = vmatprep.subr.bf16.mxu0 0
      %3098 = vmatpush1.bf16.msra.mxu0 %v2451
      %3099 = vmatprep.subr.bf16.mxu0 0
      %3100 = vmatpush1.bf16.msra.mxu0 %v2452
      %3101 = vmatprep.subr.bf16.mxu0 0
      %3102 = vmatpush1.bf16.msra.mxu0 %v2453
      %3103 = vmatprep.subr.bf16.mxu0 0
      %3104 = vmatpush1.bf16.msra.mxu0 %v2454
      %3105 = vmatprep.subr.bf16.mxu0 0
      %3106 = vmatpush1.bf16.msra.mxu0 %v2455
      %3107 = vmatprep.subr.bf16.mxu0 0
      %3108 = vmatpush1.bf16.msra.mxu0 %v2456
      %3109 = vmatprep.subr.bf16.mxu0 0
      %3110 = vmatpush1.bf16.msra.mxu0 %v2457
      %3111 = vmatprep.subr.bf16.mxu0 0
      %3112 = vmatpush1.bf16.msra.mxu0 %v2458
      %3113 = vmatprep.subr.bf16.mxu0 0
      %3114 = vmatpush1.bf16.msra.mxu0 %v2459
      %3115 = vmatprep.subr.bf16.mxu0 0
      %3116 = vmatpush1.bf16.msra.mxu0 %v2460
      %3117 = vmatprep.subr.bf16.mxu0 0
      %3118 = vmatpush1.bf16.msra.mxu0 %v2461
      %3119 = vmatprep.subr.bf16.mxu0 0
      %3120 = vmatpush1.bf16.msra.mxu0 %v2462
      %3121 = vmatprep.mubr.bf16.mxu0 %v1124
      %3122 = vmatmul.mubr.bf16.gmra.mrb[0].mxu0 %v1123
      %v3123 = vpop.f32.mrb[0].mxu0
      %v3124 = vadd.f32 %v3075, %v3123
      %v3125 = vpop.f32.mrb[0].mxu0
      %v3126 = vpop.f32.mrb[0].mxu0
      %v3127 = vadd.f32 %v3078, %v3126
      %v3128 = vpop.f32.mrb[0].mxu0
      %3129 = vmatprep.mubr.bf16.mxu0 %v1160
      %3130 = vmatmul.mubr.bf16.gmra.mrb[0].mxu0 %v1159
      %v3131 = vpop.f32.mrb[0].mxu0
      %v3132 = vadd.f32 %v3083, %v3131
      %v3133 = vpop.f32.mrb[0].mxu0
      %v3134 = vpop.f32.mrb[0].mxu0
      %v3135 = vadd.f32 %v3086, %v3134
      %v3136 = vpop.f32.mrb[0].mxu0
      %3137 = vdwg.mxu0
      %3138 = vmatprep.subr.bf16.mxu0 0
      %3139 = vmatpush1.bf16.msra.mxu0 %v2463
      %3140 = vmatprep.subr.bf16.mxu0 0
      %3141 = vmatpush1.bf16.msra.mxu0 %v2464
      %3142 = vmatprep.subr.bf16.mxu0 0
      %3143 = vmatpush1.bf16.msra.mxu0 %v2465
      %3144 = vmatprep.subr.bf16.mxu0 0
      %3145 = vmatpush1.bf16.msra.mxu0 %v2466
      %3146 = vmatprep.subr.bf16.mxu0 0
      %3147 = vmatpush1.bf16.msra.mxu0 %v2467
      %3148 = vmatprep.subr.bf16.mxu0 0
      %3149 = vmatpush1.bf16.msra.mxu0 %v2468
      %3150 = vmatprep.subr.bf16.mxu0 0
      %3151 = vmatpush1.bf16.msra.mxu0 %v2469
      %3152 = vmatprep.subr.bf16.mxu0 0
      %3153 = vmatpush1.bf16.msra.mxu0 %v2470
      %3154 = vmatprep.subr.bf16.mxu0 0
      %3155 = vmatpush1.bf16.msra.mxu0 %v2471
      %3156 = vmatprep.subr.bf16.mxu0 0
      %3157 = vmatpush1.bf16.msra.mxu0 %v2472
      %3158 = vmatprep.subr.bf16.mxu0 0
      %3159 = vmatpush1.bf16.msra.mxu0 %v2473
      %3160 = vmatprep.subr.bf16.mxu0 0
      %3161 = vmatpush1.bf16.msra.mxu0 %v2474
      %3162 = vmatprep.subr.bf16.mxu0 0
      %3163 = vmatpush1.bf16.msra.mxu0 %v2475
      %3164 = vmatprep.subr.bf16.mxu0 0
      %3165 = vmatpush1.bf16.msra.mxu0 %v2476
      %3166 = vmatprep.subr.bf16.mxu0 0
      %3167 = vmatpush1.bf16.msra.mxu0 %v2477
      %3168 = vmatprep.subr.bf16.mxu0 0
      %3169 = vmatpush1.bf16.msra.mxu0 %v2478
      %3170 = vmatprep.mubr.bf16.mxu0 %v1126
      %3171 = vmatmul.mubr.bf16.gmra.mrb[0].mxu0 %v1125
      %v3172 = vpop.f32.mrb[0].mxu0
      %v3173 = vadd.f32 %v3124, %v3172
      %v3174 = vpop.f32.mrb[0].mxu0
      %v3175 = vpop.f32.mrb[0].mxu0
      %v3176 = vadd.f32 %v3127, %v3175
      %v3177 = vpop.f32.mrb[0].mxu0
      %3178 = vmatprep.mubr.bf16.mxu0 %v1162
      %3179 = vmatmul.mubr.bf16.gmra.mrb[0].mxu0 %v1161
      %v3180 = vpop.f32.mrb[0].mxu0
      %v3181 = vadd.f32 %v3132, %v3180
      %v3182 = vpop.f32.mrb[0].mxu0
      %v3183 = vpop.f32.mrb[0].mxu0
      %v3184 = vadd.f32 %v3135, %v3183
      %v3185 = vpop.f32.mrb[0].mxu0
      %3186 = vdwg.mxu0
      %3187 = vmatprep.subr.bf16.mxu0 0
      %3188 = vmatpush1.bf16.msra.mxu0 %v2479
      %3189 = vmatprep.subr.bf16.mxu0 0
      %3190 = vmatpush1.bf16.msra.mxu0 %v2480
      %3191 = vmatprep.subr.bf16.mxu0 0
      %3192 = vmatpush1.bf16.msra.mxu0 %v2481
      %3193 = vmatprep.subr.bf16.mxu0 0
      %3194 = vmatpush1.bf16.msra.mxu0 %v2482
      %3195 = vmatprep.subr.bf16.mxu0 0
      %3196 = vmatpush1.bf16.msra.mxu0 %v2483
      %3197 = vmatprep.subr.bf16.mxu0 0
      %3198 = vmatpush1.bf16.msra.mxu0 %v2484
      %3199 = vmatprep.subr.bf16.mxu0 0
      %3200 = vmatpush1.bf16.msra.mxu0 %v2485
      %3201 = vmatprep.subr.bf16.mxu0 0
      %3202 = vmatpush1.bf16.msra.mxu0 %v2486
      %3203 = vmatprep.subr.bf16.mxu0 0
      %3204 = vmatpush1.bf16.msra.mxu0 %v2487
      %3205 = vmatprep.subr.bf16.mxu0 0
      %3206 = vmatpush1.bf16.msra.mxu0 %v2488
      %3207 = vmatprep.subr.bf16.mxu0 0
      %3208 = vmatpush1.bf16.msra.mxu0 %v2489
      %3209 = vmatprep.subr.bf16.mxu0 0
      %3210 = vmatpush1.bf16.msra.mxu0 %v2490
      %3211 = vmatprep.subr.bf16.mxu0 0
      %3212 = vmatpush1.bf16.msra.mxu0 %v2491
      %3213 = vmatprep.subr.bf16.mxu0 0
      %3214 = vmatpush1.bf16.msra.mxu0 %v2492
      %3215 = vmatprep.subr.bf16.mxu0 0
      %3216 = vmatpush1.bf16.msra.mxu0 %v2493
      %3217 = vmatprep.subr.bf16.mxu0 0
      %3218 = vmatpush1.bf16.msra.mxu0 %v2494
      %3219 = vmatprep.mubr.bf16.mxu0 %v1128
      %3220 = vmatmul.mubr.bf16.gmra.mrb[0].mxu0 %v1127
      %v3221 = vpop.f32.mrb[0].mxu0
      %v3222 = vadd.f32 %v3173, %v3221
      %v3223 = vpop.f32.mrb[0].mxu0
      %v3224 = vpop.f32.mrb[0].mxu0
      %v3225 = vadd.f32 %v3176, %v3224
      %v3226 = vpop.f32.mrb[0].mxu0
      %3227 = vmatprep.mubr.bf16.mxu0 %v1164
      %3228 = vmatmul.mubr.bf16.gmra.mrb[0].mxu0 %v1163
      %v3229 = vpop.f32.mrb[0].mxu0
      %v3230 = vadd.f32 %v3181, %v3229
      %v3231 = vpop.f32.mrb[0].mxu0
      %v3232 = vpop.f32.mrb[0].mxu0
      %v3233 = vadd.f32 %v3184, %v3232
      %v3234 = vpop.f32.mrb[0].mxu0
      %3235 = vdwg.mxu0
      %3236 = vmatprep.subr.bf16.mxu0 0
      %3237 = vmatpush1.bf16.msra.mxu0 %v2495
      %3238 = vmatprep.subr.bf16.mxu0 0
      %3239 = vmatpush1.bf16.msra.mxu0 %v2496
      %3240 = vmatprep.subr.bf16.mxu0 0
      %3241 = vmatpush1.bf16.msra.mxu0 %v2497
      %3242 = vmatprep.subr.bf16.mxu0 0
      %3243 = vmatpush1.bf16.msra.mxu0 %v2498
      %3244 = vmatprep.subr.bf16.mxu0 0
      %3245 = vmatpush1.bf16.msra.mxu0 %v2499
      %3246 = vmatprep.subr.bf16.mxu0 0
      %3247 = vmatpush1.bf16.msra.mxu0 %v2500
      %3248 = vmatprep.subr.bf16.mxu0 0
      %3249 = vmatpush1.bf16.msra.mxu0 %v2501
      %3250 = vmatprep.subr.bf16.mxu0 0
      %3251 = vmatpush1.bf16.msra.mxu0 %v2502
      %3252 = vmatprep.subr.bf16.mxu0 0
      %3253 = vmatpush1.bf16.msra.mxu0 %v2503
      %3254 = vmatprep.subr.bf16.mxu0 0
      %3255 = vmatpush1.bf16.msra.mxu0 %v2504
      %3256 = vmatprep.subr.bf16.mxu0 0
      %3257 = vmatpush1.bf16.msra.mxu0 %v2505
      %3258 = vmatprep.subr.bf16.mxu0 0
      %3259 = vmatpush1.bf16.msra.mxu0 %v2506
      %3260 = vmatprep.subr.bf16.mxu0 0
      %3261 = vmatpush1.bf16.msra.mxu0 %v2507
      %3262 = vmatprep.subr.bf16.mxu0 0
      %3263 = vmatpush1.bf16.msra.mxu0 %v2508
      %3264 = vmatprep.subr.bf16.mxu0 0
      %3265 = vmatpush1.bf16.msra.mxu0 %v2509
      %3266 = vmatprep.subr.bf16.mxu0 0
      %3267 = vmatpush1.bf16.msra.mxu0 %v2510
      %3268 = vmatprep.mubr.bf16.mxu0 %v1130
      %3269 = vmatmul.mubr.bf16.gmra.mrb[0].mxu0 %v1129
      %v3270 = vpop.f32.mrb[0].mxu0
      %v3271 = vadd.f32 %v3222, %v3270
      %v3272 = vpop.f32.mrb[0].mxu0
      %v3273 = vpop.f32.mrb[0].mxu0
      %v3274 = vadd.f32 %v3225, %v3273
      %v3275 = vpop.f32.mrb[0].mxu0
      %3276 = vmatprep.mubr.bf16.mxu0 %v1166
      %3277 = vmatmul.mubr.bf16.gmra.mrb[0].mxu0 %v1165
      %v3278 = vpop.f32.mrb[0].mxu0
      %v3279 = vadd.f32 %v3230, %v3278
      %v3280 = vpop.f32.mrb[0].mxu0
      %v3281 = vpop.f32.mrb[0].mxu0
      %v3282 = vadd.f32 %v3233, %v3281
      %v3283 = vpop.f32.mrb[0].mxu0
      %3284 = vdwg.mxu0
      %3285 = vmatprep.subr.bf16.mxu0 0
      %3286 = vmatpush1.bf16.msra.mxu0 %v2511
      %3287 = vmatprep.subr.bf16.mxu0 0
      %3288 = vmatpush1.bf16.msra.mxu0 %v2512
      %3289 = vmatprep.subr.bf16.mxu0 0
      %3290 = vmatpush1.bf16.msra.mxu0 %v2513
      %3291 = vmatprep.subr.bf16.mxu0 0
      %3292 = vmatpush1.bf16.msra.mxu0 %v2514
      %3293 = vmatprep.subr.bf16.mxu0 0
      %3294 = vmatpush1.bf16.msra.mxu0 %v2515
      %3295 = vmatprep.subr.bf16.mxu0 0
      %3296 = vmatpush1.bf16.msra.mxu0 %v2516
      %3297 = vmatprep.subr.bf16.mxu0 0
      %3298 = vmatpush1.bf16.msra.mxu0 %v2517
      %3299 = vmatprep.subr.bf16.mxu0 0
      %3300 = vmatpush1.bf16.msra.mxu0 %v2518
      %3301 = vmatprep.subr.bf16.mxu0 0
      %3302 = vmatpush1.bf16.msra.mxu0 %v2519
      %3303 = vmatprep.subr.bf16.mxu0 0
      %3304 = vmatpush1.bf16.msra.mxu0 %v2520
      %3305 = vmatprep.subr.bf16.mxu0 0
      %3306 = vmatpush1.bf16.msra.mxu0 %v2521
      %3307 = vmatprep.subr.bf16.mxu0 0
      %3308 = vmatpush1.bf16.msra.mxu0 %v2522
      %3309 = vmatprep.subr.bf16.mxu0 0
      %3310 = vmatpush1.bf16.msra.mxu0 %v2523
      %3311 = vmatprep.subr.bf16.mxu0 0
      %3312 = vmatpush1.bf16.msra.mxu0 %v2524
      %3313 = vmatprep.subr.bf16.mxu0 0
      %3314 = vmatpush1.bf16.msra.mxu0 %v2525
      %3315 = vmatprep.subr.bf16.mxu0 0
      %3316 = vmatpush1.bf16.msra.mxu0 %v2526
      %3317 = vmatprep.mubr.bf16.mxu0 %v1132
      %3318 = vmatmul.mubr.bf16.gmra.mrb[0].mxu0 %v1131
      %v3319 = vpop.f32.mrb[0].mxu0
      %v3320 = vadd.f32 %v3271, %v3319
      %v3321 = vpop.f32.mrb[0].mxu0
      %v3322 = vpop.f32.mrb[0].mxu0
      %v3323 = vadd.f32 %v3274, %v3322
      %v3324 = vpop.f32.mrb[0].mxu0
      %3325 = vmatprep.mubr.bf16.mxu0 %v1168
      %3326 = vmatmul.mubr.bf16.gmra.mrb[0].mxu0 %v1167
      %v3327 = vpop.f32.mrb[0].mxu0
      %v3328 = vadd.f32 %v3279, %v3327
      %v3329 = vpop.f32.mrb[0].mxu0
      %v3330 = vpop.f32.mrb[0].mxu0
      %v3331 = vadd.f32 %v3282, %v3330
      %v3332 = vpop.f32.mrb[0].mxu0
      %3333 = vdwg.mxu0
      %3334 = vmatprep.subr.bf16.mxu0 0
      %3335 = vmatpush1.bf16.msra.mxu0 %v2527
      %3336 = vmatprep.subr.bf16.mxu0 0
      %3337 = vmatpush1.bf16.msra.mxu0 %v2528
      %3338 = vmatprep.subr.bf16.mxu0 0
      %3339 = vmatpush1.bf16.msra.mxu0 %v2529
      %3340 = vmatprep.subr.bf16.mxu0 0
      %3341 = vmatpush1.bf16.msra.mxu0 %v2530
      %3342 = vmatprep.subr.bf16.mxu0 0
      %3343 = vmatpush1.bf16.msra.mxu0 %v2531
      %3344 = vmatprep.subr.bf16.mxu0 0
      %3345 = vmatpush1.bf16.msra.mxu0 %v2532
      %3346 = vmatprep.subr.bf16.mxu0 0
      %3347 = vmatpush1.bf16.msra.mxu0 %v2533
      %3348 = vmatprep.subr.bf16.mxu0 0
      %3349 = vmatpush1.bf16.msra.mxu0 %v2534
      %3350 = vmatprep.subr.bf16.mxu0 0
      %3351 = vmatpush1.bf16.msra.mxu0 %v2535
      %3352 = vmatprep.subr.bf16.mxu0 0
      %3353 = vmatpush1.bf16.msra.mxu0 %v2536
      %3354 = vmatprep.subr.bf16.mxu0 0
      %3355 = vmatpush1.bf16.msra.mxu0 %v2537
      %3356 = vmatprep.subr.bf16.mxu0 0
      %3357 = vmatpush1.bf16.msra.mxu0 %v2538
      %3358 = vmatprep.subr.bf16.mxu0 0
      %3359 = vmatpush1.bf16.msra.mxu0 %v2539
      %3360 = vmatprep.subr.bf16.mxu0 0
      %3361 = vmatpush1.bf16.msra.mxu0 %v2540
      %3362 = vmatprep.subr.bf16.mxu0 0
      %3363 = vmatpush1.bf16.msra.mxu0 %v2541
      %3364 = vmatprep.subr.bf16.mxu0 0
      %3365 = vmatpush1.bf16.msra.mxu0 %v2542
      %3366 = vmatprep.mubr.bf16.mxu0 %v1134
      %3367 = vmatmul.mubr.bf16.gmra.mrb[0].mxu0 %v1133
      %v3368 = vpop.f32.mrb[0].mxu0
      %v3369 = vadd.f32 %v3320, %v3368
      %v3370 = vpop.f32.mrb[0].mxu0
      %v3371 = vpop.f32.mrb[0].mxu0
      %v3372 = vadd.f32 %v3323, %v3371
      %v3373 = vpop.f32.mrb[0].mxu0
      %3374 = vmatprep.mubr.bf16.mxu0 %v1170
      %3375 = vmatmul.mubr.bf16.gmra.mrb[0].mxu0 %v1169
      %v3376 = vpop.f32.mrb[0].mxu0
      %v3377 = vadd.f32 %v3328, %v3376
      %v3378 = vpop.f32.mrb[0].mxu0
      %v3379 = vpop.f32.mrb[0].mxu0
      %v3380 = vadd.f32 %v3331, %v3379
      %v3381 = vpop.f32.mrb[0].mxu0
      %3382 = vdwg.mxu0
      %3383 = vmatprep.subr.bf16.mxu0 0
      %3384 = vmatpush1.bf16.msra.mxu0 %v2543
      %3385 = vmatprep.subr.bf16.mxu0 0
      %3386 = vmatpush1.bf16.msra.mxu0 %v2544
      %3387 = vmatprep.subr.bf16.mxu0 0
      %3388 = vmatpush1.bf16.msra.mxu0 %v2545
      %3389 = vmatprep.subr.bf16.mxu0 0
      %3390 = vmatpush1.bf16.msra.mxu0 %v2546
      %3391 = vmatprep.subr.bf16.mxu0 0
      %3392 = vmatpush1.bf16.msra.mxu0 %v2547
      %3393 = vmatprep.subr.bf16.mxu0 0
      %3394 = vmatpush1.bf16.msra.mxu0 %v2548
      %3395 = vmatprep.subr.bf16.mxu0 0
      %3396 = vmatpush1.bf16.msra.mxu0 %v2549
      %3397 = vmatprep.subr.bf16.mxu0 0
      %3398 = vmatpush1.bf16.msra.mxu0 %v2550
      %3399 = vmatprep.subr.bf16.mxu0 0
      %3400 = vmatpush1.bf16.msra.mxu0 %v2551
      %3401 = vmatprep.subr.bf16.mxu0 0
      %3402 = vmatpush1.bf16.msra.mxu0 %v2552
      %3403 = vmatprep.subr.bf16.mxu0 0
      %3404 = vmatpush1.bf16.msra.mxu0 %v2553
      %3405 = vmatprep.subr.bf16.mxu0 0
      %3406 = vmatpush1.bf16.msra.mxu0 %v2554
      %3407 = vmatprep.subr.bf16.mxu0 0
      %3408 = vmatpush1.bf16.msra.mxu0 %v2555
      %3409 = vmatprep.subr.bf16.mxu0 0
      %3410 = vmatpush1.bf16.msra.mxu0 %v2556
      %3411 = vmatprep.subr.bf16.mxu0 0
      %3412 = vmatpush1.bf16.msra.mxu0 %v2557
      %3413 = vmatprep.subr.bf16.mxu0 0
      %3414 = vmatpush1.bf16.msra.mxu0 %v2558
      %3415 = vmatprep.mubr.bf16.mxu0 %v1136
      %3416 = vmatmul.mubr.bf16.gmra.mrb[0].mxu0 %v1135
      %v3417 = vpop.f32.mrb[0].mxu0
      %v3418 = vadd.f32 %v3369, %v3417
      %v3419 = vpop.f32.mrb[0].mxu0
      %v3420 = vpop.f32.mrb[0].mxu0
      %v3421 = vadd.f32 %v3372, %v3420
      %v3422 = vpop.f32.mrb[0].mxu0
      %3423 = vmatprep.mubr.bf16.mxu0 %v1172
      %3424 = vmatmul.mubr.bf16.gmra.mrb[0].mxu0 %v1171
      %v3425 = vpop.f32.mrb[0].mxu0
      %v3426 = vadd.f32 %v3377, %v3425
      %v3427 = vpop.f32.mrb[0].mxu0
      %v3428 = vpop.f32.mrb[0].mxu0
      %v3429 = vadd.f32 %v3380, %v3428
      %v3430 = vpop.f32.mrb[0].mxu0
      %3431 = vdwg.mxu0
      %3432 = vmatprep.subr.bf16.mxu0 0
      %3433 = vmatpush1.bf16.msra.mxu0 %v2559
      %3434 = vmatprep.subr.bf16.mxu0 0
      %3435 = vmatpush1.bf16.msra.mxu0 %v2560
      %3436 = vmatprep.subr.bf16.mxu0 0
      %3437 = vmatpush1.bf16.msra.mxu0 %v2561
      %3438 = vmatprep.subr.bf16.mxu0 0
      %3439 = vmatpush1.bf16.msra.mxu0 %v2562
      %3440 = vmatprep.subr.bf16.mxu0 0
      %3441 = vmatpush1.bf16.msra.mxu0 %v2563
      %3442 = vmatprep.subr.bf16.mxu0 0
      %3443 = vmatpush1.bf16.msra.mxu0 %v2564
      %3444 = vmatprep.subr.bf16.mxu0 0
      %3445 = vmatpush1.bf16.msra.mxu0 %v2565
      %3446 = vmatprep.subr.bf16.mxu0 0
      %3447 = vmatpush1.bf16.msra.mxu0 %v2566
      %3448 = vmatprep.subr.bf16.mxu0 0
      %3449 = vmatpush1.bf16.msra.mxu0 %v2567
      %3450 = vmatprep.subr.bf16.mxu0 0
      %3451 = vmatpush1.bf16.msra.mxu0 %v2568
      %3452 = vmatprep.subr.bf16.mxu0 0
      %3453 = vmatpush1.bf16.msra.mxu0 %v2569
      %3454 = vmatprep.subr.bf16.mxu0 0
      %3455 = vmatpush1.bf16.msra.mxu0 %v2570
      %3456 = vmatprep.subr.bf16.mxu0 0
      %3457 = vmatpush1.bf16.msra.mxu0 %v2571
      %3458 = vmatprep.subr.bf16.mxu0 0
      %3459 = vmatpush1.bf16.msra.mxu0 %v2572
      %3460 = vmatprep.subr.bf16.mxu0 0
      %3461 = vmatpush1.bf16.msra.mxu0 %v2573
      %3462 = vmatprep.subr.bf16.mxu0 0
      %3463 = vmatpush1.bf16.msra.mxu0 %v2574
      %3464 = vmatprep.mubr.bf16.mxu0 %v1138
      %3465 = vmatmul.mubr.bf16.gmra.mrb[0].mxu0 %v1137
      %v3466 = vpop.f32.mrb[0].mxu0
      %v3467 = vadd.f32 %v3418, %v3466
      %v3468 = vpop.f32.mrb[0].mxu0
      %v3469 = vpop.f32.mrb[0].mxu0
      %v3470 = vadd.f32 %v3421, %v3469
      %v3471 = vpop.f32.mrb[0].mxu0
      %3472 = vmatprep.mubr.bf16.mxu0 %v1174
      %3473 = vmatmul.mubr.bf16.gmra.mrb[0].mxu0 %v1173
      %v3474 = vpop.f32.mrb[0].mxu0
      %v3475 = vadd.f32 %v3426, %v3474
      %v3476 = vpop.f32.mrb[0].mxu0
      %v3477 = vpop.f32.mrb[0].mxu0
      %v3478 = vadd.f32 %v3429, %v3477
      %v3479 = vpop.f32.mrb[0].mxu0
      %3480 = vdwg.mxu0
      %3481 = vmatprep.subr.bf16.mxu0 0
      %3482 = vmatpush1.bf16.msra.mxu0 %v2575
      %3483 = vmatprep.subr.bf16.mxu0 0
      %3484 = vmatpush1.bf16.msra.mxu0 %v2576
      %3485 = vmatprep.subr.bf16.mxu0 0
      %3486 = vmatpush1.bf16.msra.mxu0 %v2577
      %3487 = vmatprep.subr.bf16.mxu0 0
      %3488 = vmatpush1.bf16.msra.mxu0 %v2578
      %3489 = vmatprep.subr.bf16.mxu0 0
      %3490 = vmatpush1.bf16.msra.mxu0 %v2579
      %3491 = vmatprep.subr.bf16.mxu0 0
      %3492 = vmatpush1.bf16.msra.mxu0 %v2580
      %3493 = vmatprep.subr.bf16.mxu0 0
      %3494 = vmatpush1.bf16.msra.mxu0 %v2581
      %3495 = vmatprep.subr.bf16.mxu0 0
      %3496 = vmatpush1.bf16.msra.mxu0 %v2582
      %3497 = vmatprep.subr.bf16.mxu0 0
      %3498 = vmatpush1.bf16.msra.mxu0 %v2583
      %3499 = vmatprep.subr.bf16.mxu0 0
      %3500 = vmatpush1.bf16.msra.mxu0 %v2584
      %3501 = vmatprep.subr.bf16.mxu0 0
      %3502 = vmatpush1.bf16.msra.mxu0 %v2585
      %3503 = vmatprep.subr.bf16.mxu0 0
      %3504 = vmatpush1.bf16.msra.mxu0 %v2586
      %3505 = vmatprep.subr.bf16.mxu0 0
      %3506 = vmatpush1.bf16.msra.mxu0 %v2587
      %3507 = vmatprep.subr.bf16.mxu0 0
      %3508 = vmatpush1.bf16.msra.mxu0 %v2588
      %3509 = vmatprep.subr.bf16.mxu0 0
      %3510 = vmatpush1.bf16.msra.mxu0 %v2589
      %3511 = vmatprep.subr.bf16.mxu0 0
      %3512 = vmatpush1.bf16.msra.mxu0 %v2590
      %3513 = vmatprep.mubr.bf16.mxu0 %v1140
      %3514 = vmatmul.mubr.bf16.gmra.mrb[0].mxu0 %v1139
      %v3515 = vpop.f32.mrb[0].mxu0
      %v3516 = vadd.f32 %v3467, %v3515
      %v3517 = vpop.f32.mrb[0].mxu0
      %v3518 = vpop.f32.mrb[0].mxu0
      %v3519 = vadd.f32 %v3470, %v3518
      %v3520 = vpop.f32.mrb[0].mxu0
      %3521 = vmatprep.mubr.bf16.mxu0 %v1176
      %3522 = vmatmul.mubr.bf16.gmra.mrb[0].mxu0 %v1175
      %v3523 = vpop.f32.mrb[0].mxu0
      %v3524 = vadd.f32 %v3475, %v3523
      %v3525 = vpop.f32.mrb[0].mxu0
      %v3526 = vpop.f32.mrb[0].mxu0
      %v3527 = vadd.f32 %v3478, %v3526
      %v3528 = vpop.f32.mrb[0].mxu0
      %3529 = vdwg.mxu0
      %3530 = vmatprep.subr.bf16.mxu0 0
      %3531 = vmatpush1.bf16.msra.mxu0 %v2591
      %3532 = vmatprep.subr.bf16.mxu0 0
      %3533 = vmatpush1.bf16.msra.mxu0 %v2592
      %3534 = vmatprep.subr.bf16.mxu0 0
      %3535 = vmatpush1.bf16.msra.mxu0 %v2593
      %3536 = vmatprep.subr.bf16.mxu0 0
      %3537 = vmatpush1.bf16.msra.mxu0 %v2594
      %3538 = vmatprep.subr.bf16.mxu0 0
      %3539 = vmatpush1.bf16.msra.mxu0 %v2595
      %3540 = vmatprep.subr.bf16.mxu0 0
      %3541 = vmatpush1.bf16.msra.mxu0 %v2596
      %3542 = vmatprep.subr.bf16.mxu0 0
      %3543 = vmatpush1.bf16.msra.mxu0 %v2597
      %3544 = vmatprep.subr.bf16.mxu0 0
      %3545 = vmatpush1.bf16.msra.mxu0 %v2598
      %3546 = vmatprep.subr.bf16.mxu0 0
      %3547 = vmatpush1.bf16.msra.mxu0 %v2599
      %3548 = vmatprep.subr.bf16.mxu0 0
      %3549 = vmatpush1.bf16.msra.mxu0 %v2600
      %3550 = vmatprep.subr.bf16.mxu0 0
      %3551 = vmatpush1.bf16.msra.mxu0 %v2601
      %3552 = vmatprep.subr.bf16.mxu0 0
      %3553 = vmatpush1.bf16.msra.mxu0 %v2602
      %3554 = vmatprep.subr.bf16.mxu0 0
      %3555 = vmatpush1.bf16.msra.mxu0 %v2603
      %3556 = vmatprep.subr.bf16.mxu0 0
      %3557 = vmatpush1.bf16.msra.mxu0 %v2604
      %3558 = vmatprep.subr.bf16.mxu0 0
      %3559 = vmatpush1.bf16.msra.mxu0 %v2605
      %3560 = vmatprep.subr.bf16.mxu0 0
      %3561 = vmatpush1.bf16.msra.mxu0 %v2606
      %3562 = vmatprep.mubr.bf16.mxu0 %v1142
      %3563 = vmatmul.mubr.bf16.gmra.mrb[0].mxu0 %v1141
      %v3564 = vpop.f32.mrb[0].mxu0
      %v3565 = vadd.f32 %v3516, %v3564
      %v3566 = vpop.f32.mrb[0].mxu0
      %v3567 = vpop.f32.mrb[0].mxu0
      %v3568 = vadd.f32 %v3519, %v3567
      %v3569 = vpop.f32.mrb[0].mxu0
      %3570 = vmatprep.mubr.bf16.mxu0 %v1178
      %3571 = vmatmul.mubr.bf16.gmra.mrb[0].mxu0 %v1177
      %v3572 = vpop.f32.mrb[0].mxu0
      %v3573 = vadd.f32 %v3524, %v3572
      %v3574 = vpop.f32.mrb[0].mxu0
      %v3575 = vpop.f32.mrb[0].mxu0
      %v3576 = vadd.f32 %v3527, %v3575
      %v3577 = vpop.f32.mrb[0].mxu0
      %3578 = vdwg.mxu0
      %3579 = vmatprep.subr.bf16.mxu0 0
      %3580 = vmatpush1.bf16.msra.mxu0 %v2607
      %3581 = vmatprep.subr.bf16.mxu0 0
      %3582 = vmatpush1.bf16.msra.mxu0 %v2608
      %3583 = vmatprep.subr.bf16.mxu0 0
      %3584 = vmatpush1.bf16.msra.mxu0 %v2609
      %3585 = vmatprep.subr.bf16.mxu0 0
      %3586 = vmatpush1.bf16.msra.mxu0 %v2610
      %3587 = vmatprep.subr.bf16.mxu0 0
      %3588 = vmatpush1.bf16.msra.mxu0 %v2611
      %3589 = vmatprep.subr.bf16.mxu0 0
      %3590 = vmatpush1.bf16.msra.mxu0 %v2612
      %3591 = vmatprep.subr.bf16.mxu0 0
      %3592 = vmatpush1.bf16.msra.mxu0 %v2613
      %3593 = vmatprep.subr.bf16.mxu0 0
      %3594 = vmatpush1.bf16.msra.mxu0 %v2614
      %3595 = vmatprep.subr.bf16.mxu0 0
      %3596 = vmatpush1.bf16.msra.mxu0 %v2615
      %3597 = vmatprep.subr.bf16.mxu0 0
      %3598 = vmatpush1.bf16.msra.mxu0 %v2616
      %3599 = vmatprep.subr.bf16.mxu0 0
      %3600 = vmatpush1.bf16.msra.mxu0 %v2617
      %3601 = vmatprep.subr.bf16.mxu0 0
      %3602 = vmatpush1.bf16.msra.mxu0 %v2618
      %3603 = vmatprep.subr.bf16.mxu0 0
      %3604 = vmatpush1.bf16.msra.mxu0 %v2619
      %3605 = vmatprep.subr.bf16.mxu0 0
      %3606 = vmatpush1.bf16.msra.mxu0 %v2620
      %3607 = vmatprep.subr.bf16.mxu0 0
      %3608 = vmatpush1.bf16.msra.mxu0 %v2621
      %3609 = vmatprep.subr.bf16.mxu0 0
      %3610 = vmatpush1.bf16.msra.mxu0 %v2622
      %3611 = vmatprep.mubr.bf16.mxu0 %v1144
      %3612 = vmatmul.mubr.bf16.gmra.mrb[0].mxu0 %v1143
      %v3613 = vpop.f32.mrb[0].mxu0
      %v3614 = vadd.f32 %v3565, %v3613
      %v3615 = vpop.f32.mrb[0].mxu0
      %v3616 = vpop.f32.mrb[0].mxu0
      %v3617 = vadd.f32 %v3568, %v3616
      %v3618 = vpop.f32.mrb[0].mxu0
      %3619 = vmatprep.mubr.bf16.mxu0 %v1180
      %3620 = vmatmul.mubr.bf16.gmra.mrb[0].mxu0 %v1179
      %v3621 = vpop.f32.mrb[0].mxu0
      %v3622 = vadd.f32 %v3573, %v3621
      %v3623 = vpop.f32.mrb[0].mxu0
      %v3624 = vpop.f32.mrb[0].mxu0
      %v3625 = vadd.f32 %v3576, %v3624
      %v3626 = vpop.f32.mrb[0].mxu0
      %3627 = vdwg.mxu0
      %3628 = vmatprep.subr.bf16.mxu0 0
      %3629 = vmatpush1.bf16.msra.mxu0 %v2623
      %3630 = vmatprep.subr.bf16.mxu0 0
      %3631 = vmatpush1.bf16.msra.mxu0 %v2624
      %3632 = vmatprep.subr.bf16.mxu0 0
      %3633 = vmatpush1.bf16.msra.mxu0 %v2625
      %3634 = vmatprep.subr.bf16.mxu0 0
      %3635 = vmatpush1.bf16.msra.mxu0 %v2626
      %3636 = vmatprep.subr.bf16.mxu0 0
      %3637 = vmatpush1.bf16.msra.mxu0 %v2627
      %3638 = vmatprep.subr.bf16.mxu0 0
      %3639 = vmatpush1.bf16.msra.mxu0 %v2628
      %3640 = vmatprep.subr.bf16.mxu0 0
      %3641 = vmatpush1.bf16.msra.mxu0 %v2629
      %3642 = vmatprep.subr.bf16.mxu0 0
      %3643 = vmatpush1.bf16.msra.mxu0 %v2630
      %3644 = vmatprep.subr.bf16.mxu0 0
      %3645 = vmatpush1.bf16.msra.mxu0 %v2631
      %3646 = vmatprep.subr.bf16.mxu0 0
      %3647 = vmatpush1.bf16.msra.mxu0 %v2632
      %3648 = vmatprep.subr.bf16.mxu0 0
      %3649 = vmatpush1.bf16.msra.mxu0 %v2633
      %3650 = vmatprep.subr.bf16.mxu0 0
      %3651 = vmatpush1.bf16.msra.mxu0 %v2634
      %3652 = vmatprep.subr.bf16.mxu0 0
      %3653 = vmatpush1.bf16.msra.mxu0 %v2635
      %3654 = vmatprep.subr.bf16.mxu0 0
      %3655 = vmatpush1.bf16.msra.mxu0 %v2636
      %3656 = vmatprep.subr.bf16.mxu0 0
      %3657 = vmatpush1.bf16.msra.mxu0 %v2637
      %3658 = vmatprep.subr.bf16.mxu0 0
      %3659 = vmatpush1.bf16.msra.mxu0 %v2638
      %3660 = vmatprep.mubr.bf16.mxu0 %v1146
      %3661 = vmatmul.mubr.bf16.gmra.mrb[0].mxu0 %v1145
      %v3662 = vpop.f32.mrb[0].mxu0
      %v3663 = vadd.f32 %v3614, %v3662
      %v3664 = vpop.f32.mrb[0].mxu0
      %v3665 = vpop.f32.mrb[0].mxu0
      %v3666 = vadd.f32 %v3617, %v3665
      %v3667 = vpop.f32.mrb[0].mxu0
      %3668 = vmatprep.mubr.bf16.mxu0 %v1182
      %3669 = vmatmul.mubr.bf16.gmra.mrb[0].mxu0 %v1181
      %v3670 = vpop.f32.mrb[0].mxu0
      %v3671 = vadd.f32 %v3622, %v3670
      %v3672 = vpop.f32.mrb[0].mxu0
      %v3673 = vpop.f32.mrb[0].mxu0
      %v3674 = vadd.f32 %v3625, %v3673
      %v3675 = vpop.f32.mrb[0].mxu0
      %3676 = vdwg.mxu0
      %3677 = vmatprep.subr.bf16.mxu0 0
      %3678 = vmatpush1.bf16.msra.mxu0 %v2639
      %3679 = vmatprep.subr.bf16.mxu0 0
      %3680 = vmatpush1.bf16.msra.mxu0 %v2640
      %3681 = vmatprep.subr.bf16.mxu0 0
      %3682 = vmatpush1.bf16.msra.mxu0 %v2641
      %3683 = vmatprep.subr.bf16.mxu0 0
      %3684 = vmatpush1.bf16.msra.mxu0 %v2642
      %3685 = vmatprep.subr.bf16.mxu0 0
      %3686 = vmatpush1.bf16.msra.mxu0 %v2643
      %3687 = vmatprep.subr.bf16.mxu0 0
      %3688 = vmatpush1.bf16.msra.mxu0 %v2644
      %3689 = vmatprep.subr.bf16.mxu0 0
      %3690 = vmatpush1.bf16.msra.mxu0 %v2645
      %3691 = vmatprep.subr.bf16.mxu0 0
      %3692 = vmatpush1.bf16.msra.mxu0 %v2646
      %3693 = vmatprep.subr.bf16.mxu0 0
      %3694 = vmatpush1.bf16.msra.mxu0 %v2647
      %3695 = vmatprep.subr.bf16.mxu0 0
      %3696 = vmatpush1.bf16.msra.mxu0 %v2648
      %3697 = vmatprep.subr.bf16.mxu0 0
      %3698 = vmatpush1.bf16.msra.mxu0 %v2649
      %3699 = vmatprep.subr.bf16.mxu0 0
      %3700 = vmatpush1.bf16.msra.mxu0 %v2650
      %3701 = vmatprep.subr.bf16.mxu0 0
      %3702 = vmatpush1.bf16.msra.mxu0 %v2651
      %3703 = vmatprep.subr.bf16.mxu0 0
      %3704 = vmatpush1.bf16.msra.mxu0 %v2652
      %3705 = vmatprep.subr.bf16.mxu0 0
      %3706 = vmatpush1.bf16.msra.mxu0 %v2653
      %3707 = vmatprep.subr.bf16.mxu0 0
      %3708 = vmatpush1.bf16.msra.mxu0 %v2654
      %3709 = vmatprep.mubr.bf16.mxu0 %v1148
      %3710 = vmatmul.mubr.bf16.gmra.mrb[0].mxu0 %v1147
      %v3711 = vpop.f32.mrb[0].mxu0
      %v3712 = vadd.f32 %v3663, %v3711
      %v3713 = vpop.f32.mrb[0].mxu0
      %v3714 = vpop.f32.mrb[0].mxu0
      %v3715 = vadd.f32 %v3666, %v3714
      %v3716 = vpop.f32.mrb[0].mxu0
      %3717 = vmatprep.mubr.bf16.mxu0 %v1184
      %3718 = vmatmul.mubr.bf16.gmra.mrb[0].mxu0 %v1183
      %v3719 = vpop.f32.mrb[0].mxu0
      %v3720 = vadd.f32 %v3671, %v3719
      %v3721 = vpop.f32.mrb[0].mxu0
      %v3722 = vpop.f32.mrb[0].mxu0
      %v3723 = vadd.f32 %v3674, %v3722
      %v3724 = vpop.f32.mrb[0].mxu0
      %3725 = vdwg.mxu0
      %3726 = vmatprep.subr.bf16.mxu0 0
      %3727 = vmatpush1.bf16.msra.mxu0 %v2655
      %3728 = vmatprep.subr.bf16.mxu0 0
      %3729 = vmatpush1.bf16.msra.mxu0 %v2656
      %3730 = vmatprep.subr.bf16.mxu0 0
      %3731 = vmatpush1.bf16.msra.mxu0 %v2657
      %3732 = vmatprep.subr.bf16.mxu0 0
      %3733 = vmatpush1.bf16.msra.mxu0 %v2658
      %3734 = vmatprep.subr.bf16.mxu0 0
      %3735 = vmatpush1.bf16.msra.mxu0 %v2659
      %3736 = vmatprep.subr.bf16.mxu0 0
      %3737 = vmatpush1.bf16.msra.mxu0 %v2660
      %3738 = vmatprep.subr.bf16.mxu0 0
      %3739 = vmatpush1.bf16.msra.mxu0 %v2661
      %3740 = vmatprep.subr.bf16.mxu0 0
      %3741 = vmatpush1.bf16.msra.mxu0 %v2662
      %3742 = vmatprep.subr.bf16.mxu0 0
      %3743 = vmatpush1.bf16.msra.mxu0 %v2663
      %3744 = vmatprep.subr.bf16.mxu0 0
      %3745 = vmatpush1.bf16.msra.mxu0 %v2664
      %3746 = vmatprep.subr.bf16.mxu0 0
      %3747 = vmatpush1.bf16.msra.mxu0 %v2665
      %3748 = vmatprep.subr.bf16.mxu0 0
      %3749 = vmatpush1.bf16.msra.mxu0 %v2666
      %3750 = vmatprep.subr.bf16.mxu0 0
      %3751 = vmatpush1.bf16.msra.mxu0 %v2667
      %3752 = vmatprep.subr.bf16.mxu0 0
      %3753 = vmatpush1.bf16.msra.mxu0 %v2668
      %3754 = vmatprep.subr.bf16.mxu0 0
      %3755 = vmatpush1.bf16.msra.mxu0 %v2669
      %3756 = vmatprep.subr.bf16.mxu0 0
      %3757 = vmatpush1.bf16.msra.mxu0 %v2670
      %3758 = vmatprep.mubr.bf16.mxu0 %v1150
      %3759 = vmatmul.mubr.bf16.gmra.mrb[0].mxu0 %v1149
      %v3760 = vpop.f32.mrb[0].mxu0
      %v3761 = vadd.f32 %v3712, %v3760
      %v3762 = vpop.f32.mrb[0].mxu0
      %v3763 = vpop.f32.mrb[0].mxu0
      %v3764 = vadd.f32 %v3715, %v3763
      %v3765 = vpop.f32.mrb[0].mxu0
      %3766 = vmatprep.mubr.bf16.mxu0 %v1186
      %3767 = vmatmul.mubr.bf16.gmra.mrb[0].mxu0 %v1185
      %v3768 = vpop.f32.mrb[0].mxu0
      %v3769 = vadd.f32 %v3720, %v3768
      %v3770 = vpop.f32.mrb[0].mxu0
      %v3771 = vpop.f32.mrb[0].mxu0
      %v3772 = vadd.f32 %v3723, %v3771
      %v3773 = vpop.f32.mrb[0].mxu0
      %3774 = vdwg.mxu0
      %3775 = vmatprep.subr.bf16.mxu0 0
      %3776 = vmatpush1.bf16.msra.mxu0 %v2671
      %3777 = vmatprep.subr.bf16.mxu0 0
      %3778 = vmatpush1.bf16.msra.mxu0 %v2672
      %3779 = vmatprep.subr.bf16.mxu0 0
      %3780 = vmatpush1.bf16.msra.mxu0 %v2673
      %3781 = vmatprep.subr.bf16.mxu0 0
      %3782 = vmatpush1.bf16.msra.mxu0 %v2674
      %3783 = vmatprep.subr.bf16.mxu0 0
      %3784 = vmatpush1.bf16.msra.mxu0 %v2675
      %3785 = vmatprep.subr.bf16.mxu0 0
      %3786 = vmatpush1.bf16.msra.mxu0 %v2676
      %3787 = vmatprep.subr.bf16.mxu0 0
      %3788 = vmatpush1.bf16.msra.mxu0 %v2677
      %3789 = vmatprep.subr.bf16.mxu0 0
      %3790 = vmatpush1.bf16.msra.mxu0 %v2678
      %3791 = vmatprep.subr.bf16.mxu0 0
      %3792 = vmatpush1.bf16.msra.mxu0 %v2679
      %3793 = vmatprep.subr.bf16.mxu0 0
      %3794 = vmatpush1.bf16.msra.mxu0 %v2680
      %3795 = vmatprep.subr.bf16.mxu0 0
      %3796 = vmatpush1.bf16.msra.mxu0 %v2681
      %3797 = vmatprep.subr.bf16.mxu0 0
      %3798 = vmatpush1.bf16.msra.mxu0 %v2682
      %3799 = vmatprep.subr.bf16.mxu0 0
      %3800 = vmatpush1.bf16.msra.mxu0 %v2683
      %3801 = vmatprep.subr.bf16.mxu0 0
      %3802 = vmatpush1.bf16.msra.mxu0 %v2684
      %3803 = vmatprep.subr.bf16.mxu0 0
      %3804 = vmatpush1.bf16.msra.mxu0 %v2685
      %3805 = vmatprep.subr.bf16.mxu0 0
      %3806 = vmatpush1.bf16.msra.mxu0 %v2686
      %3807 = vmatprep.mubr.bf16.mxu0 %v1152
      %3808 = vmatmul.mubr.bf16.gmra.mrb[0].mxu0 %v1151
      %v3809 = vpop.f32.mrb[0].mxu0
      %v3810 = vadd.f32 %v3761, %v3809
      %v3811 = vpop.f32.mrb[0].mxu0
      %v3812 = vpop.f32.mrb[0].mxu0
      %v3813 = vadd.f32 %v3764, %v3812
      %v3814 = vpop.f32.mrb[0].mxu0
      %3815 = vmatprep.mubr.bf16.mxu0 %v1188
      %3816 = vmatmul.mubr.bf16.gmra.mrb[0].mxu0 %v1187
      %v3817 = vpop.f32.mrb[0].mxu0
      %v3818 = vadd.f32 %v3769, %v3817
      %v3819 = vpop.f32.mrb[0].mxu0
      %v3820 = vpop.f32.mrb[0].mxu0
      %v3821 = vadd.f32 %v3772, %v3820
      %v3822 = vpop.f32.mrb[0].mxu0
      %3823 = vdwg.mxu0
      %3824 = vmatprep.subr.bf16.mxu0 0
      %3825 = vmatpush1.bf16.msra.mxu0 %v2687
      %3826 = vmatprep.subr.bf16.mxu0 0
      %3827 = vmatpush1.bf16.msra.mxu0 %v2688
      %3828 = vmatprep.subr.bf16.mxu0 0
      %3829 = vmatpush1.bf16.msra.mxu0 %v2689
      %3830 = vmatprep.subr.bf16.mxu0 0
      %3831 = vmatpush1.bf16.msra.mxu0 %v2690
      %3832 = vmatprep.subr.bf16.mxu0 0
      %3833 = vmatpush1.bf16.msra.mxu0 %v2691
      %3834 = vmatprep.subr.bf16.mxu0 0
      %3835 = vmatpush1.bf16.msra.mxu0 %v2692
      %3836 = vmatprep.subr.bf16.mxu0 0
      %3837 = vmatpush1.bf16.msra.mxu0 %v2693
      %3838 = vmatprep.subr.bf16.mxu0 0
      %3839 = vmatpush1.bf16.msra.mxu0 %v2694
      %3840 = vmatprep.subr.bf16.mxu0 0
      %3841 = vmatpush1.bf16.msra.mxu0 %v2695
      %3842 = vmatprep.subr.bf16.mxu0 0
      %3843 = vmatpush1.bf16.msra.mxu0 %v2696
      %3844 = vmatprep.subr.bf16.mxu0 0
      %3845 = vmatpush1.bf16.msra.mxu0 %v2697
      %3846 = vmatprep.subr.bf16.mxu0 0
      %3847 = vmatpush1.bf16.msra.mxu0 %v2698
      %3848 = vmatprep.subr.bf16.mxu0 0
      %3849 = vmatpush1.bf16.msra.mxu0 %v2699
      %3850 = vmatprep.subr.bf16.mxu0 0
      %3851 = vmatpush1.bf16.msra.mxu0 %v2700
      %3852 = vmatprep.subr.bf16.mxu0 0
      %3853 = vmatpush1.bf16.msra.mxu0 %v2701
      %3854 = vmatprep.subr.bf16.mxu0 0
      %3855 = vmatpush1.bf16.msra.mxu0 %v2702
      %3856 = vmatprep.mubr.bf16.mxu0 %v1154
      %3857 = vmatmul.mubr.bf16.gmra.mrb[0].mxu0 %v1153
      %v3858 = vpop.f32.mrb[0].mxu0
      %v3859 = vadd.f32 %v3810, %v3858
      %v3860 = vpop.f32.mrb[0].mxu0
      %v3861 = vpop.f32.mrb[0].mxu0
      %v3862 = vadd.f32 %v3813, %v3861
      %v3863 = vpop.f32.mrb[0].mxu0
      %3864 = vmatprep.mubr.bf16.mxu0 %v1190
      %3865 = vmatmul.mubr.bf16.gmra.mrb[0].mxu0 %v1189
      %v3866 = vpop.f32.mrb[0].mxu0
      %v3867 = vadd.f32 %v3818, %v3866
      %v3868 = vpop.f32.mrb[0].mxu0
      %v3869 = vpop.f32.mrb[0].mxu0
      %v3870 = vadd.f32 %v3821, %v3869
      %v3871 = vpop.f32.mrb[0].mxu0
      %3872 = vdwg.mxu0
      %v3873 = vmax.f32 %v3859, 0.0
      %v3874 = vmax.f32 %v3862, 0.0
      %v3875 = vmax.f32 %v3867, 0.0
      %v3876 = vmax.f32 %v3870, 0.0
      %3877 = vst [vmem:[%s245] sm:$0xff] %v3873
      %3878 = vst [vmem:[%s245 + $0x8] sm:$0xff] %v3874
      %3879 = vst [vmem:[%s245 + $0x10] sm:$0xff] %v3875
      %3880 = vst [vmem:[%s245 + $0x18] sm:$0xff] %v3876
      %s3881 = smul.u32 4, %s19
      %p3882 = scmp.lt.s32.totalorder %s18, 1
      %s3883 = scalar_select %p3882, %s18, 1
      %p3884 = scmp.lt.s32.totalorder %s3881, 3
      %s3885 = scalar_select %p3884, %s3881, 3
      %s3886 = smul.addr %s3883, 4
      %s3887 = sadd.s32 %s3885, %s3886
      %s3888 = smul.addr %s3887, 8
      %s3889 = scalar_lea.vmem %s3, %s3888
      // Predicated region
      $region33: #{selector_forward.4} parent=31 // pred_check
        %p3890 = pneg %p126
      $region34: #{selector_forward.4} parent=31 // pred_check_branch
        %3892 = sbr.rel (%p3890) target = $region36
      $region35: #{selector_forward.4} parent=31 // pred_region
        %s3893 = smul.u32 4, %s19
      $region36: #{selector_forward.4} parent=31 // pred_fallthru
        _
    $region32: #{selector_forward.4} parent=5 // pred_fallthru
      _
    %p3894 = scmp.le.s32.totalorder 2, %s9
    // Predicated region
    $region37: #{selector_forward.4} parent=5 // pred_check
      %p3895 = pneg %p3894
    $region38: #{selector_forward.4} parent=5 // pred_check_branch
      %3897 = sbr.rel (%p3895) target = $region40
    $region39: #{selector_forward.4} parent=5 // pred_region
      %s3898 = ssub.s32 %s9, 2
      // Predicated region
      $region41: #{selector_forward.4} parent=39 // pred_check
        %p3899 = pneg %p132
      $region42: #{selector_forward.4} parent=39 // pred_check_branch
        %3901 = sbr.rel (%p3899) target = $region44
      $region43: #{selector_forward.4} parent=39 // pred_region
        %s3902 = smul.u32 4, %s21
        %p3903 = scmp.lt.s32.totalorder %s20, 1
        %s3904 = scalar_select %p3903, %s20, 1
        %p3905 = scmp.lt.s32.totalorder %s3902, 3
        %s3906 = scalar_select %p3905, %s3902, 3
        %s3907 = smul.addr %s3904, 4
        %s3908 = sadd.s32 %s3906, %s3907
        %s3909 = smul.addr %s3908, 8
        %s3910 = scalar_lea.vmem %s3, %s3909
      $region44: #{selector_forward.4} parent=39 // pred_fallthru
        _
    $region40: #{selector_forward.4} parent=5 // pred_fallthru
      _
  $region6: #{selector_forward.4} parent=0 // loop_footer
    %s13 = sadd.s32 1, %s9
  $region7: #{selector_forward.4} parent=0 // loop_footer_branch
    %8 = sbr.rel target = $region3
  $region8: #{selector_forward.4} parent=0 // loop_exit
    _

// kernel: selector_forward.5
$region0: #{selector_forward.5}
  #allocation0 [shape = 'u32[]', space=smem, size = 0x4, offset = 0x4, fixed_abs, tag = 'smem constant byte address 0x4 - core index']
  #allocation1 [shape = 'u32[144,128]{1,0:T(1,128)}', space=vmem, size = 0x12000, scoped, tag = 'internal scratch']
  %s0 = inlined_call_operand.vmem [shape: bf16[1,32,9216], index: 0, kind: input, shape index: {}]
  %s1 = inlined_call_operand.vmem [shape: bf16[1,9216,128], index: 1, kind: input, shape index: {}]
  %s2 = inlined_call_operand.vmem [shape: f32[1,1,128], index: 2, kind: input, shape index: {}]
  %s3 = inlined_call_operand.vmem [shape: f32[1,32,128], index: 3, kind: output, shape index: {}]
  %s4 = sld [smem:[#allocation0]]
  $region22: #{selector_forward.5} parent=0
    _
  %s6 = ssub.s32 1, %s4
  %s7 = scalar_select 0, %s6, %s4
  // Predicated region
  $region2: #{selector_forward.5} parent=0 // pred_check
    _
  $region3: #{selector_forward.5} parent=0 // pred_check_branch
    %9 = sbr.rel (0) target = $region5
  $region4: #{selector_forward.5} parent=0 // pred_region
    _
  $region5: #{selector_forward.5} parent=0 // pred_fallthru
    _
  // Predicated region
  $region6: #{selector_forward.5} parent=0 // pred_check
    _
  $region7: #{selector_forward.5} parent=0 // pred_check_branch
    %11 = sbr.rel (0) target = $region9
  $region8: #{selector_forward.5} parent=0 // pred_region
    _
  $region9: #{selector_forward.5} parent=0 // pred_fallthru
    _
  // Predicated region
  $region10: #{selector_forward.5} parent=0 // pred_check
    _
  $region11: #{selector_forward.5} parent=0 // pred_check_branch
    %13 = sbr.rel (0) target = $region13
  $region12: #{selector_forward.5} parent=0 // pred_region
    _
  $region13: #{selector_forward.5} parent=0 // pred_fallthru
    _
  %v15 = vld [vmem:[%s0] sm:$0xff]
  %v16 = vld [vmem:[%s0 + $0x8] sm:$0xff]
  %v17 = vld [vmem:[%s0 + $0x10] sm:$0xff]
  %v18 = vld [vmem:[%s0 + $0x18] sm:$0xff]
  %v19 = vld [vmem:[%s0 + $0x20] sm:$0xff]
  %v20 = vld [vmem:[%s0 + $0x28] sm:$0xff]
  %v21 = vld [vmem:[%s0 + $0x30] sm:$0xff]
  %v22 = vld [vmem:[%s0 + $0x38] sm:$0xff]
  %v23 = vld [vmem:[%s0 + $0x40] sm:$0xff]
  %v24 = vld [vmem:[%s0 + $0x48] sm:$0xff]
  %v25 = vld [vmem:[%s0 + $0x50] sm:$0xff]
  %v26 = vld [vmem:[%s0 + $0x58] sm:$0xff]
  %v27 = vld [vmem:[%s0 + $0x60] sm:$0xff]
  %v28 = vld [vmem:[%s0 + $0x68] sm:$0xff]
  %v29 = vld [vmem:[%s0 + $0x70] sm:$0xff]
  %v30 = vld [vmem:[%s0 + $0x78] sm:$0xff]
  %v31 = vld [vmem:[%s0 + $0x80] sm:$0xff]
  %v32 = vld [vmem:[%s0 + $0x88] sm:$0xff]
  %v33 = vld [vmem:[%s0 + $0x90] sm:$0xff]
  %v34 = vld [vmem:[%s0 + $0x98] sm:$0xff]
  %v35 = vld [vmem:[%s0 + $0xa0] sm:$0xff]
  %v36 = vld [vmem:[%s0 + $0xa8] sm:$0xff]
  %v37 = vld [vmem:[%s0 + $0xb0] sm:$0xff]
  %v38 = vld [vmem:[%s0 + $0xb8] sm:$0xff]
  %v39 = vld [vmem:[%s0 + $0xc0] sm:$0xff]
  %v40 = vld [vmem:[%s0 + $0xc8] sm:$0xff]
  %v41 = vld [vmem:[%s0 + $0xd0] sm:$0xff]
  %v42 = vld [vmem:[%s0 + $0xd8] sm:$0xff]
  %v43 = vld [vmem:[%s0 + $0xe0] sm:$0xff]
  %v44 = vld [vmem:[%s0 + $0xe8] sm:$0xff]
  %v45 = vld [vmem:[%s0 + $0xf0] sm:$0xff]
  %v46 = vld [vmem:[%s0 + $0xf8] sm:$0xff]
  %v47 = vld [vmem:[%s0 + $0x100] sm:$0xff]
  %v48 = vld [vmem:[%s0 + $0x108] sm:$0xff]
  %v49 = vld [vmem:[%s0 + $0x110] sm:$0xff]
  %v50 = vld [vmem:[%s0 + $0x118] sm:$0xff]
  %v51 = vld [vmem:[%s0 + $0x120] sm:$0xff]
  %v52 = vld [vmem:[%s0 + $0x128] sm:$0xff]
  %v53 = vld [vmem:[%s0 + $0x130] sm:$0xff]
  %v54 = vld [vmem:[%s0 + $0x138] sm:$0xff]
  %v55 = vld [vmem:[%s0 + $0x140] sm:$0xff]
  %v56 = vld [vmem:[%s0 + $0x148] sm:$0xff]
  %v57 = vld [vmem:[%s0 + $0x150] sm:$0xff]
  %v58 = vld [vmem:[%s0 + $0x158] sm:$0xff]
  %v59 = vld [vmem:[%s0 + $0x160] sm:$0xff]
  %v60 = vld [vmem:[%s0 + $0x168] sm:$0xff]
  %v61 = vld [vmem:[%s0 + $0x170] sm:$0xff]
  %v62 = vld [vmem:[%s0 + $0x178] sm:$0xff]
  %v63 = vld [vmem:[%s0 + $0x180] sm:$0xff]
  %v64 = vld [vmem:[%s0 + $0x188] sm:$0xff]
  %v65 = vld [vmem:[%s0 + $0x190] sm:$0xff]
  %v66 = vld [vmem:[%s0 + $0x198] sm:$0xff]
  %v67 = vld [vmem:[%s0 + $0x1a0] sm:$0xff]
  %v68 = vld [vmem:[%s0 + $0x1a8] sm:$0xff]
  %v69 = vld [vmem:[%s0 + $0x1b0] sm:$0xff]
  %v70 = vld [vmem:[%s0 + $0x1b8] sm:$0xff]
  %v71 = vld [vmem:[%s0 + $0x1c0] sm:$0xff]
  %v72 = vld [vmem:[%s0 + $0x1c8] sm:$0xff]
  %v73 = vld [vmem:[%s0 + $0x1d0] sm:$0xff]
  %v74 = vld [vmem:[%s0 + $0x1d8] sm:$0xff]
  %v75 = vld [vmem:[%s0 + $0x1e0] sm:$0xff]
  %v76 = vld [vmem:[%s0 + $0x1e8] sm:$0xff]
  %v77 = vld [vmem:[%s0 + $0x1f0] sm:$0xff]
  %v78 = vld [vmem:[%s0 + $0x1f8] sm:$0xff]
  %v79 = vld [vmem:[%s0 + $0x200] sm:$0xff]
  %v80 = vld [vmem:[%s0 + $0x208] sm:$0xff]
  %v81 = vld [vmem:[%s0 + $0x210] sm:$0xff]
  %v82 = vld [vmem:[%s0 + $0x218] sm:$0xff]
  %v83 = vld [vmem:[%s0 + $0x220] sm:$0xff]
  %v84 = vld [vmem:[%s0 + $0x228] sm:$0xff]
  %v85 = vld [vmem:[%s0 + $0x230] sm:$0xff]
  %v86 = vld [vmem:[%s0 + $0x238] sm:$0xff]
  %v87 = vld [vmem:[%s0 + $0x240] sm:$0xff]
  %v88 = vld [vmem:[%s0 + $0x248] sm:$0xff]
  %v89 = vld [vmem:[%s0 + $0x250] sm:$0xff]
  %v90 = vld [vmem:[%s0 + $0x258] sm:$0xff]
  %v91 = vld [vmem:[%s0 + $0x260] sm:$0xff]
  %v92 = vld [vmem:[%s0 + $0x268] sm:$0xff]
  %v93 = vld [vmem:[%s0 + $0x270] sm:$0xff]
  %v94 = vld [vmem:[%s0 + $0x278] sm:$0xff]
  %v95 = vld [vmem:[%s0 + $0x280] sm:$0xff]
  %v96 = vld [vmem:[%s0 + $0x288] sm:$0xff]
  %v97 = vld [vmem:[%s0 + $0x290] sm:$0xff]
  %v98 = vld [vmem:[%s0 + $0x298] sm:$0xff]
  %v99 = vld [vmem:[%s0 + $0x2a0] sm:$0xff]
  %v100 = vld [vmem:[%s0 + $0x2a8] sm:$0xff]
  %v101 = vld [vmem:[%s0 + $0x2b0] sm:$0xff]
  %v102 = vld [vmem:[%s0 + $0x2b8] sm:$0xff]
  %v103 = vld [vmem:[%s0 + $0x2c0] sm:$0xff]
  %v104 = vld [vmem:[%s0 + $0x2c8] sm:$0xff]
  %v105 = vld [vmem:[%s0 + $0x2d0] sm:$0xff]
  %v106 = vld [vmem:[%s0 + $0x2d8] sm:$0xff]
  %v107 = vld [vmem:[%s0 + $0x2e0] sm:$0xff]
  %v108 = vld [vmem:[%s0 + $0x2e8] sm:$0xff]
  %v109 = vld [vmem:[%s0 + $0x2f0] sm:$0xff]
  %v110 = vld [vmem:[%s0 + $0x2f8] sm:$0xff]
  %v111 = vld [vmem:[%s0 + $0x300] sm:$0xff]
  %v112 = vld [vmem:[%s0 + $0x308] sm:$0xff]
  %v113 = vld [vmem:[%s0 + $0x310] sm:$0xff]
  %v114 = vld [vmem:[%s0 + $0x318] sm:$0xff]
  %v115 = vld [vmem:[%s0 + $0x320] sm:$0xff]
  %v116 = vld [vmem:[%s0 + $0x328] sm:$0xff]
  %v117 = vld [vmem:[%s0 + $0x330] sm:$0xff]
  %v118 = vld [vmem:[%s0 + $0x338] sm:$0xff]
  %v119 = vld [vmem:[%s0 + $0x340] sm:$0xff]
  %v120 = vld [vmem:[%s0 + $0x348] sm:$0xff]
  %v121 = vld [vmem:[%s0 + $0x350] sm:$0xff]
  %v122 = vld [vmem:[%s0 + $0x358] sm:$0xff]
  %v123 = vld [vmem:[%s0 + $0x360] sm:$0xff]
  %v124 = vld [vmem:[%s0 + $0x368] sm:$0xff]
  %v125 = vld [vmem:[%s0 + $0x370] sm:$0xff]
  %v126 = vld [vmem:[%s0 + $0x378] sm:$0xff]
  %v127 = vld [vmem:[%s0 + $0x380] sm:$0xff]
  %v128 = vld [vmem:[%s0 + $0x388] sm:$0xff]
  %v129 = vld [vmem:[%s0 + $0x390] sm:$0xff]
  %v130 = vld [vmem:[%s0 + $0x398] sm:$0xff]
  %v131 = vld [vmem:[%s0 + $0x3a0] sm:$0xff]
  %v132 = vld [vmem:[%s0 + $0x3a8] sm:$0xff]
  %v133 = vld [vmem:[%s0 + $0x3b0] sm:$0xff]
  %v134 = vld [vmem:[%s0 + $0x3b8] sm:$0xff]
  %v135 = vld [vmem:[%s0 + $0x3c0] sm:$0xff]
  %v136 = vld [vmem:[%s0 + $0x3c8] sm:$0xff]
  %v137 = vld [vmem:[%s0 + $0x3d0] sm:$0xff]
  %v138 = vld [vmem:[%s0 + $0x3d8] sm:$0xff]
  %v139 = vld [vmem:[%s0 + $0x3e0] sm:$0xff]
  %v140 = vld [vmem:[%s0 + $0x3e8] sm:$0xff]
  %v141 = vld [vmem:[%s0 + $0x3f0] sm:$0xff]
  %v142 = vld [vmem:[%s0 + $0x3f8] sm:$0xff]
  %v143 = vld [vmem:[%s0 + $0x400] sm:$0xff]
  %v144 = vld [vmem:[%s0 + $0x408] sm:$0xff]
  %v145 = vld [vmem:[%s0 + $0x410] sm:$0xff]
  %v146 = vld [vmem:[%s0 + $0x418] sm:$0xff]
  %v147 = vld [vmem:[%s0 + $0x420] sm:$0xff]
  %v148 = vld [vmem:[%s0 + $0x428] sm:$0xff]
  %v149 = vld [vmem:[%s0 + $0x430] sm:$0xff]
  %v150 = vld [vmem:[%s0 + $0x438] sm:$0xff]
  %v151 = vld [vmem:[%s0 + $0x440] sm:$0xff]
  %v152 = vld [vmem:[%s0 + $0x448] sm:$0xff]
  %v153 = vld [vmem:[%s0 + $0x450] sm:$0xff]
  %v154 = vld [vmem:[%s0 + $0x458] sm:$0xff]
  %v155 = vld [vmem:[%s0 + $0x460] sm:$0xff]
  %v156 = vld [vmem:[%s0 + $0x468] sm:$0xff]
  %v157 = vld [vmem:[%s0 + $0x470] sm:$0xff]
  %v158 = vld [vmem:[%s0 + $0x478] sm:$0xff]
  %v159 = vld [vmem:[%s1] sm:$0xf]
  %v160 = vld [vmem:[%s1 + $0x4] sm:$0xf]
  %v161 = vld [vmem:[%s1 + $0x8] sm:$0xf]
  %v162 = vld [vmem:[%s1 + $0xc] sm:$0xf]
  %v163 = vld [vmem:[%s1 + $0x10] sm:$0xf]
  %v164 = vld [vmem:[%s1 + $0x14] sm:$0xf]
  %v165 = vld [vmem:[%s1 + $0x18] sm:$0xf]
  %v166 = vld [vmem:[%s1 + $0x1c] sm:$0xf]
  %v167 = vld [vmem:[%s1 + $0x20] sm:$0xf]
  %v168 = vld [vmem:[%s1 + $0x24] sm:$0xf]
  %v169 = vld [vmem:[%s1 + $0x28] sm:$0xf]
  %v170 = vld [vmem:[%s1 + $0x2c] sm:$0xf]
  %v171 = vld [vmem:[%s1 + $0x30] sm:$0xf]
  %v172 = vld [vmem:[%s1 + $0x34] sm:$0xf]
  %v173 = vld [vmem:[%s1 + $0x38] sm:$0xf]
  %v174 = vld [vmem:[%s1 + $0x3c] sm:$0xf]
  %v175 = vld [vmem:[%s1 + $0x40] sm:$0xf]
  %v176 = vld [vmem:[%s1 + $0x44] sm:$0xf]
  %v177 = vld [vmem:[%s1 + $0x48] sm:$0xf]
  %v178 = vld [vmem:[%s1 + $0x4c] sm:$0xf]
  %v179 = vld [vmem:[%s1 + $0x50] sm:$0xf]
  %v180 = vld [vmem:[%s1 + $0x54] sm:$0xf]
  %v181 = vld [vmem:[%s1 + $0x58] sm:$0xf]
  %v182 = vld [vmem:[%s1 + $0x5c] sm:$0xf]
  %v183 = vld [vmem:[%s1 + $0x60] sm:$0xf]
  %v184 = vld [vmem:[%s1 + $0x64] sm:$0xf]
  %v185 = vld [vmem:[%s1 + $0x68] sm:$0xf]
  %v186 = vld [vmem:[%s1 + $0x6c] sm:$0xf]
  %v187 = vld [vmem:[%s1 + $0x70] sm:$0xf]
  %v188 = vld [vmem:[%s1 + $0x74] sm:$0xf]
  %v189 = vld [vmem:[%s1 + $0x78] sm:$0xf]
  %v190 = vld [vmem:[%s1 + $0x7c] sm:$0xf]
  %v191 = vld [vmem:[%s1 + $0x80] sm:$0xf]
  %v192 = vld [vmem:[%s1 + $0x84] sm:$0xf]
  %v193 = vld [vmem:[%s1 + $0x88] sm:$0xf]
  %v194 = vld [vmem:[%s1 + $0x8c] sm:$0xf]
  %v195 = vld [vmem:[%s1 + $0x90] sm:$0xf]
  %v196 = vld [vmem:[%s1 + $0x94] sm:$0xf]
  %v197 = vld [vmem:[%s1 + $0x98] sm:$0xf]
  %v198 = vld [vmem:[%s1 + $0x9c] sm:$0xf]
  %v199 = vld [vmem:[%s1 + $0xa0] sm:$0xf]
  %v200 = vld [vmem:[%s1 + $0xa4] sm:$0xf]
  %v201 = vld [vmem:[%s1 + $0xa8] sm:$0xf]
  %v202 = vld [vmem:[%s1 + $0xac] sm:$0xf]
  %v203 = vld [vmem:[%s1 + $0xb0] sm:$0xf]
  %v204 = vld [vmem:[%s1 + $0xb4] sm:$0xf]
  %v205 = vld [vmem:[%s1 + $0xb8] sm:$0xf]
  %v206 = vld [vmem:[%s1 + $0xbc] sm:$0xf]
  %v207 = vld [vmem:[%s1 + $0xc0] sm:$0xf]
  %v208 = vld [vmem:[%s1 + $0xc4] sm:$0xf]
  %v209 = vld [vmem:[%s1 + $0xc8] sm:$0xf]
  %v210 = vld [vmem:[%s1 + $0xcc] sm:$0xf]
  %v211 = vld [vmem:[%s1 + $0xd0] sm:$0xf]
  %v212 = vld [vmem:[%s1 + $0xd4] sm:$0xf]
  %v213 = vld [vmem:[%s1 + $0xd8] sm:$0xf]
  %v214 = vld [vmem:[%s1 + $0xdc] sm:$0xf]
  %v215 = vld [vmem:[%s1 + $0xe0] sm:$0xf]
  %v216 = vld [vmem:[%s1 + $0xe4] sm:$0xf]
  %v217 = vld [vmem:[%s1 + $0xe8] sm:$0xf]
  %v218 = vld [vmem:[%s1 + $0xec] sm:$0xf]
  %v219 = vld [vmem:[%s1 + $0xf0] sm:$0xf]
  %v220 = vld [vmem:[%s1 + $0xf4] sm:$0xf]
  %v221 = vld [vmem:[%s1 + $0xf8] sm:$0xf]
  %v222 = vld [vmem:[%s1 + $0xfc] sm:$0xf]
  %v223 = vld [vmem:[%s1 + $0x100] sm:$0xf]
  %v224 = vld [vmem:[%s1 + $0x104] sm:$0xf]
  %v225 = vld [vmem:[%s1 + $0x108] sm:$0xf]
  %v226 = vld [vmem:[%s1 + $0x10c] sm:$0xf]
  %v227 = vld [vmem:[%s1 + $0x110] sm:$0xf]
  %v228 = vld [vmem:[%s1 + $0x114] sm:$0xf]
  %v229 = vld [vmem:[%s1 + $0x118] sm:$0xf]
  %v230 = vld [vmem:[%s1 + $0x11c] sm:$0xf]
  %v231 = vld [vmem:[%s1 + $0x120] sm:$0xf]
  %v232 = vld [vmem:[%s1 + $0x124] sm:$0xf]
  %v233 = vld [vmem:[%s1 + $0x128] sm:$0xf]
  %v234 = vld [vmem:[%s1 + $0x12c] sm:$0xf]
  %v235 = vld [vmem:[%s1 + $0x130] sm:$0xf]
  %v236 = vld [vmem:[%s1 + $0x134] sm:$0xf]
  %v237 = vld [vmem:[%s1 + $0x138] sm:$0xf]
  %v238 = vld [vmem:[%s1 + $0x13c] sm:$0xf]
  %v239 = vld [vmem:[%s1 + $0x140] sm:$0xf]
  %v240 = vld [vmem:[%s1 + $0x144] sm:$0xf]
  %v241 = vld [vmem:[%s1 + $0x148] sm:$0xf]
  %v242 = vld [vmem:[%s1 + $0x14c] sm:$0xf]
  %v243 = vld [vmem:[%s1 + $0x150] sm:$0xf]
  %v244 = vld [vmem:[%s1 + $0x154] sm:$0xf]
  %v245 = vld [vmem:[%s1 + $0x158] sm:$0xf]
  %v246 = vld [vmem:[%s1 + $0x15c] sm:$0xf]
  %v247 = vld [vmem:[%s1 + $0x160] sm:$0xf]
  %v248 = vld [vmem:[%s1 + $0x164] sm:$0xf]
  %v249 = vld [vmem:[%s1 + $0x168] sm:$0xf]
  %v250 = vld [vmem:[%s1 + $0x16c] sm:$0xf]
  %v251 = vld [vmem:[%s1 + $0x170] sm:$0xf]
  %v252 = vld [vmem:[%s1 + $0x174] sm:$0xf]
  %v253 = vld [vmem:[%s1 + $0x178] sm:$0xf]
  %v254 = vld [vmem:[%s1 + $0x17c] sm:$0xf]
  %v255 = vld [vmem:[%s1 + $0x180] sm:$0xf]
  %v256 = vld [vmem:[%s1 + $0x184] sm:$0xf]
  %v257 = vld [vmem:[%s1 + $0x188] sm:$0xf]
  %v258 = vld [vmem:[%s1 + $0x18c] sm:$0xf]
  %v259 = vld [vmem:[%s1 + $0x190] sm:$0xf]
  %v260 = vld [vmem:[%s1 + $0x194] sm:$0xf]
  %v261 = vld [vmem:[%s1 + $0x198] sm:$0xf]
  %v262 = vld [vmem:[%s1 + $0x19c] sm:$0xf]
  %v263 = vld [vmem:[%s1 + $0x1a0] sm:$0xf]
  %v264 = vld [vmem:[%s1 + $0x1a4] sm:$0xf]
  %v265 = vld [vmem:[%s1 + $0x1a8] sm:$0xf]
  %v266 = vld [vmem:[%s1 + $0x1ac] sm:$0xf]
  %v267 = vld [vmem:[%s1 + $0x1b0] sm:$0xf]
  %v268 = vld [vmem:[%s1 + $0x1b4] sm:$0xf]
  %v269 = vld [vmem:[%s1 + $0x1b8] sm:$0xf]
  %v270 = vld [vmem:[%s1 + $0x1bc] sm:$0xf]
  %v271 = vld [vmem:[%s1 + $0x1c0] sm:$0xf]
  %v272 = vld [vmem:[%s1 + $0x1c4] sm:$0xf]
  %v273 = vld [vmem:[%s1 + $0x1c8] sm:$0xf]
  %v274 = vld [vmem:[%s1 + $0x1cc] sm:$0xf]
  %v275 = vld [vmem:[%s1 + $0x1d0] sm:$0xf]
  %v276 = vld [vmem:[%s1 + $0x1d4] sm:$0xf]
  %v277 = vld [vmem:[%s1 + $0x1d8] sm:$0xf]
  %v278 = vld [vmem:[%s1 + $0x1dc] sm:$0xf]
  %v279 = vld [vmem:[%s1 + $0x1e0] sm:$0xf]
  %v280 = vld [vmem:[%s1 + $0x1e4] sm:$0xf]
  %v281 = vld [vmem:[%s1 + $0x1e8] sm:$0xf]
  %v282 = vld [vmem:[%s1 + $0x1ec] sm:$0xf]
  %v283 = vld [vmem:[%s1 + $0x1f0] sm:$0xf]
  %v284 = vld [vmem:[%s1 + $0x1f4] sm:$0xf]
  %v285 = vld [vmem:[%s1 + $0x1f8] sm:$0xf]
  %v286 = vld [vmem:[%s1 + $0x1fc] sm:$0xf]
  %v287 = vld [vmem:[%s1 + $0x200] sm:$0xf]
  %v288 = vld [vmem:[%s1 + $0x204] sm:$0xf]
  %v289 = vld [vmem:[%s1 + $0x208] sm:$0xf]
  %v290 = vld [vmem:[%s1 + $0x20c] sm:$0xf]
  %v291 = vld [vmem:[%s1 + $0x210] sm:$0xf]
  %v292 = vld [vmem:[%s1 + $0x214] sm:$0xf]
  %v293 = vld [vmem:[%s1 + $0x218] sm:$0xf]
  %v294 = vld [vmem:[%s1 + $0x21c] sm:$0xf]
  %v295 = vld [vmem:[%s1 + $0x220] sm:$0xf]
  %v296 = vld [vmem:[%s1 + $0x224] sm:$0xf]
  %v297 = vld [vmem:[%s1 + $0x228] sm:$0xf]
  %v298 = vld [vmem:[%s1 + $0x22c] sm:$0xf]
  %v299 = vld [vmem:[%s1 + $0x230] sm:$0xf]
  %v300 = vld [vmem:[%s1 + $0x234] sm:$0xf]
  %v301 = vld [vmem:[%s1 + $0x238] sm:$0xf]
  %v302 = vld [vmem:[%s1 + $0x23c] sm:$0xf]
  %v303 = vld [vmem:[%s1 + $0x240] sm:$0xf]
  %v304 = vld [vmem:[%s1 + $0x244] sm:$0xf]
  %v305 = vld [vmem:[%s1 + $0x248] sm:$0xf]
  %v306 = vld [vmem:[%s1 + $0x24c] sm:$0xf]
  %v307 = vld [vmem:[%s1 + $0x250] sm:$0xf]
  %v308 = vld [vmem:[%s1 + $0x254] sm:$0xf]
  %v309 = vld [vmem:[%s1 + $0x258] sm:$0xf]
  %v310 = vld [vmem:[%s1 + $0x25c] sm:$0xf]
  %v311 = vld [vmem:[%s1 + $0x260] sm:$0xf]
  %v312 = vld [vmem:[%s1 + $0x264] sm:$0xf]
  %v313 = vld [vmem:[%s1 + $0x268] sm:$0xf]
  %v314 = vld [vmem:[%s1 + $0x26c] sm:$0xf]
  %v315 = vld [vmem:[%s1 + $0x270] sm:$0xf]
  %v316 = vld [vmem:[%s1 + $0x274] sm:$0xf]
  %v317 = vld [vmem:[%s1 + $0x278] sm:$0xf]
  %v318 = vld [vmem:[%s1 + $0x27c] sm:$0xf]
  %v319 = vld [vmem:[%s1 + $0x280] sm:$0xf]
  %v320 = vld [vmem:[%s1 + $0x284] sm:$0xf]
  %v321 = vld [vmem:[%s1 + $0x288] sm:$0xf]
  %v322 = vld [vmem:[%s1 + $0x28c] sm:$0xf]
  %v323 = vld [vmem:[%s1 + $0x290] sm:$0xf]
  %v324 = vld [vmem:[%s1 + $0x294] sm:$0xf]
  %v325 = vld [vmem:[%s1 + $0x298] sm:$0xf]
  %v326 = vld [vmem:[%s1 + $0x29c] sm:$0xf]
  %v327 = vld [vmem:[%s1 + $0x2a0] sm:$0xf]
  %v328 = vld [vmem:[%s1 + $0x2a4] sm:$0xf]
  %v329 = vld [vmem:[%s1 + $0x2a8] sm:$0xf]
  %v330 = vld [vmem:[%s1 + $0x2ac] sm:$0xf]
  %v331 = vld [vmem:[%s1 + $0x2b0] sm:$0xf]
  %v332 = vld [vmem:[%s1 + $0x2b4] sm:$0xf]
  %v333 = vld [vmem:[%s1 + $0x2b8] sm:$0xf]
  %v334 = vld [vmem:[%s1 + $0x2bc] sm:$0xf]
  %v335 = vld [vmem:[%s1 + $0x2c0] sm:$0xf]
  %v336 = vld [vmem:[%s1 + $0x2c4] sm:$0xf]
  %v337 = vld [vmem:[%s1 + $0x2c8] sm:$0xf]
  %v338 = vld [vmem:[%s1 + $0x2cc] sm:$0xf]
  %v339 = vld [vmem:[%s1 + $0x2d0] sm:$0xf]
  %v340 = vld [vmem:[%s1 + $0x2d4] sm:$0xf]
  %v341 = vld [vmem:[%s1 + $0x2d8] sm:$0xf]
  %v342 = vld [vmem:[%s1 + $0x2dc] sm:$0xf]
  %v343 = vld [vmem:[%s1 + $0x2e0] sm:$0xf]
  %v344 = vld [vmem:[%s1 + $0x2e4] sm:$0xf]
  %v345 = vld [vmem:[%s1 + $0x2e8] sm:$0xf]
  %v346 = vld [vmem:[%s1 + $0x2ec] sm:$0xf]
  %v347 = vld [vmem:[%s1 + $0x2f0] sm:$0xf]
  %v348 = vld [vmem:[%s1 + $0x2f4] sm:$0xf]
  %v349 = vld [vmem:[%s1 + $0x2f8] sm:$0xf]
  %v350 = vld [vmem:[%s1 + $0x2fc] sm:$0xf]
  %v351 = vld [vmem:[%s1 + $0x300] sm:$0xf]
  %v352 = vld [vmem:[%s1 + $0x304] sm:$0xf]
  %v353 = vld [vmem:[%s1 + $0x308] sm:$0xf]
  %v354 = vld [vmem:[%s1 + $0x30c] sm:$0xf]
  %v355 = vld [vmem:[%s1 + $0x310] sm:$0xf]
  %v356 = vld [vmem:[%s1 + $0x314] sm:$0xf]
  %v357 = vld [vmem:[%s1 + $0x318] sm:$0xf]
  %v358 = vld [vmem:[%s1 + $0x31c] sm:$0xf]
  %v359 = vld [vmem:[%s1 + $0x320] sm:$0xf]
  %v360 = vld [vmem:[%s1 + $0x324] sm:$0xf]
  %v361 = vld [vmem:[%s1 + $0x328] sm:$0xf]
  %v362 = vld [vmem:[%s1 + $0x32c] sm:$0xf]
  %v363 = vld [vmem:[%s1 + $0x330] sm:$0xf]
  %v364 = vld [vmem:[%s1 + $0x334] sm:$0xf]
  %v365 = vld [vmem:[%s1 + $0x338] sm:$0xf]
  %v366 = vld [vmem:[%s1 + $0x33c] sm:$0xf]
  %v367 = vld [vmem:[%s1 + $0x340] sm:$0xf]
  %v368 = vld [vmem:[%s1 + $0x344] sm:$0xf]
  %v369 = vld [vmem:[%s1 + $0x348] sm:$0xf]
  %v370 = vld [vmem:[%s1 + $0x34c] sm:$0xf]
  %v371 = vld [vmem:[%s1 + $0x350] sm:$0xf]
  %v372 = vld [vmem:[%s1 + $0x354] sm:$0xf]
  %v373 = vld [vmem:[%s1 + $0x358] sm:$0xf]
  %v374 = vld [vmem:[%s1 + $0x35c] sm:$0xf]
  %v375 = vld [vmem:[%s1 + $0x360] sm:$0xf]
  %v376 = vld [vmem:[%s1 + $0x364] sm:$0xf]
  %v377 = vld [vmem:[%s1 + $0x368] sm:$0xf]
  %v378 = vld [vmem:[%s1 + $0x36c] sm:$0xf]
  %v379 = vld [vmem:[%s1 + $0x370] sm:$0xf]
  %v380 = vld [vmem:[%s1 + $0x374] sm:$0xf]
  %v381 = vld [vmem:[%s1 + $0x378] sm:$0xf]
  %v382 = vld [vmem:[%s1 + $0x37c] sm:$0xf]
  %v383 = vld [vmem:[%s1 + $0x380] sm:$0xf]
  %v384 = vld [vmem:[%s1 + $0x384] sm:$0xf]
  %v385 = vld [vmem:[%s1 + $0x388] sm:$0xf]
  %v386 = vld [vmem:[%s1 + $0x38c] sm:$0xf]
  %v387 = vld [vmem:[%s1 + $0x390] sm:$0xf]
  %v388 = vld [vmem:[%s1 + $0x394] sm:$0xf]
  %v389 = vld [vmem:[%s1 + $0x398] sm:$0xf]
  %v390 = vld [vmem:[%s1 + $0x39c] sm:$0xf]
  %v391 = vld [vmem:[%s1 + $0x3a0] sm:$0xf]
  %v392 = vld [vmem:[%s1 + $0x3a4] sm:$0xf]
  %v393 = vld [vmem:[%s1 + $0x3a8] sm:$0xf]
  %v394 = vld [vmem:[%s1 + $0x3ac] sm:$0xf]
  %v395 = vld [vmem:[%s1 + $0x3b0] sm:$0xf]
  %v396 = vld [vmem:[%s1 + $0x3b4] sm:$0xf]
  %v397 = vld [vmem:[%s1 + $0x3b8] sm:$0xf]
  %v398 = vld [vmem:[%s1 + $0x3bc] sm:$0xf]
  %v399 = vld [vmem:[%s1 + $0x3c0] sm:$0xf]
  %v400 = vld [vmem:[%s1 + $0x3c4] sm:$0xf]
  %v401 = vld [vmem:[%s1 + $0x3c8] sm:$0xf]
  %v402 = vld [vmem:[%s1 + $0x3cc] sm:$0xf]
  %v403 = vld [vmem:[%s1 + $0x3d0] sm:$0xf]
  %v404 = vld [vmem:[%s1 + $0x3d4] sm:$0xf]
  %v405 = vld [vmem:[%s1 + $0x3d8] sm:$0xf]
  %v406 = vld [vmem:[%s1 + $0x3dc] sm:$0xf]
  %v407 = vld [vmem:[%s1 + $0x3e0] sm:$0xf]
  %v408 = vld [vmem:[%s1 + $0x3e4] sm:$0xf]
  %v409 = vld [vmem:[%s1 + $0x3e8] sm:$0xf]
  %v410 = vld [vmem:[%s1 + $0x3ec] sm:$0xf]
  %v411 = vld [vmem:[%s1 + $0x3f0] sm:$0xf]
  %v412 = vld [vmem:[%s1 + $0x3f4] sm:$0xf]
  %v413 = vld [vmem:[%s1 + $0x3f8] sm:$0xf]
  %v414 = vld [vmem:[%s1 + $0x3fc] sm:$0xf]
  %v415 = vld [vmem:[%s1 + $0x400] sm:$0xf]
  %v416 = vld [vmem:[%s1 + $0x404] sm:$0xf]
  %v417 = vld [vmem:[%s1 + $0x408] sm:$0xf]
  %v418 = vld [vmem:[%s1 + $0x40c] sm:$0xf]
  %v419 = vld [vmem:[%s1 + $0x410] sm:$0xf]
  %v420 = vld [vmem:[%s1 + $0x414] sm:$0xf]
  %v421 = vld [vmem:[%s1 + $0x418] sm:$0xf]
  %v422 = vld [vmem:[%s1 + $0x41c] sm:$0xf]
  %v423 = vld [vmem:[%s1 + $0x420] sm:$0xf]
  %v424 = vld [vmem:[%s1 + $0x424] sm:$0xf]
  %v425 = vld [vmem:[%s1 + $0x428] sm:$0xf]
  %v426 = vld [vmem:[%s1 + $0x42c] sm:$0xf]
  %v427 = vld [vmem:[%s1 + $0x430] sm:$0xf]
  %v428 = vld [vmem:[%s1 + $0x434] sm:$0xf]
  %v429 = vld [vmem:[%s1 + $0x438] sm:$0xf]
  %v430 = vld [vmem:[%s1 + $0x43c] sm:$0xf]
  %v431 = vld [vmem:[%s1 + $0x440] sm:$0xf]
  %v432 = vld [vmem:[%s1 + $0x444] sm:$0xf]
  %v433 = vld [vmem:[%s1 + $0x448] sm:$0xf]
  %v434 = vld [vmem:[%s1 + $0x44c] sm:$0xf]
  %v435 = vld [vmem:[%s1 + $0x450] sm:$0xf]
  %v436 = vld [vmem:[%s1 + $0x454] sm:$0xf]
  %v437 = vld [vmem:[%s1 + $0x458] sm:$0xf]
  %v438 = vld [vmem:[%s1 + $0x45c] sm:$0xf]
  %v439 = vld [vmem:[%s1 + $0x460] sm:$0xf]
  %v440 = vld [vmem:[%s1 + $0x464] sm:$0xf]
  %v441 = vld [vmem:[%s1 + $0x468] sm:$0xf]
  %v442 = vld [vmem:[%s1 + $0x46c] sm:$0xf]
  %v443 = vld [vmem:[%s1 + $0x470] sm:$0xf]
  %v444 = vld [vmem:[%s1 + $0x474] sm:$0xf]
  %v445 = vld [vmem:[%s1 + $0x478] sm:$0xf]
  %v446 = vld [vmem:[%s1 + $0x47c] sm:$0xf]
  %v447 = vld [vmem:[%s1 + $0x480] sm:$0xf]
  %v448 = vld [vmem:[%s1 + $0x484] sm:$0xf]
  %v449 = vld [vmem:[%s1 + $0x488] sm:$0xf]
  %v450 = vld [vmem:[%s1 + $0x48c] sm:$0xf]
  %v451 = vld [vmem:[%s1 + $0x490] sm:$0xf]
  %v452 = vld [vmem:[%s1 + $0x494] sm:$0xf]
  %v453 = vld [vmem:[%s1 + $0x498] sm:$0xf]
  %v454 = vld [vmem:[%s1 + $0x49c] sm:$0xf]
  %v455 = vld [vmem:[%s1 + $0x4a0] sm:$0xf]
  %v456 = vld [vmem:[%s1 + $0x4a4] sm:$0xf]
  %v457 = vld [vmem:[%s1 + $0x4a8] sm:$0xf]
  %v458 = vld [vmem:[%s1 + $0x4ac] sm:$0xf]
  %v459 = vld [vmem:[%s1 + $0x4b0] sm:$0xf]
  %v460 = vld [vmem:[%s1 + $0x4b4] sm:$0xf]
  %v461 = vld [vmem:[%s1 + $0x4b8] sm:$0xf]
  %v462 = vld [vmem:[%s1 + $0x4bc] sm:$0xf]
  %v463 = vld [vmem:[%s1 + $0x4c0] sm:$0xf]
  %v464 = vld [vmem:[%s1 + $0x4c4] sm:$0xf]
  %v465 = vld [vmem:[%s1 + $0x4c8] sm:$0xf]
  %v466 = vld [vmem:[%s1 + $0x4cc] sm:$0xf]
  %v467 = vld [vmem:[%s1 + $0x4d0] sm:$0xf]
  %v468 = vld [vmem:[%s1 + $0x4d4] sm:$0xf]
  %v469 = vld [vmem:[%s1 + $0x4d8] sm:$0xf]
  %v470 = vld [vmem:[%s1 + $0x4dc] sm:$0xf]
  %v471 = vld [vmem:[%s1 + $0x4e0] sm:$0xf]
  %v472 = vld [vmem:[%s1 + $0x4e4] sm:$0xf]
  %v473 = vld [vmem:[%s1 + $0x4e8] sm:$0xf]
  %v474 = vld [vmem:[%s1 + $0x4ec] sm:$0xf]
  %v475 = vld [vmem:[%s1 + $0x4f0] sm:$0xf]
  %v476 = vld [vmem:[%s1 + $0x4f4] sm:$0xf]
  %v477 = vld [vmem:[%s1 + $0x4f8] sm:$0xf]
  %v478 = vld [vmem:[%s1 + $0x4fc] sm:$0xf]
  %v479 = vld [vmem:[%s1 + $0x500] sm:$0xf]
  %v480 = vld [vmem:[%s1 + $0x504] sm:$0xf]
  %v481 = vld [vmem:[%s1 + $0x508] sm:$0xf]
  %v482 = vld [vmem:[%s1 + $0x50c] sm:$0xf]
  %v483 = vld [vmem:[%s1 + $0x510] sm:$0xf]
  %v484 = vld [vmem:[%s1 + $0x514] sm:$0xf]
  %v485 = vld [vmem:[%s1 + $0x518] sm:$0xf]
  %v486 = vld [vmem:[%s1 + $0x51c] sm:$0xf]
  %v487 = vld [vmem:[%s1 + $0x520] sm:$0xf]
  %v488 = vld [vmem:[%s1 + $0x524] sm:$0xf]
  %v489 = vld [vmem:[%s1 + $0x528] sm:$0xf]
  %v490 = vld [vmem:[%s1 + $0x52c] sm:$0xf]
  %v491 = vld [vmem:[%s1 + $0x530] sm:$0xf]
  %v492 = vld [vmem:[%s1 + $0x534] sm:$0xf]
  %v493 = vld [vmem:[%s1 + $0x538] sm:$0xf]
  %v494 = vld [vmem:[%s1 + $0x53c] sm:$0xf]
  %v495 = vld [vmem:[%s1 + $0x540] sm:$0xf]
  %v496 = vld [vmem:[%s1 + $0x544] sm:$0xf]
  %v497 = vld [vmem:[%s1 + $0x548] sm:$0xf]
  %v498 = vld [vmem:[%s1 + $0x54c] sm:$0xf]
  %v499 = vld [vmem:[%s1 + $0x550] sm:$0xf]
  %v500 = vld [vmem:[%s1 + $0x554] sm:$0xf]
  %v501 = vld [vmem:[%s1 + $0x558] sm:$0xf]
  %v502 = vld [vmem:[%s1 + $0x55c] sm:$0xf]
  %v503 = vld [vmem:[%s1 + $0x560] sm:$0xf]
  %v504 = vld [vmem:[%s1 + $0x564] sm:$0xf]
  %v505 = vld [vmem:[%s1 + $0x568] sm:$0xf]
  %v506 = vld [vmem:[%s1 + $0x56c] sm:$0xf]
  %v507 = vld [vmem:[%s1 + $0x570] sm:$0xf]
  %v508 = vld [vmem:[%s1 + $0x574] sm:$0xf]
  %v509 = vld [vmem:[%s1 + $0x578] sm:$0xf]
  %v510 = vld [vmem:[%s1 + $0x57c] sm:$0xf]
  %v511 = vld [vmem:[%s1 + $0x580] sm:$0xf]
  %v512 = vld [vmem:[%s1 + $0x584] sm:$0xf]
  %v513 = vld [vmem:[%s1 + $0x588] sm:$0xf]
  %v514 = vld [vmem:[%s1 + $0x58c] sm:$0xf]
  %v515 = vld [vmem:[%s1 + $0x590] sm:$0xf]
  %v516 = vld [vmem:[%s1 + $0x594] sm:$0xf]
  %v517 = vld [vmem:[%s1 + $0x598] sm:$0xf]
  %v518 = vld [vmem:[%s1 + $0x59c] sm:$0xf]
  %v519 = vld [vmem:[%s1 + $0x5a0] sm:$0xf]
  %v520 = vld [vmem:[%s1 + $0x5a4] sm:$0xf]
  %v521 = vld [vmem:[%s1 + $0x5a8] sm:$0xf]
  %v522 = vld [vmem:[%s1 + $0x5ac] sm:$0xf]
  %v523 = vld [vmem:[%s1 + $0x5b0] sm:$0xf]
  %v524 = vld [vmem:[%s1 + $0x5b4] sm:$0xf]
  %v525 = vld [vmem:[%s1 + $0x5b8] sm:$0xf]
  %v526 = vld [vmem:[%s1 + $0x5bc] sm:$0xf]
  %v527 = vld [vmem:[%s1 + $0x5c0] sm:$0xf]
  %v528 = vld [vmem:[%s1 + $0x5c4] sm:$0xf]
  %v529 = vld [vmem:[%s1 + $0x5c8] sm:$0xf]
  %v530 = vld [vmem:[%s1 + $0x5cc] sm:$0xf]
  %v531 = vld [vmem:[%s1 + $0x5d0] sm:$0xf]
  %v532 = vld [vmem:[%s1 + $0x5d4] sm:$0xf]
  %v533 = vld [vmem:[%s1 + $0x5d8] sm:$0xf]
  %v534 = vld [vmem:[%s1 + $0x5dc] sm:$0xf]
  %v535 = vld [vmem:[%s1 + $0x5e0] sm:$0xf]
  %v536 = vld [vmem:[%s1 + $0x5e4] sm:$0xf]
  %v537 = vld [vmem:[%s1 + $0x5e8] sm:$0xf]
  %v538 = vld [vmem:[%s1 + $0x5ec] sm:$0xf]
  %v539 = vld [vmem:[%s1 + $0x5f0] sm:$0xf]
  %v540 = vld [vmem:[%s1 + $0x5f4] sm:$0xf]
  %v541 = vld [vmem:[%s1 + $0x5f8] sm:$0xf]
  %v542 = vld [vmem:[%s1 + $0x5fc] sm:$0xf]
  %v543 = vld [vmem:[%s1 + $0x600] sm:$0xf]
  %v544 = vld [vmem:[%s1 + $0x604] sm:$0xf]
  %v545 = vld [vmem:[%s1 + $0x608] sm:$0xf]
  %v546 = vld [vmem:[%s1 + $0x60c] sm:$0xf]
  %v547 = vld [vmem:[%s1 + $0x610] sm:$0xf]
  %v548 = vld [vmem:[%s1 + $0x614] sm:$0xf]
  %v549 = vld [vmem:[%s1 + $0x618] sm:$0xf]
  %v550 = vld [vmem:[%s1 + $0x61c] sm:$0xf]
  %v551 = vld [vmem:[%s1 + $0x620] sm:$0xf]
  %v552 = vld [vmem:[%s1 + $0x624] sm:$0xf]
  %v553 = vld [vmem:[%s1 + $0x628] sm:$0xf]
  %v554 = vld [vmem:[%s1 + $0x62c] sm:$0xf]
  %v555 = vld [vmem:[%s1 + $0x630] sm:$0xf]
  %v556 = vld [vmem:[%s1 + $0x634] sm:$0xf]
  %v557 = vld [vmem:[%s1 + $0x638] sm:$0xf]
  %v558 = vld [vmem:[%s1 + $0x63c] sm:$0xf]
  %v559 = vld [vmem:[%s1 + $0x640] sm:$0xf]
  %v560 = vld [vmem:[%s1 + $0x644] sm:$0xf]
  %v561 = vld [vmem:[%s1 + $0x648] sm:$0xf]
  %v562 = vld [vmem:[%s1 + $0x64c] sm:$0xf]
  %v563 = vld [vmem:[%s1 + $0x650] sm:$0xf]
  %v564 = vld [vmem:[%s1 + $0x654] sm:$0xf]
  %v565 = vld [vmem:[%s1 + $0x658] sm:$0xf]
  %v566 = vld [vmem:[%s1 + $0x65c] sm:$0xf]
  %v567 = vld [vmem:[%s1 + $0x660] sm:$0xf]
  %v568 = vld [vmem:[%s1 + $0x664] sm:$0xf]
  %v569 = vld [vmem:[%s1 + $0x668] sm:$0xf]
  %v570 = vld [vmem:[%s1 + $0x66c] sm:$0xf]
  %v571 = vld [vmem:[%s1 + $0x670] sm:$0xf]
  %v572 = vld [vmem:[%s1 + $0x674] sm:$0xf]
  %v573 = vld [vmem:[%s1 + $0x678] sm:$0xf]
  %v574 = vld [vmem:[%s1 + $0x67c] sm:$0xf]
  %v575 = vld [vmem:[%s1 + $0x680] sm:$0xf]
  %v576 = vld [vmem:[%s1 + $0x684] sm:$0xf]
  %v577 = vld [vmem:[%s1 + $0x688] sm:$0xf]
  %v578 = vld [vmem:[%s1 + $0x68c] sm:$0xf]
  %v579 = vld [vmem:[%s1 + $0x690] sm:$0xf]
  %v580 = vld [vmem:[%s1 + $0x694] sm:$0xf]
  %v581 = vld [vmem:[%s1 + $0x698] sm:$0xf]
  %v582 = vld [vmem:[%s1 + $0x69c] sm:$0xf]
  %v583 = vld [vmem:[%s1 + $0x6a0] sm:$0xf]
  %v584 = vld [vmem:[%s1 + $0x6a4] sm:$0xf]
  %v585 = vld [vmem:[%s1 + $0x6a8] sm:$0xf]
  %v586 = vld [vmem:[%s1 + $0x6ac] sm:$0xf]
  %v587 = vld [vmem:[%s1 + $0x6b0] sm:$0xf]
  %v588 = vld [vmem:[%s1 + $0x6b4] sm:$0xf]
  %v589 = vld [vmem:[%s1 + $0x6b8] sm:$0xf]
  %v590 = vld [vmem:[%s1 + $0x6bc] sm:$0xf]
  %v591 = vld [vmem:[%s1 + $0x6c0] sm:$0xf]
  %v592 = vld [vmem:[%s1 + $0x6c4] sm:$0xf]
  %v593 = vld [vmem:[%s1 + $0x6c8] sm:$0xf]
  %v594 = vld [vmem:[%s1 + $0x6cc] sm:$0xf]
  %v595 = vld [vmem:[%s1 + $0x6d0] sm:$0xf]
  %v596 = vld [vmem:[%s1 + $0x6d4] sm:$0xf]
  %v597 = vld [vmem:[%s1 + $0x6d8] sm:$0xf]
  %v598 = vld [vmem:[%s1 + $0x6dc] sm:$0xf]
  %v599 = vld [vmem:[%s1 + $0x6e0] sm:$0xf]
  %v600 = vld [vmem:[%s1 + $0x6e4] sm:$0xf]
  %v601 = vld [vmem:[%s1 + $0x6e8] sm:$0xf]
  %v602 = vld [vmem:[%s1 + $0x6ec] sm:$0xf]
  %v603 = vld [vmem:[%s1 + $0x6f0] sm:$0xf]
  %v604 = vld [vmem:[%s1 + $0x6f4] sm:$0xf]
  %v605 = vld [vmem:[%s1 + $0x6f8] sm:$0xf]
  %v606 = vld [vmem:[%s1 + $0x6fc] sm:$0xf]
  %v607 = vld [vmem:[%s1 + $0x700] sm:$0xf]
  %v608 = vld [vmem:[%s1 + $0x704] sm:$0xf]
  %v609 = vld [vmem:[%s1 + $0x708] sm:$0xf]
  %v610 = vld [vmem:[%s1 + $0x70c] sm:$0xf]
  %v611 = vld [vmem:[%s1 + $0x710] sm:$0xf]
  %v612 = vld [vmem:[%s1 + $0x714] sm:$0xf]
  %v613 = vld [vmem:[%s1 + $0x718] sm:$0xf]
  %v614 = vld [vmem:[%s1 + $0x71c] sm:$0xf]
  %v615 = vld [vmem:[%s1 + $0x720] sm:$0xf]
  %v616 = vld [vmem:[%s1 + $0x724] sm:$0xf]
  %v617 = vld [vmem:[%s1 + $0x728] sm:$0xf]
  %v618 = vld [vmem:[%s1 + $0x72c] sm:$0xf]
  %v619 = vld [vmem:[%s1 + $0x730] sm:$0xf]
  %v620 = vld [vmem:[%s1 + $0x734] sm:$0xf]
  %v621 = vld [vmem:[%s1 + $0x738] sm:$0xf]
  %v622 = vld [vmem:[%s1 + $0x73c] sm:$0xf]
  %v623 = vld [vmem:[%s1 + $0x740] sm:$0xf]
  %v624 = vld [vmem:[%s1 + $0x744] sm:$0xf]
  %v625 = vld [vmem:[%s1 + $0x748] sm:$0xf]
  %v626 = vld [vmem:[%s1 + $0x74c] sm:$0xf]
  %v627 = vld [vmem:[%s1 + $0x750] sm:$0xf]
  %v628 = vld [vmem:[%s1 + $0x754] sm:$0xf]
  %v629 = vld [vmem:[%s1 + $0x758] sm:$0xf]
  %v630 = vld [vmem:[%s1 + $0x75c] sm:$0xf]
  %v631 = vld [vmem:[%s1 + $0x760] sm:$0xf]
  %v632 = vld [vmem:[%s1 + $0x764] sm:$0xf]
  %v633 = vld [vmem:[%s1 + $0x768] sm:$0xf]
  %v634 = vld [vmem:[%s1 + $0x76c] sm:$0xf]
  %v635 = vld [vmem:[%s1 + $0x770] sm:$0xf]
  %v636 = vld [vmem:[%s1 + $0x774] sm:$0xf]
  %v637 = vld [vmem:[%s1 + $0x778] sm:$0xf]
  %v638 = vld [vmem:[%s1 + $0x77c] sm:$0xf]
  %v639 = vld [vmem:[%s1 + $0x780] sm:$0xf]
  %v640 = vld [vmem:[%s1 + $0x784] sm:$0xf]
  %v641 = vld [vmem:[%s1 + $0x788] sm:$0xf]
  %v642 = vld [vmem:[%s1 + $0x78c] sm:$0xf]
  %v643 = vld [vmem:[%s1 + $0x790] sm:$0xf]
  %v644 = vld [vmem:[%s1 + $0x794] sm:$0xf]
  %v645 = vld [vmem:[%s1 + $0x798] sm:$0xf]
  %v646 = vld [vmem:[%s1 + $0x79c] sm:$0xf]
  %v647 = vld [vmem:[%s1 + $0x7a0] sm:$0xf]
  %v648 = vld [vmem:[%s1 + $0x7a4] sm:$0xf]
  %v649 = vld [vmem:[%s1 + $0x7a8] sm:$0xf]
  %v650 = vld [vmem:[%s1 + $0x7ac] sm:$0xf]
  %v651 = vld [vmem:[%s1 + $0x7b0] sm:$0xf]
  %v652 = vld [vmem:[%s1 + $0x7b4] sm:$0xf]
  %v653 = vld [vmem:[%s1 + $0x7b8] sm:$0xf]
  %v654 = vld [vmem:[%s1 + $0x7bc] sm:$0xf]
  %v655 = vld [vmem:[%s1 + $0x7c0] sm:$0xf]
  %v656 = vld [vmem:[%s1 + $0x7c4] sm:$0xf]
  %v657 = vld [vmem:[%s1 + $0x7c8] sm:$0xf]
  %v658 = vld [vmem:[%s1 + $0x7cc] sm:$0xf]
  %v659 = vld [vmem:[%s1 + $0x7d0] sm:$0xf]
  %v660 = vld [vmem:[%s1 + $0x7d4] sm:$0xf]
  %v661 = vld [vmem:[%s1 + $0x7d8] sm:$0xf]
  %v662 = vld [vmem:[%s1 + $0x7dc] sm:$0xf]
  %v663 = vld [vmem:[%s1 + $0x7e0] sm:$0xf]
  %v664 = vld [vmem:[%s1 + $0x7e4] sm:$0xf]
  %v665 = vld [vmem:[%s1 + $0x7e8] sm:$0xf]
  %v666 = vld [vmem:[%s1 + $0x7ec] sm:$0xf]
  %v667 = vld [vmem:[%s1 + $0x7f0] sm:$0xf]
  %v668 = vld [vmem:[%s1 + $0x7f4] sm:$0xf]
  %v669 = vld [vmem:[%s1 + $0x7f8] sm:$0xf]
  %v670 = vld [vmem:[%s1 + $0x7fc] sm:$0xf]
  %v671 = vld [vmem:[%s1 + $0x800] sm:$0xf]
  %v672 = vld [vmem:[%s1 + $0x804] sm:$0xf]
  %v673 = vld [vmem:[%s1 + $0x808] sm:$0xf]
  %v674 = vld [vmem:[%s1 + $0x80c] sm:$0xf]
  %v675 = vld [vmem:[%s1 + $0x810] sm:$0xf]
  %v676 = vld [vmem:[%s1 + $0x814] sm:$0xf]
  %v677 = vld [vmem:[%s1 + $0x818] sm:$0xf]
  %v678 = vld [vmem:[%s1 + $0x81c] sm:$0xf]
  %v679 = vld [vmem:[%s1 + $0x820] sm:$0xf]
  %v680 = vld [vmem:[%s1 + $0x824] sm:$0xf]
  %v681 = vld [vmem:[%s1 + $0x828] sm:$0xf]
  %v682 = vld [vmem:[%s1 + $0x82c] sm:$0xf]
  %v683 = vld [vmem:[%s1 + $0x830] sm:$0xf]
  %v684 = vld [vmem:[%s1 + $0x834] sm:$0xf]
  %v685 = vld [vmem:[%s1 + $0x838] sm:$0xf]
  %v686 = vld [vmem:[%s1 + $0x83c] sm:$0xf]
  %v687 = vld [vmem:[%s1 + $0x840] sm:$0xf]
  %v688 = vld [vmem:[%s1 + $0x844] sm:$0xf]
  %v689 = vld [vmem:[%s1 + $0x848] sm:$0xf]
  %v690 = vld [vmem:[%s1 + $0x84c] sm:$0xf]
  %v691 = vld [vmem:[%s1 + $0x850] sm:$0xf]
  %v692 = vld [vmem:[%s1 + $0x854] sm:$0xf]
  %v693 = vld [vmem:[%s1 + $0x858] sm:$0xf]
  %v694 = vld [vmem:[%s1 + $0x85c] sm:$0xf]
  %v695 = vld [vmem:[%s1 + $0x860] sm:$0xf]
  %v696 = vld [vmem:[%s1 + $0x864] sm:$0xf]
  %v697 = vld [vmem:[%s1 + $0x868] sm:$0xf]
  %v698 = vld [vmem:[%s1 + $0x86c] sm:$0xf]
  %v699 = vld [vmem:[%s1 + $0x870] sm:$0xf]
  %v700 = vld [vmem:[%s1 + $0x874] sm:$0xf]
  %v701 = vld [vmem:[%s1 + $0x878] sm:$0xf]
  %v702 = vld [vmem:[%s1 + $0x87c] sm:$0xf]
  %v703 = vld [vmem:[%s1 + $0x880] sm:$0xf]
  %v704 = vld [vmem:[%s1 + $0x884] sm:$0xf]
  %v705 = vld [vmem:[%s1 + $0x888] sm:$0xf]
  %v706 = vld [vmem:[%s1 + $0x88c] sm:$0xf]
  %v707 = vld [vmem:[%s1 + $0x890] sm:$0xf]
  %v708 = vld [vmem:[%s1 + $0x894] sm:$0xf]
  %v709 = vld [vmem:[%s1 + $0x898] sm:$0xf]
  %v710 = vld [vmem:[%s1 + $0x89c] sm:$0xf]
  %v711 = vld [vmem:[%s1 + $0x8a0] sm:$0xf]
  %v712 = vld [vmem:[%s1 + $0x8a4] sm:$0xf]
  %v713 = vld [vmem:[%s1 + $0x8a8] sm:$0xf]
  %v714 = vld [vmem:[%s1 + $0x8ac] sm:$0xf]
  %v715 = vld [vmem:[%s1 + $0x8b0] sm:$0xf]
  %v716 = vld [vmem:[%s1 + $0x8b4] sm:$0xf]
  %v717 = vld [vmem:[%s1 + $0x8b8] sm:$0xf]
  %v718 = vld [vmem:[%s1 + $0x8bc] sm:$0xf]
  %v719 = vld [vmem:[%s1 + $0x8c0] sm:$0xf]
  %v720 = vld [vmem:[%s1 + $0x8c4] sm:$0xf]
  %v721 = vld [vmem:[%s1 + $0x8c8] sm:$0xf]
  %v722 = vld [vmem:[%s1 + $0x8cc] sm:$0xf]
  %v723 = vld [vmem:[%s1 + $0x8d0] sm:$0xf]
  %v724 = vld [vmem:[%s1 + $0x8d4] sm:$0xf]
  %v725 = vld [vmem:[%s1 + $0x8d8] sm:$0xf]
  %v726 = vld [vmem:[%s1 + $0x8dc] sm:$0xf]
  %v727 = vld [vmem:[%s1 + $0x8e0] sm:$0xf]
  %v728 = vld [vmem:[%s1 + $0x8e4] sm:$0xf]
  %v729 = vld [vmem:[%s1 + $0x8e8] sm:$0xf]
  %v730 = vld [vmem:[%s1 + $0x8ec] sm:$0xf]
  %v731 = vld [vmem:[%s1 + $0x8f0] sm:$0xf]
  %v732 = vld [vmem:[%s1 + $0x8f4] sm:$0xf]
  %v733 = vld [vmem:[%s1 + $0x8f8] sm:$0xf]
  %v734 = vld [vmem:[%s1 + $0x8fc] sm:$0xf]
  %v735 = vld [vmem:[%s1 + $0x900] sm:$0xf]
  %v736 = vld [vmem:[%s1 + $0x904] sm:$0xf]
  %v737 = vld [vmem:[%s1 + $0x908] sm:$0xf]
  %v738 = vld [vmem:[%s1 + $0x90c] sm:$0xf]
  %v739 = vld [vmem:[%s1 + $0x910] sm:$0xf]
  %v740 = vld [vmem:[%s1 + $0x914] sm:$0xf]
  %v741 = vld [vmem:[%s1 + $0x918] sm:$0xf]
  %v742 = vld [vmem:[%s1 + $0x91c] sm:$0xf]
  %v743 = vld [vmem:[%s1 + $0x920] sm:$0xf]
  %v744 = vld [vmem:[%s1 + $0x924] sm:$0xf]
  %v745 = vld [vmem:[%s1 + $0x928] sm:$0xf]
  %v746 = vld [vmem:[%s1 + $0x92c] sm:$0xf]
  %v747 = vld [vmem:[%s1 + $0x930] sm:$0xf]
  %v748 = vld [vmem:[%s1 + $0x934] sm:$0xf]
  %v749 = vld [vmem:[%s1 + $0x938] sm:$0xf]
  %v750 = vld [vmem:[%s1 + $0x93c] sm:$0xf]
  %v751 = vld [vmem:[%s1 + $0x940] sm:$0xf]
  %v752 = vld [vmem:[%s1 + $0x944] sm:$0xf]
  %v753 = vld [vmem:[%s1 + $0x948] sm:$0xf]
  %v754 = vld [vmem:[%s1 + $0x94c] sm:$0xf]
  %v755 = vld [vmem:[%s1 + $0x950] sm:$0xf]
  %v756 = vld [vmem:[%s1 + $0x954] sm:$0xf]
  %v757 = vld [vmem:[%s1 + $0x958] sm:$0xf]
  %v758 = vld [vmem:[%s1 + $0x95c] sm:$0xf]
  %v759 = vld [vmem:[%s1 + $0x960] sm:$0xf]
  %v760 = vld [vmem:[%s1 + $0x964] sm:$0xf]
  %v761 = vld [vmem:[%s1 + $0x968] sm:$0xf]
  %v762 = vld [vmem:[%s1 + $0x96c] sm:$0xf]
  %v763 = vld [vmem:[%s1 + $0x970] sm:$0xf]
  %v764 = vld [vmem:[%s1 + $0x974] sm:$0xf]
  %v765 = vld [vmem:[%s1 + $0x978] sm:$0xf]
  %v766 = vld [vmem:[%s1 + $0x97c] sm:$0xf]
  %v767 = vld [vmem:[%s1 + $0x980] sm:$0xf]
  %v768 = vld [vmem:[%s1 + $0x984] sm:$0xf]
  %v769 = vld [vmem:[%s1 + $0x988] sm:$0xf]
  %v770 = vld [vmem:[%s1 + $0x98c] sm:$0xf]
  %v771 = vld [vmem:[%s1 + $0x990] sm:$0xf]
  %v772 = vld [vmem:[%s1 + $0x994] sm:$0xf]
  %v773 = vld [vmem:[%s1 + $0x998] sm:$0xf]
  %v774 = vld [vmem:[%s1 + $0x99c] sm:$0xf]
  %v775 = vld [vmem:[%s1 + $0x9a0] sm:$0xf]
  %v776 = vld [vmem:[%s1 + $0x9a4] sm:$0xf]
  %v777 = vld [vmem:[%s1 + $0x9a8] sm:$0xf]
  %v778 = vld [vmem:[%s1 + $0x9ac] sm:$0xf]
  %v779 = vld [vmem:[%s1 + $0x9b0] sm:$0xf]
  %v780 = vld [vmem:[%s1 + $0x9b4] sm:$0xf]
  %v781 = vld [vmem:[%s1 + $0x9b8] sm:$0xf]
  %v782 = vld [vmem:[%s1 + $0x9bc] sm:$0xf]
  %v783 = vld [vmem:[%s1 + $0x9c0] sm:$0xf]
  %v784 = vld [vmem:[%s1 + $0x9c4] sm:$0xf]
  %v785 = vld [vmem:[%s1 + $0x9c8] sm:$0xf]
  %v786 = vld [vmem:[%s1 + $0x9cc] sm:$0xf]
  %v787 = vld [vmem:[%s1 + $0x9d0] sm:$0xf]
  %v788 = vld [vmem:[%s1 + $0x9d4] sm:$0xf]
  %v789 = vld [vmem:[%s1 + $0x9d8] sm:$0xf]
  %v790 = vld [vmem:[%s1 + $0x9dc] sm:$0xf]
  %v791 = vld [vmem:[%s1 + $0x9e0] sm:$0xf]
  %v792 = vld [vmem:[%s1 + $0x9e4] sm:$0xf]
  %v793 = vld [vmem:[%s1 + $0x9e8] sm:$0xf]
  %v794 = vld [vmem:[%s1 + $0x9ec] sm:$0xf]
  %v795 = vld [vmem:[%s1 + $0x9f0] sm:$0xf]
  %v796 = vld [vmem:[%s1 + $0x9f4] sm:$0xf]
  %v797 = vld [vmem:[%s1 + $0x9f8] sm:$0xf]
  %v798 = vld [vmem:[%s1 + $0x9fc] sm:$0xf]
  %v799 = vld [vmem:[%s1 + $0xa00] sm:$0xf]
  %v800 = vld [vmem:[%s1 + $0xa04] sm:$0xf]
  %v801 = vld [vmem:[%s1 + $0xa08] sm:$0xf]
  %v802 = vld [vmem:[%s1 + $0xa0c] sm:$0xf]
  %v803 = vld [vmem:[%s1 + $0xa10] sm:$0xf]
  %v804 = vld [vmem:[%s1 + $0xa14] sm:$0xf]
  %v805 = vld [vmem:[%s1 + $0xa18] sm:$0xf]
  %v806 = vld [vmem:[%s1 + $0xa1c] sm:$0xf]
  %v807 = vld [vmem:[%s1 + $0xa20] sm:$0xf]
  %v808 = vld [vmem:[%s1 + $0xa24] sm:$0xf]
  %v809 = vld [vmem:[%s1 + $0xa28] sm:$0xf]
  %v810 = vld [vmem:[%s1 + $0xa2c] sm:$0xf]
  %v811 = vld [vmem:[%s1 + $0xa30] sm:$0xf]
  %v812 = vld [vmem:[%s1 + $0xa34] sm:$0xf]
  %v813 = vld [vmem:[%s1 + $0xa38] sm:$0xf]
  %v814 = vld [vmem:[%s1 + $0xa3c] sm:$0xf]
  %v815 = vld [vmem:[%s1 + $0xa40] sm:$0xf]
  %v816 = vld [vmem:[%s1 + $0xa44] sm:$0xf]
  %v817 = vld [vmem:[%s1 + $0xa48] sm:$0xf]
  %v818 = vld [vmem:[%s1 + $0xa4c] sm:$0xf]
  %v819 = vld [vmem:[%s1 + $0xa50] sm:$0xf]
  %v820 = vld [vmem:[%s1 + $0xa54] sm:$0xf]
  %v821 = vld [vmem:[%s1 + $0xa58] sm:$0xf]
  %v822 = vld [vmem:[%s1 + $0xa5c] sm:$0xf]
  %v823 = vld [vmem:[%s1 + $0xa60] sm:$0xf]
  %v824 = vld [vmem:[%s1 + $0xa64] sm:$0xf]
  %v825 = vld [vmem:[%s1 + $0xa68] sm:$0xf]
  %v826 = vld [vmem:[%s1 + $0xa6c] sm:$0xf]
  %v827 = vld [vmem:[%s1 + $0xa70] sm:$0xf]
  %v828 = vld [vmem:[%s1 + $0xa74] sm:$0xf]
  %v829 = vld [vmem:[%s1 + $0xa78] sm:$0xf]
  %v830 = vld [vmem:[%s1 + $0xa7c] sm:$0xf]
  %v831 = vld [vmem:[%s1 + $0xa80] sm:$0xf]
  %v832 = vld [vmem:[%s1 + $0xa84] sm:$0xf]
  %v833 = vld [vmem:[%s1 + $0xa88] sm:$0xf]
  %v834 = vld [vmem:[%s1 + $0xa8c] sm:$0xf]
  %v835 = vld [vmem:[%s1 + $0xa90] sm:$0xf]
  %v836 = vld [vmem:[%s1 + $0xa94] sm:$0xf]
  %v837 = vld [vmem:[%s1 + $0xa98] sm:$0xf]
  %v838 = vld [vmem:[%s1 + $0xa9c] sm:$0xf]
  %v839 = vld [vmem:[%s1 + $0xaa0] sm:$0xf]
  %v840 = vld [vmem:[%s1 + $0xaa4] sm:$0xf]
  %v841 = vld [vmem:[%s1 + $0xaa8] sm:$0xf]
  %v842 = vld [vmem:[%s1 + $0xaac] sm:$0xf]
  %v843 = vld [vmem:[%s1 + $0xab0] sm:$0xf]
  %v844 = vld [vmem:[%s1 + $0xab4] sm:$0xf]
  %v845 = vld [vmem:[%s1 + $0xab8] sm:$0xf]
  %v846 = vld [vmem:[%s1 + $0xabc] sm:$0xf]
  %v847 = vld [vmem:[%s1 + $0xac0] sm:$0xf]
  %v848 = vld [vmem:[%s1 + $0xac4] sm:$0xf]
  %v849 = vld [vmem:[%s1 + $0xac8] sm:$0xf]
  %v850 = vld [vmem:[%s1 + $0xacc] sm:$0xf]
  %v851 = vld [vmem:[%s1 + $0xad0] sm:$0xf]
  %v852 = vld [vmem:[%s1 + $0xad4] sm:$0xf]
  %v853 = vld [vmem:[%s1 + $0xad8] sm:$0xf]
  %v854 = vld [vmem:[%s1 + $0xadc] sm:$0xf]
  %v855 = vld [vmem:[%s1 + $0xae0] sm:$0xf]
  %v856 = vld [vmem:[%s1 + $0xae4] sm:$0xf]
  %v857 = vld [vmem:[%s1 + $0xae8] sm:$0xf]
  %v858 = vld [vmem:[%s1 + $0xaec] sm:$0xf]
  %v859 = vld [vmem:[%s1 + $0xaf0] sm:$0xf]
  %v860 = vld [vmem:[%s1 + $0xaf4] sm:$0xf]
  %v861 = vld [vmem:[%s1 + $0xaf8] sm:$0xf]
  %v862 = vld [vmem:[%s1 + $0xafc] sm:$0xf]
  %v863 = vld [vmem:[%s1 + $0xb00] sm:$0xf]
  %v864 = vld [vmem:[%s1 + $0xb04] sm:$0xf]
  %v865 = vld [vmem:[%s1 + $0xb08] sm:$0xf]
  %v866 = vld [vmem:[%s1 + $0xb0c] sm:$0xf]
  %v867 = vld [vmem:[%s1 + $0xb10] sm:$0xf]
  %v868 = vld [vmem:[%s1 + $0xb14] sm:$0xf]
  %v869 = vld [vmem:[%s1 + $0xb18] sm:$0xf]
  %v870 = vld [vmem:[%s1 + $0xb1c] sm:$0xf]
  %v871 = vld [vmem:[%s1 + $0xb20] sm:$0xf]
  %v872 = vld [vmem:[%s1 + $0xb24] sm:$0xf]
  %v873 = vld [vmem:[%s1 + $0xb28] sm:$0xf]
  %v874 = vld [vmem:[%s1 + $0xb2c] sm:$0xf]
  %v875 = vld [vmem:[%s1 + $0xb30] sm:$0xf]
  %v876 = vld [vmem:[%s1 + $0xb34] sm:$0xf]
  %v877 = vld [vmem:[%s1 + $0xb38] sm:$0xf]
  %v878 = vld [vmem:[%s1 + $0xb3c] sm:$0xf]
  %v879 = vld [vmem:[%s1 + $0xb40] sm:$0xf]
  %v880 = vld [vmem:[%s1 + $0xb44] sm:$0xf]
  %v881 = vld [vmem:[%s1 + $0xb48] sm:$0xf]
  %v882 = vld [vmem:[%s1 + $0xb4c] sm:$0xf]
  %v883 = vld [vmem:[%s1 + $0xb50] sm:$0xf]
  %v884 = vld [vmem:[%s1 + $0xb54] sm:$0xf]
  %v885 = vld [vmem:[%s1 + $0xb58] sm:$0xf]
  %v886 = vld [vmem:[%s1 + $0xb5c] sm:$0xf]
  %v887 = vld [vmem:[%s1 + $0xb60] sm:$0xf]
  %v888 = vld [vmem:[%s1 + $0xb64] sm:$0xf]
  %v889 = vld [vmem:[%s1 + $0xb68] sm:$0xf]
  %v890 = vld [vmem:[%s1 + $0xb6c] sm:$0xf]
  %v891 = vld [vmem:[%s1 + $0xb70] sm:$0xf]
  %v892 = vld [vmem:[%s1 + $0xb74] sm:$0xf]
  %v893 = vld [vmem:[%s1 + $0xb78] sm:$0xf]
  %v894 = vld [vmem:[%s1 + $0xb7c] sm:$0xf]
  %v895 = vld [vmem:[%s1 + $0xb80] sm:$0xf]
  %v896 = vld [vmem:[%s1 + $0xb84] sm:$0xf]
  %v897 = vld [vmem:[%s1 + $0xb88] sm:$0xf]
  %v898 = vld [vmem:[%s1 + $0xb8c] sm:$0xf]
  %v899 = vld [vmem:[%s1 + $0xb90] sm:$0xf]
  %v900 = vld [vmem:[%s1 + $0xb94] sm:$0xf]
  %v901 = vld [vmem:[%s1 + $0xb98] sm:$0xf]
  %v902 = vld [vmem:[%s1 + $0xb9c] sm:$0xf]
  %v903 = vld [vmem:[%s1 + $0xba0] sm:$0xf]
  %v904 = vld [vmem:[%s1 + $0xba4] sm:$0xf]
  %v905 = vld [vmem:[%s1 + $0xba8] sm:$0xf]
  %v906 = vld [vmem:[%s1 + $0xbac] sm:$0xf]
  %v907 = vld [vmem:[%s1 + $0xbb0] sm:$0xf]
  %v908 = vld [vmem:[%s1 + $0xbb4] sm:$0xf]
  %v909 = vld [vmem:[%s1 + $0xbb8] sm:$0xf]
  %v910 = vld [vmem:[%s1 + $0xbbc] sm:$0xf]
  %v911 = vld [vmem:[%s1 + $0xbc0] sm:$0xf]
  %v912 = vld [vmem:[%s1 + $0xbc4] sm:$0xf]
  %v913 = vld [vmem:[%s1 + $0xbc8] sm:$0xf]
  %v914 = vld [vmem:[%s1 + $0xbcc] sm:$0xf]
  %v915 = vld [vmem:[%s1 + $0xbd0] sm:$0xf]
  %v916 = vld [vmem:[%s1 + $0xbd4] sm:$0xf]
  %v917 = vld [vmem:[%s1 + $0xbd8] sm:$0xf]
  %v918 = vld [vmem:[%s1 + $0xbdc] sm:$0xf]
  %v919 = vld [vmem:[%s1 + $0xbe0] sm:$0xf]
  %v920 = vld [vmem:[%s1 + $0xbe4] sm:$0xf]
  %v921 = vld [vmem:[%s1 + $0xbe8] sm:$0xf]
  %v922 = vld [vmem:[%s1 + $0xbec] sm:$0xf]
  %v923 = vld [vmem:[%s1 + $0xbf0] sm:$0xf]
  %v924 = vld [vmem:[%s1 + $0xbf4] sm:$0xf]
  %v925 = vld [vmem:[%s1 + $0xbf8] sm:$0xf]
  %v926 = vld [vmem:[%s1 + $0xbfc] sm:$0xf]
  %v927 = vld [vmem:[%s1 + $0xc00] sm:$0xf]
  %v928 = vld [vmem:[%s1 + $0xc04] sm:$0xf]
  %v929 = vld [vmem:[%s1 + $0xc08] sm:$0xf]
  %v930 = vld [vmem:[%s1 + $0xc0c] sm:$0xf]
  %v931 = vld [vmem:[%s1 + $0xc10] sm:$0xf]
  %v932 = vld [vmem:[%s1 + $0xc14] sm:$0xf]
  %v933 = vld [vmem:[%s1 + $0xc18] sm:$0xf]
  %v934 = vld [vmem:[%s1 + $0xc1c] sm:$0xf]
  %v935 = vld [vmem:[%s1 + $0xc20] sm:$0xf]
  %v936 = vld [vmem:[%s1 + $0xc24] sm:$0xf]
  %v937 = vld [vmem:[%s1 + $0xc28] sm:$0xf]
  %v938 = vld [vmem:[%s1 + $0xc2c] sm:$0xf]
  %v939 = vld [vmem:[%s1 + $0xc30] sm:$0xf]
  %v940 = vld [vmem:[%s1 + $0xc34] sm:$0xf]
  %v941 = vld [vmem:[%s1 + $0xc38] sm:$0xf]
  %v942 = vld [vmem:[%s1 + $0xc3c] sm:$0xf]
  %v943 = vld [vmem:[%s1 + $0xc40] sm:$0xf]
  %v944 = vld [vmem:[%s1 + $0xc44] sm:$0xf]
  %v945 = vld [vmem:[%s1 + $0xc48] sm:$0xf]
  %v946 = vld [vmem:[%s1 + $0xc4c] sm:$0xf]
  %v947 = vld [vmem:[%s1 + $0xc50] sm:$0xf]
  %v948 = vld [vmem:[%s1 + $0xc54] sm:$0xf]
  %v949 = vld [vmem:[%s1 + $0xc58] sm:$0xf]
  %v950 = vld [vmem:[%s1 + $0xc5c] sm:$0xf]
  %v951 = vld [vmem:[%s1 + $0xc60] sm:$0xf]
  %v952 = vld [vmem:[%s1 + $0xc64] sm:$0xf]
  %v953 = vld [vmem:[%s1 + $0xc68] sm:$0xf]
  %v954 = vld [vmem:[%s1 + $0xc6c] sm:$0xf]
  %v955 = vld [vmem:[%s1 + $0xc70] sm:$0xf]
  %v956 = vld [vmem:[%s1 + $0xc74] sm:$0xf]
  %v957 = vld [vmem:[%s1 + $0xc78] sm:$0xf]
  %v958 = vld [vmem:[%s1 + $0xc7c] sm:$0xf]
  %v959 = vld [vmem:[%s1 + $0xc80] sm:$0xf]
  %v960 = vld [vmem:[%s1 + $0xc84] sm:$0xf]
  %v961 = vld [vmem:[%s1 + $0xc88] sm:$0xf]
  %v962 = vld [vmem:[%s1 + $0xc8c] sm:$0xf]
  %v963 = vld [vmem:[%s1 + $0xc90] sm:$0xf]
  %v964 = vld [vmem:[%s1 + $0xc94] sm:$0xf]
  %v965 = vld [vmem:[%s1 + $0xc98] sm:$0xf]
  %v966 = vld [vmem:[%s1 + $0xc9c] sm:$0xf]
  %v967 = vld [vmem:[%s1 + $0xca0] sm:$0xf]
  %v968 = vld [vmem:[%s1 + $0xca4] sm:$0xf]
  %v969 = vld [vmem:[%s1 + $0xca8] sm:$0xf]
  %v970 = vld [vmem:[%s1 + $0xcac] sm:$0xf]
  %v971 = vld [vmem:[%s1 + $0xcb0] sm:$0xf]
  %v972 = vld [vmem:[%s1 + $0xcb4] sm:$0xf]
  %v973 = vld [vmem:[%s1 + $0xcb8] sm:$0xf]
  %v974 = vld [vmem:[%s1 + $0xcbc] sm:$0xf]
  %v975 = vld [vmem:[%s1 + $0xcc0] sm:$0xf]
  %v976 = vld [vmem:[%s1 + $0xcc4] sm:$0xf]
  %v977 = vld [vmem:[%s1 + $0xcc8] sm:$0xf]
  %v978 = vld [vmem:[%s1 + $0xccc] sm:$0xf]
  %v979 = vld [vmem:[%s1 + $0xcd0] sm:$0xf]
  %v980 = vld [vmem:[%s1 + $0xcd4] sm:$0xf]
  %v981 = vld [vmem:[%s1 + $0xcd8] sm:$0xf]
  %v982 = vld [vmem:[%s1 + $0xcdc] sm:$0xf]
  %v983 = vld [vmem:[%s1 + $0xce0] sm:$0xf]
  %v984 = vld [vmem:[%s1 + $0xce4] sm:$0xf]
  %v985 = vld [vmem:[%s1 + $0xce8] sm:$0xf]
  %v986 = vld [vmem:[%s1 + $0xcec] sm:$0xf]
  %v987 = vld [vmem:[%s1 + $0xcf0] sm:$0xf]
  %v988 = vld [vmem:[%s1 + $0xcf4] sm:$0xf]
  %v989 = vld [vmem:[%s1 + $0xcf8] sm:$0xf]
  %v990 = vld [vmem:[%s1 + $0xcfc] sm:$0xf]
  %v991 = vld [vmem:[%s1 + $0xd00] sm:$0xf]
  %v992 = vld [vmem:[%s1 + $0xd04] sm:$0xf]
  %v993 = vld [vmem:[%s1 + $0xd08] sm:$0xf]
  %v994 = vld [vmem:[%s1 + $0xd0c] sm:$0xf]
  %v995 = vld [vmem:[%s1 + $0xd10] sm:$0xf]
  %v996 = vld [vmem:[%s1 + $0xd14] sm:$0xf]
  %v997 = vld [vmem:[%s1 + $0xd18] sm:$0xf]
  %v998 = vld [vmem:[%s1 + $0xd1c] sm:$0xf]
  %v999 = vld [vmem:[%s1 + $0xd20] sm:$0xf]
  %v1000 = vld [vmem:[%s1 + $0xd24] sm:$0xf]
  %v1001 = vld [vmem:[%s1 + $0xd28] sm:$0xf]
  %v1002 = vld [vmem:[%s1 + $0xd2c] sm:$0xf]
  %v1003 = vld [vmem:[%s1 + $0xd30] sm:$0xf]
  %v1004 = vld [vmem:[%s1 + $0xd34] sm:$0xf]
  %v1005 = vld [vmem:[%s1 + $0xd38] sm:$0xf]
  %v1006 = vld [vmem:[%s1 + $0xd3c] sm:$0xf]
  %v1007 = vld [vmem:[%s1 + $0xd40] sm:$0xf]
  %v1008 = vld [vmem:[%s1 + $0xd44] sm:$0xf]
  %v1009 = vld [vmem:[%s1 + $0xd48] sm:$0xf]
  %v1010 = vld [vmem:[%s1 + $0xd4c] sm:$0xf]
  %v1011 = vld [vmem:[%s1 + $0xd50] sm:$0xf]
  %v1012 = vld [vmem:[%s1 + $0xd54] sm:$0xf]
  %v1013 = vld [vmem:[%s1 + $0xd58] sm:$0xf]
  %v1014 = vld [vmem:[%s1 + $0xd5c] sm:$0xf]
  %v1015 = vld [vmem:[%s1 + $0xd60] sm:$0xf]
  %v1016 = vld [vmem:[%s1 + $0xd64] sm:$0xf]
  %v1017 = vld [vmem:[%s1 + $0xd68] sm:$0xf]
  %v1018 = vld [vmem:[%s1 + $0xd6c] sm:$0xf]
  %v1019 = vld [vmem:[%s1 + $0xd70] sm:$0xf]
  %v1020 = vld [vmem:[%s1 + $0xd74] sm:$0xf]
  %v1021 = vld [vmem:[%s1 + $0xd78] sm:$0xf]
  %v1022 = vld [vmem:[%s1 + $0xd7c] sm:$0xf]
  %v1023 = vld [vmem:[%s1 + $0xd80] sm:$0xf]
  %v1024 = vld [vmem:[%s1 + $0xd84] sm:$0xf]
  %v1025 = vld [vmem:[%s1 + $0xd88] sm:$0xf]
  %v1026 = vld [vmem:[%s1 + $0xd8c] sm:$0xf]
  %v1027 = vld [vmem:[%s1 + $0xd90] sm:$0xf]
  %v1028 = vld [vmem:[%s1 + $0xd94] sm:$0xf]
  %v1029 = vld [vmem:[%s1 + $0xd98] sm:$0xf]
  %v1030 = vld [vmem:[%s1 + $0xd9c] sm:$0xf]
  %v1031 = vld [vmem:[%s1 + $0xda0] sm:$0xf]
  %v1032 = vld [vmem:[%s1 + $0xda4] sm:$0xf]
  %v1033 = vld [vmem:[%s1 + $0xda8] sm:$0xf]
  %v1034 = vld [vmem:[%s1 + $0xdac] sm:$0xf]
  %v1035 = vld [vmem:[%s1 + $0xdb0] sm:$0xf]
  %v1036 = vld [vmem:[%s1 + $0xdb4] sm:$0xf]
  %v1037 = vld [vmem:[%s1 + $0xdb8] sm:$0xf]
  %v1038 = vld [vmem:[%s1 + $0xdbc] sm:$0xf]
  %v1039 = vld [vmem:[%s1 + $0xdc0] sm:$0xf]
  %v1040 = vld [vmem:[%s1 + $0xdc4] sm:$0xf]
  %v1041 = vld [vmem:[%s1 + $0xdc8] sm:$0xf]
  %v1042 = vld [vmem:[%s1 + $0xdcc] sm:$0xf]
  %v1043 = vld [vmem:[%s1 + $0xdd0] sm:$0xf]
  %v1044 = vld [vmem:[%s1 + $0xdd4] sm:$0xf]
  %v1045 = vld [vmem:[%s1 + $0xdd8] sm:$0xf]
  %v1046 = vld [vmem:[%s1 + $0xddc] sm:$0xf]
  %v1047 = vld [vmem:[%s1 + $0xde0] sm:$0xf]
  %v1048 = vld [vmem:[%s1 + $0xde4] sm:$0xf]
  %v1049 = vld [vmem:[%s1 + $0xde8] sm:$0xf]
  %v1050 = vld [vmem:[%s1 + $0xdec] sm:$0xf]
  %v1051 = vld [vmem:[%s1 + $0xdf0] sm:$0xf]
  %v1052 = vld [vmem:[%s1 + $0xdf4] sm:$0xf]
  %v1053 = vld [vmem:[%s1 + $0xdf8] sm:$0xf]
  %v1054 = vld [vmem:[%s1 + $0xdfc] sm:$0xf]
  %v1055 = vld [vmem:[%s1 + $0xe00] sm:$0xf]
  %v1056 = vld [vmem:[%s1 + $0xe04] sm:$0xf]
  %v1057 = vld [vmem:[%s1 + $0xe08] sm:$0xf]
  %v1058 = vld [vmem:[%s1 + $0xe0c] sm:$0xf]
  %v1059 = vld [vmem:[%s1 + $0xe10] sm:$0xf]
  %v1060 = vld [vmem:[%s1 + $0xe14] sm:$0xf]
  %v1061 = vld [vmem:[%s1 + $0xe18] sm:$0xf]
  %v1062 = vld [vmem:[%s1 + $0xe1c] sm:$0xf]
  %v1063 = vld [vmem:[%s1 + $0xe20] sm:$0xf]
  %v1064 = vld [vmem:[%s1 + $0xe24] sm:$0xf]
  %v1065 = vld [vmem:[%s1 + $0xe28] sm:$0xf]
  %v1066 = vld [vmem:[%s1 + $0xe2c] sm:$0xf]
  %v1067 = vld [vmem:[%s1 + $0xe30] sm:$0xf]
  %v1068 = vld [vmem:[%s1 + $0xe34] sm:$0xf]
  %v1069 = vld [vmem:[%s1 + $0xe38] sm:$0xf]
  %v1070 = vld [vmem:[%s1 + $0xe3c] sm:$0xf]
  %v1071 = vld [vmem:[%s1 + $0xe40] sm:$0xf]
  %v1072 = vld [vmem:[%s1 + $0xe44] sm:$0xf]
  %v1073 = vld [vmem:[%s1 + $0xe48] sm:$0xf]
  %v1074 = vld [vmem:[%s1 + $0xe4c] sm:$0xf]
  %v1075 = vld [vmem:[%s1 + $0xe50] sm:$0xf]
  %v1076 = vld [vmem:[%s1 + $0xe54] sm:$0xf]
  %v1077 = vld [vmem:[%s1 + $0xe58] sm:$0xf]
  %v1078 = vld [vmem:[%s1 + $0xe5c] sm:$0xf]
  %v1079 = vld [vmem:[%s1 + $0xe60] sm:$0xf]
  %v1080 = vld [vmem:[%s1 + $0xe64] sm:$0xf]
  %v1081 = vld [vmem:[%s1 + $0xe68] sm:$0xf]
  %v1082 = vld [vmem:[%s1 + $0xe6c] sm:$0xf]
  %v1083 = vld [vmem:[%s1 + $0xe70] sm:$0xf]
  %v1084 = vld [vmem:[%s1 + $0xe74] sm:$0xf]
  %v1085 = vld [vmem:[%s1 + $0xe78] sm:$0xf]
  %v1086 = vld [vmem:[%s1 + $0xe7c] sm:$0xf]
  %v1087 = vld [vmem:[%s1 + $0xe80] sm:$0xf]
  %v1088 = vld [vmem:[%s1 + $0xe84] sm:$0xf]
  %v1089 = vld [vmem:[%s1 + $0xe88] sm:$0xf]
  %v1090 = vld [vmem:[%s1 + $0xe8c] sm:$0xf]
  %v1091 = vld [vmem:[%s1 + $0xe90] sm:$0xf]
  %v1092 = vld [vmem:[%s1 + $0xe94] sm:$0xf]
  %v1093 = vld [vmem:[%s1 + $0xe98] sm:$0xf]
  %v1094 = vld [vmem:[%s1 + $0xe9c] sm:$0xf]
  %v1095 = vld [vmem:[%s1 + $0xea0] sm:$0xf]
  %v1096 = vld [vmem:[%s1 + $0xea4] sm:$0xf]
  %v1097 = vld [vmem:[%s1 + $0xea8] sm:$0xf]
  %v1098 = vld [vmem:[%s1 + $0xeac] sm:$0xf]
  %v1099 = vld [vmem:[%s1 + $0xeb0] sm:$0xf]
  %v1100 = vld [vmem:[%s1 + $0xeb4] sm:$0xf]
  %v1101 = vld [vmem:[%s1 + $0xeb8] sm:$0xf]
  %v1102 = vld [vmem:[%s1 + $0xebc] sm:$0xf]
  %v1103 = vld [vmem:[%s1 + $0xec0] sm:$0xf]
  %v1104 = vld [vmem:[%s1 + $0xec4] sm:$0xf]
  %v1105 = vld [vmem:[%s1 + $0xec8] sm:$0xf]
  %v1106 = vld [vmem:[%s1 + $0xecc] sm:$0xf]
  %v1107 = vld [vmem:[%s1 + $0xed0] sm:$0xf]
  %v1108 = vld [vmem:[%s1 + $0xed4] sm:$0xf]
  %v1109 = vld [vmem:[%s1 + $0xed8] sm:$0xf]
  %v1110 = vld [vmem:[%s1 + $0xedc] sm:$0xf]
  %v1111 = vld [vmem:[%s1 + $0xee0] sm:$0xf]
  %v1112 = vld [vmem:[%s1 + $0xee4] sm:$0xf]
  %v1113 = vld [vmem:[%s1 + $0xee8] sm:$0xf]
  %v1114 = vld [vmem:[%s1 + $0xeec] sm:$0xf]
  %v1115 = vld [vmem:[%s1 + $0xef0] sm:$0xf]
  %v1116 = vld [vmem:[%s1 + $0xef4] sm:$0xf]
  %v1117 = vld [vmem:[%s1 + $0xef8] sm:$0xf]
  %v1118 = vld [vmem:[%s1 + $0xefc] sm:$0xf]
  %v1119 = vld [vmem:[%s1 + $0xf00] sm:$0xf]
  %v1120 = vld [vmem:[%s1 + $0xf04] sm:$0xf]
  %v1121 = vld [vmem:[%s1 + $0xf08] sm:$0xf]
  %v1122 = vld [vmem:[%s1 + $0xf0c] sm:$0xf]
  %v1123 = vld [vmem:[%s1 + $0xf10] sm:$0xf]
  %v1124 = vld [vmem:[%s1 + $0xf14] sm:$0xf]
  %v1125 = vld [vmem:[%s1 + $0xf18] sm:$0xf]
  %v1126 = vld [vmem:[%s1 + $0xf1c] sm:$0xf]
  %v1127 = vld [vmem:[%s1 + $0xf20] sm:$0xf]
  %v1128 = vld [vmem:[%s1 + $0xf24] sm:$0xf]
  %v1129 = vld [vmem:[%s1 + $0xf28] sm:$0xf]
  %v1130 = vld [vmem:[%s1 + $0xf2c] sm:$0xf]
  %v1131 = vld [vmem:[%s1 + $0xf30] sm:$0xf]
  %v1132 = vld [vmem:[%s1 + $0xf34] sm:$0xf]
  %v1133 = vld [vmem:[%s1 + $0xf38] sm:$0xf]
  %v1134 = vld [vmem:[%s1 + $0xf3c] sm:$0xf]
  %v1135 = vld [vmem:[%s1 + $0xf40] sm:$0xf]
  %v1136 = vld [vmem:[%s1 + $0xf44] sm:$0xf]
  %v1137 = vld [vmem:[%s1 + $0xf48] sm:$0xf]
  %v1138 = vld [vmem:[%s1 + $0xf4c] sm:$0xf]
  %v1139 = vld [vmem:[%s1 + $0xf50] sm:$0xf]
  %v1140 = vld [vmem:[%s1 + $0xf54] sm:$0xf]
  %v1141 = vld [vmem:[%s1 + $0xf58] sm:$0xf]
  %v1142 = vld [vmem:[%s1 + $0xf5c] sm:$0xf]
  %v1143 = vld [vmem:[%s1 + $0xf60] sm:$0xf]
  %v1144 = vld [vmem:[%s1 + $0xf64] sm:$0xf]
  %v1145 = vld [vmem:[%s1 + $0xf68] sm:$0xf]
  %v1146 = vld [vmem:[%s1 + $0xf6c] sm:$0xf]
  %v1147 = vld [vmem:[%s1 + $0xf70] sm:$0xf]
  %v1148 = vld [vmem:[%s1 + $0xf74] sm:$0xf]
  %v1149 = vld [vmem:[%s1 + $0xf78] sm:$0xf]
  %v1150 = vld [vmem:[%s1 + $0xf7c] sm:$0xf]
  %v1151 = vld [vmem:[%s1 + $0xf80] sm:$0xf]
  %v1152 = vld [vmem:[%s1 + $0xf84] sm:$0xf]
  %v1153 = vld [vmem:[%s1 + $0xf88] sm:$0xf]
  %v1154 = vld [vmem:[%s1 + $0xf8c] sm:$0xf]
  %v1155 = vld [vmem:[%s1 + $0xf90] sm:$0xf]
  %v1156 = vld [vmem:[%s1 + $0xf94] sm:$0xf]
  %v1157 = vld [vmem:[%s1 + $0xf98] sm:$0xf]
  %v1158 = vld [vmem:[%s1 + $0xf9c] sm:$0xf]
  %v1159 = vld [vmem:[%s1 + $0xfa0] sm:$0xf]
  %v1160 = vld [vmem:[%s1 + $0xfa4] sm:$0xf]
  %v1161 = vld [vmem:[%s1 + $0xfa8] sm:$0xf]
  %v1162 = vld [vmem:[%s1 + $0xfac] sm:$0xf]
  %v1163 = vld [vmem:[%s1 + $0xfb0] sm:$0xf]
  %v1164 = vld [vmem:[%s1 + $0xfb4] sm:$0xf]
  %v1165 = vld [vmem:[%s1 + $0xfb8] sm:$0xf]
  %v1166 = vld [vmem:[%s1 + $0xfbc] sm:$0xf]
  %v1167 = vld [vmem:[%s1 + $0xfc0] sm:$0xf]
  %v1168 = vld [vmem:[%s1 + $0xfc4] sm:$0xf]
  %v1169 = vld [vmem:[%s1 + $0xfc8] sm:$0xf]
  %v1170 = vld [vmem:[%s1 + $0xfcc] sm:$0xf]
  %v1171 = vld [vmem:[%s1 + $0xfd0] sm:$0xf]
  %v1172 = vld [vmem:[%s1 + $0xfd4] sm:$0xf]
  %v1173 = vld [vmem:[%s1 + $0xfd8] sm:$0xf]
  %v1174 = vld [vmem:[%s1 + $0xfdc] sm:$0xf]
  %v1175 = vld [vmem:[%s1 + $0xfe0] sm:$0xf]
  %v1176 = vld [vmem:[%s1 + $0xfe4] sm:$0xf]
  %v1177 = vld [vmem:[%s1 + $0xfe8] sm:$0xf]
  %v1178 = vld [vmem:[%s1 + $0xfec] sm:$0xf]
  %v1179 = vld [vmem:[%s1 + $0xff0] sm:$0xf]
  %v1180 = vld [vmem:[%s1 + $0xff4] sm:$0xf]
  %v1181 = vld [vmem:[%s1 + $0xff8] sm:$0xf]
  %v1182 = vld [vmem:[%s1 + $0xffc] sm:$0xf]
  %v1183 = vld [vmem:[%s1 + $0x1000] sm:$0xf]
  %v1184 = vld [vmem:[%s1 + $0x1004] sm:$0xf]
  %v1185 = vld [vmem:[%s1 + $0x1008] sm:$0xf]
  %v1186 = vld [vmem:[%s1 + $0x100c] sm:$0xf]
  %v1187 = vld [vmem:[%s1 + $0x1010] sm:$0xf]
  %v1188 = vld [vmem:[%s1 + $0x1014] sm:$0xf]
  %v1189 = vld [vmem:[%s1 + $0x1018] sm:$0xf]
  %v1190 = vld [vmem:[%s1 + $0x101c] sm:$0xf]
  %v1191 = vld [vmem:[%s1 + $0x1020] sm:$0xf]
  %v1192 = vld [vmem:[%s1 + $0x1024] sm:$0xf]
  %v1193 = vld [vmem:[%s1 + $0x1028] sm:$0xf]
  %v1194 = vld [vmem:[%s1 + $0x102c] sm:$0xf]
  %v1195 = vld [vmem:[%s1 + $0x1030] sm:$0xf]
  %v1196 = vld [vmem:[%s1 + $0x1034] sm:$0xf]
  %v1197 = vld [vmem:[%s1 + $0x1038] sm:$0xf]
  %v1198 = vld [vmem:[%s1 + $0x103c] sm:$0xf]
  %v1199 = vld [vmem:[%s1 + $0x1040] sm:$0xf]
  %v1200 = vld [vmem:[%s1 + $0x1044] sm:$0xf]
  %v1201 = vld [vmem:[%s1 + $0x1048] sm:$0xf]
  %v1202 = vld [vmem:[%s1 + $0x104c] sm:$0xf]
  %v1203 = vld [vmem:[%s1 + $0x1050] sm:$0xf]
  %v1204 = vld [vmem:[%s1 + $0x1054] sm:$0xf]
  %v1205 = vld [vmem:[%s1 + $0x1058] sm:$0xf]
  %v1206 = vld [vmem:[%s1 + $0x105c] sm:$0xf]
  %v1207 = vld [vmem:[%s1 + $0x1060] sm:$0xf]
  %v1208 = vld [vmem:[%s1 + $0x1064] sm:$0xf]
  %v1209 = vld [vmem:[%s1 + $0x1068] sm:$0xf]
  %v1210 = vld [vmem:[%s1 + $0x106c] sm:$0xf]
  %v1211 = vld [vmem:[%s1 + $0x1070] sm:$0xf]
  %v1212 = vld [vmem:[%s1 + $0x1074] sm:$0xf]
  %v1213 = vld [vmem:[%s1 + $0x1078] sm:$0xf]
  %v1214 = vld [vmem:[%s1 + $0x107c] sm:$0xf]
  %v1215 = vld [vmem:[%s1 + $0x1080] sm:$0xf]
  %v1216 = vld [vmem:[%s1 + $0x1084] sm:$0xf]
  %v1217 = vld [vmem:[%s1 + $0x1088] sm:$0xf]
  %v1218 = vld [vmem:[%s1 + $0x108c] sm:$0xf]
  %v1219 = vld [vmem:[%s1 + $0x1090] sm:$0xf]
  %v1220 = vld [vmem:[%s1 + $0x1094] sm:$0xf]
  %v1221 = vld [vmem:[%s1 + $0x1098] sm:$0xf]
  %v1222 = vld [vmem:[%s1 + $0x109c] sm:$0xf]
  %v1223 = vld [vmem:[%s1 + $0x10a0] sm:$0xf]
  %v1224 = vld [vmem:[%s1 + $0x10a4] sm:$0xf]
  %v1225 = vld [vmem:[%s1 + $0x10a8] sm:$0xf]
  %v1226 = vld [vmem:[%s1 + $0x10ac] sm:$0xf]
  %v1227 = vld [vmem:[%s1 + $0x10b0] sm:$0xf]
  %v1228 = vld [vmem:[%s1 + $0x10b4] sm:$0xf]
  %v1229 = vld [vmem:[%s1 + $0x10b8] sm:$0xf]
  %v1230 = vld [vmem:[%s1 + $0x10bc] sm:$0xf]
  %v1231 = vld [vmem:[%s1 + $0x10c0] sm:$0xf]
  %v1232 = vld [vmem:[%s1 + $0x10c4] sm:$0xf]
  %v1233 = vld [vmem:[%s1 + $0x10c8] sm:$0xf]
  %v1234 = vld [vmem:[%s1 + $0x10cc] sm:$0xf]
  %v1235 = vld [vmem:[%s1 + $0x10d0] sm:$0xf]
  %v1236 = vld [vmem:[%s1 + $0x10d4] sm:$0xf]
  %v1237 = vld [vmem:[%s1 + $0x10d8] sm:$0xf]
  %v1238 = vld [vmem:[%s1 + $0x10dc] sm:$0xf]
  %v1239 = vld [vmem:[%s1 + $0x10e0] sm:$0xf]
  %v1240 = vld [vmem:[%s1 + $0x10e4] sm:$0xf]
  %v1241 = vld [vmem:[%s1 + $0x10e8] sm:$0xf]
  %v1242 = vld [vmem:[%s1 + $0x10ec] sm:$0xf]
  %v1243 = vld [vmem:[%s1 + $0x10f0] sm:$0xf]
  %v1244 = vld [vmem:[%s1 + $0x10f4] sm:$0xf]
  %v1245 = vld [vmem:[%s1 + $0x10f8] sm:$0xf]
  %v1246 = vld [vmem:[%s1 + $0x10fc] sm:$0xf]
  %v1247 = vld [vmem:[%s1 + $0x1100] sm:$0xf]
  %v1248 = vld [vmem:[%s1 + $0x1104] sm:$0xf]
  %v1249 = vld [vmem:[%s1 + $0x1108] sm:$0xf]
  %v1250 = vld [vmem:[%s1 + $0x110c] sm:$0xf]
  %v1251 = vld [vmem:[%s1 + $0x1110] sm:$0xf]
  %v1252 = vld [vmem:[%s1 + $0x1114] sm:$0xf]
  %v1253 = vld [vmem:[%s1 + $0x1118] sm:$0xf]
  %v1254 = vld [vmem:[%s1 + $0x111c] sm:$0xf]
  %v1255 = vld [vmem:[%s1 + $0x1120] sm:$0xf]
  %v1256 = vld [vmem:[%s1 + $0x1124] sm:$0xf]
  %v1257 = vld [vmem:[%s1 + $0x1128] sm:$0xf]
  %v1258 = vld [vmem:[%s1 + $0x112c] sm:$0xf]
  %v1259 = vld [vmem:[%s1 + $0x1130] sm:$0xf]
  %v1260 = vld [vmem:[%s1 + $0x1134] sm:$0xf]
  %v1261 = vld [vmem:[%s1 + $0x1138] sm:$0xf]
  %v1262 = vld [vmem:[%s1 + $0x113c] sm:$0xf]
  %v1263 = vld [vmem:[%s1 + $0x1140] sm:$0xf]
  %v1264 = vld [vmem:[%s1 + $0x1144] sm:$0xf]
  %v1265 = vld [vmem:[%s1 + $0x1148] sm:$0xf]
  %v1266 = vld [vmem:[%s1 + $0x114c] sm:$0xf]
  %v1267 = vld [vmem:[%s1 + $0x1150] sm:$0xf]
  %v1268 = vld [vmem:[%s1 + $0x1154] sm:$0xf]
  %v1269 = vld [vmem:[%s1 + $0x1158] sm:$0xf]
  %v1270 = vld [vmem:[%s1 + $0x115c] sm:$0xf]
  %v1271 = vld [vmem:[%s1 + $0x1160] sm:$0xf]
  %v1272 = vld [vmem:[%s1 + $0x1164] sm:$0xf]
  %v1273 = vld [vmem:[%s1 + $0x1168] sm:$0xf]
  %v1274 = vld [vmem:[%s1 + $0x116c] sm:$0xf]
  %v1275 = vld [vmem:[%s1 + $0x1170] sm:$0xf]
  %v1276 = vld [vmem:[%s1 + $0x1174] sm:$0xf]
  %v1277 = vld [vmem:[%s1 + $0x1178] sm:$0xf]
  %v1278 = vld [vmem:[%s1 + $0x117c] sm:$0xf]
  %v1279 = vld [vmem:[%s1 + $0x1180] sm:$0xf]
  %v1280 = vld [vmem:[%s1 + $0x1184] sm:$0xf]
  %v1281 = vld [vmem:[%s1 + $0x1188] sm:$0xf]
  %v1282 = vld [vmem:[%s1 + $0x118c] sm:$0xf]
  %v1283 = vld [vmem:[%s1 + $0x1190] sm:$0xf]
  %v1284 = vld [vmem:[%s1 + $0x1194] sm:$0xf]
  %v1285 = vld [vmem:[%s1 + $0x1198] sm:$0xf]
  %v1286 = vld [vmem:[%s1 + $0x119c] sm:$0xf]
  %v1287 = vld [vmem:[%s1 + $0x11a0] sm:$0xf]
  %v1288 = vld [vmem:[%s1 + $0x11a4] sm:$0xf]
  %v1289 = vld [vmem:[%s1 + $0x11a8] sm:$0xf]
  %v1290 = vld [vmem:[%s1 + $0x11ac] sm:$0xf]
  %v1291 = vld [vmem:[%s1 + $0x11b0] sm:$0xf]
  %v1292 = vld [vmem:[%s1 + $0x11b4] sm:$0xf]
  %v1293 = vld [vmem:[%s1 + $0x11b8] sm:$0xf]
  %v1294 = vld [vmem:[%s1 + $0x11bc] sm:$0xf]
  %v1295 = vld [vmem:[%s1 + $0x11c0] sm:$0xf]
  %v1296 = vld [vmem:[%s1 + $0x11c4] sm:$0xf]
  %v1297 = vld [vmem:[%s1 + $0x11c8] sm:$0xf]
  %v1298 = vld [vmem:[%s1 + $0x11cc] sm:$0xf]
  %v1299 = vld [vmem:[%s1 + $0x11d0] sm:$0xf]
  %v1300 = vld [vmem:[%s1 + $0x11d4] sm:$0xf]
  %v1301 = vld [vmem:[%s1 + $0x11d8] sm:$0xf]
  %v1302 = vld [vmem:[%s1 + $0x11dc] sm:$0xf]
  %v1303 = vld [vmem:[%s1 + $0x11e0] sm:$0xf]
  %v1304 = vld [vmem:[%s1 + $0x11e4] sm:$0xf]
  %v1305 = vld [vmem:[%s1 + $0x11e8] sm:$0xf]
  %v1306 = vld [vmem:[%s1 + $0x11ec] sm:$0xf]
  %v1307 = vld [vmem:[%s1 + $0x11f0] sm:$0xf]
  %v1308 = vld [vmem:[%s1 + $0x11f4] sm:$0xf]
  %v1309 = vld [vmem:[%s1 + $0x11f8] sm:$0xf]
  %v1310 = vld [vmem:[%s1 + $0x11fc] sm:$0xf]
  %v1311 = vld [vmem:[%s2] sm:$0x1]
  %v1313 = vlaneseq
  %v1314 = vshrl.u32 %v1313, 7
  %v1315 = vsub.s32 0, %v1314
  %v1316 = vrot.slane %v1311, %v1315
  %v1462 = vunpack.c.l.b16 %v15
  %v1463 = vunpack.c.h.b16 %v15
  %v1464 = vunpack.c.l.b16 %v16
  %v1465 = vunpack.c.h.b16 %v16
  %v1466 = vunpack.c.l.b16 %v17
  %v1467 = vunpack.c.h.b16 %v17
  %v1468 = vunpack.c.l.b16 %v18
  %v1469 = vunpack.c.h.b16 %v18
  %v1470 = vunpack.c.l.b16 %v19
  %v1471 = vunpack.c.h.b16 %v19
  %v1472 = vunpack.c.l.b16 %v20
  %v1473 = vunpack.c.h.b16 %v20
  %v1474 = vunpack.c.l.b16 %v21
  %v1475 = vunpack.c.h.b16 %v21
  %v1476 = vunpack.c.l.b16 %v22
  %v1477 = vunpack.c.h.b16 %v22
  %v1478 = vunpack.c.l.b16 %v23
  %v1479 = vunpack.c.h.b16 %v23
  %v1480 = vunpack.c.l.b16 %v24
  %v1481 = vunpack.c.h.b16 %v24
  %v1482 = vunpack.c.l.b16 %v25
  %v1483 = vunpack.c.h.b16 %v25
  %v1484 = vunpack.c.l.b16 %v26
  %v1485 = vunpack.c.h.b16 %v26
  %v1486 = vunpack.c.l.b16 %v27
  %v1487 = vunpack.c.h.b16 %v27
  %v1488 = vunpack.c.l.b16 %v28
  %v1489 = vunpack.c.h.b16 %v28
  %v1490 = vunpack.c.l.b16 %v29
  %v1491 = vunpack.c.h.b16 %v29
  %v1492 = vunpack.c.l.b16 %v30
  %v1493 = vunpack.c.h.b16 %v30
  %v1494 = vunpack.c.l.b16 %v31
  %v1495 = vunpack.c.h.b16 %v31
  %v1496 = vunpack.c.l.b16 %v32
  %v1497 = vunpack.c.h.b16 %v32
  %v1498 = vunpack.c.l.b16 %v33
  %v1499 = vunpack.c.h.b16 %v33
  %v1500 = vunpack.c.l.b16 %v34
  %v1501 = vunpack.c.h.b16 %v34
  %v1502 = vunpack.c.l.b16 %v35
  %v1503 = vunpack.c.h.b16 %v35
  %v1504 = vunpack.c.l.b16 %v36
  %v1505 = vunpack.c.h.b16 %v36
  %v1506 = vunpack.c.l.b16 %v37
  %v1507 = vunpack.c.h.b16 %v37
  %v1508 = vunpack.c.l.b16 %v38
  %v1509 = vunpack.c.h.b16 %v38
  %v1510 = vunpack.c.l.b16 %v39
  %v1511 = vunpack.c.h.b16 %v39
  %v1512 = vunpack.c.l.b16 %v40
  %v1513 = vunpack.c.h.b16 %v40
  %v1514 = vunpack.c.l.b16 %v41
  %v1515 = vunpack.c.h.b16 %v41
  %v1516 = vunpack.c.l.b16 %v42
  %v1517 = vunpack.c.h.b16 %v42
  %v1518 = vunpack.c.l.b16 %v43
  %v1519 = vunpack.c.h.b16 %v43
  %v1520 = vunpack.c.l.b16 %v44
  %v1521 = vunpack.c.h.b16 %v44
  %v1522 = vunpack.c.l.b16 %v45
  %v1523 = vunpack.c.h.b16 %v45
  %v1524 = vunpack.c.l.b16 %v46
  %v1525 = vunpack.c.h.b16 %v46
  %v1526 = vunpack.c.l.b16 %v47
  %v1527 = vunpack.c.h.b16 %v47
  %v1528 = vunpack.c.l.b16 %v48
  %v1529 = vunpack.c.h.b16 %v48
  %v1530 = vunpack.c.l.b16 %v49
  %v1531 = vunpack.c.h.b16 %v49
  %v1532 = vunpack.c.l.b16 %v50
  %v1533 = vunpack.c.h.b16 %v50
  %v1534 = vunpack.c.l.b16 %v51
  %v1535 = vunpack.c.h.b16 %v51
  %v1536 = vunpack.c.l.b16 %v52
  %v1537 = vunpack.c.h.b16 %v52
  %v1538 = vunpack.c.l.b16 %v53
  %v1539 = vunpack.c.h.b16 %v53
  %v1540 = vunpack.c.l.b16 %v54
  %v1541 = vunpack.c.h.b16 %v54
  %v1542 = vunpack.c.l.b16 %v55
  %v1543 = vunpack.c.h.b16 %v55
  %v1544 = vunpack.c.l.b16 %v56
  %v1545 = vunpack.c.h.b16 %v56
  %v1546 = vunpack.c.l.b16 %v57
  %v1547 = vunpack.c.h.b16 %v57
  %v1548 = vunpack.c.l.b16 %v58
  %v1549 = vunpack.c.h.b16 %v58
  %v1550 = vunpack.c.l.b16 %v59
  %v1551 = vunpack.c.h.b16 %v59
  %v1552 = vunpack.c.l.b16 %v60
  %v1553 = vunpack.c.h.b16 %v60
  %v1554 = vunpack.c.l.b16 %v61
  %v1555 = vunpack.c.h.b16 %v61
  %v1556 = vunpack.c.l.b16 %v62
  %v1557 = vunpack.c.h.b16 %v62
  %v1558 = vunpack.c.l.b16 %v63
  %v1559 = vunpack.c.h.b16 %v63
  %v1560 = vunpack.c.l.b16 %v64
  %v1561 = vunpack.c.h.b16 %v64
  %v1562 = vunpack.c.l.b16 %v65
  %v1563 = vunpack.c.h.b16 %v65
  %v1564 = vunpack.c.l.b16 %v66
  %v1565 = vunpack.c.h.b16 %v66
  %v1566 = vunpack.c.l.b16 %v67
  %v1567 = vunpack.c.h.b16 %v67
  %v1568 = vunpack.c.l.b16 %v68
  %v1569 = vunpack.c.h.b16 %v68
  %v1570 = vunpack.c.l.b16 %v69
  %v1571 = vunpack.c.h.b16 %v69
  %v1572 = vunpack.c.l.b16 %v70
  %v1573 = vunpack.c.h.b16 %v70
  %v1574 = vunpack.c.l.b16 %v71
  %v1575 = vunpack.c.h.b16 %v71
  %v1576 = vunpack.c.l.b16 %v72
  %v1577 = vunpack.c.h.b16 %v72
  %v1578 = vunpack.c.l.b16 %v73
  %v1579 = vunpack.c.h.b16 %v73
  %v1580 = vunpack.c.l.b16 %v74
  %v1581 = vunpack.c.h.b16 %v74
  %v1582 = vunpack.c.l.b16 %v75
  %v1583 = vunpack.c.h.b16 %v75
  %v1584 = vunpack.c.l.b16 %v76
  %v1585 = vunpack.c.h.b16 %v76
  %v1586 = vunpack.c.l.b16 %v77
  %v1587 = vunpack.c.h.b16 %v77
  %v1588 = vunpack.c.l.b16 %v78
  %v1589 = vunpack.c.h.b16 %v78
  %v1590 = vunpack.c.l.b16 %v79
  %v1591 = vunpack.c.h.b16 %v79
  %v1592 = vunpack.c.l.b16 %v80
  %v1593 = vunpack.c.h.b16 %v80
  %v1594 = vunpack.c.l.b16 %v81
  %v1595 = vunpack.c.h.b16 %v81
  %v1596 = vunpack.c.l.b16 %v82
  %v1597 = vunpack.c.h.b16 %v82
  %v1598 = vunpack.c.l.b16 %v83
  %v1599 = vunpack.c.h.b16 %v83
  %v1600 = vunpack.c.l.b16 %v84
  %v1601 = vunpack.c.h.b16 %v84
  %v1602 = vunpack.c.l.b16 %v85
  %v1603 = vunpack.c.h.b16 %v85
  %v1604 = vunpack.c.l.b16 %v86
  %v1605 = vunpack.c.h.b16 %v86
  %v1606 = vunpack.c.l.b16 %v87
  %v1607 = vunpack.c.h.b16 %v87
  %v1608 = vunpack.c.l.b16 %v88
  %v1609 = vunpack.c.h.b16 %v88
  %v1610 = vunpack.c.l.b16 %v89
  %v1611 = vunpack.c.h.b16 %v89
  %v1612 = vunpack.c.l.b16 %v90
  %v1613 = vunpack.c.h.b16 %v90
  %v1614 = vunpack.c.l.b16 %v91
  %v1615 = vunpack.c.h.b16 %v91
  %v1616 = vunpack.c.l.b16 %v92
  %v1617 = vunpack.c.h.b16 %v92
  %v1618 = vunpack.c.l.b16 %v93
  %v1619 = vunpack.c.h.b16 %v93
  %v1620 = vunpack.c.l.b16 %v94
  %v1621 = vunpack.c.h.b16 %v94
  %v1622 = vunpack.c.l.b16 %v95
  %v1623 = vunpack.c.h.b16 %v95
  %v1624 = vunpack.c.l.b16 %v96
  %v1625 = vunpack.c.h.b16 %v96
  %v1626 = vunpack.c.l.b16 %v97
  %v1627 = vunpack.c.h.b16 %v97
  %v1628 = vunpack.c.l.b16 %v98
  %v1629 = vunpack.c.h.b16 %v98
  %v1630 = vunpack.c.l.b16 %v99
  %v1631 = vunpack.c.h.b16 %v99
  %v1632 = vunpack.c.l.b16 %v100
  %v1633 = vunpack.c.h.b16 %v100
  %v1634 = vunpack.c.l.b16 %v101
  %v1635 = vunpack.c.h.b16 %v101
  %v1636 = vunpack.c.l.b16 %v102
  %v1637 = vunpack.c.h.b16 %v102
  %v1638 = vunpack.c.l.b16 %v103
  %v1639 = vunpack.c.h.b16 %v103
  %v1640 = vunpack.c.l.b16 %v104
  %v1641 = vunpack.c.h.b16 %v104
  %v1642 = vunpack.c.l.b16 %v105
  %v1643 = vunpack.c.h.b16 %v105
  %v1644 = vunpack.c.l.b16 %v106
  %v1645 = vunpack.c.h.b16 %v106
  %v1646 = vunpack.c.l.b16 %v107
  %v1647 = vunpack.c.h.b16 %v107
  %v1648 = vunpack.c.l.b16 %v108
  %v1649 = vunpack.c.h.b16 %v108
  %v1650 = vunpack.c.l.b16 %v109
  %v1651 = vunpack.c.h.b16 %v109
  %v1652 = vunpack.c.l.b16 %v110
  %v1653 = vunpack.c.h.b16 %v110
  %v1654 = vunpack.c.l.b16 %v111
  %v1655 = vunpack.c.h.b16 %v111
  %v1656 = vunpack.c.l.b16 %v112
  %v1657 = vunpack.c.h.b16 %v112
  %v1658 = vunpack.c.l.b16 %v113
  %v1659 = vunpack.c.h.b16 %v113
  %v1660 = vunpack.c.l.b16 %v114
  %v1661 = vunpack.c.h.b16 %v114
  %v1662 = vunpack.c.l.b16 %v115
  %v1663 = vunpack.c.h.b16 %v115
  %v1664 = vunpack.c.l.b16 %v116
  %v1665 = vunpack.c.h.b16 %v116
  %v1666 = vunpack.c.l.b16 %v117
  %v1667 = vunpack.c.h.b16 %v117
  %v1668 = vunpack.c.l.b16 %v118
  %v1669 = vunpack.c.h.b16 %v118
  %v1670 = vunpack.c.l.b16 %v119
  %v1671 = vunpack.c.h.b16 %v119
  %v1672 = vunpack.c.l.b16 %v120
  %v1673 = vunpack.c.h.b16 %v120
  %v1674 = vunpack.c.l.b16 %v121
  %v1675 = vunpack.c.h.b16 %v121
  %v1676 = vunpack.c.l.b16 %v122
  %v1677 = vunpack.c.h.b16 %v122
  %v1678 = vunpack.c.l.b16 %v123
  %v1679 = vunpack.c.h.b16 %v123
  %v1680 = vunpack.c.l.b16 %v124
  %v1681 = vunpack.c.h.b16 %v124
  %v1682 = vunpack.c.l.b16 %v125
  %v1683 = vunpack.c.h.b16 %v125
  %v1684 = vunpack.c.l.b16 %v126
  %v1685 = vunpack.c.h.b16 %v126
  %v1686 = vunpack.c.l.b16 %v127
  %v1687 = vunpack.c.h.b16 %v127
  %v1688 = vunpack.c.l.b16 %v128
  %v1689 = vunpack.c.h.b16 %v128
  %v1690 = vunpack.c.l.b16 %v129
  %v1691 = vunpack.c.h.b16 %v129
  %v1692 = vunpack.c.l.b16 %v130
  %v1693 = vunpack.c.h.b16 %v130
  %v1694 = vunpack.c.l.b16 %v131
  %v1695 = vunpack.c.h.b16 %v131
  %v1696 = vunpack.c.l.b16 %v132
  %v1697 = vunpack.c.h.b16 %v132
  %v1698 = vunpack.c.l.b16 %v133
  %v1699 = vunpack.c.h.b16 %v133
  %v1700 = vunpack.c.l.b16 %v134
  %v1701 = vunpack.c.h.b16 %v134
  %v1702 = vunpack.c.l.b16 %v135
  %v1703 = vunpack.c.h.b16 %v135
  %v1704 = vunpack.c.l.b16 %v136
  %v1705 = vunpack.c.h.b16 %v136
  %v1706 = vunpack.c.l.b16 %v137
  %v1707 = vunpack.c.h.b16 %v137
  %v1708 = vunpack.c.l.b16 %v138
  %v1709 = vunpack.c.h.b16 %v138
  %v1710 = vunpack.c.l.b16 %v139
  %v1711 = vunpack.c.h.b16 %v139
  %v1712 = vunpack.c.l.b16 %v140
  %v1713 = vunpack.c.h.b16 %v140
  %v1714 = vunpack.c.l.b16 %v141
  %v1715 = vunpack.c.h.b16 %v141
  %v1716 = vunpack.c.l.b16 %v142
  %v1717 = vunpack.c.h.b16 %v142
  %v1718 = vunpack.c.l.b16 %v143
  %v1719 = vunpack.c.h.b16 %v143
  %v1720 = vunpack.c.l.b16 %v144
  %v1721 = vunpack.c.h.b16 %v144
  %v1722 = vunpack.c.l.b16 %v145
  %v1723 = vunpack.c.h.b16 %v145
  %v1724 = vunpack.c.l.b16 %v146
  %v1725 = vunpack.c.h.b16 %v146
  %v1726 = vunpack.c.l.b16 %v147
  %v1727 = vunpack.c.h.b16 %v147
  %v1728 = vunpack.c.l.b16 %v148
  %v1729 = vunpack.c.h.b16 %v148
  %v1730 = vunpack.c.l.b16 %v149
  %v1731 = vunpack.c.h.b16 %v149
  %v1732 = vunpack.c.l.b16 %v150
  %v1733 = vunpack.c.h.b16 %v150
  %v1734 = vunpack.c.l.b16 %v151
  %v1735 = vunpack.c.h.b16 %v151
  %v1736 = vunpack.c.l.b16 %v152
  %v1737 = vunpack.c.h.b16 %v152
  %v1738 = vunpack.c.l.b16 %v153
  %v1739 = vunpack.c.h.b16 %v153
  %v1740 = vunpack.c.l.b16 %v154
  %v1741 = vunpack.c.h.b16 %v154
  %v1742 = vunpack.c.l.b16 %v155
  %v1743 = vunpack.c.h.b16 %v155
  %v1744 = vunpack.c.l.b16 %v156
  %v1745 = vunpack.c.h.b16 %v156
  %v1746 = vunpack.c.l.b16 %v157
  %v1747 = vunpack.c.h.b16 %v157
  %v1748 = vunpack.c.l.b16 %v158
  %v1749 = vunpack.c.h.b16 %v158
  %v1750 = vpack.c.b16 %v1534, %v1462
  %v1751 = vpack.c.b16 %v1535, %v1463
  %v1752 = vpack.c.b16 %v1536, %v1464
  %v1753 = vpack.c.b16 %v1537, %v1465
  %v1754 = vpack.c.b16 %v1538, %v1466
  %v1755 = vpack.c.b16 %v1539, %v1467
  %v1756 = vpack.c.b16 %v1540, %v1468
  %v1757 = vpack.c.b16 %v1541, %v1469
  %v1758 = vpack.c.b16 %v1542, %v1470
  %v1759 = vpack.c.b16 %v1543, %v1471
  %v1760 = vpack.c.b16 %v1544, %v1472
  %v1761 = vpack.c.b16 %v1545, %v1473
  %v1762 = vpack.c.b16 %v1546, %v1474
  %v1763 = vpack.c.b16 %v1547, %v1475
  %v1764 = vpack.c.b16 %v1548, %v1476
  %v1765 = vpack.c.b16 %v1549, %v1477
  %v1766 = vpack.c.b16 %v1550, %v1478
  %v1767 = vpack.c.b16 %v1551, %v1479
  %v1768 = vpack.c.b16 %v1552, %v1480
  %v1769 = vpack.c.b16 %v1553, %v1481
  %v1770 = vpack.c.b16 %v1554, %v1482
  %v1771 = vpack.c.b16 %v1555, %v1483
  %v1772 = vpack.c.b16 %v1556, %v1484
  %v1773 = vpack.c.b16 %v1557, %v1485
  %v1774 = vpack.c.b16 %v1558, %v1486
  %v1775 = vpack.c.b16 %v1559, %v1487
  %v1776 = vpack.c.b16 %v1560, %v1488
  %v1777 = vpack.c.b16 %v1561, %v1489
  %v1778 = vpack.c.b16 %v1562, %v1490
  %v1779 = vpack.c.b16 %v1563, %v1491
  %v1780 = vpack.c.b16 %v1564, %v1492
  %v1781 = vpack.c.b16 %v1565, %v1493
  %v1782 = vpack.c.b16 %v1566, %v1494
  %v1783 = vpack.c.b16 %v1567, %v1495
  %v1784 = vpack.c.b16 %v1568, %v1496
  %v1785 = vpack.c.b16 %v1569, %v1497
  %v1786 = vpack.c.b16 %v1570, %v1498
  %v1787 = vpack.c.b16 %v1571, %v1499
  %v1788 = vpack.c.b16 %v1572, %v1500
  %v1789 = vpack.c.b16 %v1573, %v1501
  %v1790 = vpack.c.b16 %v1574, %v1502
  %v1791 = vpack.c.b16 %v1575, %v1503
  %v1792 = vpack.c.b16 %v1576, %v1504
  %v1793 = vpack.c.b16 %v1577, %v1505
  %v1794 = vpack.c.b16 %v1578, %v1506
  %v1795 = vpack.c.b16 %v1579, %v1507
  %v1796 = vpack.c.b16 %v1580, %v1508
  %v1797 = vpack.c.b16 %v1581, %v1509
  %v1798 = vpack.c.b16 %v1582, %v1510
  %v1799 = vpack.c.b16 %v1583, %v1511
  %v1800 = vpack.c.b16 %v1584, %v1512
  %v1801 = vpack.c.b16 %v1585, %v1513
  %v1802 = vpack.c.b16 %v1586, %v1514
  %v1803 = vpack.c.b16 %v1587, %v1515
  %v1804 = vpack.c.b16 %v1588, %v1516
  %v1805 = vpack.c.b16 %v1589, %v1517
  %v1806 = vpack.c.b16 %v1590, %v1518
  %v1807 = vpack.c.b16 %v1591, %v1519
  %v1808 = vpack.c.b16 %v1592, %v1520
  %v1809 = vpack.c.b16 %v1593, %v1521
  %v1810 = vpack.c.b16 %v1594, %v1522
  %v1811 = vpack.c.b16 %v1595, %v1523
  %v1812 = vpack.c.b16 %v1596, %v1524
  %v1813 = vpack.c.b16 %v1597, %v1525
  %v1814 = vpack.c.b16 %v1598, %v1526
  %v1815 = vpack.c.b16 %v1599, %v1527
  %v1816 = vpack.c.b16 %v1600, %v1528
  %v1817 = vpack.c.b16 %v1601, %v1529
  %v1818 = vpack.c.b16 %v1602, %v1530
  %v1819 = vpack.c.b16 %v1603, %v1531
  %v1820 = vpack.c.b16 %v1604, %v1532
  %v1821 = vpack.c.b16 %v1605, %v1533
  %v1822 = vpack.c.b16 %v1678, %v1606
  %v1823 = vpack.c.b16 %v1679, %v1607
  %v1824 = vpack.c.b16 %v1680, %v1608
  %v1825 = vpack.c.b16 %v1681, %v1609
  %v1826 = vpack.c.b16 %v1682, %v1610
  %v1827 = vpack.c.b16 %v1683, %v1611
  %v1828 = vpack.c.b16 %v1684, %v1612
  %v1829 = vpack.c.b16 %v1685, %v1613
  %v1830 = vpack.c.b16 %v1686, %v1614
  %v1831 = vpack.c.b16 %v1687, %v1615
  %v1832 = vpack.c.b16 %v1688, %v1616
  %v1833 = vpack.c.b16 %v1689, %v1617
  %v1834 = vpack.c.b16 %v1690, %v1618
  %v1835 = vpack.c.b16 %v1691, %v1619
  %v1836 = vpack.c.b16 %v1692, %v1620
  %v1837 = vpack.c.b16 %v1693, %v1621
  %v1838 = vpack.c.b16 %v1694, %v1622
  %v1839 = vpack.c.b16 %v1695, %v1623
  %v1840 = vpack.c.b16 %v1696, %v1624
  %v1841 = vpack.c.b16 %v1697, %v1625
  %v1842 = vpack.c.b16 %v1698, %v1626
  %v1843 = vpack.c.b16 %v1699, %v1627
  %v1844 = vpack.c.b16 %v1700, %v1628
  %v1845 = vpack.c.b16 %v1701, %v1629
  %v1846 = vpack.c.b16 %v1702, %v1630
  %v1847 = vpack.c.b16 %v1703, %v1631
  %v1848 = vpack.c.b16 %v1704, %v1632
  %v1849 = vpack.c.b16 %v1705, %v1633
  %v1850 = vpack.c.b16 %v1706, %v1634
  %v1851 = vpack.c.b16 %v1707, %v1635
  %v1852 = vpack.c.b16 %v1708, %v1636
  %v1853 = vpack.c.b16 %v1709, %v1637
  %v1854 = vpack.c.b16 %v1710, %v1638
  %v1855 = vpack.c.b16 %v1711, %v1639
  %v1856 = vpack.c.b16 %v1712, %v1640
  %v1857 = vpack.c.b16 %v1713, %v1641
  %v1858 = vpack.c.b16 %v1714, %v1642
  %v1859 = vpack.c.b16 %v1715, %v1643
  %v1860 = vpack.c.b16 %v1716, %v1644
  %v1861 = vpack.c.b16 %v1717, %v1645
  %v1862 = vpack.c.b16 %v1718, %v1646
  %v1863 = vpack.c.b16 %v1719, %v1647
  %v1864 = vpack.c.b16 %v1720, %v1648
  %v1865 = vpack.c.b16 %v1721, %v1649
  %v1866 = vpack.c.b16 %v1722, %v1650
  %v1867 = vpack.c.b16 %v1723, %v1651
  %v1868 = vpack.c.b16 %v1724, %v1652
  %v1869 = vpack.c.b16 %v1725, %v1653
  %v1870 = vpack.c.b16 %v1726, %v1654
  %v1871 = vpack.c.b16 %v1727, %v1655
  %v1872 = vpack.c.b16 %v1728, %v1656
  %v1873 = vpack.c.b16 %v1729, %v1657
  %v1874 = vpack.c.b16 %v1730, %v1658
  %v1875 = vpack.c.b16 %v1731, %v1659
  %v1876 = vpack.c.b16 %v1732, %v1660
  %v1877 = vpack.c.b16 %v1733, %v1661
  %v1878 = vpack.c.b16 %v1734, %v1662
  %v1879 = vpack.c.b16 %v1735, %v1663
  %v1880 = vpack.c.b16 %v1736, %v1664
  %v1881 = vpack.c.b16 %v1737, %v1665
  %v1882 = vpack.c.b16 %v1738, %v1666
  %v1883 = vpack.c.b16 %v1739, %v1667
  %v1884 = vpack.c.b16 %v1740, %v1668
  %v1885 = vpack.c.b16 %v1741, %v1669
  %v1886 = vpack.c.b16 %v1742, %v1670
  %v1887 = vpack.c.b16 %v1743, %v1671
  %v1888 = vpack.c.b16 %v1744, %v1672
  %v1889 = vpack.c.b16 %v1745, %v1673
  %v1890 = vpack.c.b16 %v1746, %v1674
  %v1891 = vpack.c.b16 %v1747, %v1675
  %v1892 = vpack.c.b16 %v1748, %v1676
  %v1893 = vpack.c.b16 %v1749, %v1677
  %v3190 = vunpack.c.l.b16 %v159
  %v3191 = vunpack.c.l.b16 %v160
  %v3192 = vunpack.c.l.b16 %v161
  %v3193 = vunpack.c.l.b16 %v162
  %v3194 = vunpack.c.l.b16 %v163
  %v3195 = vunpack.c.l.b16 %v164
  %v3196 = vunpack.c.l.b16 %v165
  %v3197 = vunpack.c.l.b16 %v166
  %v3198 = vunpack.c.l.b16 %v167
  %v3199 = vunpack.c.l.b16 %v168
  %v3200 = vunpack.c.l.b16 %v169
  %v3201 = vunpack.c.l.b16 %v170
  %v3202 = vunpack.c.l.b16 %v171
  %v3203 = vunpack.c.l.b16 %v172
  %v3204 = vunpack.c.l.b16 %v173
  %v3205 = vunpack.c.l.b16 %v174
  %v3206 = vunpack.c.l.b16 %v175
  %v3207 = vunpack.c.l.b16 %v176
  %v3208 = vunpack.c.l.b16 %v177
  %v3209 = vunpack.c.l.b16 %v178
  %v3210 = vunpack.c.l.b16 %v179
  %v3211 = vunpack.c.l.b16 %v180
  %v3212 = vunpack.c.l.b16 %v181
  %v3213 = vunpack.c.l.b16 %v182
  %v3214 = vunpack.c.l.b16 %v183
  %v3215 = vunpack.c.l.b16 %v184
  %v3216 = vunpack.c.l.b16 %v185
  %v3217 = vunpack.c.l.b16 %v186
  %v3218 = vunpack.c.l.b16 %v187
  %v3219 = vunpack.c.l.b16 %v188
  %v3220 = vunpack.c.l.b16 %v189
  %v3221 = vunpack.c.l.b16 %v190
  %v3222 = vunpack.c.l.b16 %v191
  %v3223 = vunpack.c.l.b16 %v192
  %v3224 = vunpack.c.l.b16 %v193
  %v3225 = vunpack.c.l.b16 %v194
  %v3226 = vunpack.c.l.b16 %v195
  %v3227 = vunpack.c.l.b16 %v196
  %v3228 = vunpack.c.l.b16 %v197
  %v3229 = vunpack.c.l.b16 %v198
  %v3230 = vunpack.c.l.b16 %v199
  %v3231 = vunpack.c.l.b16 %v200
  %v3232 = vunpack.c.l.b16 %v201
  %v3233 = vunpack.c.l.b16 %v202
  %v3234 = vunpack.c.l.b16 %v203
  %v3235 = vunpack.c.l.b16 %v204
  %v3236 = vunpack.c.l.b16 %v205
  %v3237 = vunpack.c.l.b16 %v206
  %v3238 = vunpack.c.l.b16 %v207
  %v3239 = vunpack.c.l.b16 %v208
  %v3240 = vunpack.c.l.b16 %v209
  %v3241 = vunpack.c.l.b16 %v210
  %v3242 = vunpack.c.l.b16 %v211
  %v3243 = vunpack.c.l.b16 %v212
  %v3244 = vunpack.c.l.b16 %v213
  %v3245 = vunpack.c.l.b16 %v214
  %v3246 = vunpack.c.l.b16 %v215
  %v3247 = vunpack.c.l.b16 %v216
  %v3248 = vunpack.c.l.b16 %v217
  %v3249 = vunpack.c.l.b16 %v218
  %v3250 = vunpack.c.l.b16 %v219
  %v3251 = vunpack.c.l.b16 %v220
  %v3252 = vunpack.c.l.b16 %v221
  %v3253 = vunpack.c.l.b16 %v222
  %v3254 = vunpack.c.l.b16 %v223
  %v3255 = vunpack.c.l.b16 %v224
  %v3256 = vunpack.c.l.b16 %v225
  %v3257 = vunpack.c.l.b16 %v226
  %v3258 = vunpack.c.l.b16 %v227
  %v3259 = vunpack.c.l.b16 %v228
  %v3260 = vunpack.c.l.b16 %v229
  %v3261 = vunpack.c.l.b16 %v230
  %v3262 = vunpack.c.l.b16 %v231
  %v3263 = vunpack.c.l.b16 %v232
  %v3264 = vunpack.c.l.b16 %v233
  %v3265 = vunpack.c.l.b16 %v234
  %v3266 = vunpack.c.l.b16 %v235
  %v3267 = vunpack.c.l.b16 %v236
  %v3268 = vunpack.c.l.b16 %v237
  %v3269 = vunpack.c.l.b16 %v238
  %v3270 = vunpack.c.l.b16 %v239
  %v3271 = vunpack.c.l.b16 %v240
  %v3272 = vunpack.c.l.b16 %v241
  %v3273 = vunpack.c.l.b16 %v242
  %v3274 = vunpack.c.l.b16 %v243
  %v3275 = vunpack.c.l.b16 %v244
  %v3276 = vunpack.c.l.b16 %v245
  %v3277 = vunpack.c.l.b16 %v246
  %v3278 = vunpack.c.l.b16 %v247
  %v3279 = vunpack.c.l.b16 %v248
  %v3280 = vunpack.c.l.b16 %v249
  %v3281 = vunpack.c.l.b16 %v250
  %v3282 = vunpack.c.l.b16 %v251
  %v3283 = vunpack.c.l.b16 %v252
  %v3284 = vunpack.c.l.b16 %v253
  %v3285 = vunpack.c.l.b16 %v254
  %v3286 = vunpack.c.l.b16 %v255
  %v3287 = vunpack.c.l.b16 %v256
  %v3288 = vunpack.c.l.b16 %v257
  %v3289 = vunpack.c.l.b16 %v258
  %v3290 = vunpack.c.l.b16 %v259
  %v3291 = vunpack.c.l.b16 %v260
  %v3292 = vunpack.c.l.b16 %v261
  %v3293 = vunpack.c.l.b16 %v262
  %v3294 = vunpack.c.l.b16 %v263
  %v3295 = vunpack.c.l.b16 %v264
  %v3296 = vunpack.c.l.b16 %v265
  %v3297 = vunpack.c.l.b16 %v266
  %v3298 = vunpack.c.l.b16 %v267
  %v3299 = vunpack.c.l.b16 %v268
  %v3300 = vunpack.c.l.b16 %v269
  %v3301 = vunpack.c.l.b16 %v270
  %v3302 = vunpack.c.l.b16 %v271
  %v3303 = vunpack.c.l.b16 %v272
  %v3304 = vunpack.c.l.b16 %v273
  %v3305 = vunpack.c.l.b16 %v274
  %v3306 = vunpack.c.l.b16 %v275
  %v3307 = vunpack.c.l.b16 %v276
  %v3308 = vunpack.c.l.b16 %v277
  %v3309 = vunpack.c.l.b16 %v278
  %v3310 = vunpack.c.l.b16 %v279
  %v3311 = vunpack.c.l.b16 %v280
  %v3312 = vunpack.c.l.b16 %v281
  %v3313 = vunpack.c.l.b16 %v282
  %v3314 = vunpack.c.l.b16 %v283
  %v3315 = vunpack.c.l.b16 %v284
  %v3316 = vunpack.c.l.b16 %v285
  %v3317 = vunpack.c.l.b16 %v286
  %v3318 = vunpack.c.l.b16 %v287
  %v3319 = vunpack.c.l.b16 %v288
  %v3320 = vunpack.c.l.b16 %v289
  %v3321 = vunpack.c.l.b16 %v290
  %v3322 = vunpack.c.l.b16 %v291
  %v3323 = vunpack.c.l.b16 %v292
  %v3324 = vunpack.c.l.b16 %v293
  %v3325 = vunpack.c.l.b16 %v294
  %v3326 = vunpack.c.l.b16 %v295
  %v3327 = vunpack.c.l.b16 %v296
  %v3328 = vunpack.c.l.b16 %v297
  %v3329 = vunpack.c.l.b16 %v298
  %v3330 = vunpack.c.l.b16 %v299
  %v3331 = vunpack.c.l.b16 %v300
  %v3332 = vunpack.c.l.b16 %v301
  %v3333 = vunpack.c.l.b16 %v302
  %v3334 = vunpack.c.l.b16 %v303
  %v3335 = vunpack.c.l.b16 %v304
  %v3336 = vunpack.c.l.b16 %v305
  %v3337 = vunpack.c.l.b16 %v306
  %v3338 = vunpack.c.l.b16 %v307
  %v3339 = vunpack.c.l.b16 %v308
  %v3340 = vunpack.c.l.b16 %v309
  %v3341 = vunpack.c.l.b16 %v310
  %v3342 = vunpack.c.l.b16 %v311
  %v3343 = vunpack.c.l.b16 %v312
  %v3344 = vunpack.c.l.b16 %v313
  %v3345 = vunpack.c.l.b16 %v314
  %v3346 = vunpack.c.l.b16 %v315
  %v3347 = vunpack.c.l.b16 %v316
  %v3348 = vunpack.c.l.b16 %v317
  %v3349 = vunpack.c.l.b16 %v318
  %v3350 = vunpack.c.l.b16 %v319
  %v3351 = vunpack.c.l.b16 %v320
  %v3352 = vunpack.c.l.b16 %v321
  %v3353 = vunpack.c.l.b16 %v322
  %v3354 = vunpack.c.l.b16 %v323
  %v3355 = vunpack.c.l.b16 %v324
  %v3356 = vunpack.c.l.b16 %v325
  %v3357 = vunpack.c.l.b16 %v326
  %v3358 = vunpack.c.l.b16 %v327
  %v3359 = vunpack.c.l.b16 %v328
  %v3360 = vunpack.c.l.b16 %v329
  %v3361 = vunpack.c.l.b16 %v330
  %v3362 = vunpack.c.l.b16 %v331
  %v3363 = vunpack.c.l.b16 %v332
  %v3364 = vunpack.c.l.b16 %v333
  %v3365 = vunpack.c.l.b16 %v334
  %v3366 = vunpack.c.l.b16 %v335
  %v3367 = vunpack.c.l.b16 %v336
  %v3368 = vunpack.c.l.b16 %v337
  %v3369 = vunpack.c.l.b16 %v338
  %v3370 = vunpack.c.l.b16 %v339
  %v3371 = vunpack.c.l.b16 %v340
  %v3372 = vunpack.c.l.b16 %v341
  %v3373 = vunpack.c.l.b16 %v342
  %v3374 = vunpack.c.l.b16 %v343
  %v3375 = vunpack.c.l.b16 %v344
  %v3376 = vunpack.c.l.b16 %v345
  %v3377 = vunpack.c.l.b16 %v346
  %v3378 = vunpack.c.l.b16 %v347
  %v3379 = vunpack.c.l.b16 %v348
  %v3380 = vunpack.c.l.b16 %v349
  %v3381 = vunpack.c.l.b16 %v350
  %v3382 = vunpack.c.l.b16 %v351
  %v3383 = vunpack.c.l.b16 %v352
  %v3384 = vunpack.c.l.b16 %v353
  %v3385 = vunpack.c.l.b16 %v354
  %v3386 = vunpack.c.l.b16 %v355
  %v3387 = vunpack.c.l.b16 %v356
  %v3388 = vunpack.c.l.b16 %v357
  %v3389 = vunpack.c.l.b16 %v358
  %v3390 = vunpack.c.l.b16 %v359
  %v3391 = vunpack.c.l.b16 %v360
  %v3392 = vunpack.c.l.b16 %v361
  %v3393 = vunpack.c.l.b16 %v362
  %v3394 = vunpack.c.l.b16 %v363
  %v3395 = vunpack.c.l.b16 %v364
  %v3396 = vunpack.c.l.b16 %v365
  %v3397 = vunpack.c.l.b16 %v366
  %v3398 = vunpack.c.l.b16 %v367
  %v3399 = vunpack.c.l.b16 %v368
  %v3400 = vunpack.c.l.b16 %v369
  %v3401 = vunpack.c.l.b16 %v370
  %v3402 = vunpack.c.l.b16 %v371
  %v3403 = vunpack.c.l.b16 %v372
  %v3404 = vunpack.c.l.b16 %v373
  %v3405 = vunpack.c.l.b16 %v374
  %v3406 = vunpack.c.l.b16 %v375
  %v3407 = vunpack.c.l.b16 %v376
  %v3408 = vunpack.c.l.b16 %v377
  %v3409 = vunpack.c.l.b16 %v378
  %v3410 = vunpack.c.l.b16 %v379
  %v3411 = vunpack.c.l.b16 %v380
  %v3412 = vunpack.c.l.b16 %v381
  %v3413 = vunpack.c.l.b16 %v382
  %v3414 = vunpack.c.l.b16 %v383
  %v3415 = vunpack.c.l.b16 %v384
  %v3416 = vunpack.c.l.b16 %v385
  %v3417 = vunpack.c.l.b16 %v386
  %v3418 = vunpack.c.l.b16 %v387
  %v3419 = vunpack.c.l.b16 %v388
  %v3420 = vunpack.c.l.b16 %v389
  %v3421 = vunpack.c.l.b16 %v390
  %v3422 = vunpack.c.l.b16 %v391
  %v3423 = vunpack.c.l.b16 %v392
  %v3424 = vunpack.c.l.b16 %v393
  %v3425 = vunpack.c.l.b16 %v394
  %v3426 = vunpack.c.l.b16 %v395
  %v3427 = vunpack.c.l.b16 %v396
  %v3428 = vunpack.c.l.b16 %v397
  %v3429 = vunpack.c.l.b16 %v398
  %v3430 = vunpack.c.l.b16 %v399
  %v3431 = vunpack.c.l.b16 %v400
  %v3432 = vunpack.c.l.b16 %v401
  %v3433 = vunpack.c.l.b16 %v402
  %v3434 = vunpack.c.l.b16 %v403
  %v3435 = vunpack.c.l.b16 %v404
  %v3436 = vunpack.c.l.b16 %v405
  %v3437 = vunpack.c.l.b16 %v406
  %v3438 = vunpack.c.l.b16 %v407
  %v3439 = vunpack.c.l.b16 %v408
  %v3440 = vunpack.c.l.b16 %v409
  %v3441 = vunpack.c.l.b16 %v410
  %v3442 = vunpack.c.l.b16 %v411
  %v3443 = vunpack.c.l.b16 %v412
  %v3444 = vunpack.c.l.b16 %v413
  %v3445 = vunpack.c.l.b16 %v414
  %v3446 = vunpack.c.l.b16 %v415
  %v3447 = vunpack.c.l.b16 %v416
  %v3448 = vunpack.c.l.b16 %v417
  %v3449 = vunpack.c.l.b16 %v418
  %v3450 = vunpack.c.l.b16 %v419
  %v3451 = vunpack.c.l.b16 %v420
  %v3452 = vunpack.c.l.b16 %v421
  %v3453 = vunpack.c.l.b16 %v422
  %v3454 = vunpack.c.l.b16 %v423
  %v3455 = vunpack.c.l.b16 %v424
  %v3456 = vunpack.c.l.b16 %v425
  %v3457 = vunpack.c.l.b16 %v426
  %v3458 = vunpack.c.l.b16 %v427
  %v3459 = vunpack.c.l.b16 %v428
  %v3460 = vunpack.c.l.b16 %v429
  %v3461 = vunpack.c.l.b16 %v430
  %v3462 = vunpack.c.l.b16 %v431
  %v3463 = vunpack.c.l.b16 %v432
  %v3464 = vunpack.c.l.b16 %v433
  %v3465 = vunpack.c.l.b16 %v434
  %v3466 = vunpack.c.l.b16 %v435
  %v3467 = vunpack.c.l.b16 %v436
  %v3468 = vunpack.c.l.b16 %v437
  %v3469 = vunpack.c.l.b16 %v438
  %v3470 = vunpack.c.l.b16 %v439
  %v3471 = vunpack.c.l.b16 %v440
  %v3472 = vunpack.c.l.b16 %v441
  %v3473 = vunpack.c.l.b16 %v442
  %v3474 = vunpack.c.l.b16 %v443
  %v3475 = vunpack.c.l.b16 %v444
  %v3476 = vunpack.c.l.b16 %v445
  %v3477 = vunpack.c.l.b16 %v446
  %v3478 = vunpack.c.l.b16 %v447
  %v3479 = vunpack.c.l.b16 %v448
  %v3480 = vunpack.c.l.b16 %v449
  %v3481 = vunpack.c.l.b16 %v450
  %v3482 = vunpack.c.l.b16 %v451
  %v3483 = vunpack.c.l.b16 %v452
  %v3484 = vunpack.c.l.b16 %v453
  %v3485 = vunpack.c.l.b16 %v454
  %v3486 = vunpack.c.l.b16 %v455
  %v3487 = vunpack.c.l.b16 %v456
  %v3488 = vunpack.c.l.b16 %v457
  %v3489 = vunpack.c.l.b16 %v458
  %v3490 = vunpack.c.l.b16 %v459
  %v3491 = vunpack.c.l.b16 %v460
  %v3492 = vunpack.c.l.b16 %v461
  %v3493 = vunpack.c.l.b16 %v462
  %v3494 = vunpack.c.l.b16 %v463
  %v3495 = vunpack.c.l.b16 %v464
  %v3496 = vunpack.c.l.b16 %v465
  %v3497 = vunpack.c.l.b16 %v466
  %v3498 = vunpack.c.l.b16 %v467
  %v3499 = vunpack.c.l.b16 %v468
  %v3500 = vunpack.c.l.b16 %v469
  %v3501 = vunpack.c.l.b16 %v470
  %v3502 = vunpack.c.l.b16 %v471
  %v3503 = vunpack.c.l.b16 %v472
  %v3504 = vunpack.c.l.b16 %v473
  %v3505 = vunpack.c.l.b16 %v474
  %v3506 = vunpack.c.l.b16 %v475
  %v3507 = vunpack.c.l.b16 %v476
  %v3508 = vunpack.c.l.b16 %v477
  %v3509 = vunpack.c.l.b16 %v478
  %v3510 = vunpack.c.l.b16 %v479
  %v3511 = vunpack.c.l.b16 %v480
  %v3512 = vunpack.c.l.b16 %v481
  %v3513 = vunpack.c.l.b16 %v482
  %v3514 = vunpack.c.l.b16 %v483
  %v3515 = vunpack.c.l.b16 %v484
  %v3516 = vunpack.c.l.b16 %v485
  %v3517 = vunpack.c.l.b16 %v486
  %v3518 = vunpack.c.l.b16 %v487
  %v3519 = vunpack.c.l.b16 %v488
  %v3520 = vunpack.c.l.b16 %v489
  %v3521 = vunpack.c.l.b16 %v490
  %v3522 = vunpack.c.l.b16 %v491
  %v3523 = vunpack.c.l.b16 %v492
  %v3524 = vunpack.c.l.b16 %v493
  %v3525 = vunpack.c.l.b16 %v494
  %v3526 = vunpack.c.l.b16 %v495
  %v3527 = vunpack.c.l.b16 %v496
  %v3528 = vunpack.c.l.b16 %v497
  %v3529 = vunpack.c.l.b16 %v498
  %v3530 = vunpack.c.l.b16 %v499
  %v3531 = vunpack.c.l.b16 %v500
  %v3532 = vunpack.c.l.b16 %v501
  %v3533 = vunpack.c.l.b16 %v502
  %v3534 = vunpack.c.l.b16 %v503
  %v3535 = vunpack.c.l.b16 %v504
  %v3536 = vunpack.c.l.b16 %v505
  %v3537 = vunpack.c.l.b16 %v506
  %v3538 = vunpack.c.l.b16 %v507
  %v3539 = vunpack.c.l.b16 %v508
  %v3540 = vunpack.c.l.b16 %v509
  %v3541 = vunpack.c.l.b16 %v510
  %v3542 = vunpack.c.l.b16 %v511
  %v3543 = vunpack.c.l.b16 %v512
  %v3544 = vunpack.c.l.b16 %v513
  %v3545 = vunpack.c.l.b16 %v514
  %v3546 = vunpack.c.l.b16 %v515
  %v3547 = vunpack.c.l.b16 %v516
  %v3548 = vunpack.c.l.b16 %v517
  %v3549 = vunpack.c.l.b16 %v518
  %v3550 = vunpack.c.l.b16 %v519
  %v3551 = vunpack.c.l.b16 %v520
  %v3552 = vunpack.c.l.b16 %v521
  %v3553 = vunpack.c.l.b16 %v522
  %v3554 = vunpack.c.l.b16 %v523
  %v3555 = vunpack.c.l.b16 %v524
  %v3556 = vunpack.c.l.b16 %v525
  %v3557 = vunpack.c.l.b16 %v526
  %v3558 = vunpack.c.l.b16 %v527
  %v3559 = vunpack.c.l.b16 %v528
  %v3560 = vunpack.c.l.b16 %v529
  %v3561 = vunpack.c.l.b16 %v530
  %v3562 = vunpack.c.l.b16 %v531
  %v3563 = vunpack.c.l.b16 %v532
  %v3564 = vunpack.c.l.b16 %v533
  %v3565 = vunpack.c.l.b16 %v534
  %v3566 = vunpack.c.l.b16 %v535
  %v3567 = vunpack.c.l.b16 %v536
  %v3568 = vunpack.c.l.b16 %v537
  %v3569 = vunpack.c.l.b16 %v538
  %v3570 = vunpack.c.l.b16 %v539
  %v3571 = vunpack.c.l.b16 %v540
  %v3572 = vunpack.c.l.b16 %v541
  %v3573 = vunpack.c.l.b16 %v542
  %v3574 = vunpack.c.l.b16 %v543
  %v3575 = vunpack.c.l.b16 %v544
  %v3576 = vunpack.c.l.b16 %v545
  %v3577 = vunpack.c.l.b16 %v546
  %v3578 = vunpack.c.l.b16 %v547
  %v3579 = vunpack.c.l.b16 %v548
  %v3580 = vunpack.c.l.b16 %v549
  %v3581 = vunpack.c.l.b16 %v550
  %v3582 = vunpack.c.l.b16 %v551
  %v3583 = vunpack.c.l.b16 %v552
  %v3584 = vunpack.c.l.b16 %v553
  %v3585 = vunpack.c.l.b16 %v554
  %v3586 = vunpack.c.l.b16 %v555
  %v3587 = vunpack.c.l.b16 %v556
  %v3588 = vunpack.c.l.b16 %v557
  %v3589 = vunpack.c.l.b16 %v558
  %v3590 = vunpack.c.l.b16 %v559
  %v3591 = vunpack.c.l.b16 %v560
  %v3592 = vunpack.c.l.b16 %v561
  %v3593 = vunpack.c.l.b16 %v562
  %v3594 = vunpack.c.l.b16 %v563
  %v3595 = vunpack.c.l.b16 %v564
  %v3596 = vunpack.c.l.b16 %v565
  %v3597 = vunpack.c.l.b16 %v566
  %v3598 = vunpack.c.l.b16 %v567
  %v3599 = vunpack.c.l.b16 %v568
  %v3600 = vunpack.c.l.b16 %v569
  %v3601 = vunpack.c.l.b16 %v570
  %v3602 = vunpack.c.l.b16 %v571
  %v3603 = vunpack.c.l.b16 %v572
  %v3604 = vunpack.c.l.b16 %v573
  %v3605 = vunpack.c.l.b16 %v574
  %v3606 = vunpack.c.l.b16 %v575
  %v3607 = vunpack.c.l.b16 %v576
  %v3608 = vunpack.c.l.b16 %v577
  %v3609 = vunpack.c.l.b16 %v578
  %v3610 = vunpack.c.l.b16 %v579
  %v3611 = vunpack.c.l.b16 %v580
  %v3612 = vunpack.c.l.b16 %v581
  %v3613 = vunpack.c.l.b16 %v582
  %v3614 = vunpack.c.l.b16 %v583
  %v3615 = vunpack.c.l.b16 %v584
  %v3616 = vunpack.c.l.b16 %v585
  %v3617 = vunpack.c.l.b16 %v586
  %v3618 = vunpack.c.l.b16 %v587
  %v3619 = vunpack.c.l.b16 %v588
  %v3620 = vunpack.c.l.b16 %v589
  %v3621 = vunpack.c.l.b16 %v590
  %v3622 = vunpack.c.l.b16 %v591
  %v3623 = vunpack.c.l.b16 %v592
  %v3624 = vunpack.c.l.b16 %v593
  %v3625 = vunpack.c.l.b16 %v594
  %v3626 = vunpack.c.l.b16 %v595
  %v3627 = vunpack.c.l.b16 %v596
  %v3628 = vunpack.c.l.b16 %v597
  %v3629 = vunpack.c.l.b16 %v598
  %v3630 = vunpack.c.l.b16 %v599
  %v3631 = vunpack.c.l.b16 %v600
  %v3632 = vunpack.c.l.b16 %v601
  %v3633 = vunpack.c.l.b16 %v602
  %v3634 = vunpack.c.l.b16 %v603
  %v3635 = vunpack.c.l.b16 %v604
  %v3636 = vunpack.c.l.b16 %v605
  %v3637 = vunpack.c.l.b16 %v606
  %v3638 = vunpack.c.l.b16 %v607
  %v3639 = vunpack.c.l.b16 %v608
  %v3640 = vunpack.c.l.b16 %v609
  %v3641 = vunpack.c.l.b16 %v610
  %v3642 = vunpack.c.l.b16 %v611
  %v3643 = vunpack.c.l.b16 %v612
  %v3644 = vunpack.c.l.b16 %v613
  %v3645 = vunpack.c.l.b16 %v614
  %v3646 = vunpack.c.l.b16 %v615
  %v3647 = vunpack.c.l.b16 %v616
  %v3648 = vunpack.c.l.b16 %v617
  %v3649 = vunpack.c.l.b16 %v618
  %v3650 = vunpack.c.l.b16 %v619
  %v3651 = vunpack.c.l.b16 %v620
  %v3652 = vunpack.c.l.b16 %v621
  %v3653 = vunpack.c.l.b16 %v622
  %v3654 = vunpack.c.l.b16 %v623
  %v3655 = vunpack.c.l.b16 %v624
  %v3656 = vunpack.c.l.b16 %v625
  %v3657 = vunpack.c.l.b16 %v626
  %v3658 = vunpack.c.l.b16 %v627
  %v3659 = vunpack.c.l.b16 %v628
  %v3660 = vunpack.c.l.b16 %v629
  %v3661 = vunpack.c.l.b16 %v630
  %v3662 = vunpack.c.l.b16 %v631
  %v3663 = vunpack.c.l.b16 %v632
  %v3664 = vunpack.c.l.b16 %v633
  %v3665 = vunpack.c.l.b16 %v634
  %v3666 = vunpack.c.l.b16 %v635
  %v3667 = vunpack.c.l.b16 %v636
  %v3668 = vunpack.c.l.b16 %v637
  %v3669 = vunpack.c.l.b16 %v638
  %v3670 = vunpack.c.l.b16 %v639
  %v3671 = vunpack.c.l.b16 %v640
  %v3672 = vunpack.c.l.b16 %v641
  %v3673 = vunpack.c.l.b16 %v642
  %v3674 = vunpack.c.l.b16 %v643
  %v3675 = vunpack.c.l.b16 %v644
  %v3676 = vunpack.c.l.b16 %v645
  %v3677 = vunpack.c.l.b16 %v646
  %v3678 = vunpack.c.l.b16 %v647
  %v3679 = vunpack.c.l.b16 %v648
  %v3680 = vunpack.c.l.b16 %v649
  %v3681 = vunpack.c.l.b16 %v650
  %v3682 = vunpack.c.l.b16 %v651
  %v3683 = vunpack.c.l.b16 %v652
  %v3684 = vunpack.c.l.b16 %v653
  %v3685 = vunpack.c.l.b16 %v654
  %v3686 = vunpack.c.l.b16 %v655
  %v3687 = vunpack.c.l.b16 %v656
  %v3688 = vunpack.c.l.b16 %v657
  %v3689 = vunpack.c.l.b16 %v658
  %v3690 = vunpack.c.l.b16 %v659
  %v3691 = vunpack.c.l.b16 %v660
  %v3692 = vunpack.c.l.b16 %v661
  %v3693 = vunpack.c.l.b16 %v662
  %v3694 = vunpack.c.l.b16 %v663
  %v3695 = vunpack.c.l.b16 %v664
  %v3696 = vunpack.c.l.b16 %v665
  %v3697 = vunpack.c.l.b16 %v666
  %v3698 = vunpack.c.l.b16 %v667
  %v3699 = vunpack.c.l.b16 %v668
  %v3700 = vunpack.c.l.b16 %v669
  %v3701 = vunpack.c.l.b16 %v670
  %v3702 = vunpack.c.l.b16 %v671
  %v3703 = vunpack.c.l.b16 %v672
  %v3704 = vunpack.c.l.b16 %v673
  %v3705 = vunpack.c.l.b16 %v674
  %v3706 = vunpack.c.l.b16 %v675
  %v3707 = vunpack.c.l.b16 %v676
  %v3708 = vunpack.c.l.b16 %v677
  %v3709 = vunpack.c.l.b16 %v678
  %v3710 = vunpack.c.l.b16 %v679
  %v3711 = vunpack.c.l.b16 %v680
  %v3712 = vunpack.c.l.b16 %v681
  %v3713 = vunpack.c.l.b16 %v682
  %v3714 = vunpack.c.l.b16 %v683
  %v3715 = vunpack.c.l.b16 %v684
  %v3716 = vunpack.c.l.b16 %v685
  %v3717 = vunpack.c.l.b16 %v686
  %v3718 = vunpack.c.l.b16 %v687
  %v3719 = vunpack.c.l.b16 %v688
  %v3720 = vunpack.c.l.b16 %v689
  %v3721 = vunpack.c.l.b16 %v690
  %v3722 = vunpack.c.l.b16 %v691
  %v3723 = vunpack.c.l.b16 %v692
  %v3724 = vunpack.c.l.b16 %v693
  %v3725 = vunpack.c.l.b16 %v694
  %v3726 = vunpack.c.l.b16 %v695
  %v3727 = vunpack.c.l.b16 %v696
  %v3728 = vunpack.c.l.b16 %v697
  %v3729 = vunpack.c.l.b16 %v698
  %v3730 = vunpack.c.l.b16 %v699
  %v3731 = vunpack.c.l.b16 %v700
  %v3732 = vunpack.c.l.b16 %v701
  %v3733 = vunpack.c.l.b16 %v702
  %v3734 = vunpack.c.l.b16 %v703
  %v3735 = vunpack.c.l.b16 %v704
  %v3736 = vunpack.c.l.b16 %v705
  %v3737 = vunpack.c.l.b16 %v706
  %v3738 = vunpack.c.l.b16 %v707
  %v3739 = vunpack.c.l.b16 %v708
  %v3740 = vunpack.c.l.b16 %v709
  %v3741 = vunpack.c.l.b16 %v710
  %v3742 = vunpack.c.l.b16 %v711
  %v3743 = vunpack.c.l.b16 %v712
  %v3744 = vunpack.c.l.b16 %v713
  %v3745 = vunpack.c.l.b16 %v714
  %v3746 = vunpack.c.l.b16 %v715
  %v3747 = vunpack.c.l.b16 %v716
  %v3748 = vunpack.c.l.b16 %v717
  %v3749 = vunpack.c.l.b16 %v718
  %v3750 = vunpack.c.l.b16 %v719
  %v3751 = vunpack.c.l.b16 %v720
  %v3752 = vunpack.c.l.b16 %v721
  %v3753 = vunpack.c.l.b16 %v722
  %v3754 = vunpack.c.l.b16 %v723
  %v3755 = vunpack.c.l.b16 %v724
  %v3756 = vunpack.c.l.b16 %v725
  %v3757 = vunpack.c.l.b16 %v726
  %v3758 = vunpack.c.l.b16 %v727
  %v3759 = vunpack.c.l.b16 %v728
  %v3760 = vunpack.c.l.b16 %v729
  %v3761 = vunpack.c.l.b16 %v730
  %v3762 = vunpack.c.l.b16 %v731
  %v3763 = vunpack.c.l.b16 %v732
  %v3764 = vunpack.c.l.b16 %v733
  %v3765 = vunpack.c.l.b16 %v734
  %v3766 = vunpack.c.l.b16 %v735
  %v3767 = vunpack.c.l.b16 %v736
  %v3768 = vunpack.c.l.b16 %v737
  %v3769 = vunpack.c.l.b16 %v738
  %v3770 = vunpack.c.l.b16 %v739
  %v3771 = vunpack.c.l.b16 %v740
  %v3772 = vunpack.c.l.b16 %v741
  %v3773 = vunpack.c.l.b16 %v742
  %v3774 = vunpack.c.l.b16 %v743
  %v3775 = vunpack.c.l.b16 %v744
  %v3776 = vunpack.c.l.b16 %v745
  %v3777 = vunpack.c.l.b16 %v746
  %v3778 = vunpack.c.l.b16 %v747
  %v3779 = vunpack.c.l.b16 %v748
  %v3780 = vunpack.c.l.b16 %v749
  %v3781 = vunpack.c.l.b16 %v750
  %v3782 = vunpack.c.l.b16 %v751
  %v3783 = vunpack.c.l.b16 %v752
  %v3784 = vunpack.c.l.b16 %v753
  %v3785 = vunpack.c.l.b16 %v754
  %v3786 = vunpack.c.l.b16 %v755
  %v3787 = vunpack.c.l.b16 %v756
  %v3788 = vunpack.c.l.b16 %v757
  %v3789 = vunpack.c.l.b16 %v758
  %v3790 = vunpack.c.l.b16 %v759
  %v3791 = vunpack.c.l.b16 %v760
  %v3792 = vunpack.c.l.b16 %v761
  %v3793 = vunpack.c.l.b16 %v762
  %v3794 = vunpack.c.l.b16 %v763
  %v3795 = vunpack.c.l.b16 %v764
  %v3796 = vunpack.c.l.b16 %v765
  %v3797 = vunpack.c.l.b16 %v766
  %v3798 = vunpack.c.l.b16 %v767
  %v3799 = vunpack.c.l.b16 %v768
  %v3800 = vunpack.c.l.b16 %v769
  %v3801 = vunpack.c.l.b16 %v770
  %v3802 = vunpack.c.l.b16 %v771
  %v3803 = vunpack.c.l.b16 %v772
  %v3804 = vunpack.c.l.b16 %v773
  %v3805 = vunpack.c.l.b16 %v774
  %v3806 = vunpack.c.l.b16 %v775
  %v3807 = vunpack.c.l.b16 %v776
  %v3808 = vunpack.c.l.b16 %v777
  %v3809 = vunpack.c.l.b16 %v778
  %v3810 = vunpack.c.l.b16 %v779
  %v3811 = vunpack.c.l.b16 %v780
  %v3812 = vunpack.c.l.b16 %v781
  %v3813 = vunpack.c.l.b16 %v782
  %v3814 = vunpack.c.l.b16 %v783
  %v3815 = vunpack.c.l.b16 %v784
  %v3816 = vunpack.c.l.b16 %v785
  %v3817 = vunpack.c.l.b16 %v786
  %v3818 = vunpack.c.l.b16 %v787
  %v3819 = vunpack.c.l.b16 %v788
  %v3820 = vunpack.c.l.b16 %v789
  %v3821 = vunpack.c.l.b16 %v790
  %v3822 = vunpack.c.l.b16 %v791
  %v3823 = vunpack.c.l.b16 %v792
  %v3824 = vunpack.c.l.b16 %v793
  %v3825 = vunpack.c.l.b16 %v794
  %v3826 = vunpack.c.l.b16 %v795
  %v3827 = vunpack.c.l.b16 %v796
  %v3828 = vunpack.c.l.b16 %v797
  %v3829 = vunpack.c.l.b16 %v798
  %v3830 = vunpack.c.l.b16 %v799
  %v3831 = vunpack.c.l.b16 %v800
  %v3832 = vunpack.c.l.b16 %v801
  %v3833 = vunpack.c.l.b16 %v802
  %v3834 = vunpack.c.l.b16 %v803
  %v3835 = vunpack.c.l.b16 %v804
  %v3836 = vunpack.c.l.b16 %v805
  %v3837 = vunpack.c.l.b16 %v806
  %v3838 = vunpack.c.l.b16 %v807
  %v3839 = vunpack.c.l.b16 %v808
  %v3840 = vunpack.c.l.b16 %v809
  %v3841 = vunpack.c.l.b16 %v810
  %v3842 = vunpack.c.l.b16 %v811
  %v3843 = vunpack.c.l.b16 %v812
  %v3844 = vunpack.c.l.b16 %v813
  %v3845 = vunpack.c.l.b16 %v814
  %v3846 = vunpack.c.l.b16 %v815
  %v3847 = vunpack.c.l.b16 %v816
  %v3848 = vunpack.c.l.b16 %v817
  %v3849 = vunpack.c.l.b16 %v818
  %v3850 = vunpack.c.l.b16 %v819
  %v3851 = vunpack.c.l.b16 %v820
  %v3852 = vunpack.c.l.b16 %v821
  %v3853 = vunpack.c.l.b16 %v822
  %v3854 = vunpack.c.l.b16 %v823
  %v3855 = vunpack.c.l.b16 %v824
  %v3856 = vunpack.c.l.b16 %v825
  %v3857 = vunpack.c.l.b16 %v826
  %v3858 = vunpack.c.l.b16 %v827
  %v3859 = vunpack.c.l.b16 %v828
  %v3860 = vunpack.c.l.b16 %v829
  %v3861 = vunpack.c.l.b16 %v830
  %v3862 = vunpack.c.l.b16 %v831
  %v3863 = vunpack.c.l.b16 %v832
  %v3864 = vunpack.c.l.b16 %v833
  %v3865 = vunpack.c.l.b16 %v834
  %v3866 = vunpack.c.l.b16 %v835
  %v3867 = vunpack.c.l.b16 %v836
  %v3868 = vunpack.c.l.b16 %v837
  %v3869 = vunpack.c.l.b16 %v838
  %v3870 = vunpack.c.l.b16 %v839
  %v3871 = vunpack.c.l.b16 %v840
  %v3872 = vunpack.c.l.b16 %v841
  %v3873 = vunpack.c.l.b16 %v842
  %v3874 = vunpack.c.l.b16 %v843
  %v3875 = vunpack.c.l.b16 %v844
  %v3876 = vunpack.c.l.b16 %v845
  %v3877 = vunpack.c.l.b16 %v846
  %v3878 = vunpack.c.l.b16 %v847
  %v3879 = vunpack.c.l.b16 %v848
  %v3880 = vunpack.c.l.b16 %v849
  %v3881 = vunpack.c.l.b16 %v850
  %v3882 = vunpack.c.l.b16 %v851
  %v3883 = vunpack.c.l.b16 %v852
  %v3884 = vunpack.c.l.b16 %v853
  %v3885 = vunpack.c.l.b16 %v854
  %v3886 = vunpack.c.l.b16 %v855
  %v3887 = vunpack.c.l.b16 %v856
  %v3888 = vunpack.c.l.b16 %v857
  %v3889 = vunpack.c.l.b16 %v858
  %v3890 = vunpack.c.l.b16 %v859
  %v3891 = vunpack.c.l.b16 %v860
  %v3892 = vunpack.c.l.b16 %v861
  %v3893 = vunpack.c.l.b16 %v862
  %v3894 = vunpack.c.l.b16 %v863
  %v3895 = vunpack.c.l.b16 %v864
  %v3896 = vunpack.c.l.b16 %v865
  %v3897 = vunpack.c.l.b16 %v866
  %v3898 = vunpack.c.l.b16 %v867
  %v3899 = vunpack.c.l.b16 %v868
  %v3900 = vunpack.c.l.b16 %v869
  %v3901 = vunpack.c.l.b16 %v870
  %v3902 = vunpack.c.l.b16 %v871
  %v3903 = vunpack.c.l.b16 %v872
  %v3904 = vunpack.c.l.b16 %v873
  %v3905 = vunpack.c.l.b16 %v874
  %v3906 = vunpack.c.l.b16 %v875
  %v3907 = vunpack.c.l.b16 %v876
  %v3908 = vunpack.c.l.b16 %v877
  %v3909 = vunpack.c.l.b16 %v878
  %v3910 = vunpack.c.l.b16 %v879
  %v3911 = vunpack.c.l.b16 %v880
  %v3912 = vunpack.c.l.b16 %v881
  %v3913 = vunpack.c.l.b16 %v882
  %v3914 = vunpack.c.l.b16 %v883
  %v3915 = vunpack.c.l.b16 %v884
  %v3916 = vunpack.c.l.b16 %v885
  %v3917 = vunpack.c.l.b16 %v886
  %v3918 = vunpack.c.l.b16 %v887
  %v3919 = vunpack.c.l.b16 %v888
  %v3920 = vunpack.c.l.b16 %v889
  %v3921 = vunpack.c.l.b16 %v890
  %v3922 = vunpack.c.l.b16 %v891
  %v3923 = vunpack.c.l.b16 %v892
  %v3924 = vunpack.c.l.b16 %v893
  %v3925 = vunpack.c.l.b16 %v894
  %v3926 = vunpack.c.l.b16 %v895
  %v3927 = vunpack.c.l.b16 %v896
  %v3928 = vunpack.c.l.b16 %v897
  %v3929 = vunpack.c.l.b16 %v898
  %v3930 = vunpack.c.l.b16 %v899
  %v3931 = vunpack.c.l.b16 %v900
  %v3932 = vunpack.c.l.b16 %v901
  %v3933 = vunpack.c.l.b16 %v902
  %v3934 = vunpack.c.l.b16 %v903
  %v3935 = vunpack.c.l.b16 %v904
  %v3936 = vunpack.c.l.b16 %v905
  %v3937 = vunpack.c.l.b16 %v906
  %v3938 = vunpack.c.l.b16 %v907
  %v3939 = vunpack.c.l.b16 %v908
  %v3940 = vunpack.c.l.b16 %v909
  %v3941 = vunpack.c.l.b16 %v910
  %v3942 = vunpack.c.l.b16 %v911
  %v3943 = vunpack.c.l.b16 %v912
  %v3944 = vunpack.c.l.b16 %v913
  %v3945 = vunpack.c.l.b16 %v914
  %v3946 = vunpack.c.l.b16 %v915
  %v3947 = vunpack.c.l.b16 %v916
  %v3948 = vunpack.c.l.b16 %v917
  %v3949 = vunpack.c.l.b16 %v918
  %v3950 = vunpack.c.l.b16 %v919
  %v3951 = vunpack.c.l.b16 %v920
  %v3952 = vunpack.c.l.b16 %v921
  %v3953 = vunpack.c.l.b16 %v922
  %v3954 = vunpack.c.l.b16 %v923
  %v3955 = vunpack.c.l.b16 %v924
  %v3956 = vunpack.c.l.b16 %v925
  %v3957 = vunpack.c.l.b16 %v926
  %v3958 = vunpack.c.l.b16 %v927
  %v3959 = vunpack.c.l.b16 %v928
  %v3960 = vunpack.c.l.b16 %v929
  %v3961 = vunpack.c.l.b16 %v930
  %v3962 = vunpack.c.l.b16 %v931
  %v3963 = vunpack.c.l.b16 %v932
  %v3964 = vunpack.c.l.b16 %v933
  %v3965 = vunpack.c.l.b16 %v934
  %v3966 = vunpack.c.l.b16 %v935
  %v3967 = vunpack.c.l.b16 %v936
  %v3968 = vunpack.c.l.b16 %v937
  %v3969 = vunpack.c.l.b16 %v938
  %v3970 = vunpack.c.l.b16 %v939
  %v3971 = vunpack.c.l.b16 %v940
  %v3972 = vunpack.c.l.b16 %v941
  %v3973 = vunpack.c.l.b16 %v942
  %v3974 = vunpack.c.l.b16 %v943
  %v3975 = vunpack.c.l.b16 %v944
  %v3976 = vunpack.c.l.b16 %v945
  %v3977 = vunpack.c.l.b16 %v946
  %v3978 = vunpack.c.l.b16 %v947
  %v3979 = vunpack.c.l.b16 %v948
  %v3980 = vunpack.c.l.b16 %v949
  %v3981 = vunpack.c.l.b16 %v950
  %v3982 = vunpack.c.l.b16 %v951
  %v3983 = vunpack.c.l.b16 %v952
  %v3984 = vunpack.c.l.b16 %v953
  %v3985 = vunpack.c.l.b16 %v954
  %v3986 = vunpack.c.l.b16 %v955
  %v3987 = vunpack.c.l.b16 %v956
  %v3988 = vunpack.c.l.b16 %v957
  %v3989 = vunpack.c.l.b16 %v958
  %v3990 = vunpack.c.l.b16 %v959
  %v3991 = vunpack.c.l.b16 %v960
  %v3992 = vunpack.c.l.b16 %v961
  %v3993 = vunpack.c.l.b16 %v962
  %v3994 = vunpack.c.l.b16 %v963
  %v3995 = vunpack.c.l.b16 %v964
  %v3996 = vunpack.c.l.b16 %v965
  %v3997 = vunpack.c.l.b16 %v966
  %v3998 = vunpack.c.l.b16 %v967
  %v3999 = vunpack.c.l.b16 %v968
  %v4000 = vunpack.c.l.b16 %v969
  %v4001 = vunpack.c.l.b16 %v970
  %v4002 = vunpack.c.l.b16 %v971
  %v4003 = vunpack.c.l.b16 %v972
  %v4004 = vunpack.c.l.b16 %v973
  %v4005 = vunpack.c.l.b16 %v974
  %v4006 = vunpack.c.l.b16 %v975
  %v4007 = vunpack.c.l.b16 %v976
  %v4008 = vunpack.c.l.b16 %v977
  %v4009 = vunpack.c.l.b16 %v978
  %v4010 = vunpack.c.l.b16 %v979
  %v4011 = vunpack.c.l.b16 %v980
  %v4012 = vunpack.c.l.b16 %v981
  %v4013 = vunpack.c.l.b16 %v982
  %v4014 = vunpack.c.l.b16 %v983
  %v4015 = vunpack.c.l.b16 %v984
  %v4016 = vunpack.c.l.b16 %v985
  %v4017 = vunpack.c.l.b16 %v986
  %v4018 = vunpack.c.l.b16 %v987
  %v4019 = vunpack.c.l.b16 %v988
  %v4020 = vunpack.c.l.b16 %v989
  %v4021 = vunpack.c.l.b16 %v990
  %v4022 = vunpack.c.l.b16 %v991
  %v4023 = vunpack.c.l.b16 %v992
  %v4024 = vunpack.c.l.b16 %v993
  %v4025 = vunpack.c.l.b16 %v994
  %v4026 = vunpack.c.l.b16 %v995
  %v4027 = vunpack.c.l.b16 %v996
  %v4028 = vunpack.c.l.b16 %v997
  %v4029 = vunpack.c.l.b16 %v998
  %v4030 = vunpack.c.l.b16 %v999
  %v4031 = vunpack.c.l.b16 %v1000
  %v4032 = vunpack.c.l.b16 %v1001
  %v4033 = vunpack.c.l.b16 %v1002
  %v4034 = vunpack.c.l.b16 %v1003
  %v4035 = vunpack.c.l.b16 %v1004
  %v4036 = vunpack.c.l.b16 %v1005
  %v4037 = vunpack.c.l.b16 %v1006
  %v4038 = vunpack.c.l.b16 %v1007
  %v4039 = vunpack.c.l.b16 %v1008
  %v4040 = vunpack.c.l.b16 %v1009
  %v4041 = vunpack.c.l.b16 %v1010
  %v4042 = vunpack.c.l.b16 %v1011
  %v4043 = vunpack.c.l.b16 %v1012
  %v4044 = vunpack.c.l.b16 %v1013
  %v4045 = vunpack.c.l.b16 %v1014
  %v4046 = vunpack.c.l.b16 %v1015
  %v4047 = vunpack.c.l.b16 %v1016
  %v4048 = vunpack.c.l.b16 %v1017
  %v4049 = vunpack.c.l.b16 %v1018
  %v4050 = vunpack.c.l.b16 %v1019
  %v4051 = vunpack.c.l.b16 %v1020
  %v4052 = vunpack.c.l.b16 %v1021
  %v4053 = vunpack.c.l.b16 %v1022
  %v4054 = vunpack.c.l.b16 %v1023
  %v4055 = vunpack.c.l.b16 %v1024
  %v4056 = vunpack.c.l.b16 %v1025
  %v4057 = vunpack.c.l.b16 %v1026
  %v4058 = vunpack.c.l.b16 %v1027
  %v4059 = vunpack.c.l.b16 %v1028
  %v4060 = vunpack.c.l.b16 %v1029
  %v4061 = vunpack.c.l.b16 %v1030
  %v4062 = vunpack.c.l.b16 %v1031
  %v4063 = vunpack.c.l.b16 %v1032
  %v4064 = vunpack.c.l.b16 %v1033
  %v4065 = vunpack.c.l.b16 %v1034
  %v4066 = vunpack.c.l.b16 %v1035
  %v4067 = vunpack.c.l.b16 %v1036
  %v4068 = vunpack.c.l.b16 %v1037
  %v4069 = vunpack.c.l.b16 %v1038
  %v4070 = vunpack.c.l.b16 %v1039
  %v4071 = vunpack.c.l.b16 %v1040
  %v4072 = vunpack.c.l.b16 %v1041
  %v4073 = vunpack.c.l.b16 %v1042
  %v4074 = vunpack.c.l.b16 %v1043
  %v4075 = vunpack.c.l.b16 %v1044
  %v4076 = vunpack.c.l.b16 %v1045
  %v4077 = vunpack.c.l.b16 %v1046
  %v4078 = vunpack.c.l.b16 %v1047
  %v4079 = vunpack.c.l.b16 %v1048
  %v4080 = vunpack.c.l.b16 %v1049
  %v4081 = vunpack.c.l.b16 %v1050
  %v4082 = vunpack.c.l.b16 %v1051
  %v4083 = vunpack.c.l.b16 %v1052
  %v4084 = vunpack.c.l.b16 %v1053
  %v4085 = vunpack.c.l.b16 %v1054
  %v4086 = vunpack.c.l.b16 %v1055
  %v4087 = vunpack.c.l.b16 %v1056
  %v4088 = vunpack.c.l.b16 %v1057
  %v4089 = vunpack.c.l.b16 %v1058
  %v4090 = vunpack.c.l.b16 %v1059
  %v4091 = vunpack.c.l.b16 %v1060
  %v4092 = vunpack.c.l.b16 %v1061
  %v4093 = vunpack.c.l.b16 %v1062
  %v4094 = vunpack.c.l.b16 %v1063
  %v4095 = vunpack.c.l.b16 %v1064
  %v4096 = vunpack.c.l.b16 %v1065
  %v4097 = vunpack.c.l.b16 %v1066
  %v4098 = vunpack.c.l.b16 %v1067
  %v4099 = vunpack.c.l.b16 %v1068
  %v4100 = vunpack.c.l.b16 %v1069
  %v4101 = vunpack.c.l.b16 %v1070
  %v4102 = vunpack.c.l.b16 %v1071
  %v4103 = vunpack.c.l.b16 %v1072
  %v4104 = vunpack.c.l.b16 %v1073
  %v4105 = vunpack.c.l.b16 %v1074
  %v4106 = vunpack.c.l.b16 %v1075
  %v4107 = vunpack.c.l.b16 %v1076
  %v4108 = vunpack.c.l.b16 %v1077
  %v4109 = vunpack.c.l.b16 %v1078
  %v4110 = vunpack.c.l.b16 %v1079
  %v4111 = vunpack.c.l.b16 %v1080
  %v4112 = vunpack.c.l.b16 %v1081
  %v4113 = vunpack.c.l.b16 %v1082
  %v4114 = vunpack.c.l.b16 %v1083
  %v4115 = vunpack.c.l.b16 %v1084
  %v4116 = vunpack.c.l.b16 %v1085
  %v4117 = vunpack.c.l.b16 %v1086
  %v4118 = vunpack.c.l.b16 %v1087
  %v4119 = vunpack.c.l.b16 %v1088
  %v4120 = vunpack.c.l.b16 %v1089
  %v4121 = vunpack.c.l.b16 %v1090
  %v4122 = vunpack.c.l.b16 %v1091
  %v4123 = vunpack.c.l.b16 %v1092
  %v4124 = vunpack.c.l.b16 %v1093
  %v4125 = vunpack.c.l.b16 %v1094
  %v4126 = vunpack.c.l.b16 %v1095
  %v4127 = vunpack.c.l.b16 %v1096
  %v4128 = vunpack.c.l.b16 %v1097
  %v4129 = vunpack.c.l.b16 %v1098
  %v4130 = vunpack.c.l.b16 %v1099
  %v4131 = vunpack.c.l.b16 %v1100
  %v4132 = vunpack.c.l.b16 %v1101
  %v4133 = vunpack.c.l.b16 %v1102
  %v4134 = vunpack.c.l.b16 %v1103
  %v4135 = vunpack.c.l.b16 %v1104
  %v4136 = vunpack.c.l.b16 %v1105
  %v4137 = vunpack.c.l.b16 %v1106
  %v4138 = vunpack.c.l.b16 %v1107
  %v4139 = vunpack.c.l.b16 %v1108
  %v4140 = vunpack.c.l.b16 %v1109
  %v4141 = vunpack.c.l.b16 %v1110
  %v4142 = vunpack.c.l.b16 %v1111
  %v4143 = vunpack.c.l.b16 %v1112
  %v4144 = vunpack.c.l.b16 %v1113
  %v4145 = vunpack.c.l.b16 %v1114
  %v4146 = vunpack.c.l.b16 %v1115
  %v4147 = vunpack.c.l.b16 %v1116
  %v4148 = vunpack.c.l.b16 %v1117
  %v4149 = vunpack.c.l.b16 %v1118
  %v4150 = vunpack.c.l.b16 %v1119
  %v4151 = vunpack.c.l.b16 %v1120
  %v4152 = vunpack.c.l.b16 %v1121
  %v4153 = vunpack.c.l.b16 %v1122
  %v4154 = vunpack.c.l.b16 %v1123
  %v4155 = vunpack.c.l.b16 %v1124
  %v4156 = vunpack.c.l.b16 %v1125
  %v4157 = vunpack.c.l.b16 %v1126
  %v4158 = vunpack.c.l.b16 %v1127
  %v4159 = vunpack.c.l.b16 %v1128
  %v4160 = vunpack.c.l.b16 %v1129
  %v4161 = vunpack.c.l.b16 %v1130
  %v4162 = vunpack.c.l.b16 %v1131
  %v4163 = vunpack.c.l.b16 %v1132
  %v4164 = vunpack.c.l.b16 %v1133
  %v4165 = vunpack.c.l.b16 %v1134
  %v4166 = vunpack.c.l.b16 %v1135
  %v4167 = vunpack.c.l.b16 %v1136
  %v4168 = vunpack.c.l.b16 %v1137
  %v4169 = vunpack.c.l.b16 %v1138
  %v4170 = vunpack.c.l.b16 %v1139
  %v4171 = vunpack.c.l.b16 %v1140
  %v4172 = vunpack.c.l.b16 %v1141
  %v4173 = vunpack.c.l.b16 %v1142
  %v4174 = vunpack.c.l.b16 %v1143
  %v4175 = vunpack.c.l.b16 %v1144
  %v4176 = vunpack.c.l.b16 %v1145
  %v4177 = vunpack.c.l.b16 %v1146
  %v4178 = vunpack.c.l.b16 %v1147
  %v4179 = vunpack.c.l.b16 %v1148
  %v4180 = vunpack.c.l.b16 %v1149
  %v4181 = vunpack.c.l.b16 %v1150
  %v4182 = vunpack.c.l.b16 %v1151
  %v4183 = vunpack.c.l.b16 %v1152
  %v4184 = vunpack.c.l.b16 %v1153
  %v4185 = vunpack.c.l.b16 %v1154
  %v4186 = vunpack.c.l.b16 %v1155
  %v4187 = vunpack.c.l.b16 %v1156
  %v4188 = vunpack.c.l.b16 %v1157
  %v4189 = vunpack.c.l.b16 %v1158
  %v4190 = vunpack.c.l.b16 %v1159
  %v4191 = vunpack.c.l.b16 %v1160
  %v4192 = vunpack.c.l.b16 %v1161
  %v4193 = vunpack.c.l.b16 %v1162
  %v4194 = vunpack.c.l.b16 %v1163
  %v4195 = vunpack.c.l.b16 %v1164
  %v4196 = vunpack.c.l.b16 %v1165
  %v4197 = vunpack.c.l.b16 %v1166
  %v4198 = vunpack.c.l.b16 %v1167
  %v4199 = vunpack.c.l.b16 %v1168
  %v4200 = vunpack.c.l.b16 %v1169
  %v4201 = vunpack.c.l.b16 %v1170
  %v4202 = vunpack.c.l.b16 %v1171
  %v4203 = vunpack.c.l.b16 %v1172
  %v4204 = vunpack.c.l.b16 %v1173
  %v4205 = vunpack.c.l.b16 %v1174
  %v4206 = vunpack.c.l.b16 %v1175
  %v4207 = vunpack.c.l.b16 %v1176
  %v4208 = vunpack.c.l.b16 %v1177
  %v4209 = vunpack.c.l.b16 %v1178
  %v4210 = vunpack.c.l.b16 %v1179
  %v4211 = vunpack.c.l.b16 %v1180
  %v4212 = vunpack.c.l.b16 %v1181
  %v4213 = vunpack.c.l.b16 %v1182
  %v4214 = vunpack.c.l.b16 %v1183
  %v4215 = vunpack.c.l.b16 %v1184
  %v4216 = vunpack.c.l.b16 %v1185
  %v4217 = vunpack.c.l.b16 %v1186
  %v4218 = vunpack.c.l.b16 %v1187
  %v4219 = vunpack.c.l.b16 %v1188
  %v4220 = vunpack.c.l.b16 %v1189
  %v4221 = vunpack.c.l.b16 %v1190
  %v4222 = vunpack.c.l.b16 %v1191
  %v4223 = vunpack.c.l.b16 %v1192
  %v4224 = vunpack.c.l.b16 %v1193
  %v4225 = vunpack.c.l.b16 %v1194
  %v4226 = vunpack.c.l.b16 %v1195
  %v4227 = vunpack.c.l.b16 %v1196
  %v4228 = vunpack.c.l.b16 %v1197
  %v4229 = vunpack.c.l.b16 %v1198
  %v4230 = vunpack.c.l.b16 %v1199
  %v4231 = vunpack.c.l.b16 %v1200
  %v4232 = vunpack.c.l.b16 %v1201
  %v4233 = vunpack.c.l.b16 %v1202
  %v4234 = vunpack.c.l.b16 %v1203
  %v4235 = vunpack.c.l.b16 %v1204
  %v4236 = vunpack.c.l.b16 %v1205
  %v4237 = vunpack.c.l.b16 %v1206
  %v4238 = vunpack.c.l.b16 %v1207
  %v4239 = vunpack.c.l.b16 %v1208
  %v4240 = vunpack.c.l.b16 %v1209
  %v4241 = vunpack.c.l.b16 %v1210
  %v4242 = vunpack.c.l.b16 %v1211
  %v4243 = vunpack.c.l.b16 %v1212
  %v4244 = vunpack.c.l.b16 %v1213
  %v4245 = vunpack.c.l.b16 %v1214
  %v4246 = vunpack.c.l.b16 %v1215
  %v4247 = vunpack.c.l.b16 %v1216
  %v4248 = vunpack.c.l.b16 %v1217
  %v4249 = vunpack.c.l.b16 %v1218
  %v4250 = vunpack.c.l.b16 %v1219
  %v4251 = vunpack.c.l.b16 %v1220
  %v4252 = vunpack.c.l.b16 %v1221
  %v4253 = vunpack.c.l.b16 %v1222
  %v4254 = vunpack.c.l.b16 %v1223
  %v4255 = vunpack.c.l.b16 %v1224
  %v4256 = vunpack.c.l.b16 %v1225
  %v4257 = vunpack.c.l.b16 %v1226
  %v4258 = vunpack.c.l.b16 %v1227
  %v4259 = vunpack.c.l.b16 %v1228
  %v4260 = vunpack.c.l.b16 %v1229
  %v4261 = vunpack.c.l.b16 %v1230
  %v4262 = vunpack.c.l.b16 %v1231
  %v4263 = vunpack.c.l.b16 %v1232
  %v4264 = vunpack.c.l.b16 %v1233
  %v4265 = vunpack.c.l.b16 %v1234
  %v4266 = vunpack.c.l.b16 %v1235
  %v4267 = vunpack.c.l.b16 %v1236
  %v4268 = vunpack.c.l.b16 %v1237
  %v4269 = vunpack.c.l.b16 %v1238
  %v4270 = vunpack.c.l.b16 %v1239
  %v4271 = vunpack.c.l.b16 %v1240
  %v4272 = vunpack.c.l.b16 %v1241
  %v4273 = vunpack.c.l.b16 %v1242
  %v4274 = vunpack.c.l.b16 %v1243
  %v4275 = vunpack.c.l.b16 %v1244
  %v4276 = vunpack.c.l.b16 %v1245
  %v4277 = vunpack.c.l.b16 %v1246
  %v4278 = vunpack.c.l.b16 %v1247
  %v4279 = vunpack.c.l.b16 %v1248
  %v4280 = vunpack.c.l.b16 %v1249
  %v4281 = vunpack.c.l.b16 %v1250
  %v4282 = vunpack.c.l.b16 %v1251
  %v4283 = vunpack.c.l.b16 %v1252
  %v4284 = vunpack.c.l.b16 %v1253
  %v4285 = vunpack.c.l.b16 %v1254
  %v4286 = vunpack.c.l.b16 %v1255
  %v4287 = vunpack.c.l.b16 %v1256
  %v4288 = vunpack.c.l.b16 %v1257
  %v4289 = vunpack.c.l.b16 %v1258
  %v4290 = vunpack.c.l.b16 %v1259
  %v4291 = vunpack.c.l.b16 %v1260
  %v4292 = vunpack.c.l.b16 %v1261
  %v4293 = vunpack.c.l.b16 %v1262
  %v4294 = vunpack.c.l.b16 %v1263
  %v4295 = vunpack.c.l.b16 %v1264
  %v4296 = vunpack.c.l.b16 %v1265
  %v4297 = vunpack.c.l.b16 %v1266
  %v4298 = vunpack.c.l.b16 %v1267
  %v4299 = vunpack.c.l.b16 %v1268
  %v4300 = vunpack.c.l.b16 %v1269
  %v4301 = vunpack.c.l.b16 %v1270
  %v4302 = vunpack.c.l.b16 %v1271
  %v4303 = vunpack.c.l.b16 %v1272
  %v4304 = vunpack.c.l.b16 %v1273
  %v4305 = vunpack.c.l.b16 %v1274
  %v4306 = vunpack.c.l.b16 %v1275
  %v4307 = vunpack.c.l.b16 %v1276
  %v4308 = vunpack.c.l.b16 %v1277
  %v4309 = vunpack.c.l.b16 %v1278
  %v4310 = vunpack.c.l.b16 %v1279
  %v4311 = vunpack.c.l.b16 %v1280
  %v4312 = vunpack.c.l.b16 %v1281
  %v4313 = vunpack.c.l.b16 %v1282
  %v4314 = vunpack.c.l.b16 %v1283
  %v4315 = vunpack.c.l.b16 %v1284
  %v4316 = vunpack.c.l.b16 %v1285
  %v4317 = vunpack.c.l.b16 %v1286
  %v4318 = vunpack.c.l.b16 %v1287
  %v4319 = vunpack.c.l.b16 %v1288
  %v4320 = vunpack.c.l.b16 %v1289
  %v4321 = vunpack.c.l.b16 %v1290
  %v4322 = vunpack.c.l.b16 %v1291
  %v4323 = vunpack.c.l.b16 %v1292
  %v4324 = vunpack.c.l.b16 %v1293
  %v4325 = vunpack.c.l.b16 %v1294
  %v4326 = vunpack.c.l.b16 %v1295
  %v4327 = vunpack.c.l.b16 %v1296
  %v4328 = vunpack.c.l.b16 %v1297
  %v4329 = vunpack.c.l.b16 %v1298
  %v4330 = vunpack.c.l.b16 %v1299
  %v4331 = vunpack.c.l.b16 %v1300
  %v4332 = vunpack.c.l.b16 %v1301
  %v4333 = vunpack.c.l.b16 %v1302
  %v4334 = vunpack.c.l.b16 %v1303
  %v4335 = vunpack.c.l.b16 %v1304
  %v4336 = vunpack.c.l.b16 %v1305
  %v4337 = vunpack.c.l.b16 %v1306
  %v4338 = vunpack.c.l.b16 %v1307
  %v4339 = vunpack.c.l.b16 %v1308
  %v4340 = vunpack.c.l.b16 %v1309
  %v4341 = vunpack.c.l.b16 %v1310
  %v4342 = vpack.c.b16 %v3191, %v3190
  %v4343 = vpack.c.b16 %v3193, %v3192
  %v4344 = vpack.c.b16 %v3195, %v3194
  %v4345 = vpack.c.b16 %v3197, %v3196
  %v4346 = vpack.c.b16 %v3199, %v3198
  %v4347 = vpack.c.b16 %v3201, %v3200
  %v4348 = vpack.c.b16 %v3203, %v3202
  %v4349 = vpack.c.b16 %v3205, %v3204
  %v4350 = vpack.c.b16 %v3207, %v3206
  %v4351 = vpack.c.b16 %v3209, %v3208
  %v4352 = vpack.c.b16 %v3211, %v3210
  %v4353 = vpack.c.b16 %v3213, %v3212
  %v4354 = vpack.c.b16 %v3215, %v3214
  %v4355 = vpack.c.b16 %v3217, %v3216
  %v4356 = vpack.c.b16 %v3219, %v3218
  %v4357 = vpack.c.b16 %v3221, %v3220
  %v4358 = vpack.c.b16 %v3223, %v3222
  %v4359 = vpack.c.b16 %v3225, %v3224
  %v4360 = vpack.c.b16 %v3227, %v3226
  %v4361 = vpack.c.b16 %v3229, %v3228
  %v4362 = vpack.c.b16 %v3231, %v3230
  %v4363 = vpack.c.b16 %v3233, %v3232
  %v4364 = vpack.c.b16 %v3235, %v3234
  %v4365 = vpack.c.b16 %v3237, %v3236
  %v4366 = vpack.c.b16 %v3239, %v3238
  %v4367 = vpack.c.b16 %v3241, %v3240
  %v4368 = vpack.c.b16 %v3243, %v3242
  %v4369 = vpack.c.b16 %v3245, %v3244
  %v4370 = vpack.c.b16 %v3247, %v3246
  %v4371 = vpack.c.b16 %v3249, %v3248
  %v4372 = vpack.c.b16 %v3251, %v3250
  %v4373 = vpack.c.b16 %v3253, %v3252
  %v4374 = vpack.c.b16 %v3255, %v3254
  %v4375 = vpack.c.b16 %v3257, %v3256
  %v4376 = vpack.c.b16 %v3259, %v3258
  %v4377 = vpack.c.b16 %v3261, %v3260
  %v4378 = vpack.c.b16 %v3263, %v3262
  %v4379 = vpack.c.b16 %v3265, %v3264
  %v4380 = vpack.c.b16 %v3267, %v3266
  %v4381 = vpack.c.b16 %v3269, %v3268
  %v4382 = vpack.c.b16 %v3271, %v3270
  %v4383 = vpack.c.b16 %v3273, %v3272
  %v4384 = vpack.c.b16 %v3275, %v3274
  %v4385 = vpack.c.b16 %v3277, %v3276
  %v4386 = vpack.c.b16 %v3279, %v3278
  %v4387 = vpack.c.b16 %v3281, %v3280
  %v4388 = vpack.c.b16 %v3283, %v3282
  %v4389 = vpack.c.b16 %v3285, %v3284
  %v4390 = vpack.c.b16 %v3287, %v3286
  %v4391 = vpack.c.b16 %v3289, %v3288
  %v4392 = vpack.c.b16 %v3291, %v3290
  %v4393 = vpack.c.b16 %v3293, %v3292
  %v4394 = vpack.c.b16 %v3295, %v3294
  %v4395 = vpack.c.b16 %v3297, %v3296
  %v4396 = vpack.c.b16 %v3299, %v3298
  %v4397 = vpack.c.b16 %v3301, %v3300
  %v4398 = vpack.c.b16 %v3303, %v3302
  %v4399 = vpack.c.b16 %v3305, %v3304
  %v4400 = vpack.c.b16 %v3307, %v3306
  %v4401 = vpack.c.b16 %v3309, %v3308
  %v4402 = vpack.c.b16 %v3311, %v3310
  %v4403 = vpack.c.b16 %v3313, %v3312
  %v4404 = vpack.c.b16 %v3315, %v3314
  %v4405 = vpack.c.b16 %v3317, %v3316
  %v4406 = vpack.c.b16 %v3319, %v3318
  %v4407 = vpack.c.b16 %v3321, %v3320
  %v4408 = vpack.c.b16 %v3323, %v3322
  %v4409 = vpack.c.b16 %v3325, %v3324
  %v4410 = vpack.c.b16 %v3327, %v3326
  %v4411 = vpack.c.b16 %v3329, %v3328
  %v4412 = vpack.c.b16 %v3331, %v3330
  %v4413 = vpack.c.b16 %v3333, %v3332
  %v4414 = vpack.c.b16 %v3335, %v3334
  %v4415 = vpack.c.b16 %v3337, %v3336
  %v4416 = vpack.c.b16 %v3339, %v3338
  %v4417 = vpack.c.b16 %v3341, %v3340
  %v4418 = vpack.c.b16 %v3343, %v3342
  %v4419 = vpack.c.b16 %v3345, %v3344
  %v4420 = vpack.c.b16 %v3347, %v3346
  %v4421 = vpack.c.b16 %v3349, %v3348
  %v4422 = vpack.c.b16 %v3351, %v3350
  %v4423 = vpack.c.b16 %v3353, %v3352
  %v4424 = vpack.c.b16 %v3355, %v3354
  %v4425 = vpack.c.b16 %v3357, %v3356
  %v4426 = vpack.c.b16 %v3359, %v3358
  %v4427 = vpack.c.b16 %v3361, %v3360
  %v4428 = vpack.c.b16 %v3363, %v3362
  %v4429 = vpack.c.b16 %v3365, %v3364
  %v4430 = vpack.c.b16 %v3367, %v3366
  %v4431 = vpack.c.b16 %v3369, %v3368
  %v4432 = vpack.c.b16 %v3371, %v3370
  %v4433 = vpack.c.b16 %v3373, %v3372
  %v4434 = vpack.c.b16 %v3375, %v3374
  %v4435 = vpack.c.b16 %v3377, %v3376
  %v4436 = vpack.c.b16 %v3379, %v3378
  %v4437 = vpack.c.b16 %v3381, %v3380
  %v4438 = vpack.c.b16 %v3383, %v3382
  %v4439 = vpack.c.b16 %v3385, %v3384
  %v4440 = vpack.c.b16 %v3387, %v3386
  %v4441 = vpack.c.b16 %v3389, %v3388
  %v4442 = vpack.c.b16 %v3391, %v3390
  %v4443 = vpack.c.b16 %v3393, %v3392
  %v4444 = vpack.c.b16 %v3395, %v3394
  %v4445 = vpack.c.b16 %v3397, %v3396
  %v4446 = vpack.c.b16 %v3399, %v3398
  %v4447 = vpack.c.b16 %v3401, %v3400
  %v4448 = vpack.c.b16 %v3403, %v3402
  %v4449 = vpack.c.b16 %v3405, %v3404
  %v4450 = vpack.c.b16 %v3407, %v3406
  %v4451 = vpack.c.b16 %v3409, %v3408
  %v4452 = vpack.c.b16 %v3411, %v3410
  %v4453 = vpack.c.b16 %v3413, %v3412
  %v4454 = vpack.c.b16 %v3415, %v3414
  %v4455 = vpack.c.b16 %v3417, %v3416
  %v4456 = vpack.c.b16 %v3419, %v3418
  %v4457 = vpack.c.b16 %v3421, %v3420
  %v4458 = vpack.c.b16 %v3423, %v3422
  %v4459 = vpack.c.b16 %v3425, %v3424
  %v4460 = vpack.c.b16 %v3427, %v3426
  %v4461 = vpack.c.b16 %v3429, %v3428
  %v4462 = vpack.c.b16 %v3431, %v3430
  %v4463 = vpack.c.b16 %v3433, %v3432
  %v4464 = vpack.c.b16 %v3435, %v3434
  %v4465 = vpack.c.b16 %v3437, %v3436
  %v4466 = vpack.c.b16 %v3439, %v3438
  %v4467 = vpack.c.b16 %v3441, %v3440
  %v4468 = vpack.c.b16 %v3443, %v3442
  %v4469 = vpack.c.b16 %v3445, %v3444
  %v4470 = vpack.c.b16 %v3447, %v3446
  %v4471 = vpack.c.b16 %v3449, %v3448
  %v4472 = vpack.c.b16 %v3451, %v3450
  %v4473 = vpack.c.b16 %v3453, %v3452
  %v4474 = vpack.c.b16 %v3455, %v3454
  %v4475 = vpack.c.b16 %v3457, %v3456
  %v4476 = vpack.c.b16 %v3459, %v3458
  %v4477 = vpack.c.b16 %v3461, %v3460
  %v4478 = vpack.c.b16 %v3463, %v3462
  %v4479 = vpack.c.b16 %v3465, %v3464
  %v4480 = vpack.c.b16 %v3467, %v3466
  %v4481 = vpack.c.b16 %v3469, %v3468
  %v4482 = vpack.c.b16 %v3471, %v3470
  %v4483 = vpack.c.b16 %v3473, %v3472
  %v4484 = vpack.c.b16 %v3475, %v3474
  %v4485 = vpack.c.b16 %v3477, %v3476
  %v4486 = vpack.c.b16 %v3479, %v3478
  %v4487 = vpack.c.b16 %v3481, %v3480
  %v4488 = vpack.c.b16 %v3483, %v3482
  %v4489 = vpack.c.b16 %v3485, %v3484
  %v4490 = vpack.c.b16 %v3487, %v3486
  %v4491 = vpack.c.b16 %v3489, %v3488
  %v4492 = vpack.c.b16 %v3491, %v3490
  %v4493 = vpack.c.b16 %v3493, %v3492
  %v4494 = vpack.c.b16 %v3495, %v3494
  %v4495 = vpack.c.b16 %v3497, %v3496
  %v4496 = vpack.c.b16 %v3499, %v3498
  %v4497 = vpack.c.b16 %v3501, %v3500
  %v4498 = vpack.c.b16 %v3503, %v3502
  %v4499 = vpack.c.b16 %v3505, %v3504
  %v4500 = vpack.c.b16 %v3507, %v3506
  %v4501 = vpack.c.b16 %v3509, %v3508
  %v4502 = vpack.c.b16 %v3511, %v3510
  %v4503 = vpack.c.b16 %v3513, %v3512
  %v4504 = vpack.c.b16 %v3515, %v3514
  %v4505 = vpack.c.b16 %v3517, %v3516
  %v4506 = vpack.c.b16 %v3519, %v3518
  %v4507 = vpack.c.b16 %v3521, %v3520
  %v4508 = vpack.c.b16 %v3523, %v3522
  %v4509 = vpack.c.b16 %v3525, %v3524
  %v4510 = vpack.c.b16 %v3527, %v3526
  %v4511 = vpack.c.b16 %v3529, %v3528
  %v4512 = vpack.c.b16 %v3531, %v3530
  %v4513 = vpack.c.b16 %v3533, %v3532
  %v4514 = vpack.c.b16 %v3535, %v3534
  %v4515 = vpack.c.b16 %v3537, %v3536
  %v4516 = vpack.c.b16 %v3539, %v3538
  %v4517 = vpack.c.b16 %v3541, %v3540
  %v4518 = vpack.c.b16 %v3543, %v3542
  %v4519 = vpack.c.b16 %v3545, %v3544
  %v4520 = vpack.c.b16 %v3547, %v3546
  %v4521 = vpack.c.b16 %v3549, %v3548
  %v4522 = vpack.c.b16 %v3551, %v3550
  %v4523 = vpack.c.b16 %v3553, %v3552
  %v4524 = vpack.c.b16 %v3555, %v3554
  %v4525 = vpack.c.b16 %v3557, %v3556
  %v4526 = vpack.c.b16 %v3559, %v3558
  %v4527 = vpack.c.b16 %v3561, %v3560
  %v4528 = vpack.c.b16 %v3563, %v3562
  %v4529 = vpack.c.b16 %v3565, %v3564
  %v4530 = vpack.c.b16 %v3567, %v3566
  %v4531 = vpack.c.b16 %v3569, %v3568
  %v4532 = vpack.c.b16 %v3571, %v3570
  %v4533 = vpack.c.b16 %v3573, %v3572
  %v4534 = vpack.c.b16 %v3575, %v3574
  %v4535 = vpack.c.b16 %v3577, %v3576
  %v4536 = vpack.c.b16 %v3579, %v3578
  %v4537 = vpack.c.b16 %v3581, %v3580
  %v4538 = vpack.c.b16 %v3583, %v3582
  %v4539 = vpack.c.b16 %v3585, %v3584
  %v4540 = vpack.c.b16 %v3587, %v3586
  %v4541 = vpack.c.b16 %v3589, %v3588
  %v4542 = vpack.c.b16 %v3591, %v3590
  %v4543 = vpack.c.b16 %v3593, %v3592
  %v4544 = vpack.c.b16 %v3595, %v3594
  %v4545 = vpack.c.b16 %v3597, %v3596
  %v4546 = vpack.c.b16 %v3599, %v3598
  %v4547 = vpack.c.b16 %v3601, %v3600
  %v4548 = vpack.c.b16 %v3603, %v3602
  %v4549 = vpack.c.b16 %v3605, %v3604
  %v4550 = vpack.c.b16 %v3607, %v3606
  %v4551 = vpack.c.b16 %v3609, %v3608
  %v4552 = vpack.c.b16 %v3611, %v3610
  %v4553 = vpack.c.b16 %v3613, %v3612
  %v4554 = vpack.c.b16 %v3615, %v3614
  %v4555 = vpack.c.b16 %v3617, %v3616
  %v4556 = vpack.c.b16 %v3619, %v3618
  %v4557 = vpack.c.b16 %v3621, %v3620
  %v4558 = vpack.c.b16 %v3623, %v3622
  %v4559 = vpack.c.b16 %v3625, %v3624
  %v4560 = vpack.c.b16 %v3627, %v3626
  %v4561 = vpack.c.b16 %v3629, %v3628
  %v4562 = vpack.c.b16 %v3631, %v3630
  %v4563 = vpack.c.b16 %v3633, %v3632
  %v4564 = vpack.c.b16 %v3635, %v3634
  %v4565 = vpack.c.b16 %v3637, %v3636
  %v4566 = vpack.c.b16 %v3639, %v3638
  %v4567 = vpack.c.b16 %v3641, %v3640
  %v4568 = vpack.c.b16 %v3643, %v3642
  %v4569 = vpack.c.b16 %v3645, %v3644
  %v4570 = vpack.c.b16 %v3647, %v3646
  %v4571 = vpack.c.b16 %v3649, %v3648
  %v4572 = vpack.c.b16 %v3651, %v3650
  %v4573 = vpack.c.b16 %v3653, %v3652
  %v4574 = vpack.c.b16 %v3655, %v3654
  %v4575 = vpack.c.b16 %v3657, %v3656
  %v4576 = vpack.c.b16 %v3659, %v3658
  %v4577 = vpack.c.b16 %v3661, %v3660
  %v4578 = vpack.c.b16 %v3663, %v3662
  %v4579 = vpack.c.b16 %v3665, %v3664
  %v4580 = vpack.c.b16 %v3667, %v3666
  %v4581 = vpack.c.b16 %v3669, %v3668
  %v4582 = vpack.c.b16 %v3671, %v3670
  %v4583 = vpack.c.b16 %v3673, %v3672
  %v4584 = vpack.c.b16 %v3675, %v3674
  %v4585 = vpack.c.b16 %v3677, %v3676
  %v4586 = vpack.c.b16 %v3679, %v3678
  %v4587 = vpack.c.b16 %v3681, %v3680
  %v4588 = vpack.c.b16 %v3683, %v3682
  %v4589 = vpack.c.b16 %v3685, %v3684
  %v4590 = vpack.c.b16 %v3687, %v3686
  %v4591 = vpack.c.b16 %v3689, %v3688
  %v4592 = vpack.c.b16 %v3691, %v3690
  %v4593 = vpack.c.b16 %v3693, %v3692
  %v4594 = vpack.c.b16 %v3695, %v3694
  %v4595 = vpack.c.b16 %v3697, %v3696
  %v4596 = vpack.c.b16 %v3699, %v3698
  %v4597 = vpack.c.b16 %v3701, %v3700
  %v4598 = vpack.c.b16 %v3703, %v3702
  %v4599 = vpack.c.b16 %v3705, %v3704
  %v4600 = vpack.c.b16 %v3707, %v3706
  %v4601 = vpack.c.b16 %v3709, %v3708
  %v4602 = vpack.c.b16 %v3711, %v3710
  %v4603 = vpack.c.b16 %v3713, %v3712
  %v4604 = vpack.c.b16 %v3715, %v3714
  %v4605 = vpack.c.b16 %v3717, %v3716
  %v4606 = vpack.c.b16 %v3719, %v3718
  %v4607 = vpack.c.b16 %v3721, %v3720
  %v4608 = vpack.c.b16 %v3723, %v3722
  %v4609 = vpack.c.b16 %v3725, %v3724
  %v4610 = vpack.c.b16 %v3727, %v3726
  %v4611 = vpack.c.b16 %v3729, %v3728
  %v4612 = vpack.c.b16 %v3731, %v3730
  %v4613 = vpack.c.b16 %v3733, %v3732
  %v4614 = vpack.c.b16 %v3735, %v3734
  %v4615 = vpack.c.b16 %v3737, %v3736
  %v4616 = vpack.c.b16 %v3739, %v3738
  %v4617 = vpack.c.b16 %v3741, %v3740
  %v4618 = vpack.c.b16 %v3743, %v3742
  %v4619 = vpack.c.b16 %v3745, %v3744
  %v4620 = vpack.c.b16 %v3747, %v3746
  %v4621 = vpack.c.b16 %v3749, %v3748
  %v4622 = vpack.c.b16 %v3751, %v3750
  %v4623 = vpack.c.b16 %v3753, %v3752
  %v4624 = vpack.c.b16 %v3755, %v3754
  %v4625 = vpack.c.b16 %v3757, %v3756
  %v4626 = vpack.c.b16 %v3759, %v3758
  %v4627 = vpack.c.b16 %v3761, %v3760
  %v4628 = vpack.c.b16 %v3763, %v3762
  %v4629 = vpack.c.b16 %v3765, %v3764
  %v4630 = vpack.c.b16 %v3767, %v3766
  %v4631 = vpack.c.b16 %v3769, %v3768
  %v4632 = vpack.c.b16 %v3771, %v3770
  %v4633 = vpack.c.b16 %v3773, %v3772
  %v4634 = vpack.c.b16 %v3775, %v3774
  %v4635 = vpack.c.b16 %v3777, %v3776
  %v4636 = vpack.c.b16 %v3779, %v3778
  %v4637 = vpack.c.b16 %v3781, %v3780
  %v4638 = vpack.c.b16 %v3783, %v3782
  %v4639 = vpack.c.b16 %v3785, %v3784
  %v4640 = vpack.c.b16 %v3787, %v3786
  %v4641 = vpack.c.b16 %v3789, %v3788
  %v4642 = vpack.c.b16 %v3791, %v3790
  %v4643 = vpack.c.b16 %v3793, %v3792
  %v4644 = vpack.c.b16 %v3795, %v3794
  %v4645 = vpack.c.b16 %v3797, %v3796
  %v4646 = vpack.c.b16 %v3799, %v3798
  %v4647 = vpack.c.b16 %v3801, %v3800
  %v4648 = vpack.c.b16 %v3803, %v3802
  %v4649 = vpack.c.b16 %v3805, %v3804
  %v4650 = vpack.c.b16 %v3807, %v3806
  %v4651 = vpack.c.b16 %v3809, %v3808
  %v4652 = vpack.c.b16 %v3811, %v3810
  %v4653 = vpack.c.b16 %v3813, %v3812
  %v4654 = vpack.c.b16 %v3815, %v3814
  %v4655 = vpack.c.b16 %v3817, %v3816
  %v4656 = vpack.c.b16 %v3819, %v3818
  %v4657 = vpack.c.b16 %v3821, %v3820
  %v4658 = vpack.c.b16 %v3823, %v3822
  %v4659 = vpack.c.b16 %v3825, %v3824
  %v4660 = vpack.c.b16 %v3827, %v3826
  %v4661 = vpack.c.b16 %v3829, %v3828
  %v4662 = vpack.c.b16 %v3831, %v3830
  %v4663 = vpack.c.b16 %v3833, %v3832
  %v4664 = vpack.c.b16 %v3835, %v3834
  %v4665 = vpack.c.b16 %v3837, %v3836
  %v4666 = vpack.c.b16 %v3839, %v3838
  %v4667 = vpack.c.b16 %v3841, %v3840
  %v4668 = vpack.c.b16 %v3843, %v3842
  %v4669 = vpack.c.b16 %v3845, %v3844
  %v4670 = vpack.c.b16 %v3847, %v3846
  %v4671 = vpack.c.b16 %v3849, %v3848
  %v4672 = vpack.c.b16 %v3851, %v3850
  %v4673 = vpack.c.b16 %v3853, %v3852
  %v4674 = vpack.c.b16 %v3855, %v3854
  %v4675 = vpack.c.b16 %v3857, %v3856
  %v4676 = vpack.c.b16 %v3859, %v3858
  %v4677 = vpack.c.b16 %v3861, %v3860
  %v4678 = vpack.c.b16 %v3863, %v3862
  %v4679 = vpack.c.b16 %v3865, %v3864
  %v4680 = vpack.c.b16 %v3867, %v3866
  %v4681 = vpack.c.b16 %v3869, %v3868
  %v4682 = vpack.c.b16 %v3871, %v3870
  %v4683 = vpack.c.b16 %v3873, %v3872
  %v4684 = vpack.c.b16 %v3875, %v3874
  %v4685 = vpack.c.b16 %v3877, %v3876
  %v4686 = vpack.c.b16 %v3879, %v3878
  %v4687 = vpack.c.b16 %v3881, %v3880
  %v4688 = vpack.c.b16 %v3883, %v3882
  %v4689 = vpack.c.b16 %v3885, %v3884
  %v4690 = vpack.c.b16 %v3887, %v3886
  %v4691 = vpack.c.b16 %v3889, %v3888
  %v4692 = vpack.c.b16 %v3891, %v3890
  %v4693 = vpack.c.b16 %v3893, %v3892
  %v4694 = vpack.c.b16 %v3895, %v3894
  %v4695 = vpack.c.b16 %v3897, %v3896
  %v4696 = vpack.c.b16 %v3899, %v3898
  %v4697 = vpack.c.b16 %v3901, %v3900
  %v4698 = vpack.c.b16 %v3903, %v3902
  %v4699 = vpack.c.b16 %v3905, %v3904
  %v4700 = vpack.c.b16 %v3907, %v3906
  %v4701 = vpack.c.b16 %v3909, %v3908
  %v4702 = vpack.c.b16 %v3911, %v3910
  %v4703 = vpack.c.b16 %v3913, %v3912
  %v4704 = vpack.c.b16 %v3915, %v3914
  %v4705 = vpack.c.b16 %v3917, %v3916
  %v4706 = vpack.c.b16 %v3919, %v3918
  %v4707 = vpack.c.b16 %v3921, %v3920
  %v4708 = vpack.c.b16 %v3923, %v3922
  %v4709 = vpack.c.b16 %v3925, %v3924
  %v4710 = vpack.c.b16 %v3927, %v3926
  %v4711 = vpack.c.b16 %v3929, %v3928
  %v4712 = vpack.c.b16 %v3931, %v3930
  %v4713 = vpack.c.b16 %v3933, %v3932
  %v4714 = vpack.c.b16 %v3935, %v3934
  %v4715 = vpack.c.b16 %v3937, %v3936
  %v4716 = vpack.c.b16 %v3939, %v3938
  %v4717 = vpack.c.b16 %v3941, %v3940
  %v4718 = vpack.c.b16 %v3943, %v3942
  %v4719 = vpack.c.b16 %v3945, %v3944
  %v4720 = vpack.c.b16 %v3947, %v3946
  %v4721 = vpack.c.b16 %v3949, %v3948
  %v4722 = vpack.c.b16 %v3951, %v3950
  %v4723 = vpack.c.b16 %v3953, %v3952
  %v4724 = vpack.c.b16 %v3955, %v3954
  %v4725 = vpack.c.b16 %v3957, %v3956
  %v4726 = vpack.c.b16 %v3959, %v3958
  %v4727 = vpack.c.b16 %v3961, %v3960
  %v4728 = vpack.c.b16 %v3963, %v3962
  %v4729 = vpack.c.b16 %v3965, %v3964
  %v4730 = vpack.c.b16 %v3967, %v3966
  %v4731 = vpack.c.b16 %v3969, %v3968
  %v4732 = vpack.c.b16 %v3971, %v3970
  %v4733 = vpack.c.b16 %v3973, %v3972
  %v4734 = vpack.c.b16 %v3975, %v3974
  %v4735 = vpack.c.b16 %v3977, %v3976
  %v4736 = vpack.c.b16 %v3979, %v3978
  %v4737 = vpack.c.b16 %v3981, %v3980
  %v4738 = vpack.c.b16 %v3983, %v3982
  %v4739 = vpack.c.b16 %v3985, %v3984
  %v4740 = vpack.c.b16 %v3987, %v3986
  %v4741 = vpack.c.b16 %v3989, %v3988
  %v4742 = vpack.c.b16 %v3991, %v3990
  %v4743 = vpack.c.b16 %v3993, %v3992
  %v4744 = vpack.c.b16 %v3995, %v3994
  %v4745 = vpack.c.b16 %v3997, %v3996
  %v4746 = vpack.c.b16 %v3999, %v3998
  %v4747 = vpack.c.b16 %v4001, %v4000
  %v4748 = vpack.c.b16 %v4003, %v4002
  %v4749 = vpack.c.b16 %v4005, %v4004
  %v4750 = vpack.c.b16 %v4007, %v4006
  %v4751 = vpack.c.b16 %v4009, %v4008
  %v4752 = vpack.c.b16 %v4011, %v4010
  %v4753 = vpack.c.b16 %v4013, %v4012
  %v4754 = vpack.c.b16 %v4015, %v4014
  %v4755 = vpack.c.b16 %v4017, %v4016
  %v4756 = vpack.c.b16 %v4019, %v4018
  %v4757 = vpack.c.b16 %v4021, %v4020
  %v4758 = vpack.c.b16 %v4023, %v4022
  %v4759 = vpack.c.b16 %v4025, %v4024
  %v4760 = vpack.c.b16 %v4027, %v4026
  %v4761 = vpack.c.b16 %v4029, %v4028
  %v4762 = vpack.c.b16 %v4031, %v4030
  %v4763 = vpack.c.b16 %v4033, %v4032
  %v4764 = vpack.c.b16 %v4035, %v4034
  %v4765 = vpack.c.b16 %v4037, %v4036
  %v4766 = vpack.c.b16 %v4039, %v4038
  %v4767 = vpack.c.b16 %v4041, %v4040
  %v4768 = vpack.c.b16 %v4043, %v4042
  %v4769 = vpack.c.b16 %v4045, %v4044
  %v4770 = vpack.c.b16 %v4047, %v4046
  %v4771 = vpack.c.b16 %v4049, %v4048
  %v4772 = vpack.c.b16 %v4051, %v4050
  %v4773 = vpack.c.b16 %v4053, %v4052
  %v4774 = vpack.c.b16 %v4055, %v4054
  %v4775 = vpack.c.b16 %v4057, %v4056
  %v4776 = vpack.c.b16 %v4059, %v4058
  %v4777 = vpack.c.b16 %v4061, %v4060
  %v4778 = vpack.c.b16 %v4063, %v4062
  %v4779 = vpack.c.b16 %v4065, %v4064
  %v4780 = vpack.c.b16 %v4067, %v4066
  %v4781 = vpack.c.b16 %v4069, %v4068
  %v4782 = vpack.c.b16 %v4071, %v4070
  %v4783 = vpack.c.b16 %v4073, %v4072
  %v4784 = vpack.c.b16 %v4075, %v4074
  %v4785 = vpack.c.b16 %v4077, %v4076
  %v4786 = vpack.c.b16 %v4079, %v4078
  %v4787 = vpack.c.b16 %v4081, %v4080
  %v4788 = vpack.c.b16 %v4083, %v4082
  %v4789 = vpack.c.b16 %v4085, %v4084
  %v4790 = vpack.c.b16 %v4087, %v4086
  %v4791 = vpack.c.b16 %v4089, %v4088
  %v4792 = vpack.c.b16 %v4091, %v4090
  %v4793 = vpack.c.b16 %v4093, %v4092
  %v4794 = vpack.c.b16 %v4095, %v4094
  %v4795 = vpack.c.b16 %v4097, %v4096
  %v4796 = vpack.c.b16 %v4099, %v4098
  %v4797 = vpack.c.b16 %v4101, %v4100
  %v4798 = vpack.c.b16 %v4103, %v4102
  %v4799 = vpack.c.b16 %v4105, %v4104
  %v4800 = vpack.c.b16 %v4107, %v4106
  %v4801 = vpack.c.b16 %v4109, %v4108
  %v4802 = vpack.c.b16 %v4111, %v4110
  %v4803 = vpack.c.b16 %v4113, %v4112
  %v4804 = vpack.c.b16 %v4115, %v4114
  %v4805 = vpack.c.b16 %v4117, %v4116
  %v4806 = vpack.c.b16 %v4119, %v4118
  %v4807 = vpack.c.b16 %v4121, %v4120
  %v4808 = vpack.c.b16 %v4123, %v4122
  %v4809 = vpack.c.b16 %v4125, %v4124
  %v4810 = vpack.c.b16 %v4127, %v4126
  %v4811 = vpack.c.b16 %v4129, %v4128
  %v4812 = vpack.c.b16 %v4131, %v4130
  %v4813 = vpack.c.b16 %v4133, %v4132
  %v4814 = vpack.c.b16 %v4135, %v4134
  %v4815 = vpack.c.b16 %v4137, %v4136
  %v4816 = vpack.c.b16 %v4139, %v4138
  %v4817 = vpack.c.b16 %v4141, %v4140
  %v4818 = vpack.c.b16 %v4143, %v4142
  %v4819 = vpack.c.b16 %v4145, %v4144
  %v4820 = vpack.c.b16 %v4147, %v4146
  %v4821 = vpack.c.b16 %v4149, %v4148
  %v4822 = vpack.c.b16 %v4151, %v4150
  %v4823 = vpack.c.b16 %v4153, %v4152
  %v4824 = vpack.c.b16 %v4155, %v4154
  %v4825 = vpack.c.b16 %v4157, %v4156
  %v4826 = vpack.c.b16 %v4159, %v4158
  %v4827 = vpack.c.b16 %v4161, %v4160
  %v4828 = vpack.c.b16 %v4163, %v4162
  %v4829 = vpack.c.b16 %v4165, %v4164
  %v4830 = vpack.c.b16 %v4167, %v4166
  %v4831 = vpack.c.b16 %v4169, %v4168
  %v4832 = vpack.c.b16 %v4171, %v4170
  %v4833 = vpack.c.b16 %v4173, %v4172
  %v4834 = vpack.c.b16 %v4175, %v4174
  %v4835 = vpack.c.b16 %v4177, %v4176
  %v4836 = vpack.c.b16 %v4179, %v4178
  %v4837 = vpack.c.b16 %v4181, %v4180
  %v4838 = vpack.c.b16 %v4183, %v4182
  %v4839 = vpack.c.b16 %v4185, %v4184
  %v4840 = vpack.c.b16 %v4187, %v4186
  %v4841 = vpack.c.b16 %v4189, %v4188
  %v4842 = vpack.c.b16 %v4191, %v4190
  %v4843 = vpack.c.b16 %v4193, %v4192
  %v4844 = vpack.c.b16 %v4195, %v4194
  %v4845 = vpack.c.b16 %v4197, %v4196
  %v4846 = vpack.c.b16 %v4199, %v4198
  %v4847 = vpack.c.b16 %v4201, %v4200
  %v4848 = vpack.c.b16 %v4203, %v4202
  %v4849 = vpack.c.b16 %v4205, %v4204
  %v4850 = vpack.c.b16 %v4207, %v4206
  %v4851 = vpack.c.b16 %v4209, %v4208
  %v4852 = vpack.c.b16 %v4211, %v4210
  %v4853 = vpack.c.b16 %v4213, %v4212
  %v4854 = vpack.c.b16 %v4215, %v4214
  %v4855 = vpack.c.b16 %v4217, %v4216
  %v4856 = vpack.c.b16 %v4219, %v4218
  %v4857 = vpack.c.b16 %v4221, %v4220
  %v4858 = vpack.c.b16 %v4223, %v4222
  %v4859 = vpack.c.b16 %v4225, %v4224
  %v4860 = vpack.c.b16 %v4227, %v4226
  %v4861 = vpack.c.b16 %v4229, %v4228
  %v4862 = vpack.c.b16 %v4231, %v4230
  %v4863 = vpack.c.b16 %v4233, %v4232
  %v4864 = vpack.c.b16 %v4235, %v4234
  %v4865 = vpack.c.b16 %v4237, %v4236
  %v4866 = vpack.c.b16 %v4239, %v4238
  %v4867 = vpack.c.b16 %v4241, %v4240
  %v4868 = vpack.c.b16 %v4243, %v4242
  %v4869 = vpack.c.b16 %v4245, %v4244
  %v4870 = vpack.c.b16 %v4247, %v4246
  %v4871 = vpack.c.b16 %v4249, %v4248
  %v4872 = vpack.c.b16 %v4251, %v4250
  %v4873 = vpack.c.b16 %v4253, %v4252
  %v4874 = vpack.c.b16 %v4255, %v4254
  %v4875 = vpack.c.b16 %v4257, %v4256
  %v4876 = vpack.c.b16 %v4259, %v4258
  %v4877 = vpack.c.b16 %v4261, %v4260
  %v4878 = vpack.c.b16 %v4263, %v4262
  %v4879 = vpack.c.b16 %v4265, %v4264
  %v4880 = vpack.c.b16 %v4267, %v4266
  %v4881 = vpack.c.b16 %v4269, %v4268
  %v4882 = vpack.c.b16 %v4271, %v4270
  %v4883 = vpack.c.b16 %v4273, %v4272
  %v4884 = vpack.c.b16 %v4275, %v4274
  %v4885 = vpack.c.b16 %v4277, %v4276
  %v4886 = vpack.c.b16 %v4279, %v4278
  %v4887 = vpack.c.b16 %v4281, %v4280
  %v4888 = vpack.c.b16 %v4283, %v4282
  %v4889 = vpack.c.b16 %v4285, %v4284
  %v4890 = vpack.c.b16 %v4287, %v4286
  %v4891 = vpack.c.b16 %v4289, %v4288
  %v4892 = vpack.c.b16 %v4291, %v4290
  %v4893 = vpack.c.b16 %v4293, %v4292
  %v4894 = vpack.c.b16 %v4295, %v4294
  %v4895 = vpack.c.b16 %v4297, %v4296
  %v4896 = vpack.c.b16 %v4299, %v4298
  %v4897 = vpack.c.b16 %v4301, %v4300
  %v4898 = vpack.c.b16 %v4303, %v4302
  %v4899 = vpack.c.b16 %v4305, %v4304
  %v4900 = vpack.c.b16 %v4307, %v4306
  %v4901 = vpack.c.b16 %v4309, %v4308
  %v4902 = vpack.c.b16 %v4311, %v4310
  %v4903 = vpack.c.b16 %v4313, %v4312
  %v4904 = vpack.c.b16 %v4315, %v4314
  %v4905 = vpack.c.b16 %v4317, %v4316
  %v4906 = vpack.c.b16 %v4319, %v4318
  %v4907 = vpack.c.b16 %v4321, %v4320
  %v4908 = vpack.c.b16 %v4323, %v4322
  %v4909 = vpack.c.b16 %v4325, %v4324
  %v4910 = vpack.c.b16 %v4327, %v4326
  %v4911 = vpack.c.b16 %v4329, %v4328
  %v4912 = vpack.c.b16 %v4331, %v4330
  %v4913 = vpack.c.b16 %v4333, %v4332
  %v4914 = vpack.c.b16 %v4335, %v4334
  %v4915 = vpack.c.b16 %v4337, %v4336
  %v4916 = vpack.c.b16 %v4339, %v4338
  %v4917 = vpack.c.b16 %v4341, %v4340
  %5494 = vmatprep.subr.bf16.mxu0 0
  %5495 = vmatpush1.bf16.msra.mxu0 %v4342
  %5496 = vmatprep.subr.bf16.mxu0 0
  %5497 = vmatpush1.bf16.msra.mxu0 %v4343
  %5498 = vmatprep.subr.bf16.mxu0 0
  %5499 = vmatpush1.bf16.msra.mxu0 %v4344
  %5500 = vmatprep.subr.bf16.mxu0 0
  %5501 = vmatpush1.bf16.msra.mxu0 %v4345
  %5502 = vmatprep.subr.bf16.mxu0 0
  %5503 = vmatpush1.bf16.msra.mxu0 %v4346
  %5504 = vmatprep.subr.bf16.mxu0 0
  %5505 = vmatpush1.bf16.msra.mxu0 %v4347
  %5506 = vmatprep.subr.bf16.mxu0 0
  %5507 = vmatpush1.bf16.msra.mxu0 %v4348
  %5508 = vmatprep.subr.bf16.mxu0 0
  %5509 = vmatpush1.bf16.msra.mxu0 %v4349
  %5510 = vmatprep.subr.bf16.mxu0 0
  %5511 = vmatpush1.bf16.msra.mxu0 %v4350
  %5512 = vmatprep.subr.bf16.mxu0 0
  %5513 = vmatpush1.bf16.msra.mxu0 %v4351
  %5514 = vmatprep.subr.bf16.mxu0 0
  %5515 = vmatpush1.bf16.msra.mxu0 %v4352
  %5516 = vmatprep.subr.bf16.mxu0 0
  %5517 = vmatpush1.bf16.msra.mxu0 %v4353
  %5518 = vmatprep.subr.bf16.mxu0 0
  %5519 = vmatpush1.bf16.msra.mxu0 %v4354
  %5520 = vmatprep.subr.bf16.mxu0 0
  %5521 = vmatpush1.bf16.msra.mxu0 %v4355
  %5522 = vmatprep.subr.bf16.mxu0 0
  %5523 = vmatpush1.bf16.msra.mxu0 %v4356
  %5524 = vmatprep.subr.bf16.mxu0 0
  %5525 = vmatpush1.bf16.msra.mxu0 %v4357
  %5526 = vmatprep.mubr.bf16.mxu0 %v1751
  %5527 = vmatmul.mubr.bf16.gmra.mrb[0].mxu0 %v1750
  %v5528 = vpop.f32.mrb[0].mxu0
  %v5529 = vadd.f32 %v1316, %v5528
  %v5530 = vpop.f32.mrb[0].mxu0
  %v5531 = vpop.f32.mrb[0].mxu0
  %v5532 = vadd.f32 %v1316, %v5531
  %v5533 = vpop.f32.mrb[0].mxu0
  %5534 = vmatprep.mubr.bf16.mxu0 %v1823
  %5535 = vmatmul.mubr.bf16.gmra.mrb[0].mxu0 %v1822
  %v5536 = vpop.f32.mrb[0].mxu0
  %v5537 = vadd.f32 %v1316, %v5536
  %v5538 = vpop.f32.mrb[0].mxu0
  %v5539 = vpop.f32.mrb[0].mxu0
  %v5540 = vadd.f32 %v1316, %v5539
  %v5541 = vpop.f32.mrb[0].mxu0
  %5542 = vdwg.mxu0
  %5543 = vmatprep.subr.bf16.mxu0 0
  %5544 = vmatpush1.bf16.msra.mxu0 %v4358
  %5545 = vmatprep.subr.bf16.mxu0 0
  %5546 = vmatpush1.bf16.msra.mxu0 %v4359
  %5547 = vmatprep.subr.bf16.mxu0 0
  %5548 = vmatpush1.bf16.msra.mxu0 %v4360
  %5549 = vmatprep.subr.bf16.mxu0 0
  %5550 = vmatpush1.bf16.msra.mxu0 %v4361
  %5551 = vmatprep.subr.bf16.mxu0 0
  %5552 = vmatpush1.bf16.msra.mxu0 %v4362
  %5553 = vmatprep.subr.bf16.mxu0 0
  %5554 = vmatpush1.bf16.msra.mxu0 %v4363
  %5555 = vmatprep.subr.bf16.mxu0 0
  %5556 = vmatpush1.bf16.msra.mxu0 %v4364
  %5557 = vmatprep.subr.bf16.mxu0 0
  %5558 = vmatpush1.bf16.msra.mxu0 %v4365
  %5559 = vmatprep.subr.bf16.mxu0 0
  %5560 = vmatpush1.bf16.msra.mxu0 %v4366
  %5561 = vmatprep.subr.bf16.mxu0 0
  %5562 = vmatpush1.bf16.msra.mxu0 %v4367
  %5563 = vmatprep.subr.bf16.mxu0 0
  %5564 = vmatpush1.bf16.msra.mxu0 %v4368
  %5565 = vmatprep.subr.bf16.mxu0 0
  %5566 = vmatpush1.bf16.msra.mxu0 %v4369
  %5567 = vmatprep.subr.bf16.mxu0 0
  %5568 = vmatpush1.bf16.msra.mxu0 %v4370
  %5569 = vmatprep.subr.bf16.mxu0 0
  %5570 = vmatpush1.bf16.msra.mxu0 %v4371
  %5571 = vmatprep.subr.bf16.mxu0 0
  %5572 = vmatpush1.bf16.msra.mxu0 %v4372
  %5573 = vmatprep.subr.bf16.mxu0 0
  %5574 = vmatpush1.bf16.msra.mxu0 %v4373
  %5575 = vmatprep.mubr.bf16.mxu0 %v1753
  %5576 = vmatmul.mubr.bf16.gmra.mrb[0].mxu0 %v1752
  %v5577 = vpop.f32.mrb[0].mxu0
  %v5578 = vadd.f32 %v5529, %v5577
  %v5579 = vpop.f32.mrb[0].mxu0
  %v5580 = vpop.f32.mrb[0].mxu0
  %v5581 = vadd.f32 %v5532, %v5580
  %v5582 = vpop.f32.mrb[0].mxu0
  %5583 = vmatprep.mubr.bf16.mxu0 %v1825
  %5584 = vmatmul.mubr.bf16.gmra.mrb[0].mxu0 %v1824
  %v5585 = vpop.f32.mrb[0].mxu0
  %v5586 = vadd.f32 %v5537, %v5585
  %v5587 = vpop.f32.mrb[0].mxu0
  %v5588 = vpop.f32.mrb[0].mxu0
  %v5589 = vadd.f32 %v5540, %v5588
  %v5590 = vpop.f32.mrb[0].mxu0
  %5591 = vdwg.mxu0
  %5592 = vmatprep.subr.bf16.mxu0 0
  %5593 = vmatpush1.bf16.msra.mxu0 %v4374
  %5594 = vmatprep.subr.bf16.mxu0 0
  %5595 = vmatpush1.bf16.msra.mxu0 %v4375
  %5596 = vmatprep.subr.bf16.mxu0 0
  %5597 = vmatpush1.bf16.msra.mxu0 %v4376
  %5598 = vmatprep.subr.bf16.mxu0 0
  %5599 = vmatpush1.bf16.msra.mxu0 %v4377
  %5600 = vmatprep.subr.bf16.mxu0 0
  %5601 = vmatpush1.bf16.msra.mxu0 %v4378
  %5602 = vmatprep.subr.bf16.mxu0 0
  %5603 = vmatpush1.bf16.msra.mxu0 %v4379
  %5604 = vmatprep.subr.bf16.mxu0 0
  %5605 = vmatpush1.bf16.msra.mxu0 %v4380
  %5606 = vmatprep.subr.bf16.mxu0 0
  %5607 = vmatpush1.bf16.msra.mxu0 %v4381
  %5608 = vmatprep.subr.bf16.mxu0 0
  %5609 = vmatpush1.bf16.msra.mxu0 %v4382
  %5610 = vmatprep.subr.bf16.mxu0 0
  %5611 = vmatpush1.bf16.msra.mxu0 %v4383
  %5612 = vmatprep.subr.bf16.mxu0 0
  %5613 = vmatpush1.bf16.msra.mxu0 %v4384
  %5614 = vmatprep.subr.bf16.mxu0 0
  %5615 = vmatpush1.bf16.msra.mxu0 %v4385
  %5616 = vmatprep.subr.bf16.mxu0 0
  %5617 = vmatpush1.bf16.msra.mxu0 %v4386
  %5618 = vmatprep.subr.bf16.mxu0 0
  %5619 = vmatpush1.bf16.msra.mxu0 %v4387
  %5620 = vmatprep.subr.bf16.mxu0 0
  %5621 = vmatpush1.bf16.msra.mxu0 %v4388
  %5622 = vmatprep.subr.bf16.mxu0 0
  %5623 = vmatpush1.bf16.msra.mxu0 %v4389
  %5624 = vmatprep.mubr.bf16.mxu0 %v1755
  %5625 = vmatmul.mubr.bf16.gmra.mrb[0].mxu0 %v1754
  %v5626 = vpop.f32.mrb[0].mxu0
  %v5627 = vadd.f32 %v5578, %v5626
  %v5628 = vpop.f32.mrb[0].mxu0
  %v5629 = vpop.f32.mrb[0].mxu0
  %v5630 = vadd.f32 %v5581, %v5629
  %v5631 = vpop.f32.mrb[0].mxu0
  %5632 = vmatprep.mubr.bf16.mxu0 %v1827
  %5633 = vmatmul.mubr.bf16.gmra.mrb[0].mxu0 %v1826
  %v5634 = vpop.f32.mrb[0].mxu0
  %v5635 = vadd.f32 %v5586, %v5634
  %v5636 = vpop.f32.mrb[0].mxu0
  %v5637 = vpop.f32.mrb[0].mxu0
  %v5638 = vadd.f32 %v5589, %v5637
  %v5639 = vpop.f32.mrb[0].mxu0
  %5640 = vdwg.mxu0
  %5641 = vmatprep.subr.bf16.mxu0 0
  %5642 = vmatpush1.bf16.msra.mxu0 %v4390
  %5643 = vmatprep.subr.bf16.mxu0 0
  %5644 = vmatpush1.bf16.msra.mxu0 %v4391
  %5645 = vmatprep.subr.bf16.mxu0 0
  %5646 = vmatpush1.bf16.msra.mxu0 %v4392
  %5647 = vmatprep.subr.bf16.mxu0 0
  %5648 = vmatpush1.bf16.msra.mxu0 %v4393
  %5649 = vmatprep.subr.bf16.mxu0 0
  %5650 = vmatpush1.bf16.msra.mxu0 %v4394
  %5651 = vmatprep.subr.bf16.mxu0 0
  %5652 = vmatpush1.bf16.msra.mxu0 %v4395
  %5653 = vmatprep.subr.bf16.mxu0 0
  %5654 = vmatpush1.bf16.msra.mxu0 %v4396
  %5655 = vmatprep.subr.bf16.mxu0 0
  %5656 = vmatpush1.bf16.msra.mxu0 %v4397
  %5657 = vmatprep.subr.bf16.mxu0 0
  %5658 = vmatpush1.bf16.msra.mxu0 %v4398
  %5659 = vmatprep.subr.bf16.mxu0 0
  %5660 = vmatpush1.bf16.msra.mxu0 %v4399
  %5661 = vmatprep.subr.bf16.mxu0 0
  %5662 = vmatpush1.bf16.msra.mxu0 %v4400
  %5663 = vmatprep.subr.bf16.mxu0 0
  %5664 = vmatpush1.bf16.msra.mxu0 %v4401
  %5665 = vmatprep.subr.bf16.mxu0 0
  %5666 = vmatpush1.bf16.msra.mxu0 %v4402
  %5667 = vmatprep.subr.bf16.mxu0 0
  %5668 = vmatpush1.bf16.msra.mxu0 %v4403
  %5669 = vmatprep.subr.bf16.mxu0 0
  %5670 = vmatpush1.bf16.msra.mxu0 %v4404
  %5671 = vmatprep.subr.bf16.mxu0 0
  %5672 = vmatpush1.bf16.msra.mxu0 %v4405
  %5673 = vmatprep.mubr.bf16.mxu0 %v1757
  %5674 = vmatmul.mubr.bf16.gmra.mrb[0].mxu0 %v1756
  %v5675 = vpop.f32.mrb[0].mxu0
  %v5676 = vadd.f32 %v5627, %v5675
  %v5677 = vpop.f32.mrb[0].mxu0
  %v5678 = vpop.f32.mrb[0].mxu0
  %v5679 = vadd.f32 %v5630, %v5678
  %v5680 = vpop.f32.mrb[0].mxu0
  %5681 = vmatprep.mubr.bf16.mxu0 %v1829
  %5682 = vmatmul.mubr.bf16.gmra.mrb[0].mxu0 %v1828
  %v5683 = vpop.f32.mrb[0].mxu0
  %v5684 = vadd.f32 %v5635, %v5683
  %v5685 = vpop.f32.mrb[0].mxu0
  %v5686 = vpop.f32.mrb[0].mxu0
  %v5687 = vadd.f32 %v5638, %v5686
  %v5688 = vpop.f32.mrb[0].mxu0
  %5689 = vdwg.mxu0
  %5690 = vmatprep.subr.bf16.mxu0 0
  %5691 = vmatpush1.bf16.msra.mxu0 %v4406
  %5692 = vmatprep.subr.bf16.mxu0 0
  %5693 = vmatpush1.bf16.msra.mxu0 %v4407
  %5694 = vmatprep.subr.bf16.mxu0 0
  %5695 = vmatpush1.bf16.msra.mxu0 %v4408
  %5696 = vmatprep.subr.bf16.mxu0 0
  %5697 = vmatpush1.bf16.msra.mxu0 %v4409
  %5698 = vmatprep.subr.bf16.mxu0 0
  %5699 = vmatpush1.bf16.msra.mxu0 %v4410
  %5700 = vmatprep.subr.bf16.mxu0 0
  %5701 = vmatpush1.bf16.msra.mxu0 %v4411
  %5702 = vmatprep.subr.bf16.mxu0 0
  %5703 = vmatpush1.bf16.msra.mxu0 %v4412
  %5704 = vmatprep.subr.bf16.mxu0 0
  %5705 = vmatpush1.bf16.msra.mxu0 %v4413
  %5706 = vmatprep.subr.bf16.mxu0 0
  %5707 = vmatpush1.bf16.msra.mxu0 %v4414
  %5708 = vmatprep.subr.bf16.mxu0 0
  %5709 = vmatpush1.bf16.msra.mxu0 %v4415
  %5710 = vmatprep.subr.bf16.mxu0 0
  %5711 = vmatpush1.bf16.msra.mxu0 %v4416
  %5712 = vmatprep.subr.bf16.mxu0 0
  %5713 = vmatpush1.bf16.msra.mxu0 %v4417
  %5714 = vmatprep.subr.bf16.mxu0 0
  %5715 = vmatpush1.bf16.msra.mxu0 %v4418
  %5716 = vmatprep.subr.bf16.mxu0 0
  %5717 = vmatpush1.bf16.msra.mxu0 %v4419
  %5718 = vmatprep.subr.bf16.mxu0 0
  %5719 = vmatpush1.bf16.msra.mxu0 %v4420
  %5720 = vmatprep.subr.bf16.mxu0 0
  %5721 = vmatpush1.bf16.msra.mxu0 %v4421
  %5722 = vmatprep.mubr.bf16.mxu0 %v1759
  %5723 = vmatmul.mubr.bf16.gmra.mrb[0].mxu0 %v1758
  %v5724 = vpop.f32.mrb[0].mxu0
  %v5725 = vadd.f32 %v5676, %v5724
  %v5726 = vpop.f32.mrb[0].mxu0
  %v5727 = vpop.f32.mrb[0].mxu0
  %v5728 = vadd.f32 %v5679, %v5727
  %v5729 = vpop.f32.mrb[0].mxu0
  %5730 = vmatprep.mubr.bf16.mxu0 %v1831
  %5731 = vmatmul.mubr.bf16.gmra.mrb[0].mxu0 %v1830
  %v5732 = vpop.f32.mrb[0].mxu0
  %v5733 = vadd.f32 %v5684, %v5732
  %v5734 = vpop.f32.mrb[0].mxu0
  %v5735 = vpop.f32.mrb[0].mxu0
  %v5736 = vadd.f32 %v5687, %v5735
  %v5737 = vpop.f32.mrb[0].mxu0
  %5738 = vdwg.mxu0
  %5739 = vmatprep.subr.bf16.mxu0 0
  %5740 = vmatpush1.bf16.msra.mxu0 %v4422
  %5741 = vmatprep.subr.bf16.mxu0 0
  %5742 = vmatpush1.bf16.msra.mxu0 %v4423
  %5743 = vmatprep.subr.bf16.mxu0 0
  %5744 = vmatpush1.bf16.msra.mxu0 %v4424
  %5745 = vmatprep.subr.bf16.mxu0 0
  %5746 = vmatpush1.bf16.msra.mxu0 %v4425
  %5747 = vmatprep.subr.bf16.mxu0 0
  %5748 = vmatpush1.bf16.msra.mxu0 %v4426
  %5749 = vmatprep.subr.bf16.mxu0 0
  %5750 = vmatpush1.bf16.msra.mxu0 %v4427
  %5751 = vmatprep.subr.bf16.mxu0 0
  %5752 = vmatpush1.bf16.msra.mxu0 %v4428
  %5753 = vmatprep.subr.bf16.mxu0 0
  %5754 = vmatpush1.bf16.msra.mxu0 %v4429
  %5755 = vmatprep.subr.bf16.mxu0 0
  %5756 = vmatpush1.bf16.msra.mxu0 %v4430
  %5757 = vmatprep.subr.bf16.mxu0 0
  %5758 = vmatpush1.bf16.msra.mxu0 %v4431
  %5759 = vmatprep.subr.bf16.mxu0 0
  %5760 = vmatpush1.bf16.msra.mxu0 %v4432
  %5761 = vmatprep.subr.bf16.mxu0 0
  %5762 = vmatpush1.bf16.msra.mxu0 %v4433
  %5763 = vmatprep.subr.bf16.mxu0 0
  %5764 = vmatpush1.bf16.msra.mxu0 %v4434
  %5765 = vmatprep.subr.bf16.mxu0 0
  %5766 = vmatpush1.bf16.msra.mxu0 %v4435
  %5767 = vmatprep.subr.bf16.mxu0 0
  %5768 = vmatpush1.bf16.msra.mxu0 %v4436
  %5769 = vmatprep.subr.bf16.mxu0 0
  %5770 = vmatpush1.bf16.msra.mxu0 %v4437
  %5771 = vmatprep.mubr.bf16.mxu0 %v1761
  %5772 = vmatmul.mubr.bf16.gmra.mrb[0].mxu0 %v1760
  %v5773 = vpop.f32.mrb[0].mxu0
  %v5774 = vadd.f32 %v5725, %v5773
  %v5775 = vpop.f32.mrb[0].mxu0
  %v5776 = vpop.f32.mrb[0].mxu0
  %v5777 = vadd.f32 %v5728, %v5776
  %v5778 = vpop.f32.mrb[0].mxu0
  %5779 = vmatprep.mubr.bf16.mxu0 %v1833
  %5780 = vmatmul.mubr.bf16.gmra.mrb[0].mxu0 %v1832
  %v5781 = vpop.f32.mrb[0].mxu0
  %v5782 = vadd.f32 %v5733, %v5781
  %v5783 = vpop.f32.mrb[0].mxu0
  %v5784 = vpop.f32.mrb[0].mxu0
  %v5785 = vadd.f32 %v5736, %v5784
  %v5786 = vpop.f32.mrb[0].mxu0
  %5787 = vdwg.mxu0
  %5788 = vmatprep.subr.bf16.mxu0 0
  %5789 = vmatpush1.bf16.msra.mxu0 %v4438
  %5790 = vmatprep.subr.bf16.mxu0 0
  %5791 = vmatpush1.bf16.msra.mxu0 %v4439
  %5792 = vmatprep.subr.bf16.mxu0 0
  %5793 = vmatpush1.bf16.msra.mxu0 %v4440
  %5794 = vmatprep.subr.bf16.mxu0 0
  %5795 = vmatpush1.bf16.msra.mxu0 %v4441
  %5796 = vmatprep.subr.bf16.mxu0 0
  %5797 = vmatpush1.bf16.msra.mxu0 %v4442
  %5798 = vmatprep.subr.bf16.mxu0 0
  %5799 = vmatpush1.bf16.msra.mxu0 %v4443
  %5800 = vmatprep.subr.bf16.mxu0 0
  %5801 = vmatpush1.bf16.msra.mxu0 %v4444
  %5802 = vmatprep.subr.bf16.mxu0 0
  %5803 = vmatpush1.bf16.msra.mxu0 %v4445
  %5804 = vmatprep.subr.bf16.mxu0 0
  %5805 = vmatpush1.bf16.msra.mxu0 %v4446
  %5806 = vmatprep.subr.bf16.mxu0 0
  %5807 = vmatpush1.bf16.msra.mxu0 %v4447
  %5808 = vmatprep.subr.bf16.mxu0 0
  %5809 = vmatpush1.bf16.msra.mxu0 %v4448
  %5810 = vmatprep.subr.bf16.mxu0 0
  %5811 = vmatpush1.bf16.msra.mxu0 %v4449
  %5812 = vmatprep.subr.bf16.mxu0 0
  %5813 = vmatpush1.bf16.msra.mxu0 %v4450
  %5814 = vmatprep.subr.bf16.mxu0 0
  %5815 = vmatpush1.bf16.msra.mxu0 %v4451
  %5816 = vmatprep.subr.bf16.mxu0 0
  %5817 = vmatpush1.bf16.msra.mxu0 %v4452
  %5818 = vmatprep.subr.bf16.mxu0 0
  %5819 = vmatpush1.bf16.msra.mxu0 %v4453
  %5820 = vmatprep.mubr.bf16.mxu0 %v1763
  %5821 = vmatmul.mubr.bf16.gmra.mrb[0].mxu0 %v1762
  %v5822 = vpop.f32.mrb[0].mxu0
  %v5823 = vadd.f32 %v5774, %v5822
  %v5824 = vpop.f32.mrb[0].mxu0
  %v5825 = vpop.f32.mrb[0].mxu0
  %v5826 = vadd.f32 %v5777, %v5825
  %v5827 = vpop.f32.mrb[0].mxu0
  %5828 = vmatprep.mubr.bf16.mxu0 %v1835
  %5829 = vmatmul.mubr.bf16.gmra.mrb[0].mxu0 %v1834
  %v5830 = vpop.f32.mrb[0].mxu0
  %v5831 = vadd.f32 %v5782, %v5830
  %v5832 = vpop.f32.mrb[0].mxu0
  %v5833 = vpop.f32.mrb[0].mxu0
  %v5834 = vadd.f32 %v5785, %v5833
  %v5835 = vpop.f32.mrb[0].mxu0
  %5836 = vdwg.mxu0
  %5837 = vmatprep.subr.bf16.mxu0 0
  %5838 = vmatpush1.bf16.msra.mxu0 %v4454
  %5839 = vmatprep.subr.bf16.mxu0 0
  %5840 = vmatpush1.bf16.msra.mxu0 %v4455
  %5841 = vmatprep.subr.bf16.mxu0 0
  %5842 = vmatpush1.bf16.msra.mxu0 %v4456
  %5843 = vmatprep.subr.bf16.mxu0 0
  %5844 = vmatpush1.bf16.msra.mxu0 %v4457
  %5845 = vmatprep.subr.bf16.mxu0 0
  %5846 = vmatpush1.bf16.msra.mxu0 %v4458
  %5847 = vmatprep.subr.bf16.mxu0 0
  %5848 = vmatpush1.bf16.msra.mxu0 %v4459
  %5849 = vmatprep.subr.bf16.mxu0 0
  %5850 = vmatpush1.bf16.msra.mxu0 %v4460
  %5851 = vmatprep.subr.bf16.mxu0 0
  %5852 = vmatpush1.bf16.msra.mxu0 %v4461
  %5853 = vmatprep.subr.bf16.mxu0 0
  %5854 = vmatpush1.bf16.msra.mxu0 %v4462
  %5855 = vmatprep.subr.bf16.mxu0 0
  %5856 = vmatpush1.bf16.msra.mxu0 %v4463
  %5857 = vmatprep.subr.bf16.mxu0 0
  %5858 = vmatpush1.bf16.msra.mxu0 %v4464
  %5859 = vmatprep.subr.bf16.mxu0 0
  %5860 = vmatpush1.bf16.msra.mxu0 %v4465
  %5861 = vmatprep.subr.bf16.mxu0 0
  %5862 = vmatpush1.bf16.msra.mxu0 %v4466
  %5863 = vmatprep.subr.bf16.mxu0 0
  %5864 = vmatpush1.bf16.msra.mxu0 %v4467
  %5865 = vmatprep.subr.bf16.mxu0 0
  %5866 = vmatpush1.bf16.msra.mxu0 %v4468
  %5867 = vmatprep.subr.bf16.mxu0 0
  %5868 = vmatpush1.bf16.msra.mxu0 %v4469
  %5869 = vmatprep.mubr.bf16.mxu0 %v1765
  %5870 = vmatmul.mubr.bf16.gmra.mrb[0].mxu0 %v1764
  %v5871 = vpop.f32.mrb[0].mxu0
  %v5872 = vadd.f32 %v5823, %v5871
  %v5873 = vpop.f32.mrb[0].mxu0
  %v5874 = vpop.f32.mrb[0].mxu0
  %v5875 = vadd.f32 %v5826, %v5874
  %v5876 = vpop.f32.mrb[0].mxu0
  %5877 = vmatprep.mubr.bf16.mxu0 %v1837
  %5878 = vmatmul.mubr.bf16.gmra.mrb[0].mxu0 %v1836
  %v5879 = vpop.f32.mrb[0].mxu0
  %v5880 = vadd.f32 %v5831, %v5879
  %v5881 = vpop.f32.mrb[0].mxu0
  %v5882 = vpop.f32.mrb[0].mxu0
  %v5883 = vadd.f32 %v5834, %v5882
  %v5884 = vpop.f32.mrb[0].mxu0
  %5885 = vdwg.mxu0
  %5886 = vmatprep.subr.bf16.mxu0 0
  %5887 = vmatpush1.bf16.msra.mxu0 %v4470
  %5888 = vmatprep.subr.bf16.mxu0 0
  %5889 = vmatpush1.bf16.msra.mxu0 %v4471
  %5890 = vmatprep.subr.bf16.mxu0 0
  %5891 = vmatpush1.bf16.msra.mxu0 %v4472
  %5892 = vmatprep.subr.bf16.mxu0 0
  %5893 = vmatpush1.bf16.msra.mxu0 %v4473
  %5894 = vmatprep.subr.bf16.mxu0 0
  %5895 = vmatpush1.bf16.msra.mxu0 %v4474
  %5896 = vmatprep.subr.bf16.mxu0 0
  %5897 = vmatpush1.bf16.msra.mxu0 %v4475
  %5898 = vmatprep.subr.bf16.mxu0 0
  %5899 = vmatpush1.bf16.msra.mxu0 %v4476
  %5900 = vmatprep.subr.bf16.mxu0 0
  %5901 = vmatpush1.bf16.msra.mxu0 %v4477
  %5902 = vmatprep.subr.bf16.mxu0 0
  %5903 = vmatpush1.bf16.msra.mxu0 %v4478
  %5904 = vmatprep.subr.bf16.mxu0 0
  %5905 = vmatpush1.bf16.msra.mxu0 %v4479
  %5906 = vmatprep.subr.bf16.mxu0 0
  %5907 = vmatpush1.bf16.msra.mxu0 %v4480
  %5908 = vmatprep.subr.bf16.mxu0 0
  %5909 = vmatpush1.bf16.msra.mxu0 %v4481
  %5910 = vmatprep.subr.bf16.mxu0 0
  %5911 = vmatpush1.bf16.msra.mxu0 %v4482
  %5912 = vmatprep.subr.bf16.mxu0 0
  %5913 = vmatpush1.bf16.msra.mxu0 %v4483
  %5914 = vmatprep.subr.bf16.mxu0 0
  %5915 = vmatpush1.bf16.msra.mxu0 %v4484
  %5916 = vmatprep.subr.bf16.mxu0 0
  %5917 = vmatpush1.bf16.msra.mxu0 %v4485
  %5918 = vmatprep.mubr.bf16.mxu0 %v1767
  %5919 = vmatmul.mubr.bf16.gmra.mrb[0].mxu0 %v1766
  %v5920 = vpop.f32.mrb[0].mxu0
  %v5921 = vadd.f32 %v5872, %v5920
  %v5922 = vpop.f32.mrb[0].mxu0
  %v5923 = vpop.f32.mrb[0].mxu0
  %v5924 = vadd.f32 %v5875, %v5923
  %v5925 = vpop.f32.mrb[0].mxu0
  %5926 = vmatprep.mubr.bf16.mxu0 %v1839
  %5927 = vmatmul.mubr.bf16.gmra.mrb[0].mxu0 %v1838
  %v5928 = vpop.f32.mrb[0].mxu0
  %v5929 = vadd.f32 %v5880, %v5928
  %v5930 = vpop.f32.mrb[0].mxu0
  %v5931 = vpop.f32.mrb[0].mxu0
  %v5932 = vadd.f32 %v5883, %v5931
  %v5933 = vpop.f32.mrb[0].mxu0
  %5934 = vdwg.mxu0
  %5935 = vmatprep.subr.bf16.mxu0 0
  %5936 = vmatpush1.bf16.msra.mxu0 %v4486
  %5937 = vmatprep.subr.bf16.mxu0 0
  %5938 = vmatpush1.bf16.msra.mxu0 %v4487
  %5939 = vmatprep.subr.bf16.mxu0 0
  %5940 = vmatpush1.bf16.msra.mxu0 %v4488
  %5941 = vmatprep.subr.bf16.mxu0 0
  %5942 = vmatpush1.bf16.msra.mxu0 %v4489
  %5943 = vmatprep.subr.bf16.mxu0 0
  %5944 = vmatpush1.bf16.msra.mxu0 %v4490
  %5945 = vmatprep.subr.bf16.mxu0 0
  %5946 = vmatpush1.bf16.msra.mxu0 %v4491
  %5947 = vmatprep.subr.bf16.mxu0 0
  %5948 = vmatpush1.bf16.msra.mxu0 %v4492
  %5949 = vmatprep.subr.bf16.mxu0 0
  %5950 = vmatpush1.bf16.msra.mxu0 %v4493
  %5951 = vmatprep.subr.bf16.mxu0 0
  %5952 = vmatpush1.bf16.msra.mxu0 %v4494
  %5953 = vmatprep.subr.bf16.mxu0 0
  %5954 = vmatpush1.bf16.msra.mxu0 %v4495
  %5955 = vmatprep.subr.bf16.mxu0 0
  %5956 = vmatpush1.bf16.msra.mxu0 %v4496
  %5957 = vmatprep.subr.bf16.mxu0 0
  %5958 = vmatpush1.bf16.msra.mxu0 %v4497
  %5959 = vmatprep.subr.bf16.mxu0 0
  %5960 = vmatpush1.bf16.msra.mxu0 %v4498
  %5961 = vmatprep.subr.bf16.mxu0 0
  %5962 = vmatpush1.bf16.msra.mxu0 %v4499
  %5963 = vmatprep.subr.bf16.mxu0 0
  %5964 = vmatpush1.bf16.msra.mxu0 %v4500
  %5965 = vmatprep.subr.bf16.mxu0 0
  %5966 = vmatpush1.bf16.msra.mxu0 %v4501
  %5967 = vmatprep.mubr.bf16.mxu0 %v1769
  %5968 = vmatmul.mubr.bf16.gmra.mrb[0].mxu0 %v1768
  %v5969 = vpop.f32.mrb[0].mxu0
  %v5970 = vadd.f32 %v5921, %v5969
  %v5971 = vpop.f32.mrb[0].mxu0
  %v5972 = vpop.f32.mrb[0].mxu0
  %v5973 = vadd.f32 %v5924, %v5972
  %v5974 = vpop.f32.mrb[0].mxu0
  %5975 = vmatprep.mubr.bf16.mxu0 %v1841
  %5976 = vmatmul.mubr.bf16.gmra.mrb[0].mxu0 %v1840
  %v5977 = vpop.f32.mrb[0].mxu0
  %v5978 = vadd.f32 %v5929, %v5977
  %v5979 = vpop.f32.mrb[0].mxu0
  %v5980 = vpop.f32.mrb[0].mxu0
  %v5981 = vadd.f32 %v5932, %v5980
  %v5982 = vpop.f32.mrb[0].mxu0
  %5983 = vdwg.mxu0
  %5984 = vmatprep.subr.bf16.mxu0 0
  %5985 = vmatpush1.bf16.msra.mxu0 %v4502
  %5986 = vmatprep.subr.bf16.mxu0 0
  %5987 = vmatpush1.bf16.msra.mxu0 %v4503
  %5988 = vmatprep.subr.bf16.mxu0 0
  %5989 = vmatpush1.bf16.msra.mxu0 %v4504
  %5990 = vmatprep.subr.bf16.mxu0 0
  %5991 = vmatpush1.bf16.msra.mxu0 %v4505
  %5992 = vmatprep.subr.bf16.mxu0 0
  %5993 = vmatpush1.bf16.msra.mxu0 %v4506
  %5994 = vmatprep.subr.bf16.mxu0 0
  %5995 = vmatpush1.bf16.msra.mxu0 %v4507
  %5996 = vmatprep.subr.bf16.mxu0 0
  %5997 = vmatpush1.bf16.msra.mxu0 %v4508
  %5998 = vmatprep.subr.bf16.mxu0 0
  %5999 = vmatpush1.bf16.msra.mxu0 %v4509
  %6000 = vmatprep.subr.bf16.mxu0 0
  %6001 = vmatpush1.bf16.msra.mxu0 %v4510
  %6002 = vmatprep.subr.bf16.mxu0 0
  %6003 = vmatpush1.bf16.msra.mxu0 %v4511
  %6004 = vmatprep.subr.bf16.mxu0 0
  %6005 = vmatpush1.bf16.msra.mxu0 %v4512
  %6006 = vmatprep.subr.bf16.mxu0 0
  %6007 = vmatpush1.bf16.msra.mxu0 %v4513
  %6008 = vmatprep.subr.bf16.mxu0 0
  %6009 = vmatpush1.bf16.msra.mxu0 %v4514
  %6010 = vmatprep.subr.bf16.mxu0 0
  %6011 = vmatpush1.bf16.msra.mxu0 %v4515
  %6012 = vmatprep.subr.bf16.mxu0 0
  %6013 = vmatpush1.bf16.msra.mxu0 %v4516
  %6014 = vmatprep.subr.bf16.mxu0 0
  %6015 = vmatpush1.bf16.msra.mxu0 %v4517
  %6016 = vmatprep.mubr.bf16.mxu0 %v1771
  %6017 = vmatmul.mubr.bf16.gmra.mrb[0].mxu0 %v1770
  %v6018 = vpop.f32.mrb[0].mxu0
  %v6019 = vadd.f32 %v5970, %v6018
  %v6020 = vpop.f32.mrb[0].mxu0
  %v6021 = vpop.f32.mrb[0].mxu0
  %v6022 = vadd.f32 %v5973, %v6021
  %v6023 = vpop.f32.mrb[0].mxu0
  %6024 = vmatprep.mubr.bf16.mxu0 %v1843
  %6025 = vmatmul.mubr.bf16.gmra.mrb[0].mxu0 %v1842
  %v6026 = vpop.f32.mrb[0].mxu0
  %v6027 = vadd.f32 %v5978, %v6026
  %v6028 = vpop.f32.mrb[0].mxu0
  %v6029 = vpop.f32.mrb[0].mxu0
  %v6030 = vadd.f32 %v5981, %v6029
  %v6031 = vpop.f32.mrb[0].mxu0
  %6032 = vdwg.mxu0
  %6033 = vmatprep.subr.bf16.mxu0 0
  %6034 = vmatpush1.bf16.msra.mxu0 %v4518
  %6035 = vmatprep.subr.bf16.mxu0 0
  %6036 = vmatpush1.bf16.msra.mxu0 %v4519
  %6037 = vmatprep.subr.bf16.mxu0 0
  %6038 = vmatpush1.bf16.msra.mxu0 %v4520
  %6039 = vmatprep.subr.bf16.mxu0 0
  %6040 = vmatpush1.bf16.msra.mxu0 %v4521
  %6041 = vmatprep.subr.bf16.mxu0 0
  %6042 = vmatpush1.bf16.msra.mxu0 %v4522
  %6043 = vmatprep.subr.bf16.mxu0 0
  %6044 = vmatpush1.bf16.msra.mxu0 %v4523
  %6045 = vmatprep.subr.bf16.mxu0 0
  %6046 = vmatpush1.bf16.msra.mxu0 %v4524
  %6047 = vmatprep.subr.bf16.mxu0 0
  %6048 = vmatpush1.bf16.msra.mxu0 %v4525
  %6049 = vmatprep.subr.bf16.mxu0 0
  %6050 = vmatpush1.bf16.msra.mxu0 %v4526
  %6051 = vmatprep.subr.bf16.mxu0 0
  %6052 = vmatpush1.bf16.msra.mxu0 %v4527
  %6053 = vmatprep.subr.bf16.mxu0 0
  %6054 = vmatpush1.bf16.msra.mxu0 %v4528
  %6055 = vmatprep.subr.bf16.mxu0 0
  %6056 = vmatpush1.bf16.msra.mxu0 %v4529
  %6057 = vmatprep.subr.bf16.mxu0 0
  %6058 = vmatpush1.bf16.msra.mxu0 %v4530
  %6059 = vmatprep.subr.bf16.mxu0 0
  %6060 = vmatpush1.bf16.msra.mxu0 %v4531
  %6061 = vmatprep.subr.bf16.mxu0 0
  %6062 = vmatpush1.bf16.msra.mxu0 %v4532
  %6063 = vmatprep.subr.bf16.mxu0 0
  %6064 = vmatpush1.bf16.msra.mxu0 %v4533
  %6065 = vmatprep.mubr.bf16.mxu0 %v1773
  %6066 = vmatmul.mubr.bf16.gmra.mrb[0].mxu0 %v1772
  %v6067 = vpop.f32.mrb[0].mxu0
  %v6068 = vadd.f32 %v6019, %v6067
  %v6069 = vpop.f32.mrb[0].mxu0
  %v6070 = vpop.f32.mrb[0].mxu0
  %v6071 = vadd.f32 %v6022, %v6070
  %v6072 = vpop.f32.mrb[0].mxu0
  %6073 = vmatprep.mubr.bf16.mxu0 %v1845
  %6074 = vmatmul.mubr.bf16.gmra.mrb[0].mxu0 %v1844
  %v6075 = vpop.f32.mrb[0].mxu0
  %v6076 = vadd.f32 %v6027, %v6075
  %v6077 = vpop.f32.mrb[0].mxu0
  %v6078 = vpop.f32.mrb[0].mxu0
  %v6079 = vadd.f32 %v6030, %v6078
  %v6080 = vpop.f32.mrb[0].mxu0
  %6081 = vdwg.mxu0
  %6082 = vmatprep.subr.bf16.mxu0 0
  %6083 = vmatpush1.bf16.msra.mxu0 %v4534
  %6084 = vmatprep.subr.bf16.mxu0 0
  %6085 = vmatpush1.bf16.msra.mxu0 %v4535
  %6086 = vmatprep.subr.bf16.mxu0 0
  %6087 = vmatpush1.bf16.msra.mxu0 %v4536
  %6088 = vmatprep.subr.bf16.mxu0 0
  %6089 = vmatpush1.bf16.msra.mxu0 %v4537
  %6090 = vmatprep.subr.bf16.mxu0 0
  %6091 = vmatpush1.bf16.msra.mxu0 %v4538
  %6092 = vmatprep.subr.bf16.mxu0 0
  %6093 = vmatpush1.bf16.msra.mxu0 %v4539
  %6094 = vmatprep.subr.bf16.mxu0 0
  %6095 = vmatpush1.bf16.msra.mxu0 %v4540
  %6096 = vmatprep.subr.bf16.mxu0 0
  %6097 = vmatpush1.bf16.msra.mxu0 %v4541
  %6098 = vmatprep.subr.bf16.mxu0 0
  %6099 = vmatpush1.bf16.msra.mxu0 %v4542
  %6100 = vmatprep.subr.bf16.mxu0 0
  %6101 = vmatpush1.bf16.msra.mxu0 %v4543
  %6102 = vmatprep.subr.bf16.mxu0 0
  %6103 = vmatpush1.bf16.msra.mxu0 %v4544
  %6104 = vmatprep.subr.bf16.mxu0 0
  %6105 = vmatpush1.bf16.msra.mxu0 %v4545
  %6106 = vmatprep.subr.bf16.mxu0 0
  %6107 = vmatpush1.bf16.msra.mxu0 %v4546
  %6108 = vmatprep.subr.bf16.mxu0 0
  %6109 = vmatpush1.bf16.msra.mxu0 %v4547
  %6110 = vmatprep.subr.bf16.mxu0 0
  %6111 = vmatpush1.bf16.msra.mxu0 %v4548
  %6112 = vmatprep.subr.bf16.mxu0 0
  %6113 = vmatpush1.bf16.msra.mxu0 %v4549
  %6114 = vmatprep.mubr.bf16.mxu0 %v1775
  %6115 = vmatmul.mubr.bf16.gmra.mrb[0].mxu0 %v1774
  %v6116 = vpop.f32.mrb[0].mxu0
  %v6117 = vadd.f32 %v6068, %v6116
  %v6118 = vpop.f32.mrb[0].mxu0
  %v6119 = vpop.f32.mrb[0].mxu0
  %v6120 = vadd.f32 %v6071, %v6119
  %v6121 = vpop.f32.mrb[0].mxu0
  %6122 = vmatprep.mubr.bf16.mxu0 %v1847
  %6123 = vmatmul.mubr.bf16.gmra.mrb[0].mxu0 %v1846
  %v6124 = vpop.f32.mrb[0].mxu0
  %v6125 = vadd.f32 %v6076, %v6124
  %v6126 = vpop.f32.mrb[0].mxu0
  %v6127 = vpop.f32.mrb[0].mxu0
  %v6128 = vadd.f32 %v6079, %v6127
  %v6129 = vpop.f32.mrb[0].mxu0
  %6130 = vdwg.mxu0
  %6131 = vmatprep.subr.bf16.mxu0 0
  %6132 = vmatpush1.bf16.msra.mxu0 %v4550
  %6133 = vmatprep.subr.bf16.mxu0 0
  %6134 = vmatpush1.bf16.msra.mxu0 %v4551
  %6135 = vmatprep.subr.bf16.mxu0 0
  %6136 = vmatpush1.bf16.msra.mxu0 %v4552
  %6137 = vmatprep.subr.bf16.mxu0 0
  %6138 = vmatpush1.bf16.msra.mxu0 %v4553
  %6139 = vmatprep.subr.bf16.mxu0 0
  %6140 = vmatpush1.bf16.msra.mxu0 %v4554
  %6141 = vmatprep.subr.bf16.mxu0 0
  %6142 = vmatpush1.bf16.msra.mxu0 %v4555
  %6143 = vmatprep.subr.bf16.mxu0 0
  %6144 = vmatpush1.bf16.msra.mxu0 %v4556
  %6145 = vmatprep.subr.bf16.mxu0 0
  %6146 = vmatpush1.bf16.msra.mxu0 %v4557
  %6147 = vmatprep.subr.bf16.mxu0 0
  %6148 = vmatpush1.bf16.msra.mxu0 %v4558
  %6149 = vmatprep.subr.bf16.mxu0 0
  %6150 = vmatpush1.bf16.msra.mxu0 %v4559
  %6151 = vmatprep.subr.bf16.mxu0 0
  %6152 = vmatpush1.bf16.msra.mxu0 %v4560
  %6153 = vmatprep.subr.bf16.mxu0 0
  %6154 = vmatpush1.bf16.msra.mxu0 %v4561
  %6155 = vmatprep.subr.bf16.mxu0 0
  %6156 = vmatpush1.bf16.msra.mxu0 %v4562
  %6157 = vmatprep.subr.bf16.mxu0 0
  %6158 = vmatpush1.bf16.msra.mxu0 %v4563
  %6159 = vmatprep.subr.bf16.mxu0 0
  %6160 = vmatpush1.bf16.msra.mxu0 %v4564
  %6161 = vmatprep.subr.bf16.mxu0 0
  %6162 = vmatpush1.bf16.msra.mxu0 %v4565
  %6163 = vmatprep.mubr.bf16.mxu0 %v1777
  %6164 = vmatmul.mubr.bf16.gmra.mrb[0].mxu0 %v1776
  %v6165 = vpop.f32.mrb[0].mxu0
  %v6166 = vadd.f32 %v6117, %v6165
  %v6167 = vpop.f32.mrb[0].mxu0
  %v6168 = vpop.f32.mrb[0].mxu0
  %v6169 = vadd.f32 %v6120, %v6168
  %v6170 = vpop.f32.mrb[0].mxu0
  %6171 = vmatprep.mubr.bf16.mxu0 %v1849
  %6172 = vmatmul.mubr.bf16.gmra.mrb[0].mxu0 %v1848
  %v6173 = vpop.f32.mrb[0].mxu0
  %v6174 = vadd.f32 %v6125, %v6173
  %v6175 = vpop.f32.mrb[0].mxu0
  %v6176 = vpop.f32.mrb[0].mxu0
  %v6177 = vadd.f32 %v6128, %v6176
  %v6178 = vpop.f32.mrb[0].mxu0
  %6179 = vdwg.mxu0
  %6180 = vmatprep.subr.bf16.mxu0 0
  %6181 = vmatpush1.bf16.msra.mxu0 %v4566
  %6182 = vmatprep.subr.bf16.mxu0 0
  %6183 = vmatpush1.bf16.msra.mxu0 %v4567
  %6184 = vmatprep.subr.bf16.mxu0 0
  %6185 = vmatpush1.bf16.msra.mxu0 %v4568
  %6186 = vmatprep.subr.bf16.mxu0 0
  %6187 = vmatpush1.bf16.msra.mxu0 %v4569
  %6188 = vmatprep.subr.bf16.mxu0 0
  %6189 = vmatpush1.bf16.msra.mxu0 %v4570
  %6190 = vmatprep.subr.bf16.mxu0 0
  %6191 = vmatpush1.bf16.msra.mxu0 %v4571
  %6192 = vmatprep.subr.bf16.mxu0 0
  %6193 = vmatpush1.bf16.msra.mxu0 %v4572
  %6194 = vmatprep.subr.bf16.mxu0 0
  %6195 = vmatpush1.bf16.msra.mxu0 %v4573
  %6196 = vmatprep.subr.bf16.mxu0 0
  %6197 = vmatpush1.bf16.msra.mxu0 %v4574
  %6198 = vmatprep.subr.bf16.mxu0 0
  %6199 = vmatpush1.bf16.msra.mxu0 %v4575
  %6200 = vmatprep.subr.bf16.mxu0 0
  %6201 = vmatpush1.bf16.msra.mxu0 %v4576
  %6202 = vmatprep.subr.bf16.mxu0 0
  %6203 = vmatpush1.bf16.msra.mxu0 %v4577
  %6204 = vmatprep.subr.bf16.mxu0 0
  %6205 = vmatpush1.bf16.msra.mxu0 %v4578
  %6206 = vmatprep.subr.bf16.mxu0 0
  %6207 = vmatpush1.bf16.msra.mxu0 %v4579
  %6208 = vmatprep.subr.bf16.mxu0 0
  %6209 = vmatpush1.bf16.msra.mxu0 %v4580
  %6210 = vmatprep.subr.bf16.mxu0 0
  %6211 = vmatpush1.bf16.msra.mxu0 %v4581
  %6212 = vmatprep.mubr.bf16.mxu0 %v1779
  %6213 = vmatmul.mubr.bf16.gmra.mrb[0].mxu0 %v1778
  %v6214 = vpop.f32.mrb[0].mxu0
  %v6215 = vadd.f32 %v6166, %v6214
  %v6216 = vpop.f32.mrb[0].mxu0
  %v6217 = vpop.f32.mrb[0].mxu0
  %v6218 = vadd.f32 %v6169, %v6217
  %v6219 = vpop.f32.mrb[0].mxu0
  %6220 = vmatprep.mubr.bf16.mxu0 %v1851
  %6221 = vmatmul.mubr.bf16.gmra.mrb[0].mxu0 %v1850
  %v6222 = vpop.f32.mrb[0].mxu0
  %v6223 = vadd.f32 %v6174, %v6222
  %v6224 = vpop.f32.mrb[0].mxu0
  %v6225 = vpop.f32.mrb[0].mxu0
  %v6226 = vadd.f32 %v6177, %v6225
  %v6227 = vpop.f32.mrb[0].mxu0
  %6228 = vdwg.mxu0
  %6229 = vmatprep.subr.bf16.mxu0 0
  %6230 = vmatpush1.bf16.msra.mxu0 %v4582
  %6231 = vmatprep.subr.bf16.mxu0 0
  %6232 = vmatpush1.bf16.msra.mxu0 %v4583
  %6233 = vmatprep.subr.bf16.mxu0 0
  %6234 = vmatpush1.bf16.msra.mxu0 %v4584
  %6235 = vmatprep.subr.bf16.mxu0 0
  %6236 = vmatpush1.bf16.msra.mxu0 %v4585
  %6237 = vmatprep.subr.bf16.mxu0 0
  %6238 = vmatpush1.bf16.msra.mxu0 %v4586
  %6239 = vmatprep.subr.bf16.mxu0 0
  %6240 = vmatpush1.bf16.msra.mxu0 %v4587
  %6241 = vmatprep.subr.bf16.mxu0 0
  %6242 = vmatpush1.bf16.msra.mxu0 %v4588
  %6243 = vmatprep.subr.bf16.mxu0 0
  %6244 = vmatpush1.bf16.msra.mxu0 %v4589
  %6245 = vmatprep.subr.bf16.mxu0 0
  %6246 = vmatpush1.bf16.msra.mxu0 %v4590
  %6247 = vmatprep.subr.bf16.mxu0 0
  %6248 = vmatpush1.bf16.msra.mxu0 %v4591
  %6249 = vmatprep.subr.bf16.mxu0 0
  %6250 = vmatpush1.bf16.msra.mxu0 %v4592
  %6251 = vmatprep.subr.bf16.mxu0 0
  %6252 = vmatpush1.bf16.msra.mxu0 %v4593
  %6253 = vmatprep.subr.bf16.mxu0 0
  %6254 = vmatpush1.bf16.msra.mxu0 %v4594
  %6255 = vmatprep.subr.bf16.mxu0 0
  %6256 = vmatpush1.bf16.msra.mxu0 %v4595
  %6257 = vmatprep.subr.bf16.mxu0 0
  %6258 = vmatpush1.bf16.msra.mxu0 %v4596
  %6259 = vmatprep.subr.bf16.mxu0 0
  %6260 = vmatpush1.bf16.msra.mxu0 %v4597
  %6261 = vmatprep.mubr.bf16.mxu0 %v1781
  %6262 = vmatmul.mubr.bf16.gmra.mrb[0].mxu0 %v1780
  %v6263 = vpop.f32.mrb[0].mxu0
  %v6264 = vadd.f32 %v6215, %v6263
  %v6265 = vpop.f32.mrb[0].mxu0
  %v6266 = vpop.f32.mrb[0].mxu0
  %v6267 = vadd.f32 %v6218, %v6266
  %v6268 = vpop.f32.mrb[0].mxu0
  %6269 = vmatprep.mubr.bf16.mxu0 %v1853
  %6270 = vmatmul.mubr.bf16.gmra.mrb[0].mxu0 %v1852
  %v6271 = vpop.f32.mrb[0].mxu0
  %v6272 = vadd.f32 %v6223, %v6271
  %v6273 = vpop.f32.mrb[0].mxu0
  %v6274 = vpop.f32.mrb[0].mxu0
  %v6275 = vadd.f32 %v6226, %v6274
  %v6276 = vpop.f32.mrb[0].mxu0
  %6277 = vdwg.mxu0
  %6278 = vmatprep.subr.bf16.mxu0 0
  %6279 = vmatpush1.bf16.msra.mxu0 %v4598
  %6280 = vmatprep.subr.bf16.mxu0 0
  %6281 = vmatpush1.bf16.msra.mxu0 %v4599
  %6282 = vmatprep.subr.bf16.mxu0 0
  %6283 = vmatpush1.bf16.msra.mxu0 %v4600
  %6284 = vmatprep.subr.bf16.mxu0 0
  %6285 = vmatpush1.bf16.msra.mxu0 %v4601
  %6286 = vmatprep.subr.bf16.mxu0 0
  %6287 = vmatpush1.bf16.msra.mxu0 %v4602
  %6288 = vmatprep.subr.bf16.mxu0 0
  %6289 = vmatpush1.bf16.msra.mxu0 %v4603
  %6290 = vmatprep.subr.bf16.mxu0 0
  %6291 = vmatpush1.bf16.msra.mxu0 %v4604
  %6292 = vmatprep.subr.bf16.mxu0 0
  %6293 = vmatpush1.bf16.msra.mxu0 %v4605
  %6294 = vmatprep.subr.bf16.mxu0 0
  %6295 = vmatpush1.bf16.msra.mxu0 %v4606
  %6296 = vmatprep.subr.bf16.mxu0 0
  %6297 = vmatpush1.bf16.msra.mxu0 %v4607
  %6298 = vmatprep.subr.bf16.mxu0 0
  %6299 = vmatpush1.bf16.msra.mxu0 %v4608
  %6300 = vmatprep.subr.bf16.mxu0 0
  %6301 = vmatpush1.bf16.msra.mxu0 %v4609
  %6302 = vmatprep.subr.bf16.mxu0 0
  %6303 = vmatpush1.bf16.msra.mxu0 %v4610
  %6304 = vmatprep.subr.bf16.mxu0 0
  %6305 = vmatpush1.bf16.msra.mxu0 %v4611
  %6306 = vmatprep.subr.bf16.mxu0 0
  %6307 = vmatpush1.bf16.msra.mxu0 %v4612
  %6308 = vmatprep.subr.bf16.mxu0 0
  %6309 = vmatpush1.bf16.msra.mxu0 %v4613
  %6310 = vmatprep.mubr.bf16.mxu0 %v1783
  %6311 = vmatmul.mubr.bf16.gmra.mrb[0].mxu0 %v1782
  %v6312 = vpop.f32.mrb[0].mxu0
  %v6313 = vadd.f32 %v6264, %v6312
  %v6314 = vpop.f32.mrb[0].mxu0
  %v6315 = vpop.f32.mrb[0].mxu0
  %v6316 = vadd.f32 %v6267, %v6315
  %v6317 = vpop.f32.mrb[0].mxu0
  %6318 = vmatprep.mubr.bf16.mxu0 %v1855
  %6319 = vmatmul.mubr.bf16.gmra.mrb[0].mxu0 %v1854
  %v6320 = vpop.f32.mrb[0].mxu0
  %v6321 = vadd.f32 %v6272, %v6320
  %v6322 = vpop.f32.mrb[0].mxu0
  %v6323 = vpop.f32.mrb[0].mxu0
  %v6324 = vadd.f32 %v6275, %v6323
  %v6325 = vpop.f32.mrb[0].mxu0
  %6326 = vdwg.mxu0
  %6327 = vmatprep.subr.bf16.mxu0 0
  %6328 = vmatpush1.bf16.msra.mxu0 %v4614
  %6329 = vmatprep.subr.bf16.mxu0 0
  %6330 = vmatpush1.bf16.msra.mxu0 %v4615
  %6331 = vmatprep.subr.bf16.mxu0 0
  %6332 = vmatpush1.bf16.msra.mxu0 %v4616
  %6333 = vmatprep.subr.bf16.mxu0 0
  %6334 = vmatpush1.bf16.msra.mxu0 %v4617
  %6335 = vmatprep.subr.bf16.mxu0 0
  %6336 = vmatpush1.bf16.msra.mxu0 %v4618
  %6337 = vmatprep.subr.bf16.mxu0 0
  %6338 = vmatpush1.bf16.msra.mxu0 %v4619
  %6339 = vmatprep.subr.bf16.mxu0 0
  %6340 = vmatpush1.bf16.msra.mxu0 %v4620
  %6341 = vmatprep.subr.bf16.mxu0 0
  %6342 = vmatpush1.bf16.msra.mxu0 %v4621
  %6343 = vmatprep.subr.bf16.mxu0 0
  %6344 = vmatpush1.bf16.msra.mxu0 %v4622
  %6345 = vmatprep.subr.bf16.mxu0 0
  %6346 = vmatpush1.bf16.msra.mxu0 %v4623
  %6347 = vmatprep.subr.bf16.mxu0 0
  %6348 = vmatpush1.bf16.msra.mxu0 %v4624
  %6349 = vmatprep.subr.bf16.mxu0 0
  %6350 = vmatpush1.bf16.msra.mxu0 %v4625
  %6351 = vmatprep.subr.bf16.mxu0 0
  %6352 = vmatpush1.bf16.msra.mxu0 %v4626
  %6353 = vmatprep.subr.bf16.mxu0 0
  %6354 = vmatpush1.bf16.msra.mxu0 %v4627
  %6355 = vmatprep.subr.bf16.mxu0 0
  %6356 = vmatpush1.bf16.msra.mxu0 %v4628
  %6357 = vmatprep.subr.bf16.mxu0 0
  %6358 = vmatpush1.bf16.msra.mxu0 %v4629
  %6359 = vmatprep.mubr.bf16.mxu0 %v1785
  %6360 = vmatmul.mubr.bf16.gmra.mrb[0].mxu0 %v1784
  %v6361 = vpop.f32.mrb[0].mxu0
  %v6362 = vadd.f32 %v6313, %v6361
  %v6363 = vpop.f32.mrb[0].mxu0
  %v6364 = vpop.f32.mrb[0].mxu0
  %v6365 = vadd.f32 %v6316, %v6364
  %v6366 = vpop.f32.mrb[0].mxu0
  %6367 = vmatprep.mubr.bf16.mxu0 %v1857
  %6368 = vmatmul.mubr.bf16.gmra.mrb[0].mxu0 %v1856
  %v6369 = vpop.f32.mrb[0].mxu0
  %v6370 = vadd.f32 %v6321, %v6369
  %v6371 = vpop.f32.mrb[0].mxu0
  %v6372 = vpop.f32.mrb[0].mxu0
  %v6373 = vadd.f32 %v6324, %v6372
  %v6374 = vpop.f32.mrb[0].mxu0
  %6375 = vdwg.mxu0
  %6376 = vmatprep.subr.bf16.mxu0 0
  %6377 = vmatpush1.bf16.msra.mxu0 %v4630
  %6378 = vmatprep.subr.bf16.mxu0 0
  %6379 = vmatpush1.bf16.msra.mxu0 %v4631
  %6380 = vmatprep.subr.bf16.mxu0 0
  %6381 = vmatpush1.bf16.msra.mxu0 %v4632
  %6382 = vmatprep.subr.bf16.mxu0 0
  %6383 = vmatpush1.bf16.msra.mxu0 %v4633
  %6384 = vmatprep.subr.bf16.mxu0 0
  %6385 = vmatpush1.bf16.msra.mxu0 %v4634
  %6386 = vmatprep.subr.bf16.mxu0 0
  %6387 = vmatpush1.bf16.msra.mxu0 %v4635
  %6388 = vmatprep.subr.bf16.mxu0 0
  %6389 = vmatpush1.bf16.msra.mxu0 %v4636
  %6390 = vmatprep.subr.bf16.mxu0 0
  %6391 = vmatpush1.bf16.msra.mxu0 %v4637
  %6392 = vmatprep.subr.bf16.mxu0 0
  %6393 = vmatpush1.bf16.msra.mxu0 %v4638
  %6394 = vmatprep.subr.bf16.mxu0 0
  %6395 = vmatpush1.bf16.msra.mxu0 %v4639
  %6396 = vmatprep.subr.bf16.mxu0 0
  %6397 = vmatpush1.bf16.msra.mxu0 %v4640
  %6398 = vmatprep.subr.bf16.mxu0 0
  %6399 = vmatpush1.bf16.msra.mxu0 %v4641
  %6400 = vmatprep.subr.bf16.mxu0 0
  %6401 = vmatpush1.bf16.msra.mxu0 %v4642
  %6402 = vmatprep.subr.bf16.mxu0 0
  %6403 = vmatpush1.bf16.msra.mxu0 %v4643
  %6404 = vmatprep.subr.bf16.mxu0 0
  %6405 = vmatpush1.bf16.msra.mxu0 %v4644
  %6406 = vmatprep.subr.bf16.mxu0 0
  %6407 = vmatpush1.bf16.msra.mxu0 %v4645
  %6408 = vmatprep.mubr.bf16.mxu0 %v1787
  %6409 = vmatmul.mubr.bf16.gmra.mrb[0].mxu0 %v1786
  %v6410 = vpop.f32.mrb[0].mxu0
  %v6411 = vadd.f32 %v6362, %v6410
  %v6412 = vpop.f32.mrb[0].mxu0
  %v6413 = vpop.f32.mrb[0].mxu0
  %v6414 = vadd.f32 %v6365, %v6413
  %v6415 = vpop.f32.mrb[0].mxu0
  %6416 = vmatprep.mubr.bf16.mxu0 %v1859
  %6417 = vmatmul.mubr.bf16.gmra.mrb[0].mxu0 %v1858
  %v6418 = vpop.f32.mrb[0].mxu0
  %v6419 = vadd.f32 %v6370, %v6418
  %v6420 = vpop.f32.mrb[0].mxu0
  %v6421 = vpop.f32.mrb[0].mxu0
  %v6422 = vadd.f32 %v6373, %v6421
  %v6423 = vpop.f32.mrb[0].mxu0
  %6424 = vdwg.mxu0
  %6425 = vmatprep.subr.bf16.mxu0 0
  %6426 = vmatpush1.bf16.msra.mxu0 %v4646
  %6427 = vmatprep.subr.bf16.mxu0 0
  %6428 = vmatpush1.bf16.msra.mxu0 %v4647
  %6429 = vmatprep.subr.bf16.mxu0 0
  %6430 = vmatpush1.bf16.msra.mxu0 %v4648
  %6431 = vmatprep.subr.bf16.mxu0 0
  %6432 = vmatpush1.bf16.msra.mxu0 %v4649
  %6433 = vmatprep.subr.bf16.mxu0 0
  %6434 = vmatpush1.bf16.msra.mxu0 %v4650
  %6435 = vmatprep.subr.bf16.mxu0 0
  %6436 = vmatpush1.bf16.msra.mxu0 %v4651
  %6437 = vmatprep.subr.bf16.mxu0 0
  %6438 = vmatpush1.bf16.msra.mxu0 %v4652
  %6439 = vmatprep.subr.bf16.mxu0 0
  %6440 = vmatpush1.bf16.msra.mxu0 %v4653
  %6441 = vmatprep.subr.bf16.mxu0 0
  %6442 = vmatpush1.bf16.msra.mxu0 %v4654
  %6443 = vmatprep.subr.bf16.mxu0 0
  %6444 = vmatpush1.bf16.msra.mxu0 %v4655
  %6445 = vmatprep.subr.bf16.mxu0 0
  %6446 = vmatpush1.bf16.msra.mxu0 %v4656
  %6447 = vmatprep.subr.bf16.mxu0 0
  %6448 = vmatpush1.bf16.msra.mxu0 %v4657
  %6449 = vmatprep.subr.bf16.mxu0 0
  %6450 = vmatpush1.bf16.msra.mxu0 %v4658
  %6451 = vmatprep.subr.bf16.mxu0 0
  %6452 = vmatpush1.bf16.msra.mxu0 %v4659
  %6453 = vmatprep.subr.bf16.mxu0 0
  %6454 = vmatpush1.bf16.msra.mxu0 %v4660
  %6455 = vmatprep.subr.bf16.mxu0 0
  %6456 = vmatpush1.bf16.msra.mxu0 %v4661
  %6457 = vmatprep.mubr.bf16.mxu0 %v1789
  %6458 = vmatmul.mubr.bf16.gmra.mrb[0].mxu0 %v1788
  %v6459 = vpop.f32.mrb[0].mxu0
  %v6460 = vadd.f32 %v6411, %v6459
  %v6461 = vpop.f32.mrb[0].mxu0
  %v6462 = vpop.f32.mrb[0].mxu0
  %v6463 = vadd.f32 %v6414, %v6462
  %v6464 = vpop.f32.mrb[0].mxu0
  %6465 = vmatprep.mubr.bf16.mxu0 %v1861
  %6466 = vmatmul.mubr.bf16.gmra.mrb[0].mxu0 %v1860
  %v6467 = vpop.f32.mrb[0].mxu0
  %v6468 = vadd.f32 %v6419, %v6467
  %v6469 = vpop.f32.mrb[0].mxu0
  %v6470 = vpop.f32.mrb[0].mxu0
  %v6471 = vadd.f32 %v6422, %v6470
  %v6472 = vpop.f32.mrb[0].mxu0
  %6473 = vdwg.mxu0
  %6474 = vmatprep.subr.bf16.mxu0 0
  %6475 = vmatpush1.bf16.msra.mxu0 %v4662
  %6476 = vmatprep.subr.bf16.mxu0 0
  %6477 = vmatpush1.bf16.msra.mxu0 %v4663
  %6478 = vmatprep.subr.bf16.mxu0 0
  %6479 = vmatpush1.bf16.msra.mxu0 %v4664
  %6480 = vmatprep.subr.bf16.mxu0 0
  %6481 = vmatpush1.bf16.msra.mxu0 %v4665
  %6482 = vmatprep.subr.bf16.mxu0 0
  %6483 = vmatpush1.bf16.msra.mxu0 %v4666
  %6484 = vmatprep.subr.bf16.mxu0 0
  %6485 = vmatpush1.bf16.msra.mxu0 %v4667
  %6486 = vmatprep.subr.bf16.mxu0 0
  %6487 = vmatpush1.bf16.msra.mxu0 %v4668
  %6488 = vmatprep.subr.bf16.mxu0 0
  %6489 = vmatpush1.bf16.msra.mxu0 %v4669
  %6490 = vmatprep.subr.bf16.mxu0 0
  %6491 = vmatpush1.bf16.msra.mxu0 %v4670
  %6492 = vmatprep.subr.bf16.mxu0 0
  %6493 = vmatpush1.bf16.msra.mxu0 %v4671
  %6494 = vmatprep.subr.bf16.mxu0 0
  %6495 = vmatpush1.bf16.msra.mxu0 %v4672
  %6496 = vmatprep.subr.bf16.mxu0 0
  %6497 = vmatpush1.bf16.msra.mxu0 %v4673
  %6498 = vmatprep.subr.bf16.mxu0 0
  %6499 = vmatpush1.bf16.msra.mxu0 %v4674
  %6500 = vmatprep.subr.bf16.mxu0 0
  %6501 = vmatpush1.bf16.msra.mxu0 %v4675
  %6502 = vmatprep.subr.bf16.mxu0 0
  %6503 = vmatpush1.bf16.msra.mxu0 %v4676
  %6504 = vmatprep.subr.bf16.mxu0 0
  %6505 = vmatpush1.bf16.msra.mxu0 %v4677
  %6506 = vmatprep.mubr.bf16.mxu0 %v1791
  %6507 = vmatmul.mubr.bf16.gmra.mrb[0].mxu0 %v1790
  %v6508 = vpop.f32.mrb[0].mxu0
  %v6509 = vadd.f32 %v6460, %v6508
  %v6510 = vpop.f32.mrb[0].mxu0
  %v6511 = vpop.f32.mrb[0].mxu0
  %v6512 = vadd.f32 %v6463, %v6511
  %v6513 = vpop.f32.mrb[0].mxu0
  %6514 = vmatprep.mubr.bf16.mxu0 %v1863
  %6515 = vmatmul.mubr.bf16.gmra.mrb[0].mxu0 %v1862
  %v6516 = vpop.f32.mrb[0].mxu0
  %v6517 = vadd.f32 %v6468, %v6516
  %v6518 = vpop.f32.mrb[0].mxu0
  %v6519 = vpop.f32.mrb[0].mxu0
  %v6520 = vadd.f32 %v6471, %v6519
  %v6521 = vpop.f32.mrb[0].mxu0
  %6522 = vdwg.mxu0
  %6523 = vmatprep.subr.bf16.mxu0 0
  %6524 = vmatpush1.bf16.msra.mxu0 %v4678
  %6525 = vmatprep.subr.bf16.mxu0 0
  %6526 = vmatpush1.bf16.msra.mxu0 %v4679
  %6527 = vmatprep.subr.bf16.mxu0 0
  %6528 = vmatpush1.bf16.msra.mxu0 %v4680
  %6529 = vmatprep.subr.bf16.mxu0 0
  %6530 = vmatpush1.bf16.msra.mxu0 %v4681
  %6531 = vmatprep.subr.bf16.mxu0 0
  %6532 = vmatpush1.bf16.msra.mxu0 %v4682
  %6533 = vmatprep.subr.bf16.mxu0 0
  %6534 = vmatpush1.bf16.msra.mxu0 %v4683
  %6535 = vmatprep.subr.bf16.mxu0 0
  %6536 = vmatpush1.bf16.msra.mxu0 %v4684
  %6537 = vmatprep.subr.bf16.mxu0 0
  %6538 = vmatpush1.bf16.msra.mxu0 %v4685
  %6539 = vmatprep.subr.bf16.mxu0 0
  %6540 = vmatpush1.bf16.msra.mxu0 %v4686
  %6541 = vmatprep.subr.bf16.mxu0 0
  %6542 = vmatpush1.bf16.msra.mxu0 %v4687
  %6543 = vmatprep.subr.bf16.mxu0 0
  %6544 = vmatpush1.bf16.msra.mxu0 %v4688
  %6545 = vmatprep.subr.bf16.mxu0 0
  %6546 = vmatpush1.bf16.msra.mxu0 %v4689
  %6547 = vmatprep.subr.bf16.mxu0 0
  %6548 = vmatpush1.bf16.msra.mxu0 %v4690
  %6549 = vmatprep.subr.bf16.mxu0 0
  %6550 = vmatpush1.bf16.msra.mxu0 %v4691
  %6551 = vmatprep.subr.bf16.mxu0 0
  %6552 = vmatpush1.bf16.msra.mxu0 %v4692
  %6553 = vmatprep.subr.bf16.mxu0 0
  %6554 = vmatpush1.bf16.msra.mxu0 %v4693
  %6555 = vmatprep.mubr.bf16.mxu0 %v1793
  %6556 = vmatmul.mubr.bf16.gmra.mrb[0].mxu0 %v1792
  %v6557 = vpop.f32.mrb[0].mxu0
  %v6558 = vadd.f32 %v6509, %v6557
  %v6559 = vpop.f32.mrb[0].mxu0
  %v6560 = vpop.f32.mrb[0].mxu0
  %v6561 = vadd.f32 %v6512, %v6560
  %v6562 = vpop.f32.mrb[0].mxu0
  %6563 = vmatprep.mubr.bf16.mxu0 %v1865
  %6564 = vmatmul.mubr.bf16.gmra.mrb[0].mxu0 %v1864
  %v6565 = vpop.f32.mrb[0].mxu0
  %v6566 = vadd.f32 %v6517, %v6565
  %v6567 = vpop.f32.mrb[0].mxu0
  %v6568 = vpop.f32.mrb[0].mxu0
  %v6569 = vadd.f32 %v6520, %v6568
  %v6570 = vpop.f32.mrb[0].mxu0
  %6571 = vdwg.mxu0
  %6572 = vmatprep.subr.bf16.mxu0 0
  %6573 = vmatpush1.bf16.msra.mxu0 %v4694
  %6574 = vmatprep.subr.bf16.mxu0 0
  %6575 = vmatpush1.bf16.msra.mxu0 %v4695
  %6576 = vmatprep.subr.bf16.mxu0 0
  %6577 = vmatpush1.bf16.msra.mxu0 %v4696
  %6578 = vmatprep.subr.bf16.mxu0 0
  %6579 = vmatpush1.bf16.msra.mxu0 %v4697
  %6580 = vmatprep.subr.bf16.mxu0 0
  %6581 = vmatpush1.bf16.msra.mxu0 %v4698
  %6582 = vmatprep.subr.bf16.mxu0 0
  %6583 = vmatpush1.bf16.msra.mxu0 %v4699
  %6584 = vmatprep.subr.bf16.mxu0 0
  %6585 = vmatpush1.bf16.msra.mxu0 %v4700
  %6586 = vmatprep.subr.bf16.mxu0 0
  %6587 = vmatpush1.bf16.msra.mxu0 %v4701
  %6588 = vmatprep.subr.bf16.mxu0 0
  %6589 = vmatpush1.bf16.msra.mxu0 %v4702
  %6590 = vmatprep.subr.bf16.mxu0 0
  %6591 = vmatpush1.bf16.msra.mxu0 %v4703
  %6592 = vmatprep.subr.bf16.mxu0 0
  %6593 = vmatpush1.bf16.msra.mxu0 %v4704
  %6594 = vmatprep.subr.bf16.mxu0 0
  %6595 = vmatpush1.bf16.msra.mxu0 %v4705
  %6596 = vmatprep.subr.bf16.mxu0 0
  %6597 = vmatpush1.bf16.msra.mxu0 %v4706
  %6598 = vmatprep.subr.bf16.mxu0 0
  %6599 = vmatpush1.bf16.msra.mxu0 %v4707
  %6600 = vmatprep.subr.bf16.mxu0 0
  %6601 = vmatpush1.bf16.msra.mxu0 %v4708
  %6602 = vmatprep.subr.bf16.mxu0 0
  %6603 = vmatpush1.bf16.msra.mxu0 %v4709
  %6604 = vmatprep.mubr.bf16.mxu0 %v1795
  %6605 = vmatmul.mubr.bf16.gmra.mrb[0].mxu0 %v1794
  %v6606 = vpop.f32.mrb[0].mxu0
  %v6607 = vadd.f32 %v6558, %v6606
  %v6608 = vpop.f32.mrb[0].mxu0
  %v6609 = vpop.f32.mrb[0].mxu0
  %v6610 = vadd.f32 %v6561, %v6609
  %v6611 = vpop.f32.mrb[0].mxu0
  %6612 = vmatprep.mubr.bf16.mxu0 %v1867
  %6613 = vmatmul.mubr.bf16.gmra.mrb[0].mxu0 %v1866
  %v6614 = vpop.f32.mrb[0].mxu0
  %v6615 = vadd.f32 %v6566, %v6614
  %v6616 = vpop.f32.mrb[0].mxu0
  %v6617 = vpop.f32.mrb[0].mxu0
  %v6618 = vadd.f32 %v6569, %v6617
  %v6619 = vpop.f32.mrb[0].mxu0
  %6620 = vdwg.mxu0
  %6621 = vmatprep.subr.bf16.mxu0 0
  %6622 = vmatpush1.bf16.msra.mxu0 %v4710
  %6623 = vmatprep.subr.bf16.mxu0 0
  %6624 = vmatpush1.bf16.msra.mxu0 %v4711
  %6625 = vmatprep.subr.bf16.mxu0 0
  %6626 = vmatpush1.bf16.msra.mxu0 %v4712
  %6627 = vmatprep.subr.bf16.mxu0 0
  %6628 = vmatpush1.bf16.msra.mxu0 %v4713
  %6629 = vmatprep.subr.bf16.mxu0 0
  %6630 = vmatpush1.bf16.msra.mxu0 %v4714
  %6631 = vmatprep.subr.bf16.mxu0 0
  %6632 = vmatpush1.bf16.msra.mxu0 %v4715
  %6633 = vmatprep.subr.bf16.mxu0 0
  %6634 = vmatpush1.bf16.msra.mxu0 %v4716
  %6635 = vmatprep.subr.bf16.mxu0 0
  %6636 = vmatpush1.bf16.msra.mxu0 %v4717
  %6637 = vmatprep.subr.bf16.mxu0 0
  %6638 = vmatpush1.bf16.msra.mxu0 %v4718
  %6639 = vmatprep.subr.bf16.mxu0 0
  %6640 = vmatpush1.bf16.msra.mxu0 %v4719
  %6641 = vmatprep.subr.bf16.mxu0 0
  %6642 = vmatpush1.bf16.msra.mxu0 %v4720
  %6643 = vmatprep.subr.bf16.mxu0 0
  %6644 = vmatpush1.bf16.msra.mxu0 %v4721
  %6645 = vmatprep.subr.bf16.mxu0 0
  %6646 = vmatpush1.bf16.msra.mxu0 %v4722
  %6647 = vmatprep.subr.bf16.mxu0 0
  %6648 = vmatpush1.bf16.msra.mxu0 %v4723
  %6649 = vmatprep.subr.bf16.mxu0 0
  %6650 = vmatpush1.bf16.msra.mxu0 %v4724
  %6651 = vmatprep.subr.bf16.mxu0 0
  %6652 = vmatpush1.bf16.msra.mxu0 %v4725
  %6653 = vmatprep.mubr.bf16.mxu0 %v1797
  %6654 = vmatmul.mubr.bf16.gmra.mrb[0].mxu0 %v1796
  %v6655 = vpop.f32.mrb[0].mxu0
  %v6656 = vadd.f32 %v6607, %v6655
  %v6657 = vpop.f32.mrb[0].mxu0
  %v6658 = vpop.f32.mrb[0].mxu0
  %v6659 = vadd.f32 %v6610, %v6658
  %v6660 = vpop.f32.mrb[0].mxu0
  %6661 = vmatprep.mubr.bf16.mxu0 %v1869
  %6662 = vmatmul.mubr.bf16.gmra.mrb[0].mxu0 %v1868
  %v6663 = vpop.f32.mrb[0].mxu0
  %v6664 = vadd.f32 %v6615, %v6663
  %v6665 = vpop.f32.mrb[0].mxu0
  %v6666 = vpop.f32.mrb[0].mxu0
  %v6667 = vadd.f32 %v6618, %v6666
  %v6668 = vpop.f32.mrb[0].mxu0
  %6669 = vdwg.mxu0
  %6670 = vmatprep.subr.bf16.mxu0 0
  %6671 = vmatpush1.bf16.msra.mxu0 %v4726
  %6672 = vmatprep.subr.bf16.mxu0 0
  %6673 = vmatpush1.bf16.msra.mxu0 %v4727
  %6674 = vmatprep.subr.bf16.mxu0 0
  %6675 = vmatpush1.bf16.msra.mxu0 %v4728
  %6676 = vmatprep.subr.bf16.mxu0 0
  %6677 = vmatpush1.bf16.msra.mxu0 %v4729
  %6678 = vmatprep.subr.bf16.mxu0 0
  %6679 = vmatpush1.bf16.msra.mxu0 %v4730
  %6680 = vmatprep.subr.bf16.mxu0 0
  %6681 = vmatpush1.bf16.msra.mxu0 %v4731
  %6682 = vmatprep.subr.bf16.mxu0 0
  %6683 = vmatpush1.bf16.msra.mxu0 %v4732
  %6684 = vmatprep.subr.bf16.mxu0 0
  %6685 = vmatpush1.bf16.msra.mxu0 %v4733
  %6686 = vmatprep.subr.bf16.mxu0 0
  %6687 = vmatpush1.bf16.msra.mxu0 %v4734
  %6688 = vmatprep.subr.bf16.mxu0 0
  %6689 = vmatpush1.bf16.msra.mxu0 %v4735
  %6690 = vmatprep.subr.bf16.mxu0 0
  %6691 = vmatpush1.bf16.msra.mxu0 %v4736
  %6692 = vmatprep.subr.bf16.mxu0 0
  %6693 = vmatpush1.bf16.msra.mxu0 %v4737
  %6694 = vmatprep.subr.bf16.mxu0 0
  %6695 = vmatpush1.bf16.msra.mxu0 %v4738
  %6696 = vmatprep.subr.bf16.mxu0 0
  %6697 = vmatpush1.bf16.msra.mxu0 %v4739
  %6698 = vmatprep.subr.bf16.mxu0 0
  %6699 = vmatpush1.bf16.msra.mxu0 %v4740
  %6700 = vmatprep.subr.bf16.mxu0 0
  %6701 = vmatpush1.bf16.msra.mxu0 %v4741
  %6702 = vmatprep.mubr.bf16.mxu0 %v1799
  %6703 = vmatmul.mubr.bf16.gmra.mrb[0].mxu0 %v1798
  %v6704 = vpop.f32.mrb[0].mxu0
  %v6705 = vadd.f32 %v6656, %v6704
  %v6706 = vpop.f32.mrb[0].mxu0
  %v6707 = vpop.f32.mrb[0].mxu0
  %v6708 = vadd.f32 %v6659, %v6707
  %v6709 = vpop.f32.mrb[0].mxu0
  %6710 = vmatprep.mubr.bf16.mxu0 %v1871
  %6711 = vmatmul.mubr.bf16.gmra.mrb[0].mxu0 %v1870
  %v6712 = vpop.f32.mrb[0].mxu0
  %v6713 = vadd.f32 %v6664, %v6712
  %v6714 = vpop.f32.mrb[0].mxu0
  %v6715 = vpop.f32.mrb[0].mxu0
  %v6716 = vadd.f32 %v6667, %v6715
  %v6717 = vpop.f32.mrb[0].mxu0
  %6718 = vdwg.mxu0
  %6719 = vmatprep.subr.bf16.mxu0 0
  %6720 = vmatpush1.bf16.msra.mxu0 %v4742
  %6721 = vmatprep.subr.bf16.mxu0 0
  %6722 = vmatpush1.bf16.msra.mxu0 %v4743
  %6723 = vmatprep.subr.bf16.mxu0 0
  %6724 = vmatpush1.bf16.msra.mxu0 %v4744
  %6725 = vmatprep.subr.bf16.mxu0 0
  %6726 = vmatpush1.bf16.msra.mxu0 %v4745
  %6727 = vmatprep.subr.bf16.mxu0 0
  %6728 = vmatpush1.bf16.msra.mxu0 %v4746
  %6729 = vmatprep.subr.bf16.mxu0 0
  %6730 = vmatpush1.bf16.msra.mxu0 %v4747
  %6731 = vmatprep.subr.bf16.mxu0 0
  %6732 = vmatpush1.bf16.msra.mxu0 %v4748
  %6733 = vmatprep.subr.bf16.mxu0 0
  %6734 = vmatpush1.bf16.msra.mxu0 %v4749
  %6735 = vmatprep.subr.bf16.mxu0 0
  %6736 = vmatpush1.bf16.msra.mxu0 %v4750
  %6737 = vmatprep.subr.bf16.mxu0 0
  %6738 = vmatpush1.bf16.msra.mxu0 %v4751
  %6739 = vmatprep.subr.bf16.mxu0 0
  %6740 = vmatpush1.bf16.msra.mxu0 %v4752
  %6741 = vmatprep.subr.bf16.mxu0 0
  %6742 = vmatpush1.bf16.msra.mxu0 %v4753
  %6743 = vmatprep.subr.bf16.mxu0 0
  %6744 = vmatpush1.bf16.msra.mxu0 %v4754
  %6745 = vmatprep.subr.bf16.mxu0 0
  %6746 = vmatpush1.bf16.msra.mxu0 %v4755
  %6747 = vmatprep.subr.bf16.mxu0 0
  %6748 = vmatpush1.bf16.msra.mxu0 %v4756
  %6749 = vmatprep.subr.bf16.mxu0 0
  %6750 = vmatpush1.bf16.msra.mxu0 %v4757
  %6751 = vmatprep.mubr.bf16.mxu0 %v1801
  %6752 = vmatmul.mubr.bf16.gmra.mrb[0].mxu0 %v1800
  %v6753 = vpop.f32.mrb[0].mxu0
  %v6754 = vadd.f32 %v6705, %v6753
  %v6755 = vpop.f32.mrb[0].mxu0
  %v6756 = vpop.f32.mrb[0].mxu0
  %v6757 = vadd.f32 %v6708, %v6756
  %v6758 = vpop.f32.mrb[0].mxu0
  %6759 = vmatprep.mubr.bf16.mxu0 %v1873
  %6760 = vmatmul.mubr.bf16.gmra.mrb[0].mxu0 %v1872
  %v6761 = vpop.f32.mrb[0].mxu0
  %v6762 = vadd.f32 %v6713, %v6761
  %v6763 = vpop.f32.mrb[0].mxu0
  %v6764 = vpop.f32.mrb[0].mxu0
  %v6765 = vadd.f32 %v6716, %v6764
  %v6766 = vpop.f32.mrb[0].mxu0
  %6767 = vdwg.mxu0
  %6768 = vmatprep.subr.bf16.mxu0 0
  %6769 = vmatpush1.bf16.msra.mxu0 %v4758
  %6770 = vmatprep.subr.bf16.mxu0 0
  %6771 = vmatpush1.bf16.msra.mxu0 %v4759
  %6772 = vmatprep.subr.bf16.mxu0 0
  %6773 = vmatpush1.bf16.msra.mxu0 %v4760
  %6774 = vmatprep.subr.bf16.mxu0 0
  %6775 = vmatpush1.bf16.msra.mxu0 %v4761
  %6776 = vmatprep.subr.bf16.mxu0 0
  %6777 = vmatpush1.bf16.msra.mxu0 %v4762
  %6778 = vmatprep.subr.bf16.mxu0 0
  %6779 = vmatpush1.bf16.msra.mxu0 %v4763
  %6780 = vmatprep.subr.bf16.mxu0 0
  %6781 = vmatpush1.bf16.msra.mxu0 %v4764
  %6782 = vmatprep.subr.bf16.mxu0 0
  %6783 = vmatpush1.bf16.msra.mxu0 %v4765
  %6784 = vmatprep.subr.bf16.mxu0 0
  %6785 = vmatpush1.bf16.msra.mxu0 %v4766
  %6786 = vmatprep.subr.bf16.mxu0 0
  %6787 = vmatpush1.bf16.msra.mxu0 %v4767
  %6788 = vmatprep.subr.bf16.mxu0 0
  %6789 = vmatpush1.bf16.msra.mxu0 %v4768
  %6790 = vmatprep.subr.bf16.mxu0 0
  %6791 = vmatpush1.bf16.msra.mxu0 %v4769
  %6792 = vmatprep.subr.bf16.mxu0 0
  %6793 = vmatpush1.bf16.msra.mxu0 %v4770
  %6794 = vmatprep.subr.bf16.mxu0 0
  %6795 = vmatpush1.bf16.msra.mxu0 %v4771
  %6796 = vmatprep.subr.bf16.mxu0 0
  %6797 = vmatpush1.bf16.msra.mxu0 %v4772
  %6798 = vmatprep.subr.bf16.mxu0 0
  %6799 = vmatpush1.bf16.msra.mxu0 %v4773
  %6800 = vmatprep.mubr.bf16.mxu0 %v1803
  %6801 = vmatmul.mubr.bf16.gmra.mrb[0].mxu0 %v1802
  %v6802 = vpop.f32.mrb[0].mxu0
  %v6803 = vadd.f32 %v6754, %v6802
  %v6804 = vpop.f32.mrb[0].mxu0
  %v6805 = vpop.f32.mrb[0].mxu0
  %v6806 = vadd.f32 %v6757, %v6805
  %v6807 = vpop.f32.mrb[0].mxu0
  %6808 = vmatprep.mubr.bf16.mxu0 %v1875
  %6809 = vmatmul.mubr.bf16.gmra.mrb[0].mxu0 %v1874
  %v6810 = vpop.f32.mrb[0].mxu0
  %v6811 = vadd.f32 %v6762, %v6810
  %v6812 = vpop.f32.mrb[0].mxu0
  %v6813 = vpop.f32.mrb[0].mxu0
  %v6814 = vadd.f32 %v6765, %v6813
  %v6815 = vpop.f32.mrb[0].mxu0
  %6816 = vdwg.mxu0
  %6817 = vmatprep.subr.bf16.mxu0 0
  %6818 = vmatpush1.bf16.msra.mxu0 %v4774
  %6819 = vmatprep.subr.bf16.mxu0 0
  %6820 = vmatpush1.bf16.msra.mxu0 %v4775
  %6821 = vmatprep.subr.bf16.mxu0 0
  %6822 = vmatpush1.bf16.msra.mxu0 %v4776
  %6823 = vmatprep.subr.bf16.mxu0 0
  %6824 = vmatpush1.bf16.msra.mxu0 %v4777
  %6825 = vmatprep.subr.bf16.mxu0 0
  %6826 = vmatpush1.bf16.msra.mxu0 %v4778
  %6827 = vmatprep.subr.bf16.mxu0 0
  %6828 = vmatpush1.bf16.msra.mxu0 %v4779
  %6829 = vmatprep.subr.bf16.mxu0 0
  %6830 = vmatpush1.bf16.msra.mxu0 %v4780
  %6831 = vmatprep.subr.bf16.mxu0 0
  %6832 = vmatpush1.bf16.msra.mxu0 %v4781
  %6833 = vmatprep.subr.bf16.mxu0 0
  %6834 = vmatpush1.bf16.msra.mxu0 %v4782
  %6835 = vmatprep.subr.bf16.mxu0 0
  %6836 = vmatpush1.bf16.msra.mxu0 %v4783
  %6837 = vmatprep.subr.bf16.mxu0 0
  %6838 = vmatpush1.bf16.msra.mxu0 %v4784
  %6839 = vmatprep.subr.bf16.mxu0 0
  %6840 = vmatpush1.bf16.msra.mxu0 %v4785
  %6841 = vmatprep.subr.bf16.mxu0 0
  %6842 = vmatpush1.bf16.msra.mxu0 %v4786
  %6843 = vmatprep.subr.bf16.mxu0 0
  %6844 = vmatpush1.bf16.msra.mxu0 %v4787
  %6845 = vmatprep.subr.bf16.mxu0 0
  %6846 = vmatpush1.bf16.msra.mxu0 %v4788
  %6847 = vmatprep.subr.bf16.mxu0 0
  %6848 = vmatpush1.bf16.msra.mxu0 %v4789
  %6849 = vmatprep.mubr.bf16.mxu0 %v1805
  %6850 = vmatmul.mubr.bf16.gmra.mrb[0].mxu0 %v1804
  %v6851 = vpop.f32.mrb[0].mxu0
  %v6852 = vadd.f32 %v6803, %v6851
  %v6853 = vpop.f32.mrb[0].mxu0
  %v6854 = vpop.f32.mrb[0].mxu0
  %v6855 = vadd.f32 %v6806, %v6854
  %v6856 = vpop.f32.mrb[0].mxu0
  %6857 = vmatprep.mubr.bf16.mxu0 %v1877
  %6858 = vmatmul.mubr.bf16.gmra.mrb[0].mxu0 %v1876
  %v6859 = vpop.f32.mrb[0].mxu0
  %v6860 = vadd.f32 %v6811, %v6859
  %v6861 = vpop.f32.mrb[0].mxu0
  %v6862 = vpop.f32.mrb[0].mxu0
  %v6863 = vadd.f32 %v6814, %v6862
  %v6864 = vpop.f32.mrb[0].mxu0
  %6865 = vdwg.mxu0
  %6866 = vmatprep.subr.bf16.mxu0 0
  %6867 = vmatpush1.bf16.msra.mxu0 %v4790
  %6868 = vmatprep.subr.bf16.mxu0 0
  %6869 = vmatpush1.bf16.msra.mxu0 %v4791
  %6870 = vmatprep.subr.bf16.mxu0 0
  %6871 = vmatpush1.bf16.msra.mxu0 %v4792
  %6872 = vmatprep.subr.bf16.mxu0 0
  %6873 = vmatpush1.bf16.msra.mxu0 %v4793
  %6874 = vmatprep.subr.bf16.mxu0 0
  %6875 = vmatpush1.bf16.msra.mxu0 %v4794
  %6876 = vmatprep.subr.bf16.mxu0 0
  %6877 = vmatpush1.bf16.msra.mxu0 %v4795
  %6878 = vmatprep.subr.bf16.mxu0 0
  %6879 = vmatpush1.bf16.msra.mxu0 %v4796
  %6880 = vmatprep.subr.bf16.mxu0 0
  %6881 = vmatpush1.bf16.msra.mxu0 %v4797
  %6882 = vmatprep.subr.bf16.mxu0 0
  %6883 = vmatpush1.bf16.msra.mxu0 %v4798
  %6884 = vmatprep.subr.bf16.mxu0 0
  %6885 = vmatpush1.bf16.msra.mxu0 %v4799
  %6886 = vmatprep.subr.bf16.mxu0 0
  %6887 = vmatpush1.bf16.msra.mxu0 %v4800
  %6888 = vmatprep.subr.bf16.mxu0 0
  %6889 = vmatpush1.bf16.msra.mxu0 %v4801
  %6890 = vmatprep.subr.bf16.mxu0 0
  %6891 = vmatpush1.bf16.msra.mxu0 %v4802
  %6892 = vmatprep.subr.bf16.mxu0 0
  %6893 = vmatpush1.bf16.msra.mxu0 %v4803
  %6894 = vmatprep.subr.bf16.mxu0 0
  %6895 = vmatpush1.bf16.msra.mxu0 %v4804
  %6896 = vmatprep.subr.bf16.mxu0 0
  %6897 = vmatpush1.bf16.msra.mxu0 %v4805
  %6898 = vmatprep.mubr.bf16.mxu0 %v1807
  %6899 = vmatmul.mubr.bf16.gmra.mrb[0].mxu0 %v1806
  %v6900 = vpop.f32.mrb[0].mxu0
  %v6901 = vadd.f32 %v6852, %v6900
  %v6902 = vpop.f32.mrb[0].mxu0
  %v6903 = vpop.f32.mrb[0].mxu0
  %v6904 = vadd.f32 %v6855, %v6903
  %v6905 = vpop.f32.mrb[0].mxu0
  %6906 = vmatprep.mubr.bf16.mxu0 %v1879
  %6907 = vmatmul.mubr.bf16.gmra.mrb[0].mxu0 %v1878
  %v6908 = vpop.f32.mrb[0].mxu0
  %v6909 = vadd.f32 %v6860, %v6908
  %v6910 = vpop.f32.mrb[0].mxu0
  %v6911 = vpop.f32.mrb[0].mxu0
  %v6912 = vadd.f32 %v6863, %v6911
  %v6913 = vpop.f32.mrb[0].mxu0
  %6914 = vdwg.mxu0
  %6915 = vmatprep.subr.bf16.mxu0 0
  %6916 = vmatpush1.bf16.msra.mxu0 %v4806
  %6917 = vmatprep.subr.bf16.mxu0 0
  %6918 = vmatpush1.bf16.msra.mxu0 %v4807
  %6919 = vmatprep.subr.bf16.mxu0 0
  %6920 = vmatpush1.bf16.msra.mxu0 %v4808
  %6921 = vmatprep.subr.bf16.mxu0 0
  %6922 = vmatpush1.bf16.msra.mxu0 %v4809
  %6923 = vmatprep.subr.bf16.mxu0 0
  %6924 = vmatpush1.bf16.msra.mxu0 %v4810
  %6925 = vmatprep.subr.bf16.mxu0 0
  %6926 = vmatpush1.bf16.msra.mxu0 %v4811
  %6927 = vmatprep.subr.bf16.mxu0 0
  %6928 = vmatpush1.bf16.msra.mxu0 %v4812
  %6929 = vmatprep.subr.bf16.mxu0 0
  %6930 = vmatpush1.bf16.msra.mxu0 %v4813
  %6931 = vmatprep.subr.bf16.mxu0 0
  %6932 = vmatpush1.bf16.msra.mxu0 %v4814
  %6933 = vmatprep.subr.bf16.mxu0 0
  %6934 = vmatpush1.bf16.msra.mxu0 %v4815
  %6935 = vmatprep.subr.bf16.mxu0 0
  %6936 = vmatpush1.bf16.msra.mxu0 %v4816
  %6937 = vmatprep.subr.bf16.mxu0 0
  %6938 = vmatpush1.bf16.msra.mxu0 %v4817
  %6939 = vmatprep.subr.bf16.mxu0 0
  %6940 = vmatpush1.bf16.msra.mxu0 %v4818
  %6941 = vmatprep.subr.bf16.mxu0 0
  %6942 = vmatpush1.bf16.msra.mxu0 %v4819
  %6943 = vmatprep.subr.bf16.mxu0 0
  %6944 = vmatpush1.bf16.msra.mxu0 %v4820
  %6945 = vmatprep.subr.bf16.mxu0 0
  %6946 = vmatpush1.bf16.msra.mxu0 %v4821
  %6947 = vmatprep.mubr.bf16.mxu0 %v1809
  %6948 = vmatmul.mubr.bf16.gmra.mrb[0].mxu0 %v1808
  %v6949 = vpop.f32.mrb[0].mxu0
  %v6950 = vadd.f32 %v6901, %v6949
  %v6951 = vpop.f32.mrb[0].mxu0
  %v6952 = vpop.f32.mrb[0].mxu0
  %v6953 = vadd.f32 %v6904, %v6952
  %v6954 = vpop.f32.mrb[0].mxu0
  %6955 = vmatprep.mubr.bf16.mxu0 %v1881
  %6956 = vmatmul.mubr.bf16.gmra.mrb[0].mxu0 %v1880
  %v6957 = vpop.f32.mrb[0].mxu0
  %v6958 = vadd.f32 %v6909, %v6957
  %v6959 = vpop.f32.mrb[0].mxu0
  %v6960 = vpop.f32.mrb[0].mxu0
  %v6961 = vadd.f32 %v6912, %v6960
  %v6962 = vpop.f32.mrb[0].mxu0
  %6963 = vdwg.mxu0
  %6964 = vmatprep.subr.bf16.mxu0 0
  %6965 = vmatpush1.bf16.msra.mxu0 %v4822
  %6966 = vmatprep.subr.bf16.mxu0 0
  %6967 = vmatpush1.bf16.msra.mxu0 %v4823
  %6968 = vmatprep.subr.bf16.mxu0 0
  %6969 = vmatpush1.bf16.msra.mxu0 %v4824
  %6970 = vmatprep.subr.bf16.mxu0 0
  %6971 = vmatpush1.bf16.msra.mxu0 %v4825
  %6972 = vmatprep.subr.bf16.mxu0 0
  %6973 = vmatpush1.bf16.msra.mxu0 %v4826
  %6974 = vmatprep.subr.bf16.mxu0 0
  %6975 = vmatpush1.bf16.msra.mxu0 %v4827
  %6976 = vmatprep.subr.bf16.mxu0 0
  %6977 = vmatpush1.bf16.msra.mxu0 %v4828
  %6978 = vmatprep.subr.bf16.mxu0 0
  %6979 = vmatpush1.bf16.msra.mxu0 %v4829
  %6980 = vmatprep.subr.bf16.mxu0 0
  %6981 = vmatpush1.bf16.msra.mxu0 %v4830
  %6982 = vmatprep.subr.bf16.mxu0 0
  %6983 = vmatpush1.bf16.msra.mxu0 %v4831
  %6984 = vmatprep.subr.bf16.mxu0 0
  %6985 = vmatpush1.bf16.msra.mxu0 %v4832
  %6986 = vmatprep.subr.bf16.mxu0 0
  %6987 = vmatpush1.bf16.msra.mxu0 %v4833
  %6988 = vmatprep.subr.bf16.mxu0 0
  %6989 = vmatpush1.bf16.msra.mxu0 %v4834
  %6990 = vmatprep.subr.bf16.mxu0 0
  %6991 = vmatpush1.bf16.msra.mxu0 %v4835
  %6992 = vmatprep.subr.bf16.mxu0 0
  %6993 = vmatpush1.bf16.msra.mxu0 %v4836
  %6994 = vmatprep.subr.bf16.mxu0 0
  %6995 = vmatpush1.bf16.msra.mxu0 %v4837
  %6996 = vmatprep.mubr.bf16.mxu0 %v1811
  %6997 = vmatmul.mubr.bf16.gmra.mrb[0].mxu0 %v1810
  %v6998 = vpop.f32.mrb[0].mxu0
  %v6999 = vadd.f32 %v6950, %v6998
  %v7000 = vpop.f32.mrb[0].mxu0
  %v7001 = vpop.f32.mrb[0].mxu0
  %v7002 = vadd.f32 %v6953, %v7001
  %v7003 = vpop.f32.mrb[0].mxu0
  %7004 = vmatprep.mubr.bf16.mxu0 %v1883
  %7005 = vmatmul.mubr.bf16.gmra.mrb[0].mxu0 %v1882
  %v7006 = vpop.f32.mrb[0].mxu0
  %v7007 = vadd.f32 %v6958, %v7006
  %v7008 = vpop.f32.mrb[0].mxu0
  %v7009 = vpop.f32.mrb[0].mxu0
  %v7010 = vadd.f32 %v6961, %v7009
  %v7011 = vpop.f32.mrb[0].mxu0
  %7012 = vdwg.mxu0
  %7013 = vmatprep.subr.bf16.mxu0 0
  %7014 = vmatpush1.bf16.msra.mxu0 %v4838
  %7015 = vmatprep.subr.bf16.mxu0 0
  %7016 = vmatpush1.bf16.msra.mxu0 %v4839
  %7017 = vmatprep.subr.bf16.mxu0 0
  %7018 = vmatpush1.bf16.msra.mxu0 %v4840
  %7019 = vmatprep.subr.bf16.mxu0 0
  %7020 = vmatpush1.bf16.msra.mxu0 %v4841
  %7021 = vmatprep.subr.bf16.mxu0 0
  %7022 = vmatpush1.bf16.msra.mxu0 %v4842
  %7023 = vmatprep.subr.bf16.mxu0 0
  %7024 = vmatpush1.bf16.msra.mxu0 %v4843
  %7025 = vmatprep.subr.bf16.mxu0 0
  %7026 = vmatpush1.bf16.msra.mxu0 %v4844
  %7027 = vmatprep.subr.bf16.mxu0 0
  %7028 = vmatpush1.bf16.msra.mxu0 %v4845
  %7029 = vmatprep.subr.bf16.mxu0 0
  %7030 = vmatpush1.bf16.msra.mxu0 %v4846
  %7031 = vmatprep.subr.bf16.mxu0 0
  %7032 = vmatpush1.bf16.msra.mxu0 %v4847
  %7033 = vmatprep.subr.bf16.mxu0 0
  %7034 = vmatpush1.bf16.msra.mxu0 %v4848
  %7035 = vmatprep.subr.bf16.mxu0 0
  %7036 = vmatpush1.bf16.msra.mxu0 %v4849
  %7037 = vmatprep.subr.bf16.mxu0 0
  %7038 = vmatpush1.bf16.msra.mxu0 %v4850
  %7039 = vmatprep.subr.bf16.mxu0 0
  %7040 = vmatpush1.bf16.msra.mxu0 %v4851
  %7041 = vmatprep.subr.bf16.mxu0 0
  %7042 = vmatpush1.bf16.msra.mxu0 %v4852
  %7043 = vmatprep.subr.bf16.mxu0 0
  %7044 = vmatpush1.bf16.msra.mxu0 %v4853
  %7045 = vmatprep.mubr.bf16.mxu0 %v1813
  %7046 = vmatmul.mubr.bf16.gmra.mrb[0].mxu0 %v1812
  %v7047 = vpop.f32.mrb[0].mxu0
  %v7048 = vadd.f32 %v6999, %v7047
  %v7049 = vpop.f32.mrb[0].mxu0
  %v7050 = vpop.f32.mrb[0].mxu0
  %v7051 = vadd.f32 %v7002, %v7050
  %v7052 = vpop.f32.mrb[0].mxu0
  %7053 = vmatprep.mubr.bf16.mxu0 %v1885
  %7054 = vmatmul.mubr.bf16.gmra.mrb[0].mxu0 %v1884
  %v7055 = vpop.f32.mrb[0].mxu0
  %v7056 = vadd.f32 %v7007, %v7055
  %v7057 = vpop.f32.mrb[0].mxu0
  %v7058 = vpop.f32.mrb[0].mxu0
  %v7059 = vadd.f32 %v7010, %v7058
  %v7060 = vpop.f32.mrb[0].mxu0
  %7061 = vdwg.mxu0
  %7062 = vmatprep.subr.bf16.mxu0 0
  %7063 = vmatpush1.bf16.msra.mxu0 %v4854
  %7064 = vmatprep.subr.bf16.mxu0 0
  %7065 = vmatpush1.bf16.msra.mxu0 %v4855
  %7066 = vmatprep.subr.bf16.mxu0 0
  %7067 = vmatpush1.bf16.msra.mxu0 %v4856
  %7068 = vmatprep.subr.bf16.mxu0 0
  %7069 = vmatpush1.bf16.msra.mxu0 %v4857
  %7070 = vmatprep.subr.bf16.mxu0 0
  %7071 = vmatpush1.bf16.msra.mxu0 %v4858
  %7072 = vmatprep.subr.bf16.mxu0 0
  %7073 = vmatpush1.bf16.msra.mxu0 %v4859
  %7074 = vmatprep.subr.bf16.mxu0 0
  %7075 = vmatpush1.bf16.msra.mxu0 %v4860
  %7076 = vmatprep.subr.bf16.mxu0 0
  %7077 = vmatpush1.bf16.msra.mxu0 %v4861
  %7078 = vmatprep.subr.bf16.mxu0 0
  %7079 = vmatpush1.bf16.msra.mxu0 %v4862
  %7080 = vmatprep.subr.bf16.mxu0 0
  %7081 = vmatpush1.bf16.msra.mxu0 %v4863
  %7082 = vmatprep.subr.bf16.mxu0 0
  %7083 = vmatpush1.bf16.msra.mxu0 %v4864
  %7084 = vmatprep.subr.bf16.mxu0 0
  %7085 = vmatpush1.bf16.msra.mxu0 %v4865
  %7086 = vmatprep.subr.bf16.mxu0 0
  %7087 = vmatpush1.bf16.msra.mxu0 %v4866
  %7088 = vmatprep.subr.bf16.mxu0 0
  %7089 = vmatpush1.bf16.msra.mxu0 %v4867
  %7090 = vmatprep.subr.bf16.mxu0 0
  %7091 = vmatpush1.bf16.msra.mxu0 %v4868
  %7092 = vmatprep.subr.bf16.mxu0 0
  %7093 = vmatpush1.bf16.msra.mxu0 %v4869
  %7094 = vmatprep.mubr.bf16.mxu0 %v1815
  %7095 = vmatmul.mubr.bf16.gmra.mrb[0].mxu0 %v1814
  %v7096 = vpop.f32.mrb[0].mxu0
  %v7097 = vadd.f32 %v7048, %v7096
  %v7098 = vpop.f32.mrb[0].mxu0
  %v7099 = vpop.f32.mrb[0].mxu0
  %v7100 = vadd.f32 %v7051, %v7099
  %v7101 = vpop.f32.mrb[0].mxu0
  %7102 = vmatprep.mubr.bf16.mxu0 %v1887
  %7103 = vmatmul.mubr.bf16.gmra.mrb[0].mxu0 %v1886
  %v7104 = vpop.f32.mrb[0].mxu0
  %v7105 = vadd.f32 %v7056, %v7104
  %v7106 = vpop.f32.mrb[0].mxu0
  %v7107 = vpop.f32.mrb[0].mxu0
  %v7108 = vadd.f32 %v7059, %v7107
  %v7109 = vpop.f32.mrb[0].mxu0
  %7110 = vdwg.mxu0
  %7111 = vmatprep.subr.bf16.mxu0 0
  %7112 = vmatpush1.bf16.msra.mxu0 %v4870
  %7113 = vmatprep.subr.bf16.mxu0 0
  %7114 = vmatpush1.bf16.msra.mxu0 %v4871
  %7115 = vmatprep.subr.bf16.mxu0 0
  %7116 = vmatpush1.bf16.msra.mxu0 %v4872
  %7117 = vmatprep.subr.bf16.mxu0 0
  %7118 = vmatpush1.bf16.msra.mxu0 %v4873
  %7119 = vmatprep.subr.bf16.mxu0 0
  %7120 = vmatpush1.bf16.msra.mxu0 %v4874
  %7121 = vmatprep.subr.bf16.mxu0 0
  %7122 = vmatpush1.bf16.msra.mxu0 %v4875
  %7123 = vmatprep.subr.bf16.mxu0 0
  %7124 = vmatpush1.bf16.msra.mxu0 %v4876
  %7125 = vmatprep.subr.bf16.mxu0 0
  %7126 = vmatpush1.bf16.msra.mxu0 %v4877
  %7127 = vmatprep.subr.bf16.mxu0 0
  %7128 = vmatpush1.bf16.msra.mxu0 %v4878
  %7129 = vmatprep.subr.bf16.mxu0 0
  %7130 = vmatpush1.bf16.msra.mxu0 %v4879
  %7131 = vmatprep.subr.bf16.mxu0 0
  %7132 = vmatpush1.bf16.msra.mxu0 %v4880
  %7133 = vmatprep.subr.bf16.mxu0 0
  %7134 = vmatpush1.bf16.msra.mxu0 %v4881
  %7135 = vmatprep.subr.bf16.mxu0 0
  %7136 = vmatpush1.bf16.msra.mxu0 %v4882
  %7137 = vmatprep.subr.bf16.mxu0 0
  %7138 = vmatpush1.bf16.msra.mxu0 %v4883
  %7139 = vmatprep.subr.bf16.mxu0 0
  %7140 = vmatpush1.bf16.msra.mxu0 %v4884
  %7141 = vmatprep.subr.bf16.mxu0 0
  %7142 = vmatpush1.bf16.msra.mxu0 %v4885
  %7143 = vmatprep.mubr.bf16.mxu0 %v1817
  %7144 = vmatmul.mubr.bf16.gmra.mrb[0].mxu0 %v1816
  %v7145 = vpop.f32.mrb[0].mxu0
  %v7146 = vadd.f32 %v7097, %v7145
  %v7147 = vpop.f32.mrb[0].mxu0
  %v7148 = vpop.f32.mrb[0].mxu0
  %v7149 = vadd.f32 %v7100, %v7148
  %v7150 = vpop.f32.mrb[0].mxu0
  %7151 = vmatprep.mubr.bf16.mxu0 %v1889
  %7152 = vmatmul.mubr.bf16.gmra.mrb[0].mxu0 %v1888
  %v7153 = vpop.f32.mrb[0].mxu0
  %v7154 = vadd.f32 %v7105, %v7153
  %v7155 = vpop.f32.mrb[0].mxu0
  %v7156 = vpop.f32.mrb[0].mxu0
  %v7157 = vadd.f32 %v7108, %v7156
  %v7158 = vpop.f32.mrb[0].mxu0
  %7159 = vdwg.mxu0
  %7160 = vmatprep.subr.bf16.mxu0 0
  %7161 = vmatpush1.bf16.msra.mxu0 %v4886
  %7162 = vmatprep.subr.bf16.mxu0 0
  %7163 = vmatpush1.bf16.msra.mxu0 %v4887
  %7164 = vmatprep.subr.bf16.mxu0 0
  %7165 = vmatpush1.bf16.msra.mxu0 %v4888
  %7166 = vmatprep.subr.bf16.mxu0 0
  %7167 = vmatpush1.bf16.msra.mxu0 %v4889
  %7168 = vmatprep.subr.bf16.mxu0 0
  %7169 = vmatpush1.bf16.msra.mxu0 %v4890
  %7170 = vmatprep.subr.bf16.mxu0 0
  %7171 = vmatpush1.bf16.msra.mxu0 %v4891
  %7172 = vmatprep.subr.bf16.mxu0 0
  %7173 = vmatpush1.bf16.msra.mxu0 %v4892
  %7174 = vmatprep.subr.bf16.mxu0 0
  %7175 = vmatpush1.bf16.msra.mxu0 %v4893
  %7176 = vmatprep.subr.bf16.mxu0 0
  %7177 = vmatpush1.bf16.msra.mxu0 %v4894
  %7178 = vmatprep.subr.bf16.mxu0 0
  %7179 = vmatpush1.bf16.msra.mxu0 %v4895
  %7180 = vmatprep.subr.bf16.mxu0 0
  %7181 = vmatpush1.bf16.msra.mxu0 %v4896
  %7182 = vmatprep.subr.bf16.mxu0 0
  %7183 = vmatpush1.bf16.msra.mxu0 %v4897
  %7184 = vmatprep.subr.bf16.mxu0 0
  %7185 = vmatpush1.bf16.msra.mxu0 %v4898
  %7186 = vmatprep.subr.bf16.mxu0 0
  %7187 = vmatpush1.bf16.msra.mxu0 %v4899
  %7188 = vmatprep.subr.bf16.mxu0 0
  %7189 = vmatpush1.bf16.msra.mxu0 %v4900
  %7190 = vmatprep.subr.bf16.mxu0 0
  %7191 = vmatpush1.bf16.msra.mxu0 %v4901
  %7192 = vmatprep.mubr.bf16.mxu0 %v1819
  %7193 = vmatmul.mubr.bf16.gmra.mrb[0].mxu0 %v1818
  %v7194 = vpop.f32.mrb[0].mxu0
  %v7195 = vadd.f32 %v7146, %v7194
  %v7196 = vpop.f32.mrb[0].mxu0
  %v7197 = vpop.f32.mrb[0].mxu0
  %v7198 = vadd.f32 %v7149, %v7197
  %v7199 = vpop.f32.mrb[0].mxu0
  %7200 = vmatprep.mubr.bf16.mxu0 %v1891
  %7201 = vmatmul.mubr.bf16.gmra.mrb[0].mxu0 %v1890
  %v7202 = vpop.f32.mrb[0].mxu0
  %v7203 = vadd.f32 %v7154, %v7202
  %v7204 = vpop.f32.mrb[0].mxu0
  %v7205 = vpop.f32.mrb[0].mxu0
  %v7206 = vadd.f32 %v7157, %v7205
  %v7207 = vpop.f32.mrb[0].mxu0
  %7208 = vdwg.mxu0
  %7209 = vmatprep.subr.bf16.mxu0 0
  %7210 = vmatpush1.bf16.msra.mxu0 %v4902
  %7211 = vmatprep.subr.bf16.mxu0 0
  %7212 = vmatpush1.bf16.msra.mxu0 %v4903
  %7213 = vmatprep.subr.bf16.mxu0 0
  %7214 = vmatpush1.bf16.msra.mxu0 %v4904
  %7215 = vmatprep.subr.bf16.mxu0 0
  %7216 = vmatpush1.bf16.msra.mxu0 %v4905
  %7217 = vmatprep.subr.bf16.mxu0 0
  %7218 = vmatpush1.bf16.msra.mxu0 %v4906
  %7219 = vmatprep.subr.bf16.mxu0 0
  %7220 = vmatpush1.bf16.msra.mxu0 %v4907
  %7221 = vmatprep.subr.bf16.mxu0 0
  %7222 = vmatpush1.bf16.msra.mxu0 %v4908
  %7223 = vmatprep.subr.bf16.mxu0 0
  %7224 = vmatpush1.bf16.msra.mxu0 %v4909
  %7225 = vmatprep.subr.bf16.mxu0 0
  %7226 = vmatpush1.bf16.msra.mxu0 %v4910
  %7227 = vmatprep.subr.bf16.mxu0 0
  %7228 = vmatpush1.bf16.msra.mxu0 %v4911
  %7229 = vmatprep.subr.bf16.mxu0 0
  %7230 = vmatpush1.bf16.msra.mxu0 %v4912
  %7231 = vmatprep.subr.bf16.mxu0 0
  %7232 = vmatpush1.bf16.msra.mxu0 %v4913
  %7233 = vmatprep.subr.bf16.mxu0 0
  %7234 = vmatpush1.bf16.msra.mxu0 %v4914
  %7235 = vmatprep.subr.bf16.mxu0 0
  %7236 = vmatpush1.bf16.msra.mxu0 %v4915
  %7237 = vmatprep.subr.bf16.mxu0 0
  %7238 = vmatpush1.bf16.msra.mxu0 %v4916
  %7239 = vmatprep.subr.bf16.mxu0 0
  %7240 = vmatpush1.bf16.msra.mxu0 %v4917
  %7241 = vmatprep.mubr.bf16.mxu0 %v1821
  %7242 = vmatmul.mubr.bf16.gmra.mrb[0].mxu0 %v1820
  %v7243 = vpop.f32.mrb[0].mxu0
  %v7244 = vadd.f32 %v7195, %v7243
  %v7245 = vpop.f32.mrb[0].mxu0
  %v7246 = vpop.f32.mrb[0].mxu0
  %v7247 = vadd.f32 %v7198, %v7246
  %v7248 = vpop.f32.mrb[0].mxu0
  %7249 = vmatprep.mubr.bf16.mxu0 %v1893
  %7250 = vmatmul.mubr.bf16.gmra.mrb[0].mxu0 %v1892
  %v7251 = vpop.f32.mrb[0].mxu0
  %v7252 = vadd.f32 %v7203, %v7251
  %v7253 = vpop.f32.mrb[0].mxu0
  %v7254 = vpop.f32.mrb[0].mxu0
  %v7255 = vadd.f32 %v7206, %v7254
  %v7256 = vpop.f32.mrb[0].mxu0
  %7257 = vdwg.mxu0
  %v7258 = vmax.f32 %v7244, 0.0
  %v7259 = vmax.f32 %v7247, 0.0
  %v7260 = vmax.f32 %v7252, 0.0
  %v7261 = vmax.f32 %v7255, 0.0
  %7262 = vst [vmem:[%s3] sm:$0xff] %v7258
  %7263 = vst [vmem:[%s3 + $0x8] sm:$0xff] %v7259
  %7264 = vst [vmem:[%s3 + $0x10] sm:$0xff] %v7260
  %7265 = vst [vmem:[%s3 + $0x18] sm:$0xff] %v7261
  // Predicated region
  $region14: #{selector_forward.5} parent=0 // pred_check
    _
  $region15: #{selector_forward.5} parent=0 // pred_check_branch
    %7267 = sbr.rel (0) target = $region17
  $region16: #{selector_forward.5} parent=0 // pred_region
    _
  $region17: #{selector_forward.5} parent=0 // pred_fallthru
    _
  // Predicated region
  $region18: #{selector_forward.5} parent=0 // pred_check
    _
  $region19: #{selector_forward.5} parent=0 // pred_check_branch
    %7269 = sbr.rel (0) target = $region21
  $region20: #{selector_forward.5} parent=0 // pred_region
    _
  $region21: #{selector_forward.5} parent=0 // pred_fallthru
    _

</llo_original>
